<compile_context>
chip_gen: v7x
topology: tpu7x:2x2x1
jax: 0.10.0
libtpu: 0.0.40
codegen_flags: <defaults>
</compile_context>

<pallas_src>
import jax
import jax.numpy as jnp
import numpy as np
from jax.experimental import pallas as pl
from jax.experimental.pallas import tpu as pltpu

FP = 128  # lane-dense padded feature width (stem + all dense segments + padding)


def _softplus(x):
    # numerically stable softplus; matches torch.nn.functional.softplus
    return jnp.maximum(x, 0.0) + jnp.log(1.0 + jnp.exp(-jnp.abs(x)))


# Row indices inside the packed per-channel parameter table (one (1, FP) row each).
I_S0, I_B0, I_LMASK, I_S5, I_B5, I_FCW, I_FCB = range(7)


def _i_s1(i): return 7 + 4 * i
def _i_b1(i): return 8 + 4 * i
def _i_s2(i): return 9 + 4 * i
def _i_b2(i): return 10 + 4 * i
def _n_aff(n_layers): return 7 + 4 * n_layers


# ------------------------------ fused kernel ------------------------------

def _make_fused_kernel(H, W, BB, c4, n_layers, pad_rows):
    HW = H * W
    rows = BB * HW

    def kernel(x_ref, m_ref, w0_ref, aff_ref, w1_ref, w2_ref, o_ref,
               bpad_ref, imcol_ref):
        f32 = jnp.float32

        def aff(i, width=FP):
            return aff_ref[i:i + 1, :width]                    # (1, width)

        def sp(v):  # numerically stable softplus (exp goes to the EUP slot)
            return jnp.maximum(v, 0.0) + jnp.log(1.0 + jnp.exp(-jnp.abs(v)))

        # Zero ONLY the border rows of the flat bottleneck scratch (the interior
        # is fully rewritten every layer); borders make out-of-image 3x3 taps
        # read exact zeros instead of stale VMEM.
        bpad_ref[0:pad_rows, :] = jnp.zeros((pad_rows, c4), f32)
        bpad_ref[pad_rows + rows:2 * pad_rows + rows, :] = jnp.zeros((pad_rows, c4), f32)

        masks = m_ref[...]                                     # (rows, 8) border masks

        # ---- stem: 3x3 conv (wrapper im2col -> one MXU matmul) -> ActNorm ->
        #      SymmSoftplus, written straight into the 128-lane feature buffer.
        y0 = jnp.dot(x_ref[...], w0_ref[...], preferred_element_type=f32)   # (rows, FP)
        y0 = y0 * aff(I_S0) + aff(I_B0)
        # LMASK zeroes every lane beyond the stem segment so later dense
        # segments can be appended with a plain add (w2 owns its own columns).
        feat = (sp(y0) - 0.5 * y0) * aff(I_LMASK)              # (rows, FP), symm_softplus

        # ---- dense block --------------------------------------------------
        for li in range(n_layers):
            # norm1 -> softplus -> PosConv1x1 fused into ONE lane-dense matmul
            # over the whole padded feature buffer; dense connectivity is
            # encoded as zero rows of w1 (no per-segment slicing / concat).
            h1 = sp(feat * aff(_i_s1(li)) + aff(_i_b1(li)))                  # (rows, FP)
            bott = jnp.dot(h1, w1_ref[li], preferred_element_type=f32)       # (rows, c4)
            bott = sp(bott * aff(_i_s2(li), c4) + aff(_i_b2(li), c4))        # norm2 -> act2

            # PosConv2d 3x3 / pad=1: ONE aligned store of the bottleneck into
            # the flat zero-bordered scratch, nine contiguous shifted-window
            # reads (image-border masked) placed at their K offsets of the
            # im2col scratch, then a single K = 9*c4 matmul.
            bpad_ref[pad_rows:pad_rows + rows, :] = bott
            mcol = 0
            for dy in range(3):
                for dx in range(3):
                    k = dy * 3 + dx
                    s = (dy - 1) * W + (dx - 1)
                    if s == 0:
                        imcol_ref[:, k * c4:(k + 1) * c4] = bott
                    else:
                        win = bpad_ref[pad_rows + s:pad_rows + s + rows, :]  # (rows, c4)
                        imcol_ref[:, k * c4:(k + 1) * c4] = win * masks[:, mcol:mcol + 1]
                        mcol += 1
            # w2 columns already sit at this layer's output-lane offsets (all
            # other columns are zero) -> a plain add appends the new segment.
            feat = feat + jnp.dot(imcol_ref[...], w2_ref[li],
                                  preferred_element_type=f32)                # (rows, FP)

        # ---- head: norm5 -> ReLU -> global avg pool -> Linear(F, 1) --------
        yr = jnp.maximum(feat * aff(I_S5) + aff(I_B5), 0.0)    # (rows, FP)
        fcw = aff(I_FCW)
        fcb = aff(I_FCB)                                       # fcb at lane 0, rest 0
        inv_hw = 1.0 / float(HW)
        outs = []
        for b in range(BB):
            pooled = jnp.sum(yr[b * HW:(b + 1) * HW, :], axis=0,
                             keepdims=True) * inv_hw           # (1, FP)
            outs.append(jnp.sum(pooled * fcw + fcb, axis=1, keepdims=True))  # (1, 1)
        o_ref[...] = jnp.concatenate(outs, axis=0).reshape(BB, 1, 1)

    return kernel


# --------------------------------- wrapper --------------------------------

def _im2col_3x3(x):
    """(B, H, W, C) -> (B, H*W, 9*C) zero-padded 3x3 patches, (dy, dx)-major."""
    B, H, W, C = x.shape
    xp = jnp.pad(x, ((0, 0), (1, 1), (1, 1), (0, 0)))
    taps = [xp[:, dy:dy + H, dx:dx + W, :] for dy in range(3) for dx in range(3)]
    return jnp.stack(taps, axis=3).reshape(B, H * W, 9 * C)


def _pick_bb(B):
    """Images per grid step: batch several, but keep grid >= 2 for v7x megacore."""
    if B < 2:
        return 1
    for cand in range(min(4, B // 2), 0, -1):
        if B % cand == 0:
            return cand
    return 1


@jax.jit
def densenet_icnn_forward(x_nchw, params):
    # NCHW (PyTorch) -> NHWC so channels live on the 128-lane axis.
    x = jnp.transpose(x_nchw, (0, 2, 3, 1)).astype(jnp.float32)
    B, H, W, cin0 = x.shape
    HW = H * W
    layers = params["layers"]
    n_layers = len(layers)
    C0 = params["w0"].shape[-1]
    c4 = layers[0]["w1"].shape[1]
    g = layers[0]["w2"].shape[3]
    F = C0 + n_layers * g
    assert F <= FP and c4 <= FP, "feature widths > 128 lanes not supported"
    assert HW % 8 == 0, "H*W must be a multiple of 8 (sublane tiling)"

    BB = _pick_bb(B)
    grid = B // BB
    rows = BB * HW
    pad_rows = -(-(W + 1) // 8) * 8        # >= max 3x3 row shift, sublane aligned

    # ---- stem im2col (3x3 conv becomes a single MXU matmul) -----------------
    xcols = _im2col_3x3(x).reshape(B * HW, 9 * cin0)
    k9 = 9 * cin0
    KP = -(-k9 // 8) * 8
    if KP != k9:
        xcols = jnp.pad(xcols, ((0, 0), (0, KP - k9)))
    w0p = jnp.zeros((KP, FP), jnp.float32).at[:k9, :C0].set(
        params["w0"].reshape(k9, C0).astype(jnp.float32))

    # ---- image-border masks for the 8 shifted 3x3 taps (same for every block)
    r = jnp.arange(rows)
    xpos = r % W
    ypos = (r // W) % H
    mcols = []
    for dy in range(3):
        for dx in range(3):
            if dy == 1 and dx == 1:
                continue
            ok = ((xpos + dx - 1 >= 0) & (xpos + dx - 1 <= W - 1)
                  & (ypos + dy - 1 >= 0) & (ypos + dy - 1 <= H - 1))
            mcols.append(ok.astype(jnp.float32)[:, None])
    masks = jnp.concatenate(mcols, axis=1)                     # (rows, 8)

    # ---- packed per-channel rows: scales / biases / fc weight / lane mask ----
    def row(v, fill):
        v = jnp.asarray(v, jnp.float32).reshape(-1)
        pad = jnp.full((FP - v.shape[0],), fill, jnp.float32)
        return jnp.concatenate([v, pad])[None, :]

    n_aff = _n_aff(n_layers)
    n_aff_p = -(-n_aff // 8) * 8
    aff = [None] * n_aff
    aff[I_S0] = row(params["s0"], 1.0)
    aff[I_B0] = row(params["b0"], 0.0)
    aff[I_LMASK] = row(jnp.ones((C0,), jnp.float32), 0.0)
    aff[I_S5] = row(params["s5"], 1.0)
    aff[I_B5] = row(params["b5"], 0.0)
    aff[I_FCW] = row(params["fcw"], 0.0)
    aff[I_FCB] = row(params["fcb"], 0.0)
    for i, layer in enumerate(layers):
        aff[_i_s1(i)] = row(layer["s1"], 1.0)
        aff[_i_b1(i)] = row(layer["b1"], 0.0)
        aff[_i_s2(i)] = row(layer["s2"], 1.0)
        aff[_i_b2(i)] = row(layer["b2"], 0.0)
    aff_pack = jnp.concatenate(
        aff + [jnp.zeros((n_aff_p - n_aff, FP), jnp.float32)], axis=0)

    # ---- PosConv weight transforms hoisted out of the kernel (done once) ----
    w1_list, w2_list = [], []
    for i, layer in enumerate(layers):
        cin = C0 + i * g
        w1t = _softplus(jnp.asarray(layer["w1"], jnp.float32)) / float(cin)
        w1_list.append(jnp.zeros((FP, c4), jnp.float32).at[:cin, :].set(w1t))
        w2t = (_softplus(jnp.asarray(layer["w2"], jnp.float32))
               / float(9 * c4)).reshape(9 * c4, g)
        off = C0 + i * g
        w2_list.append(jnp.zeros((9 * c4, FP), jnp.float32)
                       .at[:, off:off + g].set(w2t))
    w1_all = jnp.stack(w1_list)                               # (n_layers, FP, c4)
    w2_all = jnp.stack(w2_list)                               # (n_layers, 9*c4, FP)

    out = pl.pallas_call(
        _make_fused_kernel(H, W, BB, c4, n_layers, pad_rows),
        grid=(grid,),
        in_specs=[
            pl.BlockSpec((rows, KP), lambda b: (b, 0)),            # per-step image rows
            pl.BlockSpec((rows, 8), lambda b: (0, 0)),             # tap border masks
            pl.BlockSpec((KP, FP), lambda b: (0, 0)),              # stem weights
            pl.BlockSpec((n_aff_p, FP), lambda b: (0, 0)),         # packed affine rows
            pl.BlockSpec((n_layers, FP, c4), lambda b: (0, 0, 0)),       # 1x1 weights
            pl.BlockSpec((n_layers, 9 * c4, FP), lambda b: (0, 0, 0)),   # 3x3 weights
        ],
        out_specs=pl.BlockSpec((BB, 1, 1), lambda b: (b, 0, 0)),
        out_shape=jax.ShapeDtypeStruct((B, 1, 1), jnp.float32),
        scratch_shapes=[
            pltpu.VMEM((2 * pad_rows + rows, c4), jnp.float32),    # flat bottleneck + borders
            pltpu.VMEM((rows, 9 * c4), jnp.float32),               # im2col for 3x3 PosConv
        ],
        compiler_params=pltpu.CompilerParams(
            dimension_semantics=("parallel",),
            vmem_limit_bytes=int(32 * 1024 * 1024)),
    )(xcols, masks, w0p, aff_pack, w1_all, w2_all)
    return out.reshape(B, 1)


# ---------------------- deterministic parameter init ----------------------

def init_params(key, dim=1, dimh=16, num_hidden_layers=2, bn_size=4,
                num_init_features=None):
    if num_init_features is None:
        num_init_features = dimh
    keys = iter(jax.random.split(key, 64))

    def nrm(shape, scale):
        return scale * jax.random.normal(next(keys), shape, dtype=jnp.float32)

    p = {}
    p["w0"] = nrm((3, 3, dim, num_init_features), 0.3)        # stem conv, HWIO
    p["s0"] = 1.0 + nrm((num_init_features,), 0.05)           # ActNorm scale
    p["b0"] = nrm((num_init_features,), 0.05)                 # ActNorm bias

    num_features = num_init_features
    layers = []
    for i in range(num_hidden_layers):
        cin = num_features + i * dimh
        layers.append({
            "s1": 1.0 + nrm((cin,), 0.05),
            "b1": nrm((cin,), 0.05),
            "w1": nrm((cin, bn_size * dimh), 0.3),            # PosConv 1x1
            "s2": 1.0 + nrm((bn_size * dimh,), 0.05),
            "b2": nrm((bn_size * dimh,), 0.05),
            "w2": nrm((3, 3, bn_size * dimh, dimh), 0.3),     # PosConv 3x3, HWIO
        })
    p["layers"] = layers
    num_features = num_features + num_hidden_layers * dimh

    p["s5"] = 1.0 + nrm((num_features,), 0.05)
    p["b5"] = nrm((num_features,), 0.05)
    p["fcw"] = nrm((num_features,), 0.3)                      # Linear(F, 1) weight
    p["fcb"] = nrm((1,), 0.3)                                 # Linear bias
    return p


# ----------------------- pure-JAX reference forward -----------------------

def reference_forward(x_nchw, params):
    x = jnp.transpose(x_nchw, (0, 2, 3, 1)).astype(jnp.float32)

    def conv3x3(h, w):
        return jax.lax.conv_general_dilated(
            h, w, (1, 1), ((1, 1), (1, 1)),
            dimension_numbers=("NHWC", "HWIO", "NHWC"))

    y = conv3x3(x, params["w0"])
    y = y * params["s0"] + params["b0"]
    y = _softplus(y) - 0.5 * y
    feats = y
    for layer in params["layers"]:
        cin = feats.shape[-1]
        h = _softplus(feats * layer["s1"] + layer["b1"])
        h = jnp.einsum("bhwc,cd->bhwd", h, _softplus(layer["w1"]) / float(cin))
        h = _softplus(h * layer["s2"] + layer["b2"])
        c4 = layer["w2"].shape[2]
        new = conv3x3(h, _softplus(layer["w2"]) / float(c4 * 9))
        feats = jnp.concatenate([feats, new], axis=-1)
    y = jnp.maximum(feats * params["s5"] + params["b5"], 0.0)
    pooled = jnp.mean(y, axis=(1, 2))
    return pooled @ params["fcw"][:, None] + params["fcb"][None, :]


if __name__ == "__main__":
    key = jax.random.PRNGKey(0)
    pkey, xkey = jax.random.split(key)
    params = init_params(pkey)
    # x: NCHW, dim=1 input channel (module default), 16x16 spatial, batch=2
    x = jax.random.normal(xkey, (2, 1, 16, 16), dtype=jnp.float32)

    out = jax.block_until_ready(densenet_icnn_forward(x, params))

    ref = reference_forward(x, params)
    np.testing.assert_allclose(np.asarray(out), np.asarray(ref), rtol=2e-3, atol=2e-3)
    assert out.shape == (2, 1)
    print("KERNEL_OK")
</pallas_src>

<mosaic_0001>
module attributes {stable_mosaic.version = 11 : i64} {
  func.func @kernel(%arg0: i32, %arg1: memref<256x16xf32, #tpu.memory_space<vmem>>, %arg2: memref<256x8xf32, #tpu.memory_space<vmem>>, %arg3: memref<16x128xf32, #tpu.memory_space<vmem>>, %arg4: memref<16x128xf32, #tpu.memory_space<vmem>>, %arg5: memref<2x128x64xf32, #tpu.memory_space<vmem>>, %arg6: memref<2x576x128xf32, #tpu.memory_space<vmem>>, %arg7: memref<1x1x1xf32, #tpu.memory_space<vmem>>, %arg8: memref<304x64xf32, #tpu.memory_space<vmem>>, %arg9: memref<256x576xf32, #tpu.memory_space<vmem>>) attributes {dimension_semantics = [#tpu.dimension_semantics<parallel>], iteration_bounds = array<i64: 2>, scalar_prefetch = 0 : i64, scratch_operands = 2 : i64, tpu.core_type = #tpu.core_type<tc>, window_params = [{transform_indices = @transform_0, window_bounds = array<i64: 256, 16>}, {pipeline_mode = #tpu.pipeline_mode<synchronous>, transform_indices = @transform_1, window_bounds = array<i64: 256, 8>}, {pipeline_mode = #tpu.pipeline_mode<synchronous>, transform_indices = @transform_2, window_bounds = array<i64: 16, 128>}, {pipeline_mode = #tpu.pipeline_mode<synchronous>, transform_indices = @transform_3, window_bounds = array<i64: 16, 128>}, {pipeline_mode = #tpu.pipeline_mode<synchronous>, transform_indices = @transform_4, window_bounds = array<i64: 2, 128, 64>}, {pipeline_mode = #tpu.pipeline_mode<synchronous>, transform_indices = @transform_5, window_bounds = array<i64: 2, 576, 128>}, {transform_indices = @transform_6, window_bounds = array<i64: 1, 1, 1>}]} {
    %cst = arith.constant 0.000000e+00 : f32
    %0 = vector.broadcast %cst : f32 to vector<24x64xf32>
    %c0 = arith.constant 0 : index
    %c0_0 = arith.constant 0 : index
    %1 = vector.load %arg8[%c0, %c0_0] : memref<304x64xf32, #tpu.memory_space<vmem>>, vector<24x64xf32>
    tpu.vector_store %arg8[%c0, %c0_0], %0 {strides = array<i32>} : memref<304x64xf32, #tpu.memory_space<vmem>>, vector<24x64xf32>,
    %cst_1 = arith.constant 0.000000e+00 : f32
    %2 = vector.broadcast %cst_1 : f32 to vector<24x64xf32>
    %c280 = arith.constant 280 : index
    %c0_2 = arith.constant 0 : index
    %3 = vector.load %arg8[%c280, %c0_2] : memref<304x64xf32, #tpu.memory_space<vmem>>, vector<24x64xf32>
    tpu.vector_store %arg8[%c280, %c0_2], %2 {strides = array<i32>} : memref<304x64xf32, #tpu.memory_space<vmem>>, vector<24x64xf32>,
    %c0_3 = arith.constant 0 : index
    %c0_4 = arith.constant 0 : index
    %4 = vector.load %arg2[%c0_3, %c0_4] : memref<256x8xf32, #tpu.memory_space<vmem>>, vector<256x8xf32>
    %c0_5 = arith.constant 0 : index
    %c0_6 = arith.constant 0 : index
    %5 = vector.load %arg1[%c0_5, %c0_6] : memref<256x16xf32, #tpu.memory_space<vmem>>, vector<256x16xf32>
    %c0_7 = arith.constant 0 : index
    %c0_8 = arith.constant 0 : index
    %6 = vector.load %arg3[%c0_7, %c0_8] : memref<16x128xf32, #tpu.memory_space<vmem>>, vector<16x128xf32>
    %cst_9 = arith.constant dense<0.000000e+00> : vector<256x128xf32>
    %7 = tpu.matmul %5, %6, %cst_9 {dimension_numbers = #tpu.dot_dimension_numbers<[1], [0], [0], [1], [0, 0, 1, 1], [], []>} : vector<256x16xf32>, vector<16x128xf32>, vector<256x128xf32> -> vector<256x128xf32>
    %c0_10 = arith.constant 0 : index
    %c0_11 = arith.constant 0 : index
    %8 = vector.load %arg4[%c0_10, %c0_11] : memref<16x128xf32, #tpu.memory_space<vmem>>, vector<1x128xf32>
    %9 = vector.broadcast %8 : vector<1x128xf32> to vector<256x128xf32>
    %10 = arith.mulf %7, %9 : vector<256x128xf32>
    %c1 = arith.constant 1 : index
    %c0_12 = arith.constant 0 : index
    %11 = vector.load %arg4[%c1, %c0_12] : memref<16x128xf32, #tpu.memory_space<vmem>>, vector<1x128xf32>
    %12 = vector.broadcast %11 : vector<1x128xf32> to vector<256x128xf32>
    %13 = arith.addf %10, %12 : vector<256x128xf32>
    %cst_13 = arith.constant 0.000000e+00 : f32
    %14 = vector.broadcast %cst_13 : f32 to vector<256x128xf32>
    %15 = arith.maximumf %13, %14 : vector<256x128xf32>
    %16 = math.absf %13 : vector<256x128xf32>
    %cst_14 = arith.constant 0.000000e+00 : f32
    %17 = vector.broadcast %cst_14 : f32 to vector<256x128xf32>
    %18 = arith.subf %17, %16 : vector<256x128xf32>
    %19 = math.exp %18 : vector<256x128xf32>
    %cst_15 = arith.constant 1.000000e+00 : f32
    %20 = vector.broadcast %cst_15 : f32 to vector<256x128xf32>
    %21 = arith.addf %20, %19 : vector<256x128xf32>
    %22 = math.log %21 : vector<256x128xf32>
    %23 = arith.addf %15, %22 : vector<256x128xf32>
    %cst_16 = arith.constant 5.000000e-01 : f32
    %24 = vector.broadcast %cst_16 : f32 to vector<256x128xf32>
    %25 = arith.mulf %24, %13 : vector<256x128xf32>
    %26 = arith.subf %23, %25 : vector<256x128xf32>
    %c2 = arith.constant 2 : index
    %c0_17 = arith.constant 0 : index
    %27 = vector.load %arg4[%c2, %c0_17] : memref<16x128xf32, #tpu.memory_space<vmem>>, vector<1x128xf32>
    %28 = vector.broadcast %27 : vector<1x128xf32> to vector<256x128xf32>
    %29 = arith.mulf %26, %28 : vector<256x128xf32>
    %c7 = arith.constant 7 : index
    %c0_18 = arith.constant 0 : index
    %30 = vector.load %arg4[%c7, %c0_18] : memref<16x128xf32, #tpu.memory_space<vmem>>, vector<1x128xf32>
    %31 = vector.broadcast %30 : vector<1x128xf32> to vector<256x128xf32>
    %32 = arith.mulf %29, %31 : vector<256x128xf32>
    %c8 = arith.constant 8 : index
    %c0_19 = arith.constant 0 : index
    %33 = vector.load %arg4[%c8, %c0_19] : memref<16x128xf32, #tpu.memory_space<vmem>>, vector<1x128xf32>
    %34 = vector.broadcast %33 : vector<1x128xf32> to vector<256x128xf32>
    %35 = arith.addf %32, %34 : vector<256x128xf32>
    %cst_20 = arith.constant 0.000000e+00 : f32
    %36 = vector.broadcast %cst_20 : f32 to vector<256x128xf32>
    %37 = arith.maximumf %35, %36 : vector<256x128xf32>
    %38 = math.absf %35 : vector<256x128xf32>
    %cst_21 = arith.constant 0.000000e+00 : f32
    %39 = vector.broadcast %cst_21 : f32 to vector<256x128xf32>
    %40 = arith.subf %39, %38 : vector<256x128xf32>
    %41 = math.exp %40 : vector<256x128xf32>
    %cst_22 = arith.constant 1.000000e+00 : f32
    %42 = vector.broadcast %cst_22 : f32 to vector<256x128xf32>
    %43 = arith.addf %42, %41 : vector<256x128xf32>
    %44 = math.log %43 : vector<256x128xf32>
    %45 = arith.addf %37, %44 : vector<256x128xf32>
    %c0_23 = arith.constant 0 : index
    %c0_24 = arith.constant 0 : index
    %c0_25 = arith.constant 0 : index
    %46 = vector.load %arg5[%c0_23, %c0_24, %c0_25] : memref<2x128x64xf32, #tpu.memory_space<vmem>>, vector<1x128x64xf32>
    %47 = vector.shape_cast %46 : vector<1x128x64xf32> to vector<128x64xf32>
    %cst_26 = arith.constant dense<0.000000e+00> : vector<256x64xf32>
    %48 = tpu.matmul %45, %47, %cst_26 {dimension_numbers = #tpu.dot_dimension_numbers<[1], [0], [0], [1], [0, 0, 1, 1], [], []>} : vector<256x128xf32>, vector<128x64xf32>, vector<256x64xf32> -> vector<256x64xf32>
    %c9 = arith.constant 9 : index
    %c0_27 = arith.constant 0 : index
    %49 = vector.load %arg4[%c9, %c0_27] : memref<16x128xf32, #tpu.memory_space<vmem>>, vector<1x64xf32>
    %50 = vector.broadcast %49 : vector<1x64xf32> to vector<256x64xf32>
    %51 = arith.mulf %48, %50 : vector<256x64xf32>
    %c10 = arith.constant 10 : index
    %c0_28 = arith.constant 0 : index
    %52 = vector.load %arg4[%c10, %c0_28] : memref<16x128xf32, #tpu.memory_space<vmem>>, vector<1x64xf32>
    %53 = vector.broadcast %52 : vector<1x64xf32> to vector<256x64xf32>
    %54 = arith.addf %51, %53 : vector<256x64xf32>
    %cst_29 = arith.constant 0.000000e+00 : f32
    %55 = vector.broadcast %cst_29 : f32 to vector<256x64xf32>
    %56 = arith.maximumf %54, %55 : vector<256x64xf32>
    %57 = math.absf %54 : vector<256x64xf32>
    %cst_30 = arith.constant 0.000000e+00 : f32
    %58 = vector.broadcast %cst_30 : f32 to vector<256x64xf32>
    %59 = arith.subf %58, %57 : vector<256x64xf32>
    %60 = math.exp %59 : vector<256x64xf32>
    %cst_31 = arith.constant 1.000000e+00 : f32
    %61 = vector.broadcast %cst_31 : f32 to vector<256x64xf32>
    %62 = arith.addf %61, %60 : vector<256x64xf32>
    %63 = math.log %62 : vector<256x64xf32>
    %64 = arith.addf %56, %63 : vector<256x64xf32>
    %c24 = arith.constant 24 : index
    %c0_32 = arith.constant 0 : index
    %65 = vector.load %arg8[%c24, %c0_32] : memref<304x64xf32, #tpu.memory_space<vmem>>, vector<256x64xf32>
    tpu.vector_store %arg8[%c24, %c0_32], %64 {strides = array<i32>} : memref<304x64xf32, #tpu.memory_space<vmem>>, vector<256x64xf32>,
    %c7_33 = arith.constant 7 : index
    %c0_34 = arith.constant 0 : index
    %66 = vector.load %arg8[%c7_33, %c0_34] : memref<304x64xf32, #tpu.memory_space<vmem>>, vector<256x64xf32>
    %67 = vector.extract_strided_slice %4 {offsets = [0, 0], sizes = [256, 1], strides = [1, 1]} : vector<256x8xf32> to vector<256x1xf32>
    %68 = vector.broadcast %67 : vector<256x1xf32> to vector<256x64xf32>
    %69 = arith.mulf %66, %68 : vector<256x64xf32>
    %c0_35 = arith.constant 0 : index
    %c0_36 = arith.constant 0 : index
    %70 = vector.load %arg9[%c0_35, %c0_36] : memref<256x576xf32, #tpu.memory_space<vmem>>, vector<256x64xf32>
    tpu.vector_store %arg9[%c0_35, %c0_36], %69 {strides = array<i32>} : memref<256x576xf32, #tpu.memory_space<vmem>>, vector<256x64xf32>,
    %c8_37 = arith.constant 8 : index
    %c0_38 = arith.constant 0 : index
    %71 = vector.load %arg8[%c8_37, %c0_38] : memref<304x64xf32, #tpu.memory_space<vmem>>, vector<256x64xf32>
    %72 = vector.extract_strided_slice %4 {offsets = [0, 1], sizes = [256, 1], strides = [1, 1]} : vector<256x8xf32> to vector<256x1xf32>
    %73 = vector.broadcast %72 : vector<256x1xf32> to vector<256x64xf32>
    %74 = arith.mulf %71, %73 : vector<256x64xf32>
    %c0_39 = arith.constant 0 : index
    %c64 = arith.constant 64 : index
    %75 = vector.load %arg9[%c0_39, %c64] : memref<256x576xf32, #tpu.memory_space<vmem>>, vector<256x64xf32>
    tpu.vector_store %arg9[%c0_39, %c64], %74 {strides = array<i32>} : memref<256x576xf32, #tpu.memory_space<vmem>>, vector<256x64xf32>,
    %c9_40 = arith.constant 9 : index
    %c0_41 = arith.constant 0 : index
    %76 = vector.load %arg8[%c9_40, %c0_41] : memref<304x64xf32, #tpu.memory_space<vmem>>, vector<256x64xf32>
    %77 = vector.extract_strided_slice %4 {offsets = [0, 2], sizes = [256, 1], strides = [1, 1]} : vector<256x8xf32> to vector<256x1xf32>
    %78 = vector.broadcast %77 : vector<256x1xf32> to vector<256x64xf32>
    %79 = arith.mulf %76, %78 : vector<256x64xf32>
    %c0_42 = arith.constant 0 : index
    %c128 = arith.constant 128 : index
    %80 = vector.load %arg9[%c0_42, %c128] : memref<256x576xf32, #tpu.memory_space<vmem>>, vector<256x64xf32>
    tpu.vector_store %arg9[%c0_42, %c128], %79 {strides = array<i32>} : memref<256x576xf32, #tpu.memory_space<vmem>>, vector<256x64xf32>,
    %c23 = arith.constant 23 : index
    %c0_43 = arith.constant 0 : index
    %81 = vector.load %arg8[%c23, %c0_43] : memref<304x64xf32, #tpu.memory_space<vmem>>, vector<256x64xf32>
    %82 = vector.extract_strided_slice %4 {offsets = [0, 3], sizes = [256, 1], strides = [1, 1]} : vector<256x8xf32> to vector<256x1xf32>
    %83 = vector.broadcast %82 : vector<256x1xf32> to vector<256x64xf32>
    %84 = arith.mulf %81, %83 : vector<256x64xf32>
    %c0_44 = arith.constant 0 : index
    %c192 = arith.constant 192 : index
    %85 = vector.load %arg9[%c0_44, %c192] : memref<256x576xf32, #tpu.memory_space<vmem>>, vector<256x64xf32>
    tpu.vector_store %arg9[%c0_44, %c192], %84 {strides = array<i32>} : memref<256x576xf32, #tpu.memory_space<vmem>>, vector<256x64xf32>,
    %c0_45 = arith.constant 0 : index
    %c256 = arith.constant 256 : index
    %86 = vector.load %arg9[%c0_45, %c256] : memref<256x576xf32, #tpu.memory_space<vmem>>, vector<256x64xf32>
    tpu.vector_store %arg9[%c0_45, %c256], %64 {strides = array<i32>} : memref<256x576xf32, #tpu.memory_space<vmem>>, vector<256x64xf32>,
    %c25 = arith.constant 25 : index
    %c0_46 = arith.constant 0 : index
    %87 = vector.load %arg8[%c25, %c0_46] : memref<304x64xf32, #tpu.memory_space<vmem>>, vector<256x64xf32>
    %88 = vector.extract_strided_slice %4 {offsets = [0, 4], sizes = [256, 1], strides = [1, 1]} : vector<256x8xf32> to vector<256x1xf32>
    %89 = vector.broadcast %88 : vector<256x1xf32> to vector<256x64xf32>
    %90 = arith.mulf %87, %89 : vector<256x64xf32>
    %c0_47 = arith.constant 0 : index
    %c320 = arith.constant 320 : index
    %91 = vector.load %arg9[%c0_47, %c320] : memref<256x576xf32, #tpu.memory_space<vmem>>, vector<256x64xf32>
    tpu.vector_store %arg9[%c0_47, %c320], %90 {strides = array<i32>} : memref<256x576xf32, #tpu.memory_space<vmem>>, vector<256x64xf32>,
    %c39 = arith.constant 39 : index
    %c0_48 = arith.constant 0 : index
    %92 = vector.load %arg8[%c39, %c0_48] : memref<304x64xf32, #tpu.memory_space<vmem>>, vector<256x64xf32>
    %93 = vector.extract_strided_slice %4 {offsets = [0, 5], sizes = [256, 1], strides = [1, 1]} : vector<256x8xf32> to vector<256x1xf32>
    %94 = vector.broadcast %93 : vector<256x1xf32> to vector<256x64xf32>
    %95 = arith.mulf %92, %94 : vector<256x64xf32>
    %c0_49 = arith.constant 0 : index
    %c384 = arith.constant 384 : index
    %96 = vector.load %arg9[%c0_49, %c384] : memref<256x576xf32, #tpu.memory_space<vmem>>, vector<256x64xf32>
    tpu.vector_store %arg9[%c0_49, %c384], %95 {strides = array<i32>} : memref<256x576xf32, #tpu.memory_space<vmem>>, vector<256x64xf32>,
    %c40 = arith.constant 40 : index
    %c0_50 = arith.constant 0 : index
    %97 = vector.load %arg8[%c40, %c0_50] : memref<304x64xf32, #tpu.memory_space<vmem>>, vector<256x64xf32>
    %98 = vector.extract_strided_slice %4 {offsets = [0, 6], sizes = [256, 1], strides = [1, 1]} : vector<256x8xf32> to vector<256x1xf32>
    %99 = vector.broadcast %98 : vector<256x1xf32> to vector<256x64xf32>
    %100 = arith.mulf %97, %99 : vector<256x64xf32>
    %c0_51 = arith.constant 0 : index
    %c448 = arith.constant 448 : index
    %101 = vector.load %arg9[%c0_51, %c448] : memref<256x576xf32, #tpu.memory_space<vmem>>, vector<256x64xf32>
    tpu.vector_store %arg9[%c0_51, %c448], %100 {strides = array<i32>} : memref<256x576xf32, #tpu.memory_space<vmem>>, vector<256x64xf32>,
    %c41 = arith.constant 41 : index
    %c0_52 = arith.constant 0 : index
    %102 = vector.load %arg8[%c41, %c0_52] : memref<304x64xf32, #tpu.memory_space<vmem>>, vector<256x64xf32>
    %103 = vector.extract_strided_slice %4 {offsets = [0, 7], sizes = [256, 1], strides = [1, 1]} : vector<256x8xf32> to vector<256x1xf32>
    %104 = vector.broadcast %103 : vector<256x1xf32> to vector<256x64xf32>
    %105 = arith.mulf %102, %104 : vector<256x64xf32>
    %c0_53 = arith.constant 0 : index
    %c512 = arith.constant 512 : index
    %106 = vector.load %arg9[%c0_53, %c512] : memref<256x576xf32, #tpu.memory_space<vmem>>, vector<256x64xf32>
    tpu.vector_store %arg9[%c0_53, %c512], %105 {strides = array<i32>} : memref<256x576xf32, #tpu.memory_space<vmem>>, vector<256x64xf32>,
    %c0_54 = arith.constant 0 : index
    %c0_55 = arith.constant 0 : index
    %107 = vector.load %arg9[%c0_54, %c0_55] : memref<256x576xf32, #tpu.memory_space<vmem>>, vector<256x576xf32>
    %c0_56 = arith.constant 0 : index
    %c0_57 = arith.constant 0 : index
    %c0_58 = arith.constant 0 : index
    %108 = vector.load %arg6[%c0_56, %c0_57, %c0_58] : memref<2x576x128xf32, #tpu.memory_space<vmem>>, vector<1x576x128xf32>
    %109 = vector.shape_cast %108 : vector<1x576x128xf32> to vector<576x128xf32>
    %cst_59 = arith.constant dense<0.000000e+00> : vector<256x128xf32>
    %110 = tpu.matmul %107, %109, %cst_59 {dimension_numbers = #tpu.dot_dimension_numbers<[1], [0], [0], [1], [0, 0, 1, 1], [], []>} : vector<256x576xf32>, vector<576x128xf32>, vector<256x128xf32> -> vector<256x128xf32>
    %111 = arith.addf %29, %110 : vector<256x128xf32>
    %c11 = arith.constant 11 : index
    %c0_60 = arith.constant 0 : index
    %112 = vector.load %arg4[%c11, %c0_60] : memref<16x128xf32, #tpu.memory_space<vmem>>, vector<1x128xf32>
    %113 = vector.broadcast %112 : vector<1x128xf32> to vector<256x128xf32>
    %114 = arith.mulf %111, %113 : vector<256x128xf32>
    %c12 = arith.constant 12 : index
    %c0_61 = arith.constant 0 : index
    %115 = vector.load %arg4[%c12, %c0_61] : memref<16x128xf32, #tpu.memory_space<vmem>>, vector<1x128xf32>
    %116 = vector.broadcast %115 : vector<1x128xf32> to vector<256x128xf32>
    %117 = arith.addf %114, %116 : vector<256x128xf32>
    %cst_62 = arith.constant 0.000000e+00 : f32
    %118 = vector.broadcast %cst_62 : f32 to vector<256x128xf32>
    %119 = arith.maximumf %117, %118 : vector<256x128xf32>
    %120 = math.absf %117 : vector<256x128xf32>
    %cst_63 = arith.constant 0.000000e+00 : f32
    %121 = vector.broadcast %cst_63 : f32 to vector<256x128xf32>
    %122 = arith.subf %121, %120 : vector<256x128xf32>
    %123 = math.exp %122 : vector<256x128xf32>
    %cst_64 = arith.constant 1.000000e+00 : f32
    %124 = vector.broadcast %cst_64 : f32 to vector<256x128xf32>
    %125 = arith.addf %124, %123 : vector<256x128xf32>
    %126 = math.log %125 : vector<256x128xf32>
    %127 = arith.addf %119, %126 : vector<256x128xf32>
    %c1_65 = arith.constant 1 : index
    %c0_66 = arith.constant 0 : index
    %c0_67 = arith.constant 0 : index
    %128 = vector.load %arg5[%c1_65, %c0_66, %c0_67] : memref<2x128x64xf32, #tpu.memory_space<vmem>>, vector<1x128x64xf32>
    %129 = vector.shape_cast %128 : vector<1x128x64xf32> to vector<128x64xf32>
    %cst_68 = arith.constant dense<0.000000e+00> : vector<256x64xf32>
    %130 = tpu.matmul %127, %129, %cst_68 {dimension_numbers = #tpu.dot_dimension_numbers<[1], [0], [0], [1], [0, 0, 1, 1], [], []>} : vector<256x128xf32>, vector<128x64xf32>, vector<256x64xf32> -> vector<256x64xf32>
    %c13 = arith.constant 13 : index
    %c0_69 = arith.constant 0 : index
    %131 = vector.load %arg4[%c13, %c0_69] : memref<16x128xf32, #tpu.memory_space<vmem>>, vector<1x64xf32>
    %132 = vector.broadcast %131 : vector<1x64xf32> to vector<256x64xf32>
    %133 = arith.mulf %130, %132 : vector<256x64xf32>
    %c14 = arith.constant 14 : index
    %c0_70 = arith.constant 0 : index
    %134 = vector.load %arg4[%c14, %c0_70] : memref<16x128xf32, #tpu.memory_space<vmem>>, vector<1x64xf32>
    %135 = vector.broadcast %134 : vector<1x64xf32> to vector<256x64xf32>
    %136 = arith.addf %133, %135 : vector<256x64xf32>
    %cst_71 = arith.constant 0.000000e+00 : f32
    %137 = vector.broadcast %cst_71 : f32 to vector<256x64xf32>
    %138 = arith.maximumf %136, %137 : vector<256x64xf32>
    %139 = math.absf %136 : vector<256x64xf32>
    %cst_72 = arith.constant 0.000000e+00 : f32
    %140 = vector.broadcast %cst_72 : f32 to vector<256x64xf32>
    %141 = arith.subf %140, %139 : vector<256x64xf32>
    %142 = math.exp %141 : vector<256x64xf32>
    %cst_73 = arith.constant 1.000000e+00 : f32
    %143 = vector.broadcast %cst_73 : f32 to vector<256x64xf32>
    %144 = arith.addf %143, %142 : vector<256x64xf32>
    %145 = math.log %144 : vector<256x64xf32>
    %146 = arith.addf %138, %145 : vector<256x64xf32>
    %c24_74 = arith.constant 24 : index
    %c0_75 = arith.constant 0 : index
    %147 = vector.load %arg8[%c24_74, %c0_75] : memref<304x64xf32, #tpu.memory_space<vmem>>, vector<256x64xf32>
    tpu.vector_store %arg8[%c24_74, %c0_75], %146 {strides = array<i32>} : memref<304x64xf32, #tpu.memory_space<vmem>>, vector<256x64xf32>,
    %c7_76 = arith.constant 7 : index
    %c0_77 = arith.constant 0 : index
    %148 = vector.load %arg8[%c7_76, %c0_77] : memref<304x64xf32, #tpu.memory_space<vmem>>, vector<256x64xf32>
    %149 = vector.extract_strided_slice %4 {offsets = [0, 0], sizes = [256, 1], strides = [1, 1]} : vector<256x8xf32> to vector<256x1xf32>
    %150 = vector.broadcast %149 : vector<256x1xf32> to vector<256x64xf32>
    %151 = arith.mulf %148, %150 : vector<256x64xf32>
    %c0_78 = arith.constant 0 : index
    %c0_79 = arith.constant 0 : index
    %152 = vector.load %arg9[%c0_78, %c0_79] : memref<256x576xf32, #tpu.memory_space<vmem>>, vector<256x64xf32>
    tpu.vector_store %arg9[%c0_78, %c0_79], %151 {strides = array<i32>} : memref<256x576xf32, #tpu.memory_space<vmem>>, vector<256x64xf32>,
    %c8_80 = arith.constant 8 : index
    %c0_81 = arith.constant 0 : index
    %153 = vector.load %arg8[%c8_80, %c0_81] : memref<304x64xf32, #tpu.memory_space<vmem>>, vector<256x64xf32>
    %154 = vector.extract_strided_slice %4 {offsets = [0, 1], sizes = [256, 1], strides = [1, 1]} : vector<256x8xf32> to vector<256x1xf32>
    %155 = vector.broadcast %154 : vector<256x1xf32> to vector<256x64xf32>
    %156 = arith.mulf %153, %155 : vector<256x64xf32>
    %c0_82 = arith.constant 0 : index
    %c64_83 = arith.constant 64 : index
    %157 = vector.load %arg9[%c0_82, %c64_83] : memref<256x576xf32, #tpu.memory_space<vmem>>, vector<256x64xf32>
    tpu.vector_store %arg9[%c0_82, %c64_83], %156 {strides = array<i32>} : memref<256x576xf32, #tpu.memory_space<vmem>>, vector<256x64xf32>,
    %c9_84 = arith.constant 9 : index
    %c0_85 = arith.constant 0 : index
    %158 = vector.load %arg8[%c9_84, %c0_85] : memref<304x64xf32, #tpu.memory_space<vmem>>, vector<256x64xf32>
    %159 = vector.extract_strided_slice %4 {offsets = [0, 2], sizes = [256, 1], strides = [1, 1]} : vector<256x8xf32> to vector<256x1xf32>
    %160 = vector.broadcast %159 : vector<256x1xf32> to vector<256x64xf32>
    %161 = arith.mulf %158, %160 : vector<256x64xf32>
    %c0_86 = arith.constant 0 : index
    %c128_87 = arith.constant 128 : index
    %162 = vector.load %arg9[%c0_86, %c128_87] : memref<256x576xf32, #tpu.memory_space<vmem>>, vector<256x64xf32>
    tpu.vector_store %arg9[%c0_86, %c128_87], %161 {strides = array<i32>} : memref<256x576xf32, #tpu.memory_space<vmem>>, vector<256x64xf32>,
    %c23_88 = arith.constant 23 : index
    %c0_89 = arith.constant 0 : index
    %163 = vector.load %arg8[%c23_88, %c0_89] : memref<304x64xf32, #tpu.memory_space<vmem>>, vector<256x64xf32>
    %164 = vector.extract_strided_slice %4 {offsets = [0, 3], sizes = [256, 1], strides = [1, 1]} : vector<256x8xf32> to vector<256x1xf32>
    %165 = vector.broadcast %164 : vector<256x1xf32> to vector<256x64xf32>
    %166 = arith.mulf %163, %165 : vector<256x64xf32>
    %c0_90 = arith.constant 0 : index
    %c192_91 = arith.constant 192 : index
    %167 = vector.load %arg9[%c0_90, %c192_91] : memref<256x576xf32, #tpu.memory_space<vmem>>, vector<256x64xf32>
    tpu.vector_store %arg9[%c0_90, %c192_91], %166 {strides = array<i32>} : memref<256x576xf32, #tpu.memory_space<vmem>>, vector<256x64xf32>,
    %c0_92 = arith.constant 0 : index
    %c256_93 = arith.constant 256 : index
    %168 = vector.load %arg9[%c0_92, %c256_93] : memref<256x576xf32, #tpu.memory_space<vmem>>, vector<256x64xf32>
    tpu.vector_store %arg9[%c0_92, %c256_93], %146 {strides = array<i32>} : memref<256x576xf32, #tpu.memory_space<vmem>>, vector<256x64xf32>,
    %c25_94 = arith.constant 25 : index
    %c0_95 = arith.constant 0 : index
    %169 = vector.load %arg8[%c25_94, %c0_95] : memref<304x64xf32, #tpu.memory_space<vmem>>, vector<256x64xf32>
    %170 = vector.extract_strided_slice %4 {offsets = [0, 4], sizes = [256, 1], strides = [1, 1]} : vector<256x8xf32> to vector<256x1xf32>
    %171 = vector.broadcast %170 : vector<256x1xf32> to vector<256x64xf32>
    %172 = arith.mulf %169, %171 : vector<256x64xf32>
    %c0_96 = arith.constant 0 : index
    %c320_97 = arith.constant 320 : index
    %173 = vector.load %arg9[%c0_96, %c320_97] : memref<256x576xf32, #tpu.memory_space<vmem>>, vector<256x64xf32>
    tpu.vector_store %arg9[%c0_96, %c320_97], %172 {strides = array<i32>} : memref<256x576xf32, #tpu.memory_space<vmem>>, vector<256x64xf32>,
    %c39_98 = arith.constant 39 : index
    %c0_99 = arith.constant 0 : index
    %174 = vector.load %arg8[%c39_98, %c0_99] : memref<304x64xf32, #tpu.memory_space<vmem>>, vector<256x64xf32>
    %175 = vector.extract_strided_slice %4 {offsets = [0, 5], sizes = [256, 1], strides = [1, 1]} : vector<256x8xf32> to vector<256x1xf32>
    %176 = vector.broadcast %175 : vector<256x1xf32> to vector<256x64xf32>
    %177 = arith.mulf %174, %176 : vector<256x64xf32>
    %c0_100 = arith.constant 0 : index
    %c384_101 = arith.constant 384 : index
    %178 = vector.load %arg9[%c0_100, %c384_101] : memref<256x576xf32, #tpu.memory_space<vmem>>, vector<256x64xf32>
    tpu.vector_store %arg9[%c0_100, %c384_101], %177 {strides = array<i32>} : memref<256x576xf32, #tpu.memory_space<vmem>>, vector<256x64xf32>,
    %c40_102 = arith.constant 40 : index
    %c0_103 = arith.constant 0 : index
    %179 = vector.load %arg8[%c40_102, %c0_103] : memref<304x64xf32, #tpu.memory_space<vmem>>, vector<256x64xf32>
    %180 = vector.extract_strided_slice %4 {offsets = [0, 6], sizes = [256, 1], strides = [1, 1]} : vector<256x8xf32> to vector<256x1xf32>
    %181 = vector.broadcast %180 : vector<256x1xf32> to vector<256x64xf32>
    %182 = arith.mulf %179, %181 : vector<256x64xf32>
    %c0_104 = arith.constant 0 : index
    %c448_105 = arith.constant 448 : index
    %183 = vector.load %arg9[%c0_104, %c448_105] : memref<256x576xf32, #tpu.memory_space<vmem>>, vector<256x64xf32>
    tpu.vector_store %arg9[%c0_104, %c448_105], %182 {strides = array<i32>} : memref<256x576xf32, #tpu.memory_space<vmem>>, vector<256x64xf32>,
    %c41_106 = arith.constant 41 : index
    %c0_107 = arith.constant 0 : index
    %184 = vector.load %arg8[%c41_106, %c0_107] : memref<304x64xf32, #tpu.memory_space<vmem>>, vector<256x64xf32>
    %185 = vector.extract_strided_slice %4 {offsets = [0, 7], sizes = [256, 1], strides = [1, 1]} : vector<256x8xf32> to vector<256x1xf32>
    %186 = vector.broadcast %185 : vector<256x1xf32> to vector<256x64xf32>
    %187 = arith.mulf %184, %186 : vector<256x64xf32>
    %c0_108 = arith.constant 0 : index
    %c512_109 = arith.constant 512 : index
    %188 = vector.load %arg9[%c0_108, %c512_109] : memref<256x576xf32, #tpu.memory_space<vmem>>, vector<256x64xf32>
    tpu.vector_store %arg9[%c0_108, %c512_109], %187 {strides = array<i32>} : memref<256x576xf32, #tpu.memory_space<vmem>>, vector<256x64xf32>,
    %c0_110 = arith.constant 0 : index
    %c0_111 = arith.constant 0 : index
    %189 = vector.load %arg9[%c0_110, %c0_111] : memref<256x576xf32, #tpu.memory_space<vmem>>, vector<256x576xf32>
    %c1_112 = arith.constant 1 : index
    %c0_113 = arith.constant 0 : index
    %c0_114 = arith.constant 0 : index
    %190 = vector.load %arg6[%c1_112, %c0_113, %c0_114] : memref<2x576x128xf32, #tpu.memory_space<vmem>>, vector<1x576x128xf32>
    %191 = vector.shape_cast %190 : vector<1x576x128xf32> to vector<576x128xf32>
    %cst_115 = arith.constant dense<0.000000e+00> : vector<256x128xf32>
    %192 = tpu.matmul %189, %191, %cst_115 {dimension_numbers = #tpu.dot_dimension_numbers<[1], [0], [0], [1], [0, 0, 1, 1], [], []>} : vector<256x576xf32>, vector<576x128xf32>, vector<256x128xf32> -> vector<256x128xf32>
    %193 = arith.addf %111, %192 : vector<256x128xf32>
    %c3 = arith.constant 3 : index
    %c0_116 = arith.constant 0 : index
    %194 = vector.load %arg4[%c3, %c0_116] : memref<16x128xf32, #tpu.memory_space<vmem>>, vector<1x128xf32>
    %195 = vector.broadcast %194 : vector<1x128xf32> to vector<256x128xf32>
    %196 = arith.mulf %193, %195 : vector<256x128xf32>
    %c4 = arith.constant 4 : index
    %c0_117 = arith.constant 0 : index
    %197 = vector.load %arg4[%c4, %c0_117] : memref<16x128xf32, #tpu.memory_space<vmem>>, vector<1x128xf32>
    %198 = vector.broadcast %197 : vector<1x128xf32> to vector<256x128xf32>
    %199 = arith.addf %196, %198 : vector<256x128xf32>
    %cst_118 = arith.constant 0.000000e+00 : f32
    %200 = vector.broadcast %cst_118 : f32 to vector<256x128xf32>
    %201 = arith.maximumf %199, %200 : vector<256x128xf32>
    %c5 = arith.constant 5 : index
    %c0_119 = arith.constant 0 : index
    %202 = vector.load %arg4[%c5, %c0_119] : memref<16x128xf32, #tpu.memory_space<vmem>>, vector<1x128xf32>
    %c6 = arith.constant 6 : index
    %c0_120 = arith.constant 0 : index
    %203 = vector.load %arg4[%c6, %c0_120] : memref<16x128xf32, #tpu.memory_space<vmem>>, vector<1x128xf32>
    %cst_121 = arith.constant dense<0.000000e+00> : vector<128xf32>
    %204 = vector.multi_reduction <add>, %201, %cst_121 [0] : vector<256x128xf32> to vector<128xf32>
    %205 = vector.shape_cast %204 : vector<128xf32> to vector<1x128xf32>
    %cst_122 = arith.constant 3.906250e-03 : f32
    %206 = vector.broadcast %cst_122 : f32 to vector<1x128xf32>
    %207 = arith.mulf %205, %206 : vector<1x128xf32>
    %208 = arith.mulf %207, %202 : vector<1x128xf32>
    %209 = arith.addf %208, %203 : vector<1x128xf32>
    %cst_123 = arith.constant dense<0.000000e+00> : vector<1xf32>
    %210 = vector.multi_reduction <add>, %209, %cst_123 [1] : vector<1x128xf32> to vector<1xf32>
    %211 = vector.shape_cast %210 : vector<1xf32> to vector<1x1xf32>
    %212 = vector.shape_cast %211 : vector<1x1xf32> to vector<1x1x1xf32>
    %c0_124 = arith.constant 0 : index
    %c0_125 = arith.constant 0 : index
    %c0_126 = arith.constant 0 : index
    %213 = vector.load %arg7[%c0_124, %c0_125, %c0_126] : memref<1x1x1xf32, #tpu.memory_space<vmem>>, vector<1x1x1xf32>
    tpu.vector_store %arg7[%c0_124, %c0_125, %c0_126], %212 {strides = array<i32>} : memref<1x1x1xf32, #tpu.memory_space<vmem>>, vector<1x1x1xf32>,
    return
  }
  func.func @transform_0(%arg0: i32) -> (i32, i32) {
    %c0_i32 = arith.constant 0 : i32
    %c0_i32_0 = arith.constant 0 : i32
    return %arg0, %c0_i32 : i32, i32
  }
  func.func @transform_1(%arg0: i32) -> (i32, i32) {
    %c0_i32 = arith.constant 0 : i32
    %c0_i32_0 = arith.constant 0 : i32
    %c0_i32_1 = arith.constant 0 : i32
    return %c0_i32, %c0_i32_0 : i32, i32
  }
  func.func @transform_2(%arg0: i32) -> (i32, i32) {
    %c0_i32 = arith.constant 0 : i32
    %c0_i32_0 = arith.constant 0 : i32
    %c0_i32_1 = arith.constant 0 : i32
    return %c0_i32, %c0_i32_0 : i32, i32
  }
  func.func @transform_3(%arg0: i32) -> (i32, i32) {
    %c0_i32 = arith.constant 0 : i32
    %c0_i32_0 = arith.constant 0 : i32
    %c0_i32_1 = arith.constant 0 : i32
    return %c0_i32, %c0_i32_0 : i32, i32
  }
  func.func @transform_4(%arg0: i32) -> (i32, i32, i32) {
    %c0_i32 = arith.constant 0 : i32
    %c0_i32_0 = arith.constant 0 : i32
    %c0_i32_1 = arith.constant 0 : i32
    %c0_i32_2 = arith.constant 0 : i32
    return %c0_i32, %c0_i32_0, %c0_i32_1 : i32, i32, i32
  }
  func.func @transform_5(%arg0: i32) -> (i32, i32, i32) {
    %c0_i32 = arith.constant 0 : i32
    %c0_i32_0 = arith.constant 0 : i32
    %c0_i32_1 = arith.constant 0 : i32
    %c0_i32_2 = arith.constant 0 : i32
    return %c0_i32, %c0_i32_0, %c0_i32_1 : i32, i32, i32
  }
  func.func @transform_6(%arg0: i32) -> (i32, i32, i32) {
    %c0_i32 = arith.constant 0 : i32
    %c0_i32_0 = arith.constant 0 : i32
    %c0_i32_1 = arith.constant 0 : i32
    return %arg0, %c0_i32, %c0_i32_0 : i32, i32, i32
  }
}

</mosaic_0001>

<llo_original>
// kernel: densenet_icnn_forward.1
$region0: #{densenet_icnn_forward.1}
  #allocation0 [shape = 'u32[]', space=smem, size = 0x4, offset = 0x4, fixed_abs, tag = 'smem constant byte address 0x4 - core index']
  #allocation1 [shape = 'u32[144,128]{1,0:T(1,128)}', space=vmem, size = 0x12000, scoped, tag = 'internal scratch']
  #allocation2 [shape = 'f32[304,64]{1,0:T(8,128)}', space=vmem, size = 0x26000, scoped, tag = 'scratch operand']
  #allocation3 [shape = 'f32[256,576]{1,0:T(8,128)}', space=vmem, size = 0xa0000, scoped, tag = 'scratch operand']
  %s0 = inlined_call_operand.vmem [shape: f32[512,16], index: 0, kind: input, shape index: {}]
  %s1 = inlined_call_operand.vmem [shape: f32[256,8], index: 1, kind: input, shape index: {}]
  %s2 = inlined_call_operand.vmem [shape: f32[16,128], index: 2, kind: input, shape index: {}]
  %s3 = inlined_call_operand.vmem [shape: f32[16,128], index: 3, kind: input, shape index: {}]
  %s4 = inlined_call_operand.vmem [shape: f32[2,128,64], index: 4, kind: input, shape index: {}]
  %s5 = inlined_call_operand.vmem [shape: f32[2,576,128], index: 5, kind: input, shape index: {}]
  %s6 = inlined_call_operand.vmem [shape: f32[2,1,1], index: 6, kind: output, shape index: {}]
  %s7 = sld [smem:[#allocation0]]
  $region57: #{densenet_icnn_forward.1} parent=0
    _
  %s9 = ssub.s32 1, %s7
  %s10 = scalar_select 0, %s9, %s7
  loop: start=0, step=1, limit=4
  $region2: #{densenet_icnn_forward.1} parent=0 // loop_pre_header
    _
  $region3: #{densenet_icnn_forward.1} parent=0 // loop_header
    %s12 = sphi 0, %s16
    %p13 = scmp.ge.s32.totalorder %s12, 4
    %s22 = sphi 0, %s24
    %s25 = sphi 0, %s22
    %s26 = sphi 0, %s25
    %s42 = sphi 0, %s26
    %s46 = sphi 0, %s46
    %s48 = sphi 0, %s46
    %s49 = sphi 0, %s48
    %s63 = sphi 0, %s49
    %s67 = sphi 0, %s67
    %s69 = sphi 0, %s67
    %s70 = sphi 0, %s69
    %s84 = sphi 0, %s70
    %s88 = sphi 0, %s88
    %s90 = sphi 0, %s88
    %s91 = sphi 0, %s90
    %s105 = sphi 0, %s91
    %s109 = sphi 0, %s109
    %s111 = sphi 0, %s109
    %s112 = sphi 0, %s111
    %s126 = sphi 0, %s112
    %s130 = sphi 0, %s130
    %s132 = sphi 0, %s130
    %s133 = sphi 0, %s132
    %s147 = sphi 0, %s133
    %s153 = sphi 0, %s155
    %s156 = sphi 0, %s153
    %s157 = sphi 0, %s156
    %s173 = sphi 0, %s157
  $region4: #{densenet_icnn_forward.1} parent=0 // loop_header_branch
    %15 = sbr.rel (%p13) target = $region8
  $region5: #{densenet_icnn_forward.1} parent=0 // loop_body
    %s17 = ssub.s32 %s12, 1
    %s18 = ssub.s32 %s12, 2
    %s19 = sadd.s32 %s12, 1
    %s20 = ssub.s32 %s12, %s19
    %p21 = scmp.eq.s32.totalorder %s20, 0
    %s23 = sadd.s32 %s22, 1
    %s24 = scalar_select %p21, %s22, %s23
    %p27 = pneg %p21
    %p28 = scmp.eq.s32.totalorder %s12, 1
    %p29 = por %p27, %p28
    %p30 = scmp.ne.s32.totalorder %s22, %s25
    %p31 = scmp.eq.s32.totalorder %s12, 0
    %p32 = por %p30, %p31
    %p33 = scmp.ne.s32.totalorder %s22, %s25
    %p34 = scmp.eq.s32.totalorder %s17, 1
    %p35 = por %p33, %p34
    %p36 = scmp.ne.s32.totalorder %s25, %s26
    %p37 = scmp.eq.s32.totalorder %s17, 0
    %p38 = por %p36, %p37
    %p39 = scmp.ne.s32.totalorder %s25, %s26
    %p40 = scmp.eq.s32.totalorder %s18, 1
    %p41 = por %p39, %p40
    %p43 = scmp.ne.s32.totalorder %s26, %s42
    %p44 = scmp.eq.s32.totalorder %s18, 0
    %p45 = por %p43, %p44
    %s47 = sadd.s32 %s46, 1
    %p50 = scmp.eq.s32.totalorder %s12, 1
    %p51 = scmp.ne.s32.totalorder %s46, %s48
    %p52 = scmp.eq.s32.totalorder %s12, 0
    %p53 = por %p51, %p52
    %p54 = scmp.ne.s32.totalorder %s46, %s48
    %p55 = scmp.eq.s32.totalorder %s17, 1
    %p56 = por %p54, %p55
    %p57 = scmp.ne.s32.totalorder %s48, %s49
    %p58 = scmp.eq.s32.totalorder %s17, 0
    %p59 = por %p57, %p58
    %p60 = scmp.ne.s32.totalorder %s48, %s49
    %p61 = scmp.eq.s32.totalorder %s18, 1
    %p62 = por %p60, %p61
    %p64 = scmp.ne.s32.totalorder %s49, %s63
    %p65 = scmp.eq.s32.totalorder %s18, 0
    %p66 = por %p64, %p65
    %s68 = sadd.s32 %s67, 1
    %p71 = scmp.eq.s32.totalorder %s12, 1
    %p72 = scmp.ne.s32.totalorder %s67, %s69
    %p73 = scmp.eq.s32.totalorder %s12, 0
    %p74 = por %p72, %p73
    %p75 = scmp.ne.s32.totalorder %s67, %s69
    %p76 = scmp.eq.s32.totalorder %s17, 1
    %p77 = por %p75, %p76
    %p78 = scmp.ne.s32.totalorder %s69, %s70
    %p79 = scmp.eq.s32.totalorder %s17, 0
    %p80 = por %p78, %p79
    %p81 = scmp.ne.s32.totalorder %s69, %s70
    %p82 = scmp.eq.s32.totalorder %s18, 1
    %p83 = por %p81, %p82
    %p85 = scmp.ne.s32.totalorder %s70, %s84
    %p86 = scmp.eq.s32.totalorder %s18, 0
    %p87 = por %p85, %p86
    %s89 = sadd.s32 %s88, 1
    %p92 = scmp.eq.s32.totalorder %s12, 1
    %p93 = scmp.ne.s32.totalorder %s88, %s90
    %p94 = scmp.eq.s32.totalorder %s12, 0
    %p95 = por %p93, %p94
    %p96 = scmp.ne.s32.totalorder %s88, %s90
    %p97 = scmp.eq.s32.totalorder %s17, 1
    %p98 = por %p96, %p97
    %p99 = scmp.ne.s32.totalorder %s90, %s91
    %p100 = scmp.eq.s32.totalorder %s17, 0
    %p101 = por %p99, %p100
    %p102 = scmp.ne.s32.totalorder %s90, %s91
    %p103 = scmp.eq.s32.totalorder %s18, 1
    %p104 = por %p102, %p103
    %p106 = scmp.ne.s32.totalorder %s91, %s105
    %p107 = scmp.eq.s32.totalorder %s18, 0
    %p108 = por %p106, %p107
    %s110 = sadd.s32 %s109, 1
    %p113 = scmp.eq.s32.totalorder %s12, 1
    %p114 = scmp.ne.s32.totalorder %s109, %s111
    %p115 = scmp.eq.s32.totalorder %s12, 0
    %p116 = por %p114, %p115
    %p117 = scmp.ne.s32.totalorder %s109, %s111
    %p118 = scmp.eq.s32.totalorder %s17, 1
    %p119 = por %p117, %p118
    %p120 = scmp.ne.s32.totalorder %s111, %s112
    %p121 = scmp.eq.s32.totalorder %s17, 0
    %p122 = por %p120, %p121
    %p123 = scmp.ne.s32.totalorder %s111, %s112
    %p124 = scmp.eq.s32.totalorder %s18, 1
    %p125 = por %p123, %p124
    %p127 = scmp.ne.s32.totalorder %s112, %s126
    %p128 = scmp.eq.s32.totalorder %s18, 0
    %p129 = por %p127, %p128
    %s131 = sadd.s32 %s130, 1
    %p134 = scmp.eq.s32.totalorder %s12, 1
    %p135 = scmp.ne.s32.totalorder %s130, %s132
    %p136 = scmp.eq.s32.totalorder %s12, 0
    %p137 = por %p135, %p136
    %p138 = scmp.ne.s32.totalorder %s130, %s132
    %p139 = scmp.eq.s32.totalorder %s17, 1
    %p140 = por %p138, %p139
    %p141 = scmp.ne.s32.totalorder %s132, %s133
    %p142 = scmp.eq.s32.totalorder %s17, 0
    %p143 = por %p141, %p142
    %p144 = scmp.ne.s32.totalorder %s132, %s133
    %p145 = scmp.eq.s32.totalorder %s18, 1
    %p146 = por %p144, %p145
    %p148 = scmp.ne.s32.totalorder %s133, %s147
    %p149 = scmp.eq.s32.totalorder %s18, 0
    %p150 = por %p148, %p149
    %s151 = ssub.s32 %s12, %s19
    %p152 = scmp.eq.s32.totalorder %s151, 0
    %s154 = sadd.s32 %s153, 1
    %s155 = scalar_select %p152, %s153, %s154
    %p158 = pneg %p152
    %p159 = scmp.eq.s32.totalorder %s12, 1
    %p160 = por %p158, %p159
    %p161 = scmp.ne.s32.totalorder %s153, %s156
    %p162 = scmp.eq.s32.totalorder %s12, 0
    %p163 = por %p161, %p162
    %p164 = scmp.ne.s32.totalorder %s153, %s156
    %p165 = scmp.eq.s32.totalorder %s17, 1
    %p166 = por %p164, %p165
    %p167 = scmp.ne.s32.totalorder %s156, %s157
    %p168 = scmp.eq.s32.totalorder %s17, 0
    %p169 = por %p167, %p168
    %p170 = scmp.ne.s32.totalorder %s156, %s157
    %p171 = scmp.eq.s32.totalorder %s18, 1
    %p172 = por %p170, %p171
    %p174 = scmp.ne.s32.totalorder %s157, %s173
    %p175 = scmp.eq.s32.totalorder %s18, 0
    %p176 = por %p174, %p175
    %p177 = scmp.le.s32.totalorder 1, %s12
    %p178 = scmp.lt.s32.totalorder %s12, 3
    %p179 = pnand %p177, %p178
    %p180 = pneg %p179
    // Predicated region
    $region9: #{densenet_icnn_forward.1} parent=5 // pred_check
      _
    $region10: #{densenet_icnn_forward.1} parent=5 // pred_check_branch
      %182 = sbr.rel (%p179) target = $region12
    $region11: #{densenet_icnn_forward.1} parent=5 // pred_region
      %s183 = ssub.s32 %s12, 1
      // Predicated region
      $region13: #{densenet_icnn_forward.1} parent=11 // pred_check
        %p184 = pneg %p59
      $region14: #{densenet_icnn_forward.1} parent=11 // pred_check_branch
        %186 = sbr.rel (%p184) target = $region16
      $region15: #{densenet_icnn_forward.1} parent=11 // pred_region
        _
      $region16: #{densenet_icnn_forward.1} parent=11 // pred_fallthru
        _
      // Predicated region
      $region17: #{densenet_icnn_forward.1} parent=11 // pred_check
        %p187 = pneg %p80
      $region18: #{densenet_icnn_forward.1} parent=11 // pred_check_branch
        %189 = sbr.rel (%p187) target = $region20
      $region19: #{densenet_icnn_forward.1} parent=11 // pred_region
        _
      $region20: #{densenet_icnn_forward.1} parent=11 // pred_fallthru
        _
      // Predicated region
      $region21: #{densenet_icnn_forward.1} parent=11 // pred_check
        %p190 = pneg %p101
      $region22: #{densenet_icnn_forward.1} parent=11 // pred_check_branch
        %192 = sbr.rel (%p190) target = $region24
      $region23: #{densenet_icnn_forward.1} parent=11 // pred_region
        _
      $region24: #{densenet_icnn_forward.1} parent=11 // pred_fallthru
        _
      // Predicated region
      $region25: #{densenet_icnn_forward.1} parent=11 // pred_check
        %p193 = pneg %p122
      $region26: #{densenet_icnn_forward.1} parent=11 // pred_check_branch
        %195 = sbr.rel (%p193) target = $region28
      $region27: #{densenet_icnn_forward.1} parent=11 // pred_region
        _
      $region28: #{densenet_icnn_forward.1} parent=11 // pred_fallthru
        _
      // Predicated region
      $region29: #{densenet_icnn_forward.1} parent=11 // pred_check
        %p196 = pneg %p143
      $region30: #{densenet_icnn_forward.1} parent=11 // pred_check_branch
        %198 = sbr.rel (%p196) target = $region32
      $region31: #{densenet_icnn_forward.1} parent=11 // pred_region
        _
      $region32: #{densenet_icnn_forward.1} parent=11 // pred_fallthru
        _
    $region12: #{densenet_icnn_forward.1} parent=5 // pred_fallthru
      _
    %p199 = scmp.lt.s32.totalorder %s12, 2
    // Predicated region
    $region33: #{densenet_icnn_forward.1} parent=5 // pred_check
      %p200 = pneg %p199
    $region34: #{densenet_icnn_forward.1} parent=5 // pred_check_branch
      %202 = sbr.rel (%p200) target = $region36
    $region35: #{densenet_icnn_forward.1} parent=5 // pred_region
      // Predicated region
      $region37: #{densenet_icnn_forward.1} parent=35 // pred_check
        %p203 = pneg %p32
      $region38: #{densenet_icnn_forward.1} parent=35 // pred_check_branch
        %205 = sbr.rel (%p203) target = $region40
      $region39: #{densenet_icnn_forward.1} parent=35 // pred_region
        %s206 = smul.u32 32, %s12
        %p207 = scmp.lt.s32.totalorder %s206, 63
        %s208 = scalar_select %p207, %s206, 63
        %s209 = smul.addr %s208, 8
        %s210 = scalar_lea.vmem %s0, %s209
        %s211 = smul.u32 32, %s12
      $region40: #{densenet_icnn_forward.1} parent=35 // pred_fallthru
        _
    $region36: #{densenet_icnn_forward.1} parent=5 // pred_fallthru
      _
    %p212 = scmp.le.s32.totalorder 1, %s12
    %p213 = scmp.lt.s32.totalorder %s12, 3
    %p214 = pnand %p212, %p213
    %p215 = pneg %p214
    // Predicated region
    $region41: #{densenet_icnn_forward.1} parent=5 // pred_check
      _
    $region42: #{densenet_icnn_forward.1} parent=5 // pred_check_branch
      %217 = sbr.rel (%p214) target = $region44
    $region43: #{densenet_icnn_forward.1} parent=5 // pred_region
      %s218 = ssub.s32 %s12, 1
      %s219 = smul.u32 32, %s17
      %p220 = scmp.lt.s32.totalorder %s219, 63
      %s221 = scalar_select %p220, %s219, 63
      %s222 = smul.addr %s221, 8
      %s223 = scalar_lea.vmem %s0, %s222
      %p224 = pneg %p38
      %p225 = pneg %p35
      %p226 = pneg %p59
      %p227 = pneg %p56
      %p228 = pneg %p80
      %p229 = pneg %p77
      %p230 = pneg %p101
      %p231 = pneg %p98
      %p232 = pneg %p122
      %p233 = pneg %p119
      %p234 = pneg %p143
      %p235 = pneg %p140
      %p236 = pneg %p169
      %p237 = pneg %p166
      %p238 = scmp.lt.s32.totalorder %s17, 1
      %s239 = scalar_select %p238, %s17, 1
      %s240 = scalar_lea.vmem %s6, %s239
      %s241 = smul.u32 32, %s17
      %p242 = scmp.lt.s32.totalorder %s241, 63
      %s243 = scalar_select %p242, %s241, 63
      %s244 = smul.addr %s243, 8
      %s245 = scalar_lea.vmem %s0, %s244
      %s246 = smul.u32 32, %s17
      %p247 = scmp.lt.s32.totalorder %s17, 1
      %s248 = scalar_select %p247, %s17, 1
      %s249 = scalar_lea.vmem %s6, %s248
      %vm250 = vcmask 523264
      %251 = vst.msk [vmem:[#allocation2] sm:$0xff] %vm250, 0.0
      %252 = vst.msk [vmem:[#allocation2 + $0x8] sm:$0xff] %vm250, 0.0
      %253 = vst.msk [vmem:[#allocation2 + $0x10] sm:$0xff] %vm250, 0.0
      %254 = vst.msk [vmem:[#allocation2 + $0x118] sm:$0xff] %vm250, 0.0
      %255 = vst.msk [vmem:[#allocation2 + $0x120] sm:$0xff] %vm250, 0.0
      %256 = vst.msk [vmem:[#allocation2 + $0x128] sm:$0xff] %vm250, 0.0
      %v257 = vld [vmem:[%s1] sm:$0xff]
      %v258 = vld [vmem:[%s1 + $0x8] sm:$0xff]
      %v259 = vld [vmem:[%s1 + $0x10] sm:$0xff]
      %v260 = vld [vmem:[%s1 + $0x18] sm:$0xff]
      %v261 = vld [vmem:[%s1 + $0x20] sm:$0xff]
      %v262 = vld [vmem:[%s1 + $0x28] sm:$0xff]
      %v263 = vld [vmem:[%s1 + $0x30] sm:$0xff]
      %v264 = vld [vmem:[%s1 + $0x38] sm:$0xff]
      %v265 = vld [vmem:[%s1 + $0x40] sm:$0xff]
      %v266 = vld [vmem:[%s1 + $0x48] sm:$0xff]
      %v267 = vld [vmem:[%s1 + $0x50] sm:$0xff]
      %v268 = vld [vmem:[%s1 + $0x58] sm:$0xff]
      %v269 = vld [vmem:[%s1 + $0x60] sm:$0xff]
      %v270 = vld [vmem:[%s1 + $0x68] sm:$0xff]
      %v271 = vld [vmem:[%s1 + $0x70] sm:$0xff]
      %v272 = vld [vmem:[%s1 + $0x78] sm:$0xff]
      %v273 = vld [vmem:[%s1 + $0x80] sm:$0xff]
      %v274 = vld [vmem:[%s1 + $0x88] sm:$0xff]
      %v275 = vld [vmem:[%s1 + $0x90] sm:$0xff]
      %v276 = vld [vmem:[%s1 + $0x98] sm:$0xff]
      %v277 = vld [vmem:[%s1 + $0xa0] sm:$0xff]
      %v278 = vld [vmem:[%s1 + $0xa8] sm:$0xff]
      %v279 = vld [vmem:[%s1 + $0xb0] sm:$0xff]
      %v280 = vld [vmem:[%s1 + $0xb8] sm:$0xff]
      %v281 = vld [vmem:[%s1 + $0xc0] sm:$0xff]
      %v282 = vld [vmem:[%s1 + $0xc8] sm:$0xff]
      %v283 = vld [vmem:[%s1 + $0xd0] sm:$0xff]
      %v284 = vld [vmem:[%s1 + $0xd8] sm:$0xff]
      %v285 = vld [vmem:[%s1 + $0xe0] sm:$0xff]
      %v286 = vld [vmem:[%s1 + $0xe8] sm:$0xff]
      %v287 = vld [vmem:[%s1 + $0xf0] sm:$0xff]
      %v288 = vld [vmem:[%s1 + $0xf8] sm:$0xff]
      %v289 = vld [vmem:[%s245] sm:$0xff]
      %v290 = vld [vmem:[%s245 + $0x8] sm:$0xff]
      %v291 = vld [vmem:[%s245 + $0x10] sm:$0xff]
      %v292 = vld [vmem:[%s245 + $0x18] sm:$0xff]
      %v293 = vld [vmem:[%s245 + $0x20] sm:$0xff]
      %v294 = vld [vmem:[%s245 + $0x28] sm:$0xff]
      %v295 = vld [vmem:[%s245 + $0x30] sm:$0xff]
      %v296 = vld [vmem:[%s245 + $0x38] sm:$0xff]
      %v297 = vld [vmem:[%s245 + $0x40] sm:$0xff]
      %v298 = vld [vmem:[%s245 + $0x48] sm:$0xff]
      %v299 = vld [vmem:[%s245 + $0x50] sm:$0xff]
      %v300 = vld [vmem:[%s245 + $0x58] sm:$0xff]
      %v301 = vld [vmem:[%s245 + $0x60] sm:$0xff]
      %v302 = vld [vmem:[%s245 + $0x68] sm:$0xff]
      %v303 = vld [vmem:[%s245 + $0x70] sm:$0xff]
      %v304 = vld [vmem:[%s245 + $0x78] sm:$0xff]
      %v305 = vld [vmem:[%s245 + $0x80] sm:$0xff]
      %v306 = vld [vmem:[%s245 + $0x88] sm:$0xff]
      %v307 = vld [vmem:[%s245 + $0x90] sm:$0xff]
      %v308 = vld [vmem:[%s245 + $0x98] sm:$0xff]
      %v309 = vld [vmem:[%s245 + $0xa0] sm:$0xff]
      %v310 = vld [vmem:[%s245 + $0xa8] sm:$0xff]
      %v311 = vld [vmem:[%s245 + $0xb0] sm:$0xff]
      %v312 = vld [vmem:[%s245 + $0xb8] sm:$0xff]
      %v313 = vld [vmem:[%s245 + $0xc0] sm:$0xff]
      %v314 = vld [vmem:[%s245 + $0xc8] sm:$0xff]
      %v315 = vld [vmem:[%s245 + $0xd0] sm:$0xff]
      %v316 = vld [vmem:[%s245 + $0xd8] sm:$0xff]
      %v317 = vld [vmem:[%s245 + $0xe0] sm:$0xff]
      %v318 = vld [vmem:[%s245 + $0xe8] sm:$0xff]
      %v319 = vld [vmem:[%s245 + $0xf0] sm:$0xff]
      %v320 = vld [vmem:[%s245 + $0xf8] sm:$0xff]
      %v321 = vld [vmem:[%s2] sm:$0xff]
      %v322 = vld [vmem:[%s2 + $0x8] sm:$0xff]
      %vm323 = vcmask 130048
      %v325 = vsel %vm323, %v289, 0
      %v328 = vsel %vm323, %v290, 0
      %v331 = vsel %vm323, %v291, 0
      %v334 = vsel %vm323, %v292, 0
      %v337 = vsel %vm323, %v293, 0
      %v340 = vsel %vm323, %v294, 0
      %v343 = vsel %vm323, %v295, 0
      %v346 = vsel %vm323, %v296, 0
      %v349 = vsel %vm323, %v297, 0
      %v352 = vsel %vm323, %v298, 0
      %v355 = vsel %vm323, %v299, 0
      %v358 = vsel %vm323, %v300, 0
      %v361 = vsel %vm323, %v301, 0
      %v364 = vsel %vm323, %v302, 0
      %v367 = vsel %vm323, %v303, 0
      %v370 = vsel %vm323, %v304, 0
      %v373 = vsel %vm323, %v305, 0
      %v376 = vsel %vm323, %v306, 0
      %v379 = vsel %vm323, %v307, 0
      %v382 = vsel %vm323, %v308, 0
      %v385 = vsel %vm323, %v309, 0
      %v388 = vsel %vm323, %v310, 0
      %v391 = vsel %vm323, %v311, 0
      %v394 = vsel %vm323, %v312, 0
      %v397 = vsel %vm323, %v313, 0
      %v400 = vsel %vm323, %v314, 0
      %v403 = vsel %vm323, %v315, 0
      %v406 = vsel %vm323, %v316, 0
      %v409 = vsel %vm323, %v317, 0
      %v412 = vsel %vm323, %v318, 0
      %v415 = vsel %vm323, %v319, 0
      %v418 = vsel %vm323, %v320, 0
      %420 = vmatprep.subr.mxu0 0.0
      %421 = vmatpush1.msra.mxu0 %v321
      %422 = vmatprep.subr.mxu0 0.0
      %423 = vmatpush1.msra.mxu0 %v322
      %424 = vmatprep.subr.mxu0 0.0
      %425 = vmatpush1.msra.mxu0 0.0
      %426 = vmatprep.subr.mxu0 0.0
      %427 = vmatpush1.msra.mxu0 0.0
      %428 = vmatprep.subr.mxu0 0.0
      %429 = vmatpush1.msra.mxu0 0.0
      %430 = vmatprep.subr.mxu0 0.0
      %431 = vmatpush1.msra.mxu0 0.0
      %432 = vmatprep.subr.mxu0 0.0
      %433 = vmatpush1.msra.mxu0 0.0
      %434 = vmatprep.subr.mxu0 0.0
      %435 = vmatpush1.msra.mxu0 0.0
      %436 = vmatprep.subr.mxu0 0.0
      %437 = vmatpush1.msra.mxu0 0.0
      %438 = vmatprep.subr.mxu0 0.0
      %439 = vmatpush1.msra.mxu0 0.0
      %440 = vmatprep.subr.mxu0 0.0
      %441 = vmatpush1.msra.mxu0 0.0
      %442 = vmatprep.subr.mxu0 0.0
      %443 = vmatpush1.msra.mxu0 0.0
      %444 = vmatprep.subr.mxu0 0.0
      %445 = vmatpush1.msra.mxu0 0.0
      %446 = vmatprep.subr.mxu0 0.0
      %447 = vmatpush1.msra.mxu0 0.0
      %448 = vmatprep.subr.mxu0 0.0
      %449 = vmatpush1.msra.mxu0 0.0
      %450 = vmatprep.subr.mxu0 0.0
      %451 = vmatpush1.msra.mxu0 0.0
      %452 = vmatprep.subr.mxu0 0.0
      %453 = vmatpush1.msra.mxu0 0.0
      %454 = vmatprep.subr.mxu0 0.0
      %455 = vmatpush1.msra.mxu0 0.0
      %456 = vmatprep.subr.mxu0 0.0
      %457 = vmatpush1.msra.mxu0 0.0
      %458 = vmatprep.subr.mxu0 0.0
      %459 = vmatpush1.msra.mxu0 0.0
      %460 = vmatprep.subr.mxu0 0.0
      %461 = vmatpush1.msra.mxu0 0.0
      %462 = vmatprep.subr.mxu0 0.0
      %463 = vmatpush1.msra.mxu0 0.0
      %464 = vmatprep.subr.mxu0 0.0
      %465 = vmatpush1.msra.mxu0 0.0
      %466 = vmatprep.subr.mxu0 0.0
      %467 = vmatpush1.msra.mxu0 0.0
      %468 = vmatprep.subr.mxu0 0.0
      %469 = vmatpush1.msra.mxu0 0.0
      %470 = vmatprep.subr.mxu0 0.0
      %471 = vmatpush1.msra.mxu0 0.0
      %472 = vmatprep.subr.mxu0 0.0
      %473 = vmatpush1.msra.mxu0 0.0
      %474 = vmatprep.subr.mxu0 0.0
      %475 = vmatpush1.msra.mxu0 0.0
      %476 = vmatprep.subr.mxu0 0.0
      %477 = vmatpush1.msra.mxu0 0.0
      %478 = vmatprep.subr.mxu0 0.0
      %479 = vmatpush1.msra.mxu0 0.0
      %480 = vmatprep.subr.mxu0 0.0
      %481 = vmatpush1.msra.mxu0 0.0
      %482 = vmatprep.subr.mxu0 0.0
      %483 = vmatpush1.msra.mxu0 0.0
      %484 = vmatprep.mubr.f32.mxu0 0.0
      %485 = vmatmul.mubr.f32.gmra.mrb[0].mxu0 %v325
      %v486 = vpop.f32.mrb[0].mxu0
      %v487 = vadd.f32 0.0, %v486
      %v488 = vpop.f32.mrb[0].mxu0
      %489 = vmatprep.mubr.f32.mxu0 0.0
      %490 = vmatmul.mubr.f32.gmra.mrb[0].mxu0 %v328
      %v491 = vpop.f32.mrb[0].mxu0
      %v492 = vadd.f32 0.0, %v491
      %v493 = vpop.f32.mrb[0].mxu0
      %494 = vmatprep.mubr.f32.mxu0 0.0
      %495 = vmatmul.mubr.f32.gmra.mrb[0].mxu0 %v331
      %v496 = vpop.f32.mrb[0].mxu0
      %v497 = vadd.f32 0.0, %v496
      %v498 = vpop.f32.mrb[0].mxu0
      %499 = vmatprep.mubr.f32.mxu0 0.0
      %500 = vmatmul.mubr.f32.gmra.mrb[0].mxu0 %v334
      %v501 = vpop.f32.mrb[0].mxu0
      %v502 = vadd.f32 0.0, %v501
      %v503 = vpop.f32.mrb[0].mxu0
      %504 = vmatprep.mubr.f32.mxu0 0.0
      %505 = vmatmul.mubr.f32.gmra.mrb[0].mxu0 %v337
      %v506 = vpop.f32.mrb[0].mxu0
      %v507 = vadd.f32 0.0, %v506
      %v508 = vpop.f32.mrb[0].mxu0
      %509 = vmatprep.mubr.f32.mxu0 0.0
      %510 = vmatmul.mubr.f32.gmra.mrb[0].mxu0 %v340
      %v511 = vpop.f32.mrb[0].mxu0
      %v512 = vadd.f32 0.0, %v511
      %v513 = vpop.f32.mrb[0].mxu0
      %514 = vmatprep.mubr.f32.mxu0 0.0
      %515 = vmatmul.mubr.f32.gmra.mrb[0].mxu0 %v343
      %v516 = vpop.f32.mrb[0].mxu0
      %v517 = vadd.f32 0.0, %v516
      %v518 = vpop.f32.mrb[0].mxu0
      %519 = vmatprep.mubr.f32.mxu0 0.0
      %520 = vmatmul.mubr.f32.gmra.mrb[0].mxu0 %v346
      %v521 = vpop.f32.mrb[0].mxu0
      %v522 = vadd.f32 0.0, %v521
      %v523 = vpop.f32.mrb[0].mxu0
      %524 = vmatprep.mubr.f32.mxu0 0.0
      %525 = vmatmul.mubr.f32.gmra.mrb[0].mxu0 %v349
      %v526 = vpop.f32.mrb[0].mxu0
      %v527 = vadd.f32 0.0, %v526
      %v528 = vpop.f32.mrb[0].mxu0
      %529 = vmatprep.mubr.f32.mxu0 0.0
      %530 = vmatmul.mubr.f32.gmra.mrb[0].mxu0 %v352
      %v531 = vpop.f32.mrb[0].mxu0
      %v532 = vadd.f32 0.0, %v531
      %v533 = vpop.f32.mrb[0].mxu0
      %534 = vmatprep.mubr.f32.mxu0 0.0
      %535 = vmatmul.mubr.f32.gmra.mrb[0].mxu0 %v355
      %v536 = vpop.f32.mrb[0].mxu0
      %v537 = vadd.f32 0.0, %v536
      %v538 = vpop.f32.mrb[0].mxu0
      %539 = vmatprep.mubr.f32.mxu0 0.0
      %540 = vmatmul.mubr.f32.gmra.mrb[0].mxu0 %v358
      %v541 = vpop.f32.mrb[0].mxu0
      %v542 = vadd.f32 0.0, %v541
      %v543 = vpop.f32.mrb[0].mxu0
      %544 = vmatprep.mubr.f32.mxu0 0.0
      %545 = vmatmul.mubr.f32.gmra.mrb[0].mxu0 %v361
      %v546 = vpop.f32.mrb[0].mxu0
      %v547 = vadd.f32 0.0, %v546
      %v548 = vpop.f32.mrb[0].mxu0
      %549 = vmatprep.mubr.f32.mxu0 0.0
      %550 = vmatmul.mubr.f32.gmra.mrb[0].mxu0 %v364
      %v551 = vpop.f32.mrb[0].mxu0
      %v552 = vadd.f32 0.0, %v551
      %v553 = vpop.f32.mrb[0].mxu0
      %554 = vmatprep.mubr.f32.mxu0 0.0
      %555 = vmatmul.mubr.f32.gmra.mrb[0].mxu0 %v367
      %v556 = vpop.f32.mrb[0].mxu0
      %v557 = vadd.f32 0.0, %v556
      %v558 = vpop.f32.mrb[0].mxu0
      %559 = vmatprep.mubr.f32.mxu0 0.0
      %560 = vmatmul.mubr.f32.gmra.mrb[0].mxu0 %v370
      %v561 = vpop.f32.mrb[0].mxu0
      %v562 = vadd.f32 0.0, %v561
      %v563 = vpop.f32.mrb[0].mxu0
      %564 = vmatprep.mubr.f32.mxu0 0.0
      %565 = vmatmul.mubr.f32.gmra.mrb[0].mxu0 %v373
      %v566 = vpop.f32.mrb[0].mxu0
      %v567 = vadd.f32 0.0, %v566
      %v568 = vpop.f32.mrb[0].mxu0
      %569 = vmatprep.mubr.f32.mxu0 0.0
      %570 = vmatmul.mubr.f32.gmra.mrb[0].mxu0 %v376
      %v571 = vpop.f32.mrb[0].mxu0
      %v572 = vadd.f32 0.0, %v571
      %v573 = vpop.f32.mrb[0].mxu0
      %574 = vmatprep.mubr.f32.mxu0 0.0
      %575 = vmatmul.mubr.f32.gmra.mrb[0].mxu0 %v379
      %v576 = vpop.f32.mrb[0].mxu0
      %v577 = vadd.f32 0.0, %v576
      %v578 = vpop.f32.mrb[0].mxu0
      %579 = vmatprep.mubr.f32.mxu0 0.0
      %580 = vmatmul.mubr.f32.gmra.mrb[0].mxu0 %v382
      %v581 = vpop.f32.mrb[0].mxu0
      %v582 = vadd.f32 0.0, %v581
      %v583 = vpop.f32.mrb[0].mxu0
      %584 = vmatprep.mubr.f32.mxu0 0.0
      %585 = vmatmul.mubr.f32.gmra.mrb[0].mxu0 %v385
      %v586 = vpop.f32.mrb[0].mxu0
      %v587 = vadd.f32 0.0, %v586
      %v588 = vpop.f32.mrb[0].mxu0
      %589 = vmatprep.mubr.f32.mxu0 0.0
      %590 = vmatmul.mubr.f32.gmra.mrb[0].mxu0 %v388
      %v591 = vpop.f32.mrb[0].mxu0
      %v592 = vadd.f32 0.0, %v591
      %v593 = vpop.f32.mrb[0].mxu0
      %594 = vmatprep.mubr.f32.mxu0 0.0
      %595 = vmatmul.mubr.f32.gmra.mrb[0].mxu0 %v391
      %v596 = vpop.f32.mrb[0].mxu0
      %v597 = vadd.f32 0.0, %v596
      %v598 = vpop.f32.mrb[0].mxu0
      %599 = vmatprep.mubr.f32.mxu0 0.0
      %600 = vmatmul.mubr.f32.gmra.mrb[0].mxu0 %v394
      %v601 = vpop.f32.mrb[0].mxu0
      %v602 = vadd.f32 0.0, %v601
      %v603 = vpop.f32.mrb[0].mxu0
      %604 = vmatprep.mubr.f32.mxu0 0.0
      %605 = vmatmul.mubr.f32.gmra.mrb[0].mxu0 %v397
      %v606 = vpop.f32.mrb[0].mxu0
      %v607 = vadd.f32 0.0, %v606
      %v608 = vpop.f32.mrb[0].mxu0
      %609 = vmatprep.mubr.f32.mxu0 0.0
      %610 = vmatmul.mubr.f32.gmra.mrb[0].mxu0 %v400
      %v611 = vpop.f32.mrb[0].mxu0
      %v612 = vadd.f32 0.0, %v611
      %v613 = vpop.f32.mrb[0].mxu0
      %614 = vmatprep.mubr.f32.mxu0 0.0
      %615 = vmatmul.mubr.f32.gmra.mrb[0].mxu0 %v403
      %v616 = vpop.f32.mrb[0].mxu0
      %v617 = vadd.f32 0.0, %v616
      %v618 = vpop.f32.mrb[0].mxu0
      %619 = vmatprep.mubr.f32.mxu0 0.0
      %620 = vmatmul.mubr.f32.gmra.mrb[0].mxu0 %v406
      %v621 = vpop.f32.mrb[0].mxu0
      %v622 = vadd.f32 0.0, %v621
      %v623 = vpop.f32.mrb[0].mxu0
      %624 = vmatprep.mubr.f32.mxu0 0.0
      %625 = vmatmul.mubr.f32.gmra.mrb[0].mxu0 %v409
      %v626 = vpop.f32.mrb[0].mxu0
      %v627 = vadd.f32 0.0, %v626
      %v628 = vpop.f32.mrb[0].mxu0
      %629 = vmatprep.mubr.f32.mxu0 0.0
      %630 = vmatmul.mubr.f32.gmra.mrb[0].mxu0 %v412
      %v631 = vpop.f32.mrb[0].mxu0
      %v632 = vadd.f32 0.0, %v631
      %v633 = vpop.f32.mrb[0].mxu0
      %634 = vmatprep.mubr.f32.mxu0 0.0
      %635 = vmatmul.mubr.f32.gmra.mrb[0].mxu0 %v415
      %v636 = vpop.f32.mrb[0].mxu0
      %v637 = vadd.f32 0.0, %v636
      %v638 = vpop.f32.mrb[0].mxu0
      %639 = vmatprep.mubr.f32.mxu0 0.0
      %640 = vmatmul.mubr.f32.gmra.mrb[0].mxu0 %v418
      %v641 = vpop.f32.mrb[0].mxu0
      %v642 = vadd.f32 0.0, %v641
      %v643 = vpop.f32.mrb[0].mxu0
      %644 = vdwg.mxu0
      %v645 = vld [vmem:[%s3] sm:$0x1]
      %v646 = vlaneseq
      %v647 = vshrl.u32 %v646, 7
      %v648 = vsub.s32 0, %v647
      %v649 = vrot.slane %v645, %v648
      %v650 = vmul.f32 %v487, %v649
      %v651 = vmul.f32 %v492, %v649
      %v652 = vmul.f32 %v497, %v649
      %v653 = vmul.f32 %v502, %v649
      %v654 = vmul.f32 %v507, %v649
      %v655 = vmul.f32 %v512, %v649
      %v656 = vmul.f32 %v517, %v649
      %v657 = vmul.f32 %v522, %v649
      %v658 = vmul.f32 %v527, %v649
      %v659 = vmul.f32 %v532, %v649
      %v660 = vmul.f32 %v537, %v649
      %v661 = vmul.f32 %v542, %v649
      %v662 = vmul.f32 %v547, %v649
      %v663 = vmul.f32 %v552, %v649
      %v664 = vmul.f32 %v557, %v649
      %v665 = vmul.f32 %v562, %v649
      %v666 = vmul.f32 %v567, %v649
      %v667 = vmul.f32 %v572, %v649
      %v668 = vmul.f32 %v577, %v649
      %v669 = vmul.f32 %v582, %v649
      %v670 = vmul.f32 %v587, %v649
      %v671 = vmul.f32 %v592, %v649
      %v672 = vmul.f32 %v597, %v649
      %v673 = vmul.f32 %v602, %v649
      %v674 = vmul.f32 %v607, %v649
      %v675 = vmul.f32 %v612, %v649
      %v676 = vmul.f32 %v617, %v649
      %v677 = vmul.f32 %v622, %v649
      %v678 = vmul.f32 %v627, %v649
      %v679 = vmul.f32 %v632, %v649
      %v680 = vmul.f32 %v637, %v649
      %v681 = vmul.f32 %v642, %v649
      %v682 = vld [vmem:[%s3 + $0x1] sm:$0x1]
      %v683 = vlaneseq
      %v684 = vshrl.u32 %v683, 7
      %v685 = vsub.s32 0, %v684
      %v686 = vrot.slane %v682, %v685
      %v687 = vadd.f32 %v650, %v686
      %v688 = vadd.f32 %v651, %v686
      %v689 = vadd.f32 %v652, %v686
      %v690 = vadd.f32 %v653, %v686
      %v691 = vadd.f32 %v654, %v686
      %v692 = vadd.f32 %v655, %v686
      %v693 = vadd.f32 %v656, %v686
      %v694 = vadd.f32 %v657, %v686
      %v695 = vadd.f32 %v658, %v686
      %v696 = vadd.f32 %v659, %v686
      %v697 = vadd.f32 %v660, %v686
      %v698 = vadd.f32 %v661, %v686
      %v699 = vadd.f32 %v662, %v686
      %v700 = vadd.f32 %v663, %v686
      %v701 = vadd.f32 %v664, %v686
      %v702 = vadd.f32 %v665, %v686
      %v703 = vadd.f32 %v666, %v686
      %v704 = vadd.f32 %v667, %v686
      %v705 = vadd.f32 %v668, %v686
      %v706 = vadd.f32 %v669, %v686
      %v707 = vadd.f32 %v670, %v686
      %v708 = vadd.f32 %v671, %v686
      %v709 = vadd.f32 %v672, %v686
      %v710 = vadd.f32 %v673, %v686
      %v711 = vadd.f32 %v674, %v686
      %v712 = vadd.f32 %v675, %v686
      %v713 = vadd.f32 %v676, %v686
      %v714 = vadd.f32 %v677, %v686
      %v715 = vadd.f32 %v678, %v686
      %v716 = vadd.f32 %v679, %v686
      %v717 = vadd.f32 %v680, %v686
      %v718 = vadd.f32 %v681, %v686
      %v719 = vmax.f32 %v687, 0.0
      %v720 = vmax.f32 %v688, 0.0
      %v721 = vmax.f32 %v689, 0.0
      %v722 = vmax.f32 %v690, 0.0
      %v723 = vmax.f32 %v691, 0.0
      %v724 = vmax.f32 %v692, 0.0
      %v725 = vmax.f32 %v693, 0.0
      %v726 = vmax.f32 %v694, 0.0
      %v727 = vmax.f32 %v695, 0.0
      %v728 = vmax.f32 %v696, 0.0
      %v729 = vmax.f32 %v697, 0.0
      %v730 = vmax.f32 %v698, 0.0
      %v731 = vmax.f32 %v699, 0.0
      %v732 = vmax.f32 %v700, 0.0
      %v733 = vmax.f32 %v701, 0.0
      %v734 = vmax.f32 %v702, 0.0
      %v735 = vmax.f32 %v703, 0.0
      %v736 = vmax.f32 %v704, 0.0
      %v737 = vmax.f32 %v705, 0.0
      %v738 = vmax.f32 %v706, 0.0
      %v739 = vmax.f32 %v707, 0.0
      %v740 = vmax.f32 %v708, 0.0
      %v741 = vmax.f32 %v709, 0.0
      %v742 = vmax.f32 %v710, 0.0
      %v743 = vmax.f32 %v711, 0.0
      %v744 = vmax.f32 %v712, 0.0
      %v745 = vmax.f32 %v713, 0.0
      %v746 = vmax.f32 %v714, 0.0
      %v747 = vmax.f32 %v715, 0.0
      %v748 = vmax.f32 %v716, 0.0
      %v749 = vmax.f32 %v717, 0.0
      %v750 = vmax.f32 %v718, 0.0
      %v751 = vand.u32 2147483647, %v687
      %v752 = vand.u32 2147483647, %v688
      %v753 = vand.u32 2147483647, %v689
      %v754 = vand.u32 2147483647, %v690
      %v755 = vand.u32 2147483647, %v691
      %v756 = vand.u32 2147483647, %v692
      %v757 = vand.u32 2147483647, %v693
      %v758 = vand.u32 2147483647, %v694
      %v759 = vand.u32 2147483647, %v695
      %v760 = vand.u32 2147483647, %v696
      %v761 = vand.u32 2147483647, %v697
      %v762 = vand.u32 2147483647, %v698
      %v763 = vand.u32 2147483647, %v699
      %v764 = vand.u32 2147483647, %v700
      %v765 = vand.u32 2147483647, %v701
      %v766 = vand.u32 2147483647, %v702
      %v767 = vand.u32 2147483647, %v703
      %v768 = vand.u32 2147483647, %v704
      %v769 = vand.u32 2147483647, %v705
      %v770 = vand.u32 2147483647, %v706
      %v771 = vand.u32 2147483647, %v707
      %v772 = vand.u32 2147483647, %v708
      %v773 = vand.u32 2147483647, %v709
      %v774 = vand.u32 2147483647, %v710
      %v775 = vand.u32 2147483647, %v711
      %v776 = vand.u32 2147483647, %v712
      %v777 = vand.u32 2147483647, %v713
      %v778 = vand.u32 2147483647, %v714
      %v779 = vand.u32 2147483647, %v715
      %v780 = vand.u32 2147483647, %v716
      %v781 = vand.u32 2147483647, %v717
      %v782 = vand.u32 2147483647, %v718
      %v783 = vsub.f32 0.0, %v751
      %v784 = vsub.f32 0.0, %v752
      %v785 = vsub.f32 0.0, %v753
      %v786 = vsub.f32 0.0, %v754
      %v787 = vsub.f32 0.0, %v755
      %v788 = vsub.f32 0.0, %v756
      %v789 = vsub.f32 0.0, %v757
      %v790 = vsub.f32 0.0, %v758
      %v791 = vsub.f32 0.0, %v759
      %v792 = vsub.f32 0.0, %v760
      %v793 = vsub.f32 0.0, %v761
      %v794 = vsub.f32 0.0, %v762
      %v795 = vsub.f32 0.0, %v763
      %v796 = vsub.f32 0.0, %v764
      %v797 = vsub.f32 0.0, %v765
      %v798 = vsub.f32 0.0, %v766
      %v799 = vsub.f32 0.0, %v767
      %v800 = vsub.f32 0.0, %v768
      %v801 = vsub.f32 0.0, %v769
      %v802 = vsub.f32 0.0, %v770
      %v803 = vsub.f32 0.0, %v771
      %v804 = vsub.f32 0.0, %v772
      %v805 = vsub.f32 0.0, %v773
      %v806 = vsub.f32 0.0, %v774
      %v807 = vsub.f32 0.0, %v775
      %v808 = vsub.f32 0.0, %v776
      %v809 = vsub.f32 0.0, %v777
      %v810 = vsub.f32 0.0, %v778
      %v811 = vsub.f32 0.0, %v779
      %v812 = vsub.f32 0.0, %v780
      %v813 = vsub.f32 0.0, %v781
      %v814 = vsub.f32 0.0, %v782
      %v815 = vmul.f32 %v783, 1.442695
      %v816 = vpow.pop %v815
      %v817 = vmul.f32 %v784, 1.442695
      %v818 = vpow.pop %v817
      %v819 = vmul.f32 %v785, 1.442695
      %v820 = vpow.pop %v819
      %v821 = vmul.f32 %v786, 1.442695
      %v822 = vpow.pop %v821
      %v823 = vmul.f32 %v787, 1.442695
      %v824 = vpow.pop %v823
      %v825 = vmul.f32 %v788, 1.442695
      %v826 = vpow.pop %v825
      %v827 = vmul.f32 %v789, 1.442695
      %v828 = vpow.pop %v827
      %v829 = vmul.f32 %v790, 1.442695
      %v830 = vpow.pop %v829
      %v831 = vmul.f32 %v791, 1.442695
      %v832 = vpow.pop %v831
      %v833 = vmul.f32 %v792, 1.442695
      %v834 = vpow.pop %v833
      %v835 = vmul.f32 %v793, 1.442695
      %v836 = vpow.pop %v835
      %v837 = vmul.f32 %v794, 1.442695
      %v838 = vpow.pop %v837
      %v839 = vmul.f32 %v795, 1.442695
      %v840 = vpow.pop %v839
      %v841 = vmul.f32 %v796, 1.442695
      %v842 = vpow.pop %v841
      %v843 = vmul.f32 %v797, 1.442695
      %v844 = vpow.pop %v843
      %v845 = vmul.f32 %v798, 1.442695
      %v846 = vpow.pop %v845
      %v847 = vmul.f32 %v799, 1.442695
      %v848 = vpow.pop %v847
      %v849 = vmul.f32 %v800, 1.442695
      %v850 = vpow.pop %v849
      %v851 = vmul.f32 %v801, 1.442695
      %v852 = vpow.pop %v851
      %v853 = vmul.f32 %v802, 1.442695
      %v854 = vpow.pop %v853
      %v855 = vmul.f32 %v803, 1.442695
      %v856 = vpow.pop %v855
      %v857 = vmul.f32 %v804, 1.442695
      %v858 = vpow.pop %v857
      %v859 = vmul.f32 %v805, 1.442695
      %v860 = vpow.pop %v859
      %v861 = vmul.f32 %v806, 1.442695
      %v862 = vpow.pop %v861
      %v863 = vmul.f32 %v807, 1.442695
      %v864 = vpow.pop %v863
      %v865 = vmul.f32 %v808, 1.442695
      %v866 = vpow.pop %v865
      %v867 = vmul.f32 %v809, 1.442695
      %v868 = vpow.pop %v867
      %v869 = vmul.f32 %v810, 1.442695
      %v870 = vpow.pop %v869
      %v871 = vmul.f32 %v811, 1.442695
      %v872 = vpow.pop %v871
      %v873 = vmul.f32 %v812, 1.442695
      %v874 = vpow.pop %v873
      %v875 = vmul.f32 %v813, 1.442695
      %v876 = vpow.pop %v875
      %v877 = vmul.f32 %v814, 1.442695
      %v878 = vpow.pop %v877
      %v879 = vadd.f32 %v816, 1.0
      %v880 = vadd.f32 %v818, 1.0
      %v881 = vadd.f32 %v820, 1.0
      %v882 = vadd.f32 %v822, 1.0
      %v883 = vadd.f32 %v824, 1.0
      %v884 = vadd.f32 %v826, 1.0
      %v885 = vadd.f32 %v828, 1.0
      %v886 = vadd.f32 %v830, 1.0
      %v887 = vadd.f32 %v832, 1.0
      %v888 = vadd.f32 %v834, 1.0
      %v889 = vadd.f32 %v836, 1.0
      %v890 = vadd.f32 %v838, 1.0
      %v891 = vadd.f32 %v840, 1.0
      %v892 = vadd.f32 %v842, 1.0
      %v893 = vadd.f32 %v844, 1.0
      %v894 = vadd.f32 %v846, 1.0
      %v895 = vadd.f32 %v848, 1.0
      %v896 = vadd.f32 %v850, 1.0
      %v897 = vadd.f32 %v852, 1.0
      %v898 = vadd.f32 %v854, 1.0
      %v899 = vadd.f32 %v856, 1.0
      %v900 = vadd.f32 %v858, 1.0
      %v901 = vadd.f32 %v860, 1.0
      %v902 = vadd.f32 %v862, 1.0
      %v903 = vadd.f32 %v864, 1.0
      %v904 = vadd.f32 %v866, 1.0
      %v905 = vadd.f32 %v868, 1.0
      %v906 = vadd.f32 %v870, 1.0
      %v907 = vadd.f32 %v872, 1.0
      %v908 = vadd.f32 %v874, 1.0
      %v909 = vadd.f32 %v876, 1.0
      %v910 = vadd.f32 %v878, 1.0
      %v911 = vlog2.pop %v879
      %v912 = vmul.f32 %v911, 0.6931472
      %v913 = vlog2.pop %v880
      %v914 = vmul.f32 %v913, 0.6931472
      %v915 = vlog2.pop %v881
      %v916 = vmul.f32 %v915, 0.6931472
      %v917 = vlog2.pop %v882
      %v918 = vmul.f32 %v917, 0.6931472
      %v919 = vlog2.pop %v883
      %v920 = vmul.f32 %v919, 0.6931472
      %v921 = vlog2.pop %v884
      %v922 = vmul.f32 %v921, 0.6931472
      %v923 = vlog2.pop %v885
      %v924 = vmul.f32 %v923, 0.6931472
      %v925 = vlog2.pop %v886
      %v926 = vmul.f32 %v925, 0.6931472
      %v927 = vlog2.pop %v887
      %v928 = vmul.f32 %v927, 0.6931472
      %v929 = vlog2.pop %v888
      %v930 = vmul.f32 %v929, 0.6931472
      %v931 = vlog2.pop %v889
      %v932 = vmul.f32 %v931, 0.6931472
      %v933 = vlog2.pop %v890
      %v934 = vmul.f32 %v933, 0.6931472
      %v935 = vlog2.pop %v891
      %v936 = vmul.f32 %v935, 0.6931472
      %v937 = vlog2.pop %v892
      %v938 = vmul.f32 %v937, 0.6931472
      %v939 = vlog2.pop %v893
      %v940 = vmul.f32 %v939, 0.6931472
      %v941 = vlog2.pop %v894
      %v942 = vmul.f32 %v941, 0.6931472
      %v943 = vlog2.pop %v895
      %v944 = vmul.f32 %v943, 0.6931472
      %v945 = vlog2.pop %v896
      %v946 = vmul.f32 %v945, 0.6931472
      %v947 = vlog2.pop %v897
      %v948 = vmul.f32 %v947, 0.6931472
      %v949 = vlog2.pop %v898
      %v950 = vmul.f32 %v949, 0.6931472
      %v951 = vlog2.pop %v899
      %v952 = vmul.f32 %v951, 0.6931472
      %v953 = vlog2.pop %v900
      %v954 = vmul.f32 %v953, 0.6931472
      %v955 = vlog2.pop %v901
      %v956 = vmul.f32 %v955, 0.6931472
      %v957 = vlog2.pop %v902
      %v958 = vmul.f32 %v957, 0.6931472
      %v959 = vlog2.pop %v903
      %v960 = vmul.f32 %v959, 0.6931472
      %v961 = vlog2.pop %v904
      %v962 = vmul.f32 %v961, 0.6931472
      %v963 = vlog2.pop %v905
      %v964 = vmul.f32 %v963, 0.6931472
      %v965 = vlog2.pop %v906
      %v966 = vmul.f32 %v965, 0.6931472
      %v967 = vlog2.pop %v907
      %v968 = vmul.f32 %v967, 0.6931472
      %v969 = vlog2.pop %v908
      %v970 = vmul.f32 %v969, 0.6931472
      %v971 = vlog2.pop %v909
      %v972 = vmul.f32 %v971, 0.6931472
      %v973 = vlog2.pop %v910
      %v974 = vmul.f32 %v973, 0.6931472
      %v975 = vadd.f32 %v719, %v912
      %v976 = vadd.f32 %v720, %v914
      %v977 = vadd.f32 %v721, %v916
      %v978 = vadd.f32 %v722, %v918
      %v979 = vadd.f32 %v723, %v920
      %v980 = vadd.f32 %v724, %v922
      %v981 = vadd.f32 %v725, %v924
      %v982 = vadd.f32 %v726, %v926
      %v983 = vadd.f32 %v727, %v928
      %v984 = vadd.f32 %v728, %v930
      %v985 = vadd.f32 %v729, %v932
      %v986 = vadd.f32 %v730, %v934
      %v987 = vadd.f32 %v731, %v936
      %v988 = vadd.f32 %v732, %v938
      %v989 = vadd.f32 %v733, %v940
      %v990 = vadd.f32 %v734, %v942
      %v991 = vadd.f32 %v735, %v944
      %v992 = vadd.f32 %v736, %v946
      %v993 = vadd.f32 %v737, %v948
      %v994 = vadd.f32 %v738, %v950
      %v995 = vadd.f32 %v739, %v952
      %v996 = vadd.f32 %v740, %v954
      %v997 = vadd.f32 %v741, %v956
      %v998 = vadd.f32 %v742, %v958
      %v999 = vadd.f32 %v743, %v960
      %v1000 = vadd.f32 %v744, %v962
      %v1001 = vadd.f32 %v745, %v964
      %v1002 = vadd.f32 %v746, %v966
      %v1003 = vadd.f32 %v747, %v968
      %v1004 = vadd.f32 %v748, %v970
      %v1005 = vadd.f32 %v749, %v972
      %v1006 = vadd.f32 %v750, %v974
      %v1007 = vmul.f32 %v687, 0.5
      %v1008 = vmul.f32 %v688, 0.5
      %v1009 = vmul.f32 %v689, 0.5
      %v1010 = vmul.f32 %v690, 0.5
      %v1011 = vmul.f32 %v691, 0.5
      %v1012 = vmul.f32 %v692, 0.5
      %v1013 = vmul.f32 %v693, 0.5
      %v1014 = vmul.f32 %v694, 0.5
      %v1015 = vmul.f32 %v695, 0.5
      %v1016 = vmul.f32 %v696, 0.5
      %v1017 = vmul.f32 %v697, 0.5
      %v1018 = vmul.f32 %v698, 0.5
      %v1019 = vmul.f32 %v699, 0.5
      %v1020 = vmul.f32 %v700, 0.5
      %v1021 = vmul.f32 %v701, 0.5
      %v1022 = vmul.f32 %v702, 0.5
      %v1023 = vmul.f32 %v703, 0.5
      %v1024 = vmul.f32 %v704, 0.5
      %v1025 = vmul.f32 %v705, 0.5
      %v1026 = vmul.f32 %v706, 0.5
      %v1027 = vmul.f32 %v707, 0.5
      %v1028 = vmul.f32 %v708, 0.5
      %v1029 = vmul.f32 %v709, 0.5
      %v1030 = vmul.f32 %v710, 0.5
      %v1031 = vmul.f32 %v711, 0.5
      %v1032 = vmul.f32 %v712, 0.5
      %v1033 = vmul.f32 %v713, 0.5
      %v1034 = vmul.f32 %v714, 0.5
      %v1035 = vmul.f32 %v715, 0.5
      %v1036 = vmul.f32 %v716, 0.5
      %v1037 = vmul.f32 %v717, 0.5
      %v1038 = vmul.f32 %v718, 0.5
      %v1039 = vsub.f32 %v975, %v1007
      %v1040 = vsub.f32 %v976, %v1008
      %v1041 = vsub.f32 %v977, %v1009
      %v1042 = vsub.f32 %v978, %v1010
      %v1043 = vsub.f32 %v979, %v1011
      %v1044 = vsub.f32 %v980, %v1012
      %v1045 = vsub.f32 %v981, %v1013
      %v1046 = vsub.f32 %v982, %v1014
      %v1047 = vsub.f32 %v983, %v1015
      %v1048 = vsub.f32 %v984, %v1016
      %v1049 = vsub.f32 %v985, %v1017
      %v1050 = vsub.f32 %v986, %v1018
      %v1051 = vsub.f32 %v987, %v1019
      %v1052 = vsub.f32 %v988, %v1020
      %v1053 = vsub.f32 %v989, %v1021
      %v1054 = vsub.f32 %v990, %v1022
      %v1055 = vsub.f32 %v991, %v1023
      %v1056 = vsub.f32 %v992, %v1024
      %v1057 = vsub.f32 %v993, %v1025
      %v1058 = vsub.f32 %v994, %v1026
      %v1059 = vsub.f32 %v995, %v1027
      %v1060 = vsub.f32 %v996, %v1028
      %v1061 = vsub.f32 %v997, %v1029
      %v1062 = vsub.f32 %v998, %v1030
      %v1063 = vsub.f32 %v999, %v1031
      %v1064 = vsub.f32 %v1000, %v1032
      %v1065 = vsub.f32 %v1001, %v1033
      %v1066 = vsub.f32 %v1002, %v1034
      %v1067 = vsub.f32 %v1003, %v1035
      %v1068 = vsub.f32 %v1004, %v1036
      %v1069 = vsub.f32 %v1005, %v1037
      %v1070 = vsub.f32 %v1006, %v1038
      %v1071 = vld [vmem:[%s3 + $0x2] sm:$0x1]
      %v1072 = vlaneseq
      %v1073 = vshrl.u32 %v1072, 7
      %v1074 = vsub.s32 0, %v1073
      %v1075 = vrot.slane %v1071, %v1074
      %v1076 = vmul.f32 %v1039, %v1075
      %v1077 = vmul.f32 %v1040, %v1075
      %v1078 = vmul.f32 %v1041, %v1075
      %v1079 = vmul.f32 %v1042, %v1075
      %v1080 = vmul.f32 %v1043, %v1075
      %v1081 = vmul.f32 %v1044, %v1075
      %v1082 = vmul.f32 %v1045, %v1075
      %v1083 = vmul.f32 %v1046, %v1075
      %v1084 = vmul.f32 %v1047, %v1075
      %v1085 = vmul.f32 %v1048, %v1075
      %v1086 = vmul.f32 %v1049, %v1075
      %v1087 = vmul.f32 %v1050, %v1075
      %v1088 = vmul.f32 %v1051, %v1075
      %v1089 = vmul.f32 %v1052, %v1075
      %v1090 = vmul.f32 %v1053, %v1075
      %v1091 = vmul.f32 %v1054, %v1075
      %v1092 = vmul.f32 %v1055, %v1075
      %v1093 = vmul.f32 %v1056, %v1075
      %v1094 = vmul.f32 %v1057, %v1075
      %v1095 = vmul.f32 %v1058, %v1075
      %v1096 = vmul.f32 %v1059, %v1075
      %v1097 = vmul.f32 %v1060, %v1075
      %v1098 = vmul.f32 %v1061, %v1075
      %v1099 = vmul.f32 %v1062, %v1075
      %v1100 = vmul.f32 %v1063, %v1075
      %v1101 = vmul.f32 %v1064, %v1075
      %v1102 = vmul.f32 %v1065, %v1075
      %v1103 = vmul.f32 %v1066, %v1075
      %v1104 = vmul.f32 %v1067, %v1075
      %v1105 = vmul.f32 %v1068, %v1075
      %v1106 = vmul.f32 %v1069, %v1075
      %v1107 = vmul.f32 %v1070, %v1075
      %v1108 = vld [vmem:[%s3 + $0x7] sm:$0x1]
      %v1109 = vlaneseq
      %v1110 = vshrl.u32 %v1109, 7
      %v1111 = vsub.s32 0, %v1110
      %v1112 = vrot.slane %v1108, %v1111
      %v1113 = vmul.f32 %v1076, %v1112
      %v1114 = vmul.f32 %v1077, %v1112
      %v1115 = vmul.f32 %v1078, %v1112
      %v1116 = vmul.f32 %v1079, %v1112
      %v1117 = vmul.f32 %v1080, %v1112
      %v1118 = vmul.f32 %v1081, %v1112
      %v1119 = vmul.f32 %v1082, %v1112
      %v1120 = vmul.f32 %v1083, %v1112
      %v1121 = vmul.f32 %v1084, %v1112
      %v1122 = vmul.f32 %v1085, %v1112
      %v1123 = vmul.f32 %v1086, %v1112
      %v1124 = vmul.f32 %v1087, %v1112
      %v1125 = vmul.f32 %v1088, %v1112
      %v1126 = vmul.f32 %v1089, %v1112
      %v1127 = vmul.f32 %v1090, %v1112
      %v1128 = vmul.f32 %v1091, %v1112
      %v1129 = vmul.f32 %v1092, %v1112
      %v1130 = vmul.f32 %v1093, %v1112
      %v1131 = vmul.f32 %v1094, %v1112
      %v1132 = vmul.f32 %v1095, %v1112
      %v1133 = vmul.f32 %v1096, %v1112
      %v1134 = vmul.f32 %v1097, %v1112
      %v1135 = vmul.f32 %v1098, %v1112
      %v1136 = vmul.f32 %v1099, %v1112
      %v1137 = vmul.f32 %v1100, %v1112
      %v1138 = vmul.f32 %v1101, %v1112
      %v1139 = vmul.f32 %v1102, %v1112
      %v1140 = vmul.f32 %v1103, %v1112
      %v1141 = vmul.f32 %v1104, %v1112
      %v1142 = vmul.f32 %v1105, %v1112
      %v1143 = vmul.f32 %v1106, %v1112
      %v1144 = vmul.f32 %v1107, %v1112
      %v1145 = vld [vmem:[%s3 + $0x8] sm:$0x1]
      %v1146 = vlaneseq
      %v1147 = vshrl.u32 %v1146, 7
      %v1148 = vsub.s32 0, %v1147
      %v1149 = vrot.slane %v1145, %v1148
      %v1150 = vadd.f32 %v1113, %v1149
      %v1151 = vadd.f32 %v1114, %v1149
      %v1152 = vadd.f32 %v1115, %v1149
      %v1153 = vadd.f32 %v1116, %v1149
      %v1154 = vadd.f32 %v1117, %v1149
      %v1155 = vadd.f32 %v1118, %v1149
      %v1156 = vadd.f32 %v1119, %v1149
      %v1157 = vadd.f32 %v1120, %v1149
      %v1158 = vadd.f32 %v1121, %v1149
      %v1159 = vadd.f32 %v1122, %v1149
      %v1160 = vadd.f32 %v1123, %v1149
      %v1161 = vadd.f32 %v1124, %v1149
      %v1162 = vadd.f32 %v1125, %v1149
      %v1163 = vadd.f32 %v1126, %v1149
      %v1164 = vadd.f32 %v1127, %v1149
      %v1165 = vadd.f32 %v1128, %v1149
      %v1166 = vadd.f32 %v1129, %v1149
      %v1167 = vadd.f32 %v1130, %v1149
      %v1168 = vadd.f32 %v1131, %v1149
      %v1169 = vadd.f32 %v1132, %v1149
      %v1170 = vadd.f32 %v1133, %v1149
      %v1171 = vadd.f32 %v1134, %v1149
      %v1172 = vadd.f32 %v1135, %v1149
      %v1173 = vadd.f32 %v1136, %v1149
      %v1174 = vadd.f32 %v1137, %v1149
      %v1175 = vadd.f32 %v1138, %v1149
      %v1176 = vadd.f32 %v1139, %v1149
      %v1177 = vadd.f32 %v1140, %v1149
      %v1178 = vadd.f32 %v1141, %v1149
      %v1179 = vadd.f32 %v1142, %v1149
      %v1180 = vadd.f32 %v1143, %v1149
      %v1181 = vadd.f32 %v1144, %v1149
      %v1182 = vmax.f32 %v1150, 0.0
      %v1183 = vmax.f32 %v1151, 0.0
      %v1184 = vmax.f32 %v1152, 0.0
      %v1185 = vmax.f32 %v1153, 0.0
      %v1186 = vmax.f32 %v1154, 0.0
      %v1187 = vmax.f32 %v1155, 0.0
      %v1188 = vmax.f32 %v1156, 0.0
      %v1189 = vmax.f32 %v1157, 0.0
      %v1190 = vmax.f32 %v1158, 0.0
      %v1191 = vmax.f32 %v1159, 0.0
      %v1192 = vmax.f32 %v1160, 0.0
      %v1193 = vmax.f32 %v1161, 0.0
      %v1194 = vmax.f32 %v1162, 0.0
      %v1195 = vmax.f32 %v1163, 0.0
      %v1196 = vmax.f32 %v1164, 0.0
      %v1197 = vmax.f32 %v1165, 0.0
      %v1198 = vmax.f32 %v1166, 0.0
      %v1199 = vmax.f32 %v1167, 0.0
      %v1200 = vmax.f32 %v1168, 0.0
      %v1201 = vmax.f32 %v1169, 0.0
      %v1202 = vmax.f32 %v1170, 0.0
      %v1203 = vmax.f32 %v1171, 0.0
      %v1204 = vmax.f32 %v1172, 0.0
      %v1205 = vmax.f32 %v1173, 0.0
      %v1206 = vmax.f32 %v1174, 0.0
      %v1207 = vmax.f32 %v1175, 0.0
      %v1208 = vmax.f32 %v1176, 0.0
      %v1209 = vmax.f32 %v1177, 0.0
      %v1210 = vmax.f32 %v1178, 0.0
      %v1211 = vmax.f32 %v1179, 0.0
      %v1212 = vmax.f32 %v1180, 0.0
      %v1213 = vmax.f32 %v1181, 0.0
      %v1214 = vand.u32 2147483647, %v1150
      %v1215 = vand.u32 2147483647, %v1151
      %v1216 = vand.u32 2147483647, %v1152
      %v1217 = vand.u32 2147483647, %v1153
      %v1218 = vand.u32 2147483647, %v1154
      %v1219 = vand.u32 2147483647, %v1155
      %v1220 = vand.u32 2147483647, %v1156
      %v1221 = vand.u32 2147483647, %v1157
      %v1222 = vand.u32 2147483647, %v1158
      %v1223 = vand.u32 2147483647, %v1159
      %v1224 = vand.u32 2147483647, %v1160
      %v1225 = vand.u32 2147483647, %v1161
      %v1226 = vand.u32 2147483647, %v1162
      %v1227 = vand.u32 2147483647, %v1163
      %v1228 = vand.u32 2147483647, %v1164
      %v1229 = vand.u32 2147483647, %v1165
      %v1230 = vand.u32 2147483647, %v1166
      %v1231 = vand.u32 2147483647, %v1167
      %v1232 = vand.u32 2147483647, %v1168
      %v1233 = vand.u32 2147483647, %v1169
      %v1234 = vand.u32 2147483647, %v1170
      %v1235 = vand.u32 2147483647, %v1171
      %v1236 = vand.u32 2147483647, %v1172
      %v1237 = vand.u32 2147483647, %v1173
      %v1238 = vand.u32 2147483647, %v1174
      %v1239 = vand.u32 2147483647, %v1175
      %v1240 = vand.u32 2147483647, %v1176
      %v1241 = vand.u32 2147483647, %v1177
      %v1242 = vand.u32 2147483647, %v1178
      %v1243 = vand.u32 2147483647, %v1179
      %v1244 = vand.u32 2147483647, %v1180
      %v1245 = vand.u32 2147483647, %v1181
      %v1246 = vsub.f32 0.0, %v1214
      %v1247 = vsub.f32 0.0, %v1215
      %v1248 = vsub.f32 0.0, %v1216
      %v1249 = vsub.f32 0.0, %v1217
      %v1250 = vsub.f32 0.0, %v1218
      %v1251 = vsub.f32 0.0, %v1219
      %v1252 = vsub.f32 0.0, %v1220
      %v1253 = vsub.f32 0.0, %v1221
      %v1254 = vsub.f32 0.0, %v1222
      %v1255 = vsub.f32 0.0, %v1223
      %v1256 = vsub.f32 0.0, %v1224
      %v1257 = vsub.f32 0.0, %v1225
      %v1258 = vsub.f32 0.0, %v1226
      %v1259 = vsub.f32 0.0, %v1227
      %v1260 = vsub.f32 0.0, %v1228
      %v1261 = vsub.f32 0.0, %v1229
      %v1262 = vsub.f32 0.0, %v1230
      %v1263 = vsub.f32 0.0, %v1231
      %v1264 = vsub.f32 0.0, %v1232
      %v1265 = vsub.f32 0.0, %v1233
      %v1266 = vsub.f32 0.0, %v1234
      %v1267 = vsub.f32 0.0, %v1235
      %v1268 = vsub.f32 0.0, %v1236
      %v1269 = vsub.f32 0.0, %v1237
      %v1270 = vsub.f32 0.0, %v1238
      %v1271 = vsub.f32 0.0, %v1239
      %v1272 = vsub.f32 0.0, %v1240
      %v1273 = vsub.f32 0.0, %v1241
      %v1274 = vsub.f32 0.0, %v1242
      %v1275 = vsub.f32 0.0, %v1243
      %v1276 = vsub.f32 0.0, %v1244
      %v1277 = vsub.f32 0.0, %v1245
      %v1278 = vmul.f32 %v1246, 1.442695
      %v1279 = vpow.pop %v1278
      %v1280 = vmul.f32 %v1247, 1.442695
      %v1281 = vpow.pop %v1280
      %v1282 = vmul.f32 %v1248, 1.442695
      %v1283 = vpow.pop %v1282
      %v1284 = vmul.f32 %v1249, 1.442695
      %v1285 = vpow.pop %v1284
      %v1286 = vmul.f32 %v1250, 1.442695
      %v1287 = vpow.pop %v1286
      %v1288 = vmul.f32 %v1251, 1.442695
      %v1289 = vpow.pop %v1288
      %v1290 = vmul.f32 %v1252, 1.442695
      %v1291 = vpow.pop %v1290
      %v1292 = vmul.f32 %v1253, 1.442695
      %v1293 = vpow.pop %v1292
      %v1294 = vmul.f32 %v1254, 1.442695
      %v1295 = vpow.pop %v1294
      %v1296 = vmul.f32 %v1255, 1.442695
      %v1297 = vpow.pop %v1296
      %v1298 = vmul.f32 %v1256, 1.442695
      %v1299 = vpow.pop %v1298
      %v1300 = vmul.f32 %v1257, 1.442695
      %v1301 = vpow.pop %v1300
      %v1302 = vmul.f32 %v1258, 1.442695
      %v1303 = vpow.pop %v1302
      %v1304 = vmul.f32 %v1259, 1.442695
      %v1305 = vpow.pop %v1304
      %v1306 = vmul.f32 %v1260, 1.442695
      %v1307 = vpow.pop %v1306
      %v1308 = vmul.f32 %v1261, 1.442695
      %v1309 = vpow.pop %v1308
      %v1310 = vmul.f32 %v1262, 1.442695
      %v1311 = vpow.pop %v1310
      %v1312 = vmul.f32 %v1263, 1.442695
      %v1313 = vpow.pop %v1312
      %v1314 = vmul.f32 %v1264, 1.442695
      %v1315 = vpow.pop %v1314
      %v1316 = vmul.f32 %v1265, 1.442695
      %v1317 = vpow.pop %v1316
      %v1318 = vmul.f32 %v1266, 1.442695
      %v1319 = vpow.pop %v1318
      %v1320 = vmul.f32 %v1267, 1.442695
      %v1321 = vpow.pop %v1320
      %v1322 = vmul.f32 %v1268, 1.442695
      %v1323 = vpow.pop %v1322
      %v1324 = vmul.f32 %v1269, 1.442695
      %v1325 = vpow.pop %v1324
      %v1326 = vmul.f32 %v1270, 1.442695
      %v1327 = vpow.pop %v1326
      %v1328 = vmul.f32 %v1271, 1.442695
      %v1329 = vpow.pop %v1328
      %v1330 = vmul.f32 %v1272, 1.442695
      %v1331 = vpow.pop %v1330
      %v1332 = vmul.f32 %v1273, 1.442695
      %v1333 = vpow.pop %v1332
      %v1334 = vmul.f32 %v1274, 1.442695
      %v1335 = vpow.pop %v1334
      %v1336 = vmul.f32 %v1275, 1.442695
      %v1337 = vpow.pop %v1336
      %v1338 = vmul.f32 %v1276, 1.442695
      %v1339 = vpow.pop %v1338
      %v1340 = vmul.f32 %v1277, 1.442695
      %v1341 = vpow.pop %v1340
      %v1342 = vadd.f32 %v1279, 1.0
      %v1343 = vadd.f32 %v1281, 1.0
      %v1344 = vadd.f32 %v1283, 1.0
      %v1345 = vadd.f32 %v1285, 1.0
      %v1346 = vadd.f32 %v1287, 1.0
      %v1347 = vadd.f32 %v1289, 1.0
      %v1348 = vadd.f32 %v1291, 1.0
      %v1349 = vadd.f32 %v1293, 1.0
      %v1350 = vadd.f32 %v1295, 1.0
      %v1351 = vadd.f32 %v1297, 1.0
      %v1352 = vadd.f32 %v1299, 1.0
      %v1353 = vadd.f32 %v1301, 1.0
      %v1354 = vadd.f32 %v1303, 1.0
      %v1355 = vadd.f32 %v1305, 1.0
      %v1356 = vadd.f32 %v1307, 1.0
      %v1357 = vadd.f32 %v1309, 1.0
      %v1358 = vadd.f32 %v1311, 1.0
      %v1359 = vadd.f32 %v1313, 1.0
      %v1360 = vadd.f32 %v1315, 1.0
      %v1361 = vadd.f32 %v1317, 1.0
      %v1362 = vadd.f32 %v1319, 1.0
      %v1363 = vadd.f32 %v1321, 1.0
      %v1364 = vadd.f32 %v1323, 1.0
      %v1365 = vadd.f32 %v1325, 1.0
      %v1366 = vadd.f32 %v1327, 1.0
      %v1367 = vadd.f32 %v1329, 1.0
      %v1368 = vadd.f32 %v1331, 1.0
      %v1369 = vadd.f32 %v1333, 1.0
      %v1370 = vadd.f32 %v1335, 1.0
      %v1371 = vadd.f32 %v1337, 1.0
      %v1372 = vadd.f32 %v1339, 1.0
      %v1373 = vadd.f32 %v1341, 1.0
      %v1374 = vlog2.pop %v1342
      %v1375 = vmul.f32 %v1374, 0.6931472
      %v1376 = vlog2.pop %v1343
      %v1377 = vmul.f32 %v1376, 0.6931472
      %v1378 = vlog2.pop %v1344
      %v1379 = vmul.f32 %v1378, 0.6931472
      %v1380 = vlog2.pop %v1345
      %v1381 = vmul.f32 %v1380, 0.6931472
      %v1382 = vlog2.pop %v1346
      %v1383 = vmul.f32 %v1382, 0.6931472
      %v1384 = vlog2.pop %v1347
      %v1385 = vmul.f32 %v1384, 0.6931472
      %v1386 = vlog2.pop %v1348
      %v1387 = vmul.f32 %v1386, 0.6931472
      %v1388 = vlog2.pop %v1349
      %v1389 = vmul.f32 %v1388, 0.6931472
      %v1390 = vlog2.pop %v1350
      %v1391 = vmul.f32 %v1390, 0.6931472
      %v1392 = vlog2.pop %v1351
      %v1393 = vmul.f32 %v1392, 0.6931472
      %v1394 = vlog2.pop %v1352
      %v1395 = vmul.f32 %v1394, 0.6931472
      %v1396 = vlog2.pop %v1353
      %v1397 = vmul.f32 %v1396, 0.6931472
      %v1398 = vlog2.pop %v1354
      %v1399 = vmul.f32 %v1398, 0.6931472
      %v1400 = vlog2.pop %v1355
      %v1401 = vmul.f32 %v1400, 0.6931472
      %v1402 = vlog2.pop %v1356
      %v1403 = vmul.f32 %v1402, 0.6931472
      %v1404 = vlog2.pop %v1357
      %v1405 = vmul.f32 %v1404, 0.6931472
      %v1406 = vlog2.pop %v1358
      %v1407 = vmul.f32 %v1406, 0.6931472
      %v1408 = vlog2.pop %v1359
      %v1409 = vmul.f32 %v1408, 0.6931472
      %v1410 = vlog2.pop %v1360
      %v1411 = vmul.f32 %v1410, 0.6931472
      %v1412 = vlog2.pop %v1361
      %v1413 = vmul.f32 %v1412, 0.6931472
      %v1414 = vlog2.pop %v1362
      %v1415 = vmul.f32 %v1414, 0.6931472
      %v1416 = vlog2.pop %v1363
      %v1417 = vmul.f32 %v1416, 0.6931472
      %v1418 = vlog2.pop %v1364
      %v1419 = vmul.f32 %v1418, 0.6931472
      %v1420 = vlog2.pop %v1365
      %v1421 = vmul.f32 %v1420, 0.6931472
      %v1422 = vlog2.pop %v1366
      %v1423 = vmul.f32 %v1422, 0.6931472
      %v1424 = vlog2.pop %v1367
      %v1425 = vmul.f32 %v1424, 0.6931472
      %v1426 = vlog2.pop %v1368
      %v1427 = vmul.f32 %v1426, 0.6931472
      %v1428 = vlog2.pop %v1369
      %v1429 = vmul.f32 %v1428, 0.6931472
      %v1430 = vlog2.pop %v1370
      %v1431 = vmul.f32 %v1430, 0.6931472
      %v1432 = vlog2.pop %v1371
      %v1433 = vmul.f32 %v1432, 0.6931472
      %v1434 = vlog2.pop %v1372
      %v1435 = vmul.f32 %v1434, 0.6931472
      %v1436 = vlog2.pop %v1373
      %v1437 = vmul.f32 %v1436, 0.6931472
      %v1438 = vadd.f32 %v1182, %v1375
      %v1439 = vadd.f32 %v1183, %v1377
      %v1440 = vadd.f32 %v1184, %v1379
      %v1441 = vadd.f32 %v1185, %v1381
      %v1442 = vadd.f32 %v1186, %v1383
      %v1443 = vadd.f32 %v1187, %v1385
      %v1444 = vadd.f32 %v1188, %v1387
      %v1445 = vadd.f32 %v1189, %v1389
      %v1446 = vadd.f32 %v1190, %v1391
      %v1447 = vadd.f32 %v1191, %v1393
      %v1448 = vadd.f32 %v1192, %v1395
      %v1449 = vadd.f32 %v1193, %v1397
      %v1450 = vadd.f32 %v1194, %v1399
      %v1451 = vadd.f32 %v1195, %v1401
      %v1452 = vadd.f32 %v1196, %v1403
      %v1453 = vadd.f32 %v1197, %v1405
      %v1454 = vadd.f32 %v1198, %v1407
      %v1455 = vadd.f32 %v1199, %v1409
      %v1456 = vadd.f32 %v1200, %v1411
      %v1457 = vadd.f32 %v1201, %v1413
      %v1458 = vadd.f32 %v1202, %v1415
      %v1459 = vadd.f32 %v1203, %v1417
      %v1460 = vadd.f32 %v1204, %v1419
      %v1461 = vadd.f32 %v1205, %v1421
      %v1462 = vadd.f32 %v1206, %v1423
      %v1463 = vadd.f32 %v1207, %v1425
      %v1464 = vadd.f32 %v1208, %v1427
      %v1465 = vadd.f32 %v1209, %v1429
      %v1466 = vadd.f32 %v1210, %v1431
      %v1467 = vadd.f32 %v1211, %v1433
      %v1468 = vadd.f32 %v1212, %v1435
      %v1469 = vadd.f32 %v1213, %v1437
      %v1470 = vld [vmem:[%s4] sm:$0xff]
      %v1471 = vld [vmem:[%s4 + $0x8] sm:$0xff]
      %v1472 = vld [vmem:[%s4 + $0x10] sm:$0xff]
      %v1473 = vld [vmem:[%s4 + $0x18] sm:$0xff]
      %v1474 = vld [vmem:[%s4 + $0x20] sm:$0xff]
      %v1475 = vld [vmem:[%s4 + $0x28] sm:$0xff]
      %v1476 = vld [vmem:[%s4 + $0x30] sm:$0xff]
      %v1477 = vld [vmem:[%s4 + $0x38] sm:$0xff]
      %v1478 = vld [vmem:[%s4 + $0x40] sm:$0xff]
      %v1479 = vld [vmem:[%s4 + $0x48] sm:$0xff]
      %v1480 = vld [vmem:[%s4 + $0x50] sm:$0xff]
      %v1481 = vld [vmem:[%s4 + $0x58] sm:$0xff]
      %v1482 = vld [vmem:[%s4 + $0x60] sm:$0xff]
      %v1483 = vld [vmem:[%s4 + $0x68] sm:$0xff]
      %v1484 = vld [vmem:[%s4 + $0x70] sm:$0xff]
      %v1485 = vld [vmem:[%s4 + $0x78] sm:$0xff]
      %1486 = vmatprep.subr.mxu0 0.0
      %1487 = vmatpush1.msra.mxu0 %v1470
      %1488 = vmatprep.subr.mxu0 0.0
      %1489 = vmatpush1.msra.mxu0 %v1471
      %1490 = vmatprep.subr.mxu0 0.0
      %1491 = vmatpush1.msra.mxu0 %v1472
      %1492 = vmatprep.subr.mxu0 0.0
      %1493 = vmatpush1.msra.mxu0 %v1473
      %1494 = vmatprep.subr.mxu0 0.0
      %1495 = vmatpush1.msra.mxu0 %v1474
      %1496 = vmatprep.subr.mxu0 0.0
      %1497 = vmatpush1.msra.mxu0 %v1475
      %1498 = vmatprep.subr.mxu0 0.0
      %1499 = vmatpush1.msra.mxu0 %v1476
      %1500 = vmatprep.subr.mxu0 0.0
      %1501 = vmatpush1.msra.mxu0 %v1477
      %1502 = vmatprep.subr.mxu0 0.0
      %1503 = vmatpush1.msra.mxu0 %v1478
      %1504 = vmatprep.subr.mxu0 0.0
      %1505 = vmatpush1.msra.mxu0 %v1479
      %1506 = vmatprep.subr.mxu0 0.0
      %1507 = vmatpush1.msra.mxu0 %v1480
      %1508 = vmatprep.subr.mxu0 0.0
      %1509 = vmatpush1.msra.mxu0 %v1481
      %1510 = vmatprep.subr.mxu0 0.0
      %1511 = vmatpush1.msra.mxu0 %v1482
      %1512 = vmatprep.subr.mxu0 0.0
      %1513 = vmatpush1.msra.mxu0 %v1483
      %1514 = vmatprep.subr.mxu0 0.0
      %1515 = vmatpush1.msra.mxu0 %v1484
      %1516 = vmatprep.subr.mxu0 0.0
      %1517 = vmatpush1.msra.mxu0 %v1485
      %1518 = vmatprep.subr.mxu0 0.0
      %1519 = vmatpush1.msra.mxu0 0.0
      %1520 = vmatprep.subr.mxu0 0.0
      %1521 = vmatpush1.msra.mxu0 0.0
      %1522 = vmatprep.subr.mxu0 0.0
      %1523 = vmatpush1.msra.mxu0 0.0
      %1524 = vmatprep.subr.mxu0 0.0
      %1525 = vmatpush1.msra.mxu0 0.0
      %1526 = vmatprep.subr.mxu0 0.0
      %1527 = vmatpush1.msra.mxu0 0.0
      %1528 = vmatprep.subr.mxu0 0.0
      %1529 = vmatpush1.msra.mxu0 0.0
      %1530 = vmatprep.subr.mxu0 0.0
      %1531 = vmatpush1.msra.mxu0 0.0
      %1532 = vmatprep.subr.mxu0 0.0
      %1533 = vmatpush1.msra.mxu0 0.0
      %1534 = vmatprep.subr.mxu0 0.0
      %1535 = vmatpush1.msra.mxu0 0.0
      %1536 = vmatprep.subr.mxu0 0.0
      %1537 = vmatpush1.msra.mxu0 0.0
      %1538 = vmatprep.subr.mxu0 0.0
      %1539 = vmatpush1.msra.mxu0 0.0
      %1540 = vmatprep.subr.mxu0 0.0
      %1541 = vmatpush1.msra.mxu0 0.0
      %1542 = vmatprep.subr.mxu0 0.0
      %1543 = vmatpush1.msra.mxu0 0.0
      %1544 = vmatprep.subr.mxu0 0.0
      %1545 = vmatpush1.msra.mxu0 0.0
      %1546 = vmatprep.subr.mxu0 0.0
      %1547 = vmatpush1.msra.mxu0 0.0
      %1548 = vmatprep.subr.mxu0 0.0
      %1549 = vmatpush1.msra.mxu0 0.0
      %1550 = vmatprep.mubr.f32.mxu0 0.0
      %1551 = vmatmul.mubr.f32.gmra.mrb[0].mxu0 %v1438
      %v1552 = vpop.f32.mrb[0].mxu0
      %v1553 = vadd.f32 0.0, %v1552
      %v1554 = vpop.f32.mrb[0].mxu0
      %1555 = vmatprep.mubr.f32.mxu0 0.0
      %1556 = vmatmul.mubr.f32.gmra.mrb[0].mxu0 %v1439
      %v1557 = vpop.f32.mrb[0].mxu0
      %v1558 = vadd.f32 0.0, %v1557
      %v1559 = vpop.f32.mrb[0].mxu0
      %1560 = vmatprep.mubr.f32.mxu0 0.0
      %1561 = vmatmul.mubr.f32.gmra.mrb[0].mxu0 %v1440
      %v1562 = vpop.f32.mrb[0].mxu0
      %v1563 = vadd.f32 0.0, %v1562
      %v1564 = vpop.f32.mrb[0].mxu0
      %1565 = vmatprep.mubr.f32.mxu0 0.0
      %1566 = vmatmul.mubr.f32.gmra.mrb[0].mxu0 %v1441
      %v1567 = vpop.f32.mrb[0].mxu0
      %v1568 = vadd.f32 0.0, %v1567
      %v1569 = vpop.f32.mrb[0].mxu0
      %1570 = vmatprep.mubr.f32.mxu0 0.0
      %1571 = vmatmul.mubr.f32.gmra.mrb[0].mxu0 %v1442
      %v1572 = vpop.f32.mrb[0].mxu0
      %v1573 = vadd.f32 0.0, %v1572
      %v1574 = vpop.f32.mrb[0].mxu0
      %1575 = vmatprep.mubr.f32.mxu0 0.0
      %1576 = vmatmul.mubr.f32.gmra.mrb[0].mxu0 %v1443
      %v1577 = vpop.f32.mrb[0].mxu0
      %v1578 = vadd.f32 0.0, %v1577
      %v1579 = vpop.f32.mrb[0].mxu0
      %1580 = vmatprep.mubr.f32.mxu0 0.0
      %1581 = vmatmul.mubr.f32.gmra.mrb[0].mxu0 %v1444
      %v1582 = vpop.f32.mrb[0].mxu0
      %v1583 = vadd.f32 0.0, %v1582
      %v1584 = vpop.f32.mrb[0].mxu0
      %1585 = vmatprep.mubr.f32.mxu0 0.0
      %1586 = vmatmul.mubr.f32.gmra.mrb[0].mxu0 %v1445
      %v1587 = vpop.f32.mrb[0].mxu0
      %v1588 = vadd.f32 0.0, %v1587
      %v1589 = vpop.f32.mrb[0].mxu0
      %1590 = vmatprep.mubr.f32.mxu0 0.0
      %1591 = vmatmul.mubr.f32.gmra.mrb[0].mxu0 %v1446
      %v1592 = vpop.f32.mrb[0].mxu0
      %v1593 = vadd.f32 0.0, %v1592
      %v1594 = vpop.f32.mrb[0].mxu0
      %1595 = vmatprep.mubr.f32.mxu0 0.0
      %1596 = vmatmul.mubr.f32.gmra.mrb[0].mxu0 %v1447
      %v1597 = vpop.f32.mrb[0].mxu0
      %v1598 = vadd.f32 0.0, %v1597
      %v1599 = vpop.f32.mrb[0].mxu0
      %1600 = vmatprep.mubr.f32.mxu0 0.0
      %1601 = vmatmul.mubr.f32.gmra.mrb[0].mxu0 %v1448
      %v1602 = vpop.f32.mrb[0].mxu0
      %v1603 = vadd.f32 0.0, %v1602
      %v1604 = vpop.f32.mrb[0].mxu0
      %1605 = vmatprep.mubr.f32.mxu0 0.0
      %1606 = vmatmul.mubr.f32.gmra.mrb[0].mxu0 %v1449
      %v1607 = vpop.f32.mrb[0].mxu0
      %v1608 = vadd.f32 0.0, %v1607
      %v1609 = vpop.f32.mrb[0].mxu0
      %1610 = vmatprep.mubr.f32.mxu0 0.0
      %1611 = vmatmul.mubr.f32.gmra.mrb[0].mxu0 %v1450
      %v1612 = vpop.f32.mrb[0].mxu0
      %v1613 = vadd.f32 0.0, %v1612
      %v1614 = vpop.f32.mrb[0].mxu0
      %1615 = vmatprep.mubr.f32.mxu0 0.0
      %1616 = vmatmul.mubr.f32.gmra.mrb[0].mxu0 %v1451
      %v1617 = vpop.f32.mrb[0].mxu0
      %v1618 = vadd.f32 0.0, %v1617
      %v1619 = vpop.f32.mrb[0].mxu0
      %1620 = vmatprep.mubr.f32.mxu0 0.0
      %1621 = vmatmul.mubr.f32.gmra.mrb[0].mxu0 %v1452
      %v1622 = vpop.f32.mrb[0].mxu0
      %v1623 = vadd.f32 0.0, %v1622
      %v1624 = vpop.f32.mrb[0].mxu0
      %1625 = vmatprep.mubr.f32.mxu0 0.0
      %1626 = vmatmul.mubr.f32.gmra.mrb[0].mxu0 %v1453
      %v1627 = vpop.f32.mrb[0].mxu0
      %v1628 = vadd.f32 0.0, %v1627
      %v1629 = vpop.f32.mrb[0].mxu0
      %1630 = vmatprep.mubr.f32.mxu0 0.0
      %1631 = vmatmul.mubr.f32.gmra.mrb[0].mxu0 %v1454
      %v1632 = vpop.f32.mrb[0].mxu0
      %v1633 = vadd.f32 0.0, %v1632
      %v1634 = vpop.f32.mrb[0].mxu0
      %1635 = vmatprep.mubr.f32.mxu0 0.0
      %1636 = vmatmul.mubr.f32.gmra.mrb[0].mxu0 %v1455
      %v1637 = vpop.f32.mrb[0].mxu0
      %v1638 = vadd.f32 0.0, %v1637
      %v1639 = vpop.f32.mrb[0].mxu0
      %1640 = vmatprep.mubr.f32.mxu0 0.0
      %1641 = vmatmul.mubr.f32.gmra.mrb[0].mxu0 %v1456
      %v1642 = vpop.f32.mrb[0].mxu0
      %v1643 = vadd.f32 0.0, %v1642
      %v1644 = vpop.f32.mrb[0].mxu0
      %1645 = vmatprep.mubr.f32.mxu0 0.0
      %1646 = vmatmul.mubr.f32.gmra.mrb[0].mxu0 %v1457
      %v1647 = vpop.f32.mrb[0].mxu0
      %v1648 = vadd.f32 0.0, %v1647
      %v1649 = vpop.f32.mrb[0].mxu0
      %1650 = vmatprep.mubr.f32.mxu0 0.0
      %1651 = vmatmul.mubr.f32.gmra.mrb[0].mxu0 %v1458
      %v1652 = vpop.f32.mrb[0].mxu0
      %v1653 = vadd.f32 0.0, %v1652
      %v1654 = vpop.f32.mrb[0].mxu0
      %1655 = vmatprep.mubr.f32.mxu0 0.0
      %1656 = vmatmul.mubr.f32.gmra.mrb[0].mxu0 %v1459
      %v1657 = vpop.f32.mrb[0].mxu0
      %v1658 = vadd.f32 0.0, %v1657
      %v1659 = vpop.f32.mrb[0].mxu0
      %1660 = vmatprep.mubr.f32.mxu0 0.0
      %1661 = vmatmul.mubr.f32.gmra.mrb[0].mxu0 %v1460
      %v1662 = vpop.f32.mrb[0].mxu0
      %v1663 = vadd.f32 0.0, %v1662
      %v1664 = vpop.f32.mrb[0].mxu0
      %1665 = vmatprep.mubr.f32.mxu0 0.0
      %1666 = vmatmul.mubr.f32.gmra.mrb[0].mxu0 %v1461
      %v1667 = vpop.f32.mrb[0].mxu0
      %v1668 = vadd.f32 0.0, %v1667
      %v1669 = vpop.f32.mrb[0].mxu0
      %1670 = vmatprep.mubr.f32.mxu0 0.0
      %1671 = vmatmul.mubr.f32.gmra.mrb[0].mxu0 %v1462
      %v1672 = vpop.f32.mrb[0].mxu0
      %v1673 = vadd.f32 0.0, %v1672
      %v1674 = vpop.f32.mrb[0].mxu0
      %1675 = vmatprep.mubr.f32.mxu0 0.0
      %1676 = vmatmul.mubr.f32.gmra.mrb[0].mxu0 %v1463
      %v1677 = vpop.f32.mrb[0].mxu0
      %v1678 = vadd.f32 0.0, %v1677
      %v1679 = vpop.f32.mrb[0].mxu0
      %1680 = vmatprep.mubr.f32.mxu0 0.0
      %1681 = vmatmul.mubr.f32.gmra.mrb[0].mxu0 %v1464
      %v1682 = vpop.f32.mrb[0].mxu0
      %v1683 = vadd.f32 0.0, %v1682
      %v1684 = vpop.f32.mrb[0].mxu0
      %1685 = vmatprep.mubr.f32.mxu0 0.0
      %1686 = vmatmul.mubr.f32.gmra.mrb[0].mxu0 %v1465
      %v1687 = vpop.f32.mrb[0].mxu0
      %v1688 = vadd.f32 0.0, %v1687
      %v1689 = vpop.f32.mrb[0].mxu0
      %1690 = vmatprep.mubr.f32.mxu0 0.0
      %1691 = vmatmul.mubr.f32.gmra.mrb[0].mxu0 %v1466
      %v1692 = vpop.f32.mrb[0].mxu0
      %v1693 = vadd.f32 0.0, %v1692
      %v1694 = vpop.f32.mrb[0].mxu0
      %1695 = vmatprep.mubr.f32.mxu0 0.0
      %1696 = vmatmul.mubr.f32.gmra.mrb[0].mxu0 %v1467
      %v1697 = vpop.f32.mrb[0].mxu0
      %v1698 = vadd.f32 0.0, %v1697
      %v1699 = vpop.f32.mrb[0].mxu0
      %1700 = vmatprep.mubr.f32.mxu0 0.0
      %1701 = vmatmul.mubr.f32.gmra.mrb[0].mxu0 %v1468
      %v1702 = vpop.f32.mrb[0].mxu0
      %v1703 = vadd.f32 0.0, %v1702
      %v1704 = vpop.f32.mrb[0].mxu0
      %1705 = vmatprep.mubr.f32.mxu0 0.0
      %1706 = vmatmul.mubr.f32.gmra.mrb[0].mxu0 %v1469
      %v1707 = vpop.f32.mrb[0].mxu0
      %v1708 = vadd.f32 0.0, %v1707
      %v1709 = vpop.f32.mrb[0].mxu0
      %1710 = vdwg.mxu0
      %v1711 = vld [vmem:[%s3 + $0x9] sm:$0x1]
      %v1712 = vlaneseq
      %v1713 = vshrl.u32 %v1712, 7
      %v1714 = vsub.s32 0, %v1713
      %v1715 = vrot.slane %v1711, %v1714
      %v1716 = vmul.f32 %v1553, %v1715
      %v1717 = vmul.f32 %v1558, %v1715
      %v1718 = vmul.f32 %v1563, %v1715
      %v1719 = vmul.f32 %v1568, %v1715
      %v1720 = vmul.f32 %v1573, %v1715
      %v1721 = vmul.f32 %v1578, %v1715
      %v1722 = vmul.f32 %v1583, %v1715
      %v1723 = vmul.f32 %v1588, %v1715
      %v1724 = vmul.f32 %v1593, %v1715
      %v1725 = vmul.f32 %v1598, %v1715
      %v1726 = vmul.f32 %v1603, %v1715
      %v1727 = vmul.f32 %v1608, %v1715
      %v1728 = vmul.f32 %v1613, %v1715
      %v1729 = vmul.f32 %v1618, %v1715
      %v1730 = vmul.f32 %v1623, %v1715
      %v1731 = vmul.f32 %v1628, %v1715
      %v1732 = vmul.f32 %v1633, %v1715
      %v1733 = vmul.f32 %v1638, %v1715
      %v1734 = vmul.f32 %v1643, %v1715
      %v1735 = vmul.f32 %v1648, %v1715
      %v1736 = vmul.f32 %v1653, %v1715
      %v1737 = vmul.f32 %v1658, %v1715
      %v1738 = vmul.f32 %v1663, %v1715
      %v1739 = vmul.f32 %v1668, %v1715
      %v1740 = vmul.f32 %v1673, %v1715
      %v1741 = vmul.f32 %v1678, %v1715
      %v1742 = vmul.f32 %v1683, %v1715
      %v1743 = vmul.f32 %v1688, %v1715
      %v1744 = vmul.f32 %v1693, %v1715
      %v1745 = vmul.f32 %v1698, %v1715
      %v1746 = vmul.f32 %v1703, %v1715
      %v1747 = vmul.f32 %v1708, %v1715
      %v1748 = vld [vmem:[%s3 + $0xa] sm:$0x1]
      %v1749 = vlaneseq
      %v1750 = vshrl.u32 %v1749, 7
      %v1751 = vsub.s32 0, %v1750
      %v1752 = vrot.slane %v1748, %v1751
      %v1753 = vadd.f32 %v1716, %v1752
      %v1754 = vadd.f32 %v1717, %v1752
      %v1755 = vadd.f32 %v1718, %v1752
      %v1756 = vadd.f32 %v1719, %v1752
      %v1757 = vadd.f32 %v1720, %v1752
      %v1758 = vadd.f32 %v1721, %v1752
      %v1759 = vadd.f32 %v1722, %v1752
      %v1760 = vadd.f32 %v1723, %v1752
      %v1761 = vadd.f32 %v1724, %v1752
      %v1762 = vadd.f32 %v1725, %v1752
      %v1763 = vadd.f32 %v1726, %v1752
      %v1764 = vadd.f32 %v1727, %v1752
      %v1765 = vadd.f32 %v1728, %v1752
      %v1766 = vadd.f32 %v1729, %v1752
      %v1767 = vadd.f32 %v1730, %v1752
      %v1768 = vadd.f32 %v1731, %v1752
      %v1769 = vadd.f32 %v1732, %v1752
      %v1770 = vadd.f32 %v1733, %v1752
      %v1771 = vadd.f32 %v1734, %v1752
      %v1772 = vadd.f32 %v1735, %v1752
      %v1773 = vadd.f32 %v1736, %v1752
      %v1774 = vadd.f32 %v1737, %v1752
      %v1775 = vadd.f32 %v1738, %v1752
      %v1776 = vadd.f32 %v1739, %v1752
      %v1777 = vadd.f32 %v1740, %v1752
      %v1778 = vadd.f32 %v1741, %v1752
      %v1779 = vadd.f32 %v1742, %v1752
      %v1780 = vadd.f32 %v1743, %v1752
      %v1781 = vadd.f32 %v1744, %v1752
      %v1782 = vadd.f32 %v1745, %v1752
      %v1783 = vadd.f32 %v1746, %v1752
      %v1784 = vadd.f32 %v1747, %v1752
      %v1785 = vmax.f32 %v1753, 0.0
      %v1786 = vmax.f32 %v1754, 0.0
      %v1787 = vmax.f32 %v1755, 0.0
      %v1788 = vmax.f32 %v1756, 0.0
      %v1789 = vmax.f32 %v1757, 0.0
      %v1790 = vmax.f32 %v1758, 0.0
      %v1791 = vmax.f32 %v1759, 0.0
      %v1792 = vmax.f32 %v1760, 0.0
      %v1793 = vmax.f32 %v1761, 0.0
      %v1794 = vmax.f32 %v1762, 0.0
      %v1795 = vmax.f32 %v1763, 0.0
      %v1796 = vmax.f32 %v1764, 0.0
      %v1797 = vmax.f32 %v1765, 0.0
      %v1798 = vmax.f32 %v1766, 0.0
      %v1799 = vmax.f32 %v1767, 0.0
      %v1800 = vmax.f32 %v1768, 0.0
      %v1801 = vmax.f32 %v1769, 0.0
      %v1802 = vmax.f32 %v1770, 0.0
      %v1803 = vmax.f32 %v1771, 0.0
      %v1804 = vmax.f32 %v1772, 0.0
      %v1805 = vmax.f32 %v1773, 0.0
      %v1806 = vmax.f32 %v1774, 0.0
      %v1807 = vmax.f32 %v1775, 0.0
      %v1808 = vmax.f32 %v1776, 0.0
      %v1809 = vmax.f32 %v1777, 0.0
      %v1810 = vmax.f32 %v1778, 0.0
      %v1811 = vmax.f32 %v1779, 0.0
      %v1812 = vmax.f32 %v1780, 0.0
      %v1813 = vmax.f32 %v1781, 0.0
      %v1814 = vmax.f32 %v1782, 0.0
      %v1815 = vmax.f32 %v1783, 0.0
      %v1816 = vmax.f32 %v1784, 0.0
      %v1817 = vand.u32 2147483647, %v1753
      %v1818 = vand.u32 2147483647, %v1754
      %v1819 = vand.u32 2147483647, %v1755
      %v1820 = vand.u32 2147483647, %v1756
      %v1821 = vand.u32 2147483647, %v1757
      %v1822 = vand.u32 2147483647, %v1758
      %v1823 = vand.u32 2147483647, %v1759
      %v1824 = vand.u32 2147483647, %v1760
      %v1825 = vand.u32 2147483647, %v1761
      %v1826 = vand.u32 2147483647, %v1762
      %v1827 = vand.u32 2147483647, %v1763
      %v1828 = vand.u32 2147483647, %v1764
      %v1829 = vand.u32 2147483647, %v1765
      %v1830 = vand.u32 2147483647, %v1766
      %v1831 = vand.u32 2147483647, %v1767
      %v1832 = vand.u32 2147483647, %v1768
      %v1833 = vand.u32 2147483647, %v1769
      %v1834 = vand.u32 2147483647, %v1770
      %v1835 = vand.u32 2147483647, %v1771
      %v1836 = vand.u32 2147483647, %v1772
      %v1837 = vand.u32 2147483647, %v1773
      %v1838 = vand.u32 2147483647, %v1774
      %v1839 = vand.u32 2147483647, %v1775
      %v1840 = vand.u32 2147483647, %v1776
      %v1841 = vand.u32 2147483647, %v1777
      %v1842 = vand.u32 2147483647, %v1778
      %v1843 = vand.u32 2147483647, %v1779
      %v1844 = vand.u32 2147483647, %v1780
      %v1845 = vand.u32 2147483647, %v1781
      %v1846 = vand.u32 2147483647, %v1782
      %v1847 = vand.u32 2147483647, %v1783
      %v1848 = vand.u32 2147483647, %v1784
      %v1849 = vsub.f32 0.0, %v1817
      %v1850 = vsub.f32 0.0, %v1818
      %v1851 = vsub.f32 0.0, %v1819
      %v1852 = vsub.f32 0.0, %v1820
      %v1853 = vsub.f32 0.0, %v1821
      %v1854 = vsub.f32 0.0, %v1822
      %v1855 = vsub.f32 0.0, %v1823
      %v1856 = vsub.f32 0.0, %v1824
      %v1857 = vsub.f32 0.0, %v1825
      %v1858 = vsub.f32 0.0, %v1826
      %v1859 = vsub.f32 0.0, %v1827
      %v1860 = vsub.f32 0.0, %v1828
      %v1861 = vsub.f32 0.0, %v1829
      %v1862 = vsub.f32 0.0, %v1830
      %v1863 = vsub.f32 0.0, %v1831
      %v1864 = vsub.f32 0.0, %v1832
      %v1865 = vsub.f32 0.0, %v1833
      %v1866 = vsub.f32 0.0, %v1834
      %v1867 = vsub.f32 0.0, %v1835
      %v1868 = vsub.f32 0.0, %v1836
      %v1869 = vsub.f32 0.0, %v1837
      %v1870 = vsub.f32 0.0, %v1838
      %v1871 = vsub.f32 0.0, %v1839
      %v1872 = vsub.f32 0.0, %v1840
      %v1873 = vsub.f32 0.0, %v1841
      %v1874 = vsub.f32 0.0, %v1842
      %v1875 = vsub.f32 0.0, %v1843
      %v1876 = vsub.f32 0.0, %v1844
      %v1877 = vsub.f32 0.0, %v1845
      %v1878 = vsub.f32 0.0, %v1846
      %v1879 = vsub.f32 0.0, %v1847
      %v1880 = vsub.f32 0.0, %v1848
      %v1881 = vmul.f32 %v1849, 1.442695
      %v1882 = vpow.pop %v1881
      %v1883 = vmul.f32 %v1850, 1.442695
      %v1884 = vpow.pop %v1883
      %v1885 = vmul.f32 %v1851, 1.442695
      %v1886 = vpow.pop %v1885
      %v1887 = vmul.f32 %v1852, 1.442695
      %v1888 = vpow.pop %v1887
      %v1889 = vmul.f32 %v1853, 1.442695
      %v1890 = vpow.pop %v1889
      %v1891 = vmul.f32 %v1854, 1.442695
      %v1892 = vpow.pop %v1891
      %v1893 = vmul.f32 %v1855, 1.442695
      %v1894 = vpow.pop %v1893
      %v1895 = vmul.f32 %v1856, 1.442695
      %v1896 = vpow.pop %v1895
      %v1897 = vmul.f32 %v1857, 1.442695
      %v1898 = vpow.pop %v1897
      %v1899 = vmul.f32 %v1858, 1.442695
      %v1900 = vpow.pop %v1899
      %v1901 = vmul.f32 %v1859, 1.442695
      %v1902 = vpow.pop %v1901
      %v1903 = vmul.f32 %v1860, 1.442695
      %v1904 = vpow.pop %v1903
      %v1905 = vmul.f32 %v1861, 1.442695
      %v1906 = vpow.pop %v1905
      %v1907 = vmul.f32 %v1862, 1.442695
      %v1908 = vpow.pop %v1907
      %v1909 = vmul.f32 %v1863, 1.442695
      %v1910 = vpow.pop %v1909
      %v1911 = vmul.f32 %v1864, 1.442695
      %v1912 = vpow.pop %v1911
      %v1913 = vmul.f32 %v1865, 1.442695
      %v1914 = vpow.pop %v1913
      %v1915 = vmul.f32 %v1866, 1.442695
      %v1916 = vpow.pop %v1915
      %v1917 = vmul.f32 %v1867, 1.442695
      %v1918 = vpow.pop %v1917
      %v1919 = vmul.f32 %v1868, 1.442695
      %v1920 = vpow.pop %v1919
      %v1921 = vmul.f32 %v1869, 1.442695
      %v1922 = vpow.pop %v1921
      %v1923 = vmul.f32 %v1870, 1.442695
      %v1924 = vpow.pop %v1923
      %v1925 = vmul.f32 %v1871, 1.442695
      %v1926 = vpow.pop %v1925
      %v1927 = vmul.f32 %v1872, 1.442695
      %v1928 = vpow.pop %v1927
      %v1929 = vmul.f32 %v1873, 1.442695
      %v1930 = vpow.pop %v1929
      %v1931 = vmul.f32 %v1874, 1.442695
      %v1932 = vpow.pop %v1931
      %v1933 = vmul.f32 %v1875, 1.442695
      %v1934 = vpow.pop %v1933
      %v1935 = vmul.f32 %v1876, 1.442695
      %v1936 = vpow.pop %v1935
      %v1937 = vmul.f32 %v1877, 1.442695
      %v1938 = vpow.pop %v1937
      %v1939 = vmul.f32 %v1878, 1.442695
      %v1940 = vpow.pop %v1939
      %v1941 = vmul.f32 %v1879, 1.442695
      %v1942 = vpow.pop %v1941
      %v1943 = vmul.f32 %v1880, 1.442695
      %v1944 = vpow.pop %v1943
      %v1945 = vadd.f32 %v1882, 1.0
      %v1946 = vadd.f32 %v1884, 1.0
      %v1947 = vadd.f32 %v1886, 1.0
      %v1948 = vadd.f32 %v1888, 1.0
      %v1949 = vadd.f32 %v1890, 1.0
      %v1950 = vadd.f32 %v1892, 1.0
      %v1951 = vadd.f32 %v1894, 1.0
      %v1952 = vadd.f32 %v1896, 1.0
      %v1953 = vadd.f32 %v1898, 1.0
      %v1954 = vadd.f32 %v1900, 1.0
      %v1955 = vadd.f32 %v1902, 1.0
      %v1956 = vadd.f32 %v1904, 1.0
      %v1957 = vadd.f32 %v1906, 1.0
      %v1958 = vadd.f32 %v1908, 1.0
      %v1959 = vadd.f32 %v1910, 1.0
      %v1960 = vadd.f32 %v1912, 1.0
      %v1961 = vadd.f32 %v1914, 1.0
      %v1962 = vadd.f32 %v1916, 1.0
      %v1963 = vadd.f32 %v1918, 1.0
      %v1964 = vadd.f32 %v1920, 1.0
      %v1965 = vadd.f32 %v1922, 1.0
      %v1966 = vadd.f32 %v1924, 1.0
      %v1967 = vadd.f32 %v1926, 1.0
      %v1968 = vadd.f32 %v1928, 1.0
      %v1969 = vadd.f32 %v1930, 1.0
      %v1970 = vadd.f32 %v1932, 1.0
      %v1971 = vadd.f32 %v1934, 1.0
      %v1972 = vadd.f32 %v1936, 1.0
      %v1973 = vadd.f32 %v1938, 1.0
      %v1974 = vadd.f32 %v1940, 1.0
      %v1975 = vadd.f32 %v1942, 1.0
      %v1976 = vadd.f32 %v1944, 1.0
      %v1977 = vlog2.pop %v1945
      %v1978 = vmul.f32 %v1977, 0.6931472
      %v1979 = vlog2.pop %v1946
      %v1980 = vmul.f32 %v1979, 0.6931472
      %v1981 = vlog2.pop %v1947
      %v1982 = vmul.f32 %v1981, 0.6931472
      %v1983 = vlog2.pop %v1948
      %v1984 = vmul.f32 %v1983, 0.6931472
      %v1985 = vlog2.pop %v1949
      %v1986 = vmul.f32 %v1985, 0.6931472
      %v1987 = vlog2.pop %v1950
      %v1988 = vmul.f32 %v1987, 0.6931472
      %v1989 = vlog2.pop %v1951
      %v1990 = vmul.f32 %v1989, 0.6931472
      %v1991 = vlog2.pop %v1952
      %v1992 = vmul.f32 %v1991, 0.6931472
      %v1993 = vlog2.pop %v1953
      %v1994 = vmul.f32 %v1993, 0.6931472
      %v1995 = vlog2.pop %v1954
      %v1996 = vmul.f32 %v1995, 0.6931472
      %v1997 = vlog2.pop %v1955
      %v1998 = vmul.f32 %v1997, 0.6931472
      %v1999 = vlog2.pop %v1956
      %v2000 = vmul.f32 %v1999, 0.6931472
      %v2001 = vlog2.pop %v1957
      %v2002 = vmul.f32 %v2001, 0.6931472
      %v2003 = vlog2.pop %v1958
      %v2004 = vmul.f32 %v2003, 0.6931472
      %v2005 = vlog2.pop %v1959
      %v2006 = vmul.f32 %v2005, 0.6931472
      %v2007 = vlog2.pop %v1960
      %v2008 = vmul.f32 %v2007, 0.6931472
      %v2009 = vlog2.pop %v1961
      %v2010 = vmul.f32 %v2009, 0.6931472
      %v2011 = vlog2.pop %v1962
      %v2012 = vmul.f32 %v2011, 0.6931472
      %v2013 = vlog2.pop %v1963
      %v2014 = vmul.f32 %v2013, 0.6931472
      %v2015 = vlog2.pop %v1964
      %v2016 = vmul.f32 %v2015, 0.6931472
      %v2017 = vlog2.pop %v1965
      %v2018 = vmul.f32 %v2017, 0.6931472
      %v2019 = vlog2.pop %v1966
      %v2020 = vmul.f32 %v2019, 0.6931472
      %v2021 = vlog2.pop %v1967
      %v2022 = vmul.f32 %v2021, 0.6931472
      %v2023 = vlog2.pop %v1968
      %v2024 = vmul.f32 %v2023, 0.6931472
      %v2025 = vlog2.pop %v1969
      %v2026 = vmul.f32 %v2025, 0.6931472
      %v2027 = vlog2.pop %v1970
      %v2028 = vmul.f32 %v2027, 0.6931472
      %v2029 = vlog2.pop %v1971
      %v2030 = vmul.f32 %v2029, 0.6931472
      %v2031 = vlog2.pop %v1972
      %v2032 = vmul.f32 %v2031, 0.6931472
      %v2033 = vlog2.pop %v1973
      %v2034 = vmul.f32 %v2033, 0.6931472
      %v2035 = vlog2.pop %v1974
      %v2036 = vmul.f32 %v2035, 0.6931472
      %v2037 = vlog2.pop %v1975
      %v2038 = vmul.f32 %v2037, 0.6931472
      %v2039 = vlog2.pop %v1976
      %v2040 = vmul.f32 %v2039, 0.6931472
      %v2041 = vadd.f32 %v1785, %v1978
      %v2042 = vadd.f32 %v1786, %v1980
      %v2043 = vadd.f32 %v1787, %v1982
      %v2044 = vadd.f32 %v1788, %v1984
      %v2045 = vadd.f32 %v1789, %v1986
      %v2046 = vadd.f32 %v1790, %v1988
      %v2047 = vadd.f32 %v1791, %v1990
      %v2048 = vadd.f32 %v1792, %v1992
      %v2049 = vadd.f32 %v1793, %v1994
      %v2050 = vadd.f32 %v1794, %v1996
      %v2051 = vadd.f32 %v1795, %v1998
      %v2052 = vadd.f32 %v1796, %v2000
      %v2053 = vadd.f32 %v1797, %v2002
      %v2054 = vadd.f32 %v1798, %v2004
      %v2055 = vadd.f32 %v1799, %v2006
      %v2056 = vadd.f32 %v1800, %v2008
      %v2057 = vadd.f32 %v1801, %v2010
      %v2058 = vadd.f32 %v1802, %v2012
      %v2059 = vadd.f32 %v1803, %v2014
      %v2060 = vadd.f32 %v1804, %v2016
      %v2061 = vadd.f32 %v1805, %v2018
      %v2062 = vadd.f32 %v1806, %v2020
      %v2063 = vadd.f32 %v1807, %v2022
      %v2064 = vadd.f32 %v1808, %v2024
      %v2065 = vadd.f32 %v1809, %v2026
      %v2066 = vadd.f32 %v1810, %v2028
      %v2067 = vadd.f32 %v1811, %v2030
      %v2068 = vadd.f32 %v1812, %v2032
      %v2069 = vadd.f32 %v1813, %v2034
      %v2070 = vadd.f32 %v1814, %v2036
      %v2071 = vadd.f32 %v1815, %v2038
      %v2072 = vadd.f32 %v1816, %v2040
      %2073 = vst.msk [vmem:[#allocation2 + $0x18] sm:$0xff] %vm250, %v2041
      %2074 = vst.msk [vmem:[#allocation2 + $0x20] sm:$0xff] %vm250, %v2042
      %2075 = vst.msk [vmem:[#allocation2 + $0x28] sm:$0xff] %vm250, %v2043
      %2076 = vst.msk [vmem:[#allocation2 + $0x30] sm:$0xff] %vm250, %v2044
      %2077 = vst.msk [vmem:[#allocation2 + $0x38] sm:$0xff] %vm250, %v2045
      %2078 = vst.msk [vmem:[#allocation2 + $0x40] sm:$0xff] %vm250, %v2046
      %2079 = vst.msk [vmem:[#allocation2 + $0x48] sm:$0xff] %vm250, %v2047
      %2080 = vst.msk [vmem:[#allocation2 + $0x50] sm:$0xff] %vm250, %v2048
      %2081 = vst.msk [vmem:[#allocation2 + $0x58] sm:$0xff] %vm250, %v2049
      %2082 = vst.msk [vmem:[#allocation2 + $0x60] sm:$0xff] %vm250, %v2050
      %2083 = vst.msk [vmem:[#allocation2 + $0x68] sm:$0xff] %vm250, %v2051
      %2084 = vst.msk [vmem:[#allocation2 + $0x70] sm:$0xff] %vm250, %v2052
      %2085 = vst.msk [vmem:[#allocation2 + $0x78] sm:$0xff] %vm250, %v2053
      %2086 = vst.msk [vmem:[#allocation2 + $0x80] sm:$0xff] %vm250, %v2054
      %2087 = vst.msk [vmem:[#allocation2 + $0x88] sm:$0xff] %vm250, %v2055
      %2088 = vst.msk [vmem:[#allocation2 + $0x90] sm:$0xff] %vm250, %v2056
      %2089 = vst.msk [vmem:[#allocation2 + $0x98] sm:$0xff] %vm250, %v2057
      %2090 = vst.msk [vmem:[#allocation2 + $0xa0] sm:$0xff] %vm250, %v2058
      %2091 = vst.msk [vmem:[#allocation2 + $0xa8] sm:$0xff] %vm250, %v2059
      %2092 = vst.msk [vmem:[#allocation2 + $0xb0] sm:$0xff] %vm250, %v2060
      %2093 = vst.msk [vmem:[#allocation2 + $0xb8] sm:$0xff] %vm250, %v2061
      %2094 = vst.msk [vmem:[#allocation2 + $0xc0] sm:$0xff] %vm250, %v2062
      %2095 = vst.msk [vmem:[#allocation2 + $0xc8] sm:$0xff] %vm250, %v2063
      %2096 = vst.msk [vmem:[#allocation2 + $0xd0] sm:$0xff] %vm250, %v2064
      %2097 = vst.msk [vmem:[#allocation2 + $0xd8] sm:$0xff] %vm250, %v2065
      %2098 = vst.msk [vmem:[#allocation2 + $0xe0] sm:$0xff] %vm250, %v2066
      %2099 = vst.msk [vmem:[#allocation2 + $0xe8] sm:$0xff] %vm250, %v2067
      %2100 = vst.msk [vmem:[#allocation2 + $0xf0] sm:$0xff] %vm250, %v2068
      %2101 = vst.msk [vmem:[#allocation2 + $0xf8] sm:$0xff] %vm250, %v2069
      %2102 = vst.msk [vmem:[#allocation2 + $0x100] sm:$0xff] %vm250, %v2070
      %2103 = vst.msk [vmem:[#allocation2 + $0x108] sm:$0xff] %vm250, %v2071
      %2104 = vst.msk [vmem:[#allocation2 + $0x110] sm:$0xff] %vm250, %v2072
      %v2105 = vld [vmem:[#allocation2 + $0x7] sm:$0xff]
      %v2106 = vld [vmem:[#allocation2 + $0xf] sm:$0xff]
      %v2107 = vld [vmem:[#allocation2 + $0x17] sm:$0xff]
      %v2108 = vld [vmem:[#allocation2 + $0x1f] sm:$0xff]
      %v2109 = vld [vmem:[#allocation2 + $0x27] sm:$0xff]
      %v2110 = vld [vmem:[#allocation2 + $0x2f] sm:$0xff]
      %v2111 = vld [vmem:[#allocation2 + $0x37] sm:$0xff]
      %v2112 = vld [vmem:[#allocation2 + $0x3f] sm:$0xff]
      %v2113 = vld [vmem:[#allocation2 + $0x47] sm:$0xff]
      %v2114 = vld [vmem:[#allocation2 + $0x4f] sm:$0xff]
      %v2115 = vld [vmem:[#allocation2 + $0x57] sm:$0xff]
      %v2116 = vld [vmem:[#allocation2 + $0x5f] sm:$0xff]
      %v2117 = vld [vmem:[#allocation2 + $0x67] sm:$0xff]
      %v2118 = vld [vmem:[#allocation2 + $0x6f] sm:$0xff]
      %v2119 = vld [vmem:[#allocation2 + $0x77] sm:$0xff]
      %v2120 = vld [vmem:[#allocation2 + $0x7f] sm:$0xff]
      %v2121 = vld [vmem:[#allocation2 + $0x87] sm:$0xff]
      %v2122 = vld [vmem:[#allocation2 + $0x8f] sm:$0xff]
      %v2123 = vld [vmem:[#allocation2 + $0x97] sm:$0xff]
      %v2124 = vld [vmem:[#allocation2 + $0x9f] sm:$0xff]
      %v2125 = vld [vmem:[#allocation2 + $0xa7] sm:$0xff]
      %v2126 = vld [vmem:[#allocation2 + $0xaf] sm:$0xff]
      %v2127 = vld [vmem:[#allocation2 + $0xb7] sm:$0xff]
      %v2128 = vld [vmem:[#allocation2 + $0xbf] sm:$0xff]
      %v2129 = vld [vmem:[#allocation2 + $0xc7] sm:$0xff]
      %v2130 = vld [vmem:[#allocation2 + $0xcf] sm:$0xff]
      %v2131 = vld [vmem:[#allocation2 + $0xd7] sm:$0xff]
      %v2132 = vld [vmem:[#allocation2 + $0xdf] sm:$0xff]
      %v2133 = vld [vmem:[#allocation2 + $0xe7] sm:$0xff]
      %v2134 = vld [vmem:[#allocation2 + $0xef] sm:$0xff]
      %v2135 = vld [vmem:[#allocation2 + $0xf7] sm:$0xff]
      %v2136 = vld [vmem:[#allocation2 + $0xff] sm:$0xff]
      %2138 = vset.pattern.permute.xlu0 0
      %2139 = vperm.xlu0 %2138, %v257
      %v2140 = vpop.permute.xlu0 %2139
      %2143 = vset.pattern.permute.xlu0 0
      %2144 = vperm.xlu0 %2143, %v258
      %v2145 = vpop.permute.xlu0 %2144
      %2148 = vset.pattern.permute.xlu0 0
      %2149 = vperm.xlu0 %2148, %v259
      %v2150 = vpop.permute.xlu0 %2149
      %2153 = vset.pattern.permute.xlu0 0
      %2154 = vperm.xlu0 %2153, %v260
      %v2155 = vpop.permute.xlu0 %2154
      %2158 = vset.pattern.permute.xlu0 0
      %2159 = vperm.xlu0 %2158, %v261
      %v2160 = vpop.permute.xlu0 %2159
      %2163 = vset.pattern.permute.xlu0 0
      %2164 = vperm.xlu0 %2163, %v262
      %v2165 = vpop.permute.xlu0 %2164
      %2168 = vset.pattern.permute.xlu0 0
      %2169 = vperm.xlu0 %2168, %v263
      %v2170 = vpop.permute.xlu0 %2169
      %2173 = vset.pattern.permute.xlu0 0
      %2174 = vperm.xlu0 %2173, %v264
      %v2175 = vpop.permute.xlu0 %2174
      %2178 = vset.pattern.permute.xlu0 0
      %2179 = vperm.xlu0 %2178, %v265
      %v2180 = vpop.permute.xlu0 %2179
      %2183 = vset.pattern.permute.xlu0 0
      %2184 = vperm.xlu0 %2183, %v266
      %v2185 = vpop.permute.xlu0 %2184
      %2188 = vset.pattern.permute.xlu0 0
      %2189 = vperm.xlu0 %2188, %v267
      %v2190 = vpop.permute.xlu0 %2189
      %2193 = vset.pattern.permute.xlu0 0
      %2194 = vperm.xlu0 %2193, %v268
      %v2195 = vpop.permute.xlu0 %2194
      %2198 = vset.pattern.permute.xlu0 0
      %2199 = vperm.xlu0 %2198, %v269
      %v2200 = vpop.permute.xlu0 %2199
      %2203 = vset.pattern.permute.xlu0 0
      %2204 = vperm.xlu0 %2203, %v270
      %v2205 = vpop.permute.xlu0 %2204
      %2208 = vset.pattern.permute.xlu0 0
      %2209 = vperm.xlu0 %2208, %v271
      %v2210 = vpop.permute.xlu0 %2209
      %2213 = vset.pattern.permute.xlu0 0
      %2214 = vperm.xlu0 %2213, %v272
      %v2215 = vpop.permute.xlu0 %2214
      %2218 = vset.pattern.permute.xlu0 0
      %2219 = vperm.xlu0 %2218, %v273
      %v2220 = vpop.permute.xlu0 %2219
      %2223 = vset.pattern.permute.xlu0 0
      %2224 = vperm.xlu0 %2223, %v274
      %v2225 = vpop.permute.xlu0 %2224
      %2228 = vset.pattern.permute.xlu0 0
      %2229 = vperm.xlu0 %2228, %v275
      %v2230 = vpop.permute.xlu0 %2229
      %2233 = vset.pattern.permute.xlu0 0
      %2234 = vperm.xlu0 %2233, %v276
      %v2235 = vpop.permute.xlu0 %2234
      %2238 = vset.pattern.permute.xlu0 0
      %2239 = vperm.xlu0 %2238, %v277
      %v2240 = vpop.permute.xlu0 %2239
      %2243 = vset.pattern.permute.xlu0 0
      %2244 = vperm.xlu0 %2243, %v278
      %v2245 = vpop.permute.xlu0 %2244
      %2248 = vset.pattern.permute.xlu0 0
      %2249 = vperm.xlu0 %2248, %v279
      %v2250 = vpop.permute.xlu0 %2249
      %2253 = vset.pattern.permute.xlu0 0
      %2254 = vperm.xlu0 %2253, %v280
      %v2255 = vpop.permute.xlu0 %2254
      %2258 = vset.pattern.permute.xlu0 0
      %2259 = vperm.xlu0 %2258, %v281
      %v2260 = vpop.permute.xlu0 %2259
      %2263 = vset.pattern.permute.xlu0 0
      %2264 = vperm.xlu0 %2263, %v282
      %v2265 = vpop.permute.xlu0 %2264
      %2268 = vset.pattern.permute.xlu0 0
      %2269 = vperm.xlu0 %2268, %v283
      %v2270 = vpop.permute.xlu0 %2269
      %2273 = vset.pattern.permute.xlu0 0
      %2274 = vperm.xlu0 %2273, %v284
      %v2275 = vpop.permute.xlu0 %2274
      %2278 = vset.pattern.permute.xlu0 0
      %2279 = vperm.xlu0 %2278, %v285
      %v2280 = vpop.permute.xlu0 %2279
      %2283 = vset.pattern.permute.xlu0 0
      %2284 = vperm.xlu0 %2283, %v286
      %v2285 = vpop.permute.xlu0 %2284
      %2288 = vset.pattern.permute.xlu0 0
      %2289 = vperm.xlu0 %2288, %v287
      %v2290 = vpop.permute.xlu0 %2289
      %2293 = vset.pattern.permute.xlu0 0
      %2294 = vperm.xlu0 %2293, %v288
      %v2295 = vpop.permute.xlu0 %2294
      %v2297 = vmul.f32 %v2105, %v2140
      %v2298 = vmul.f32 %v2106, %v2145
      %v2299 = vmul.f32 %v2107, %v2150
      %v2300 = vmul.f32 %v2108, %v2155
      %v2301 = vmul.f32 %v2109, %v2160
      %v2302 = vmul.f32 %v2110, %v2165
      %v2303 = vmul.f32 %v2111, %v2170
      %v2304 = vmul.f32 %v2112, %v2175
      %v2305 = vmul.f32 %v2113, %v2180
      %v2306 = vmul.f32 %v2114, %v2185
      %v2307 = vmul.f32 %v2115, %v2190
      %v2308 = vmul.f32 %v2116, %v2195
      %v2309 = vmul.f32 %v2117, %v2200
      %v2310 = vmul.f32 %v2118, %v2205
      %v2311 = vmul.f32 %v2119, %v2210
      %v2312 = vmul.f32 %v2120, %v2215
      %v2313 = vmul.f32 %v2121, %v2220
      %v2314 = vmul.f32 %v2122, %v2225
      %v2315 = vmul.f32 %v2123, %v2230
      %v2316 = vmul.f32 %v2124, %v2235
      %v2317 = vmul.f32 %v2125, %v2240
      %v2318 = vmul.f32 %v2126, %v2245
      %v2319 = vmul.f32 %v2127, %v2250
      %v2320 = vmul.f32 %v2128, %v2255
      %v2321 = vmul.f32 %v2129, %v2260
      %v2322 = vmul.f32 %v2130, %v2265
      %v2323 = vmul.f32 %v2131, %v2270
      %v2324 = vmul.f32 %v2132, %v2275
      %v2325 = vmul.f32 %v2133, %v2280
      %v2326 = vmul.f32 %v2134, %v2285
      %v2327 = vmul.f32 %v2135, %v2290
      %v2328 = vmul.f32 %v2136, %v2295
      %2329 = vst.msk [vmem:[#allocation3] sm:$0xff] %vm250, %v2297
      %2330 = vst.msk [vmem:[#allocation3 + $0x28] sm:$0xff] %vm250, %v2298
      %2331 = vst.msk [vmem:[#allocation3 + $0x50] sm:$0xff] %vm250, %v2299
      %2332 = vst.msk [vmem:[#allocation3 + $0x78] sm:$0xff] %vm250, %v2300
      %2333 = vst.msk [vmem:[#allocation3 + $0xa0] sm:$0xff] %vm250, %v2301
      %2334 = vst.msk [vmem:[#allocation3 + $0xc8] sm:$0xff] %vm250, %v2302
      %2335 = vst.msk [vmem:[#allocation3 + $0xf0] sm:$0xff] %vm250, %v2303
      %2336 = vst.msk [vmem:[#allocation3 + $0x118] sm:$0xff] %vm250, %v2304
      %2337 = vst.msk [vmem:[#allocation3 + $0x140] sm:$0xff] %vm250, %v2305
      %2338 = vst.msk [vmem:[#allocation3 + $0x168] sm:$0xff] %vm250, %v2306
      %2339 = vst.msk [vmem:[#allocation3 + $0x190] sm:$0xff] %vm250, %v2307
      %2340 = vst.msk [vmem:[#allocation3 + $0x1b8] sm:$0xff] %vm250, %v2308
      %2341 = vst.msk [vmem:[#allocation3 + $0x1e0] sm:$0xff] %vm250, %v2309
      %2342 = vst.msk [vmem:[#allocation3 + $0x208] sm:$0xff] %vm250, %v2310
      %2343 = vst.msk [vmem:[#allocation3 + $0x230] sm:$0xff] %vm250, %v2311
      %2344 = vst.msk [vmem:[#allocation3 + $0x258] sm:$0xff] %vm250, %v2312
      %2345 = vst.msk [vmem:[#allocation3 + $0x280] sm:$0xff] %vm250, %v2313
      %2346 = vst.msk [vmem:[#allocation3 + $0x2a8] sm:$0xff] %vm250, %v2314
      %2347 = vst.msk [vmem:[#allocation3 + $0x2d0] sm:$0xff] %vm250, %v2315
      %2348 = vst.msk [vmem:[#allocation3 + $0x2f8] sm:$0xff] %vm250, %v2316
      %2349 = vst.msk [vmem:[#allocation3 + $0x320] sm:$0xff] %vm250, %v2317
      %2350 = vst.msk [vmem:[#allocation3 + $0x348] sm:$0xff] %vm250, %v2318
      %2351 = vst.msk [vmem:[#allocation3 + $0x370] sm:$0xff] %vm250, %v2319
      %2352 = vst.msk [vmem:[#allocation3 + $0x398] sm:$0xff] %vm250, %v2320
      %2353 = vst.msk [vmem:[#allocation3 + $0x3c0] sm:$0xff] %vm250, %v2321
      %2354 = vst.msk [vmem:[#allocation3 + $0x3e8] sm:$0xff] %vm250, %v2322
      %2355 = vst.msk [vmem:[#allocation3 + $0x410] sm:$0xff] %vm250, %v2323
      %2356 = vst.msk [vmem:[#allocation3 + $0x438] sm:$0xff] %vm250, %v2324
      %2357 = vst.msk [vmem:[#allocation3 + $0x460] sm:$0xff] %vm250, %v2325
      %2358 = vst.msk [vmem:[#allocation3 + $0x488] sm:$0xff] %vm250, %v2326
      %2359 = vst.msk [vmem:[#allocation3 + $0x4b0] sm:$0xff] %vm250, %v2327
      %2360 = vst.msk [vmem:[#allocation3 + $0x4d8] sm:$0xff] %vm250, %v2328
      %v2361 = vld [vmem:[#allocation2 + $0x8] sm:$0xff]
      %v2362 = vld [vmem:[#allocation2 + $0x10] sm:$0xff]
      %v2363 = vld [vmem:[#allocation2 + $0x18] sm:$0xff]
      %v2364 = vld [vmem:[#allocation2 + $0x20] sm:$0xff]
      %v2365 = vld [vmem:[#allocation2 + $0x28] sm:$0xff]
      %v2366 = vld [vmem:[#allocation2 + $0x30] sm:$0xff]
      %v2367 = vld [vmem:[#allocation2 + $0x38] sm:$0xff]
      %v2368 = vld [vmem:[#allocation2 + $0x40] sm:$0xff]
      %v2369 = vld [vmem:[#allocation2 + $0x48] sm:$0xff]
      %v2370 = vld [vmem:[#allocation2 + $0x50] sm:$0xff]
      %v2371 = vld [vmem:[#allocation2 + $0x58] sm:$0xff]
      %v2372 = vld [vmem:[#allocation2 + $0x60] sm:$0xff]
      %v2373 = vld [vmem:[#allocation2 + $0x68] sm:$0xff]
      %v2374 = vld [vmem:[#allocation2 + $0x70] sm:$0xff]
      %v2375 = vld [vmem:[#allocation2 + $0x78] sm:$0xff]
      %v2376 = vld [vmem:[#allocation2 + $0x80] sm:$0xff]
      %v2377 = vld [vmem:[#allocation2 + $0x88] sm:$0xff]
      %v2378 = vld [vmem:[#allocation2 + $0x90] sm:$0xff]
      %v2379 = vld [vmem:[#allocation2 + $0x98] sm:$0xff]
      %v2380 = vld [vmem:[#allocation2 + $0xa0] sm:$0xff]
      %v2381 = vld [vmem:[#allocation2 + $0xa8] sm:$0xff]
      %v2382 = vld [vmem:[#allocation2 + $0xb0] sm:$0xff]
      %v2383 = vld [vmem:[#allocation2 + $0xb8] sm:$0xff]
      %v2384 = vld [vmem:[#allocation2 + $0xc0] sm:$0xff]
      %v2385 = vld [vmem:[#allocation2 + $0xc8] sm:$0xff]
      %v2386 = vld [vmem:[#allocation2 + $0xd0] sm:$0xff]
      %v2387 = vld [vmem:[#allocation2 + $0xd8] sm:$0xff]
      %v2388 = vld [vmem:[#allocation2 + $0xe0] sm:$0xff]
      %v2389 = vld [vmem:[#allocation2 + $0xe8] sm:$0xff]
      %v2390 = vld [vmem:[#allocation2 + $0xf0] sm:$0xff]
      %v2391 = vld [vmem:[#allocation2 + $0xf8] sm:$0xff]
      %v2392 = vld [vmem:[#allocation2 + $0x100] sm:$0xff]
      %2393 = vset.pattern.permute.xlu0 1
      %2394 = vperm.xlu0 %2393, %v257
      %v2395 = vpop.permute.xlu0 %2394
      %2397 = vset.pattern.permute.xlu0 1
      %2398 = vperm.xlu0 %2397, %v258
      %v2399 = vpop.permute.xlu0 %2398
      %2401 = vset.pattern.permute.xlu0 1
      %2402 = vperm.xlu0 %2401, %v259
      %v2403 = vpop.permute.xlu0 %2402
      %2405 = vset.pattern.permute.xlu0 1
      %2406 = vperm.xlu0 %2405, %v260
      %v2407 = vpop.permute.xlu0 %2406
      %2409 = vset.pattern.permute.xlu0 1
      %2410 = vperm.xlu0 %2409, %v261
      %v2411 = vpop.permute.xlu0 %2410
      %2413 = vset.pattern.permute.xlu0 1
      %2414 = vperm.xlu0 %2413, %v262
      %v2415 = vpop.permute.xlu0 %2414
      %2417 = vset.pattern.permute.xlu0 1
      %2418 = vperm.xlu0 %2417, %v263
      %v2419 = vpop.permute.xlu0 %2418
      %2421 = vset.pattern.permute.xlu0 1
      %2422 = vperm.xlu0 %2421, %v264
      %v2423 = vpop.permute.xlu0 %2422
      %2425 = vset.pattern.permute.xlu0 1
      %2426 = vperm.xlu0 %2425, %v265
      %v2427 = vpop.permute.xlu0 %2426
      %2429 = vset.pattern.permute.xlu0 1
      %2430 = vperm.xlu0 %2429, %v266
      %v2431 = vpop.permute.xlu0 %2430
      %2433 = vset.pattern.permute.xlu0 1
      %2434 = vperm.xlu0 %2433, %v267
      %v2435 = vpop.permute.xlu0 %2434
      %2437 = vset.pattern.permute.xlu0 1
      %2438 = vperm.xlu0 %2437, %v268
      %v2439 = vpop.permute.xlu0 %2438
      %2441 = vset.pattern.permute.xlu0 1
      %2442 = vperm.xlu0 %2441, %v269
      %v2443 = vpop.permute.xlu0 %2442
      %2445 = vset.pattern.permute.xlu0 1
      %2446 = vperm.xlu0 %2445, %v270
      %v2447 = vpop.permute.xlu0 %2446
      %2449 = vset.pattern.permute.xlu0 1
      %2450 = vperm.xlu0 %2449, %v271
      %v2451 = vpop.permute.xlu0 %2450
      %2453 = vset.pattern.permute.xlu0 1
      %2454 = vperm.xlu0 %2453, %v272
      %v2455 = vpop.permute.xlu0 %2454
      %2457 = vset.pattern.permute.xlu0 1
      %2458 = vperm.xlu0 %2457, %v273
      %v2459 = vpop.permute.xlu0 %2458
      %2461 = vset.pattern.permute.xlu0 1
      %2462 = vperm.xlu0 %2461, %v274
      %v2463 = vpop.permute.xlu0 %2462
      %2465 = vset.pattern.permute.xlu0 1
      %2466 = vperm.xlu0 %2465, %v275
      %v2467 = vpop.permute.xlu0 %2466
      %2469 = vset.pattern.permute.xlu0 1
      %2470 = vperm.xlu0 %2469, %v276
      %v2471 = vpop.permute.xlu0 %2470
      %2473 = vset.pattern.permute.xlu0 1
      %2474 = vperm.xlu0 %2473, %v277
      %v2475 = vpop.permute.xlu0 %2474
      %2477 = vset.pattern.permute.xlu0 1
      %2478 = vperm.xlu0 %2477, %v278
      %v2479 = vpop.permute.xlu0 %2478
      %2481 = vset.pattern.permute.xlu0 1
      %2482 = vperm.xlu0 %2481, %v279
      %v2483 = vpop.permute.xlu0 %2482
      %2485 = vset.pattern.permute.xlu0 1
      %2486 = vperm.xlu0 %2485, %v280
      %v2487 = vpop.permute.xlu0 %2486
      %2489 = vset.pattern.permute.xlu0 1
      %2490 = vperm.xlu0 %2489, %v281
      %v2491 = vpop.permute.xlu0 %2490
      %2493 = vset.pattern.permute.xlu0 1
      %2494 = vperm.xlu0 %2493, %v282
      %v2495 = vpop.permute.xlu0 %2494
      %2497 = vset.pattern.permute.xlu0 1
      %2498 = vperm.xlu0 %2497, %v283
      %v2499 = vpop.permute.xlu0 %2498
      %2501 = vset.pattern.permute.xlu0 1
      %2502 = vperm.xlu0 %2501, %v284
      %v2503 = vpop.permute.xlu0 %2502
      %2505 = vset.pattern.permute.xlu0 1
      %2506 = vperm.xlu0 %2505, %v285
      %v2507 = vpop.permute.xlu0 %2506
      %2509 = vset.pattern.permute.xlu0 1
      %2510 = vperm.xlu0 %2509, %v286
      %v2511 = vpop.permute.xlu0 %2510
      %2513 = vset.pattern.permute.xlu0 1
      %2514 = vperm.xlu0 %2513, %v287
      %v2515 = vpop.permute.xlu0 %2514
      %2517 = vset.pattern.permute.xlu0 1
      %2518 = vperm.xlu0 %2517, %v288
      %v2519 = vpop.permute.xlu0 %2518
      %v2521 = vmul.f32 %v2361, %v2395
      %v2522 = vmul.f32 %v2362, %v2399
      %v2523 = vmul.f32 %v2363, %v2403
      %v2524 = vmul.f32 %v2364, %v2407
      %v2525 = vmul.f32 %v2365, %v2411
      %v2526 = vmul.f32 %v2366, %v2415
      %v2527 = vmul.f32 %v2367, %v2419
      %v2528 = vmul.f32 %v2368, %v2423
      %v2529 = vmul.f32 %v2369, %v2427
      %v2530 = vmul.f32 %v2370, %v2431
      %v2531 = vmul.f32 %v2371, %v2435
      %v2532 = vmul.f32 %v2372, %v2439
      %v2533 = vmul.f32 %v2373, %v2443
      %v2534 = vmul.f32 %v2374, %v2447
      %v2535 = vmul.f32 %v2375, %v2451
      %v2536 = vmul.f32 %v2376, %v2455
      %v2537 = vmul.f32 %v2377, %v2459
      %v2538 = vmul.f32 %v2378, %v2463
      %v2539 = vmul.f32 %v2379, %v2467
      %v2540 = vmul.f32 %v2380, %v2471
      %v2541 = vmul.f32 %v2381, %v2475
      %v2542 = vmul.f32 %v2382, %v2479
      %v2543 = vmul.f32 %v2383, %v2483
      %v2544 = vmul.f32 %v2384, %v2487
      %v2545 = vmul.f32 %v2385, %v2491
      %v2546 = vmul.f32 %v2386, %v2495
      %v2547 = vmul.f32 %v2387, %v2499
      %v2548 = vmul.f32 %v2388, %v2503
      %v2549 = vmul.f32 %v2389, %v2507
      %v2550 = vmul.f32 %v2390, %v2511
      %v2551 = vmul.f32 %v2391, %v2515
      %v2552 = vmul.f32 %v2392, %v2519
      %2585 = vrot.lane.b32.xlu0 %v2521, 64
      %v2586 = vpop.permute.xlu0 %2585
      %2587 = vrot.lane.b32.xlu0 %v2522, 64
      %v2588 = vpop.permute.xlu0 %2587
      %2589 = vrot.lane.b32.xlu0 %v2523, 64
      %v2590 = vpop.permute.xlu0 %2589
      %2591 = vrot.lane.b32.xlu0 %v2524, 64
      %v2592 = vpop.permute.xlu0 %2591
      %2593 = vrot.lane.b32.xlu0 %v2525, 64
      %v2594 = vpop.permute.xlu0 %2593
      %2595 = vrot.lane.b32.xlu0 %v2526, 64
      %v2596 = vpop.permute.xlu0 %2595
      %2597 = vrot.lane.b32.xlu0 %v2527, 64
      %v2598 = vpop.permute.xlu0 %2597
      %2599 = vrot.lane.b32.xlu0 %v2528, 64
      %v2600 = vpop.permute.xlu0 %2599
      %2601 = vrot.lane.b32.xlu0 %v2529, 64
      %v2602 = vpop.permute.xlu0 %2601
      %2603 = vrot.lane.b32.xlu0 %v2530, 64
      %v2604 = vpop.permute.xlu0 %2603
      %2605 = vrot.lane.b32.xlu0 %v2531, 64
      %v2606 = vpop.permute.xlu0 %2605
      %2607 = vrot.lane.b32.xlu0 %v2532, 64
      %v2608 = vpop.permute.xlu0 %2607
      %2609 = vrot.lane.b32.xlu0 %v2533, 64
      %v2610 = vpop.permute.xlu0 %2609
      %2611 = vrot.lane.b32.xlu0 %v2534, 64
      %v2612 = vpop.permute.xlu0 %2611
      %2613 = vrot.lane.b32.xlu0 %v2535, 64
      %v2614 = vpop.permute.xlu0 %2613
      %2615 = vrot.lane.b32.xlu0 %v2536, 64
      %v2616 = vpop.permute.xlu0 %2615
      %2617 = vrot.lane.b32.xlu0 %v2537, 64
      %v2618 = vpop.permute.xlu0 %2617
      %2619 = vrot.lane.b32.xlu0 %v2538, 64
      %v2620 = vpop.permute.xlu0 %2619
      %2621 = vrot.lane.b32.xlu0 %v2539, 64
      %v2622 = vpop.permute.xlu0 %2621
      %2623 = vrot.lane.b32.xlu0 %v2540, 64
      %v2624 = vpop.permute.xlu0 %2623
      %2625 = vrot.lane.b32.xlu0 %v2541, 64
      %v2626 = vpop.permute.xlu0 %2625
      %2627 = vrot.lane.b32.xlu0 %v2542, 64
      %v2628 = vpop.permute.xlu0 %2627
      %2629 = vrot.lane.b32.xlu0 %v2543, 64
      %v2630 = vpop.permute.xlu0 %2629
      %2631 = vrot.lane.b32.xlu0 %v2544, 64
      %v2632 = vpop.permute.xlu0 %2631
      %2633 = vrot.lane.b32.xlu0 %v2545, 64
      %v2634 = vpop.permute.xlu0 %2633
      %2635 = vrot.lane.b32.xlu0 %v2546, 64
      %v2636 = vpop.permute.xlu0 %2635
      %2637 = vrot.lane.b32.xlu0 %v2547, 64
      %v2638 = vpop.permute.xlu0 %2637
      %2639 = vrot.lane.b32.xlu0 %v2548, 64
      %v2640 = vpop.permute.xlu0 %2639
      %2641 = vrot.lane.b32.xlu0 %v2549, 64
      %v2642 = vpop.permute.xlu0 %2641
      %2643 = vrot.lane.b32.xlu0 %v2550, 64
      %v2644 = vpop.permute.xlu0 %2643
      %2645 = vrot.lane.b32.xlu0 %v2551, 64
      %v2646 = vpop.permute.xlu0 %2645
      %2647 = vrot.lane.b32.xlu0 %v2552, 64
      %v2648 = vpop.permute.xlu0 %2647
      %vm2681 = vcmask 1048064
      %2682 = vst.msk [vmem:[#allocation3] sm:$0xff] %vm2681, %v2586
      %2683 = vst.msk [vmem:[#allocation3 + $0x28] sm:$0xff] %vm2681, %v2588
      %2684 = vst.msk [vmem:[#allocation3 + $0x50] sm:$0xff] %vm2681, %v2590
      %2685 = vst.msk [vmem:[#allocation3 + $0x78] sm:$0xff] %vm2681, %v2592
      %2686 = vst.msk [vmem:[#allocation3 + $0xa0] sm:$0xff] %vm2681, %v2594
      %2687 = vst.msk [vmem:[#allocation3 + $0xc8] sm:$0xff] %vm2681, %v2596
      %2688 = vst.msk [vmem:[#allocation3 + $0xf0] sm:$0xff] %vm2681, %v2598
      %2689 = vst.msk [vmem:[#allocation3 + $0x118] sm:$0xff] %vm2681, %v2600
      %2690 = vst.msk [vmem:[#allocation3 + $0x140] sm:$0xff] %vm2681, %v2602
      %2691 = vst.msk [vmem:[#allocation3 + $0x168] sm:$0xff] %vm2681, %v2604
      %2692 = vst.msk [vmem:[#allocation3 + $0x190] sm:$0xff] %vm2681, %v2606
      %2693 = vst.msk [vmem:[#allocation3 + $0x1b8] sm:$0xff] %vm2681, %v2608
      %2694 = vst.msk [vmem:[#allocation3 + $0x1e0] sm:$0xff] %vm2681, %v2610
      %2695 = vst.msk [vmem:[#allocation3 + $0x208] sm:$0xff] %vm2681, %v2612
      %2696 = vst.msk [vmem:[#allocation3 + $0x230] sm:$0xff] %vm2681, %v2614
      %2697 = vst.msk [vmem:[#allocation3 + $0x258] sm:$0xff] %vm2681, %v2616
      %2698 = vst.msk [vmem:[#allocation3 + $0x280] sm:$0xff] %vm2681, %v2618
      %2699 = vst.msk [vmem:[#allocation3 + $0x2a8] sm:$0xff] %vm2681, %v2620
      %2700 = vst.msk [vmem:[#allocation3 + $0x2d0] sm:$0xff] %vm2681, %v2622
      %2701 = vst.msk [vmem:[#allocation3 + $0x2f8] sm:$0xff] %vm2681, %v2624
      %2702 = vst.msk [vmem:[#allocation3 + $0x320] sm:$0xff] %vm2681, %v2626
      %2703 = vst.msk [vmem:[#allocation3 + $0x348] sm:$0xff] %vm2681, %v2628
      %2704 = vst.msk [vmem:[#allocation3 + $0x370] sm:$0xff] %vm2681, %v2630
      %2705 = vst.msk [vmem:[#allocation3 + $0x398] sm:$0xff] %vm2681, %v2632
      %2706 = vst.msk [vmem:[#allocation3 + $0x3c0] sm:$0xff] %vm2681, %v2634
      %2707 = vst.msk [vmem:[#allocation3 + $0x3e8] sm:$0xff] %vm2681, %v2636
      %2708 = vst.msk [vmem:[#allocation3 + $0x410] sm:$0xff] %vm2681, %v2638
      %2709 = vst.msk [vmem:[#allocation3 + $0x438] sm:$0xff] %vm2681, %v2640
      %2710 = vst.msk [vmem:[#allocation3 + $0x460] sm:$0xff] %vm2681, %v2642
      %2711 = vst.msk [vmem:[#allocation3 + $0x488] sm:$0xff] %vm2681, %v2644
      %2712 = vst.msk [vmem:[#allocation3 + $0x4b0] sm:$0xff] %vm2681, %v2646
      %2713 = vst.msk [vmem:[#allocation3 + $0x4d8] sm:$0xff] %vm2681, %v2648
      %v2714 = vld [vmem:[#allocation2 + $0x9] sm:$0xff]
      %v2715 = vld [vmem:[#allocation2 + $0x11] sm:$0xff]
      %v2716 = vld [vmem:[#allocation2 + $0x19] sm:$0xff]
      %v2717 = vld [vmem:[#allocation2 + $0x21] sm:$0xff]
      %v2718 = vld [vmem:[#allocation2 + $0x29] sm:$0xff]
      %v2719 = vld [vmem:[#allocation2 + $0x31] sm:$0xff]
      %v2720 = vld [vmem:[#allocation2 + $0x39] sm:$0xff]
      %v2721 = vld [vmem:[#allocation2 + $0x41] sm:$0xff]
      %v2722 = vld [vmem:[#allocation2 + $0x49] sm:$0xff]
      %v2723 = vld [vmem:[#allocation2 + $0x51] sm:$0xff]
      %v2724 = vld [vmem:[#allocation2 + $0x59] sm:$0xff]
      %v2725 = vld [vmem:[#allocation2 + $0x61] sm:$0xff]
      %v2726 = vld [vmem:[#allocation2 + $0x69] sm:$0xff]
      %v2727 = vld [vmem:[#allocation2 + $0x71] sm:$0xff]
      %v2728 = vld [vmem:[#allocation2 + $0x79] sm:$0xff]
      %v2729 = vld [vmem:[#allocation2 + $0x81] sm:$0xff]
      %v2730 = vld [vmem:[#allocation2 + $0x89] sm:$0xff]
      %v2731 = vld [vmem:[#allocation2 + $0x91] sm:$0xff]
      %v2732 = vld [vmem:[#allocation2 + $0x99] sm:$0xff]
      %v2733 = vld [vmem:[#allocation2 + $0xa1] sm:$0xff]
      %v2734 = vld [vmem:[#allocation2 + $0xa9] sm:$0xff]
      %v2735 = vld [vmem:[#allocation2 + $0xb1] sm:$0xff]
      %v2736 = vld [vmem:[#allocation2 + $0xb9] sm:$0xff]
      %v2737 = vld [vmem:[#allocation2 + $0xc1] sm:$0xff]
      %v2738 = vld [vmem:[#allocation2 + $0xc9] sm:$0xff]
      %v2739 = vld [vmem:[#allocation2 + $0xd1] sm:$0xff]
      %v2740 = vld [vmem:[#allocation2 + $0xd9] sm:$0xff]
      %v2741 = vld [vmem:[#allocation2 + $0xe1] sm:$0xff]
      %v2742 = vld [vmem:[#allocation2 + $0xe9] sm:$0xff]
      %v2743 = vld [vmem:[#allocation2 + $0xf1] sm:$0xff]
      %v2744 = vld [vmem:[#allocation2 + $0xf9] sm:$0xff]
      %v2745 = vld [vmem:[#allocation2 + $0x101] sm:$0xff]
      %2746 = vset.pattern.permute.xlu0 2
      %2747 = vperm.xlu0 %2746, %v257
      %v2748 = vpop.permute.xlu0 %2747
      %2750 = vset.pattern.permute.xlu0 2
      %2751 = vperm.xlu0 %2750, %v258
      %v2752 = vpop.permute.xlu0 %2751
      %2754 = vset.pattern.permute.xlu0 2
      %2755 = vperm.xlu0 %2754, %v259
      %v2756 = vpop.permute.xlu0 %2755
      %2758 = vset.pattern.permute.xlu0 2
      %2759 = vperm.xlu0 %2758, %v260
      %v2760 = vpop.permute.xlu0 %2759
      %2762 = vset.pattern.permute.xlu0 2
      %2763 = vperm.xlu0 %2762, %v261
      %v2764 = vpop.permute.xlu0 %2763
      %2766 = vset.pattern.permute.xlu0 2
      %2767 = vperm.xlu0 %2766, %v262
      %v2768 = vpop.permute.xlu0 %2767
      %2770 = vset.pattern.permute.xlu0 2
      %2771 = vperm.xlu0 %2770, %v263
      %v2772 = vpop.permute.xlu0 %2771
      %2774 = vset.pattern.permute.xlu0 2
      %2775 = vperm.xlu0 %2774, %v264
      %v2776 = vpop.permute.xlu0 %2775
      %2778 = vset.pattern.permute.xlu0 2
      %2779 = vperm.xlu0 %2778, %v265
      %v2780 = vpop.permute.xlu0 %2779
      %2782 = vset.pattern.permute.xlu0 2
      %2783 = vperm.xlu0 %2782, %v266
      %v2784 = vpop.permute.xlu0 %2783
      %2786 = vset.pattern.permute.xlu0 2
      %2787 = vperm.xlu0 %2786, %v267
      %v2788 = vpop.permute.xlu0 %2787
      %2790 = vset.pattern.permute.xlu0 2
      %2791 = vperm.xlu0 %2790, %v268
      %v2792 = vpop.permute.xlu0 %2791
      %2794 = vset.pattern.permute.xlu0 2
      %2795 = vperm.xlu0 %2794, %v269
      %v2796 = vpop.permute.xlu0 %2795
      %2798 = vset.pattern.permute.xlu0 2
      %2799 = vperm.xlu0 %2798, %v270
      %v2800 = vpop.permute.xlu0 %2799
      %2802 = vset.pattern.permute.xlu0 2
      %2803 = vperm.xlu0 %2802, %v271
      %v2804 = vpop.permute.xlu0 %2803
      %2806 = vset.pattern.permute.xlu0 2
      %2807 = vperm.xlu0 %2806, %v272
      %v2808 = vpop.permute.xlu0 %2807
      %2810 = vset.pattern.permute.xlu0 2
      %2811 = vperm.xlu0 %2810, %v273
      %v2812 = vpop.permute.xlu0 %2811
      %2814 = vset.pattern.permute.xlu0 2
      %2815 = vperm.xlu0 %2814, %v274
      %v2816 = vpop.permute.xlu0 %2815
      %2818 = vset.pattern.permute.xlu0 2
      %2819 = vperm.xlu0 %2818, %v275
      %v2820 = vpop.permute.xlu0 %2819
      %2822 = vset.pattern.permute.xlu0 2
      %2823 = vperm.xlu0 %2822, %v276
      %v2824 = vpop.permute.xlu0 %2823
      %2826 = vset.pattern.permute.xlu0 2
      %2827 = vperm.xlu0 %2826, %v277
      %v2828 = vpop.permute.xlu0 %2827
      %2830 = vset.pattern.permute.xlu0 2
      %2831 = vperm.xlu0 %2830, %v278
      %v2832 = vpop.permute.xlu0 %2831
      %2834 = vset.pattern.permute.xlu0 2
      %2835 = vperm.xlu0 %2834, %v279
      %v2836 = vpop.permute.xlu0 %2835
      %2838 = vset.pattern.permute.xlu0 2
      %2839 = vperm.xlu0 %2838, %v280
      %v2840 = vpop.permute.xlu0 %2839
      %2842 = vset.pattern.permute.xlu0 2
      %2843 = vperm.xlu0 %2842, %v281
      %v2844 = vpop.permute.xlu0 %2843
      %2846 = vset.pattern.permute.xlu0 2
      %2847 = vperm.xlu0 %2846, %v282
      %v2848 = vpop.permute.xlu0 %2847
      %2850 = vset.pattern.permute.xlu0 2
      %2851 = vperm.xlu0 %2850, %v283
      %v2852 = vpop.permute.xlu0 %2851
      %2854 = vset.pattern.permute.xlu0 2
      %2855 = vperm.xlu0 %2854, %v284
      %v2856 = vpop.permute.xlu0 %2855
      %2858 = vset.pattern.permute.xlu0 2
      %2859 = vperm.xlu0 %2858, %v285
      %v2860 = vpop.permute.xlu0 %2859
      %2862 = vset.pattern.permute.xlu0 2
      %2863 = vperm.xlu0 %2862, %v286
      %v2864 = vpop.permute.xlu0 %2863
      %2866 = vset.pattern.permute.xlu0 2
      %2867 = vperm.xlu0 %2866, %v287
      %v2868 = vpop.permute.xlu0 %2867
      %2870 = vset.pattern.permute.xlu0 2
      %2871 = vperm.xlu0 %2870, %v288
      %v2872 = vpop.permute.xlu0 %2871
      %v2874 = vmul.f32 %v2714, %v2748
      %v2875 = vmul.f32 %v2715, %v2752
      %v2876 = vmul.f32 %v2716, %v2756
      %v2877 = vmul.f32 %v2717, %v2760
      %v2878 = vmul.f32 %v2718, %v2764
      %v2879 = vmul.f32 %v2719, %v2768
      %v2880 = vmul.f32 %v2720, %v2772
      %v2881 = vmul.f32 %v2721, %v2776
      %v2882 = vmul.f32 %v2722, %v2780
      %v2883 = vmul.f32 %v2723, %v2784
      %v2884 = vmul.f32 %v2724, %v2788
      %v2885 = vmul.f32 %v2725, %v2792
      %v2886 = vmul.f32 %v2726, %v2796
      %v2887 = vmul.f32 %v2727, %v2800
      %v2888 = vmul.f32 %v2728, %v2804
      %v2889 = vmul.f32 %v2729, %v2808
      %v2890 = vmul.f32 %v2730, %v2812
      %v2891 = vmul.f32 %v2731, %v2816
      %v2892 = vmul.f32 %v2732, %v2820
      %v2893 = vmul.f32 %v2733, %v2824
      %v2894 = vmul.f32 %v2734, %v2828
      %v2895 = vmul.f32 %v2735, %v2832
      %v2896 = vmul.f32 %v2736, %v2836
      %v2897 = vmul.f32 %v2737, %v2840
      %v2898 = vmul.f32 %v2738, %v2844
      %v2899 = vmul.f32 %v2739, %v2848
      %v2900 = vmul.f32 %v2740, %v2852
      %v2901 = vmul.f32 %v2741, %v2856
      %v2902 = vmul.f32 %v2742, %v2860
      %v2903 = vmul.f32 %v2743, %v2864
      %v2904 = vmul.f32 %v2744, %v2868
      %v2905 = vmul.f32 %v2745, %v2872
      %2906 = vst.msk [vmem:[#allocation3 + $0x8] sm:$0xff] %vm250, %v2874
      %2907 = vst.msk [vmem:[#allocation3 + $0x30] sm:$0xff] %vm250, %v2875
      %2908 = vst.msk [vmem:[#allocation3 + $0x58] sm:$0xff] %vm250, %v2876
      %2909 = vst.msk [vmem:[#allocation3 + $0x80] sm:$0xff] %vm250, %v2877
      %2910 = vst.msk [vmem:[#allocation3 + $0xa8] sm:$0xff] %vm250, %v2878
      %2911 = vst.msk [vmem:[#allocation3 + $0xd0] sm:$0xff] %vm250, %v2879
      %2912 = vst.msk [vmem:[#allocation3 + $0xf8] sm:$0xff] %vm250, %v2880
      %2913 = vst.msk [vmem:[#allocation3 + $0x120] sm:$0xff] %vm250, %v2881
      %2914 = vst.msk [vmem:[#allocation3 + $0x148] sm:$0xff] %vm250, %v2882
      %2915 = vst.msk [vmem:[#allocation3 + $0x170] sm:$0xff] %vm250, %v2883
      %2916 = vst.msk [vmem:[#allocation3 + $0x198] sm:$0xff] %vm250, %v2884
      %2917 = vst.msk [vmem:[#allocation3 + $0x1c0] sm:$0xff] %vm250, %v2885
      %2918 = vst.msk [vmem:[#allocation3 + $0x1e8] sm:$0xff] %vm250, %v2886
      %2919 = vst.msk [vmem:[#allocation3 + $0x210] sm:$0xff] %vm250, %v2887
      %2920 = vst.msk [vmem:[#allocation3 + $0x238] sm:$0xff] %vm250, %v2888
      %2921 = vst.msk [vmem:[#allocation3 + $0x260] sm:$0xff] %vm250, %v2889
      %2922 = vst.msk [vmem:[#allocation3 + $0x288] sm:$0xff] %vm250, %v2890
      %2923 = vst.msk [vmem:[#allocation3 + $0x2b0] sm:$0xff] %vm250, %v2891
      %2924 = vst.msk [vmem:[#allocation3 + $0x2d8] sm:$0xff] %vm250, %v2892
      %2925 = vst.msk [vmem:[#allocation3 + $0x300] sm:$0xff] %vm250, %v2893
      %2926 = vst.msk [vmem:[#allocation3 + $0x328] sm:$0xff] %vm250, %v2894
      %2927 = vst.msk [vmem:[#allocation3 + $0x350] sm:$0xff] %vm250, %v2895
      %2928 = vst.msk [vmem:[#allocation3 + $0x378] sm:$0xff] %vm250, %v2896
      %2929 = vst.msk [vmem:[#allocation3 + $0x3a0] sm:$0xff] %vm250, %v2897
      %2930 = vst.msk [vmem:[#allocation3 + $0x3c8] sm:$0xff] %vm250, %v2898
      %2931 = vst.msk [vmem:[#allocation3 + $0x3f0] sm:$0xff] %vm250, %v2899
      %2932 = vst.msk [vmem:[#allocation3 + $0x418] sm:$0xff] %vm250, %v2900
      %2933 = vst.msk [vmem:[#allocation3 + $0x440] sm:$0xff] %vm250, %v2901
      %2934 = vst.msk [vmem:[#allocation3 + $0x468] sm:$0xff] %vm250, %v2902
      %2935 = vst.msk [vmem:[#allocation3 + $0x490] sm:$0xff] %vm250, %v2903
      %2936 = vst.msk [vmem:[#allocation3 + $0x4b8] sm:$0xff] %vm250, %v2904
      %2937 = vst.msk [vmem:[#allocation3 + $0x4e0] sm:$0xff] %vm250, %v2905
      %v2938 = vld [vmem:[#allocation2 + $0x17] sm:$0xff]
      %v2939 = vld [vmem:[#allocation2 + $0x1f] sm:$0xff]
      %v2940 = vld [vmem:[#allocation2 + $0x27] sm:$0xff]
      %v2941 = vld [vmem:[#allocation2 + $0x2f] sm:$0xff]
      %v2942 = vld [vmem:[#allocation2 + $0x37] sm:$0xff]
      %v2943 = vld [vmem:[#allocation2 + $0x3f] sm:$0xff]
      %v2944 = vld [vmem:[#allocation2 + $0x47] sm:$0xff]
      %v2945 = vld [vmem:[#allocation2 + $0x4f] sm:$0xff]
      %v2946 = vld [vmem:[#allocation2 + $0x57] sm:$0xff]
      %v2947 = vld [vmem:[#allocation2 + $0x5f] sm:$0xff]
      %v2948 = vld [vmem:[#allocation2 + $0x67] sm:$0xff]
      %v2949 = vld [vmem:[#allocation2 + $0x6f] sm:$0xff]
      %v2950 = vld [vmem:[#allocation2 + $0x77] sm:$0xff]
      %v2951 = vld [vmem:[#allocation2 + $0x7f] sm:$0xff]
      %v2952 = vld [vmem:[#allocation2 + $0x87] sm:$0xff]
      %v2953 = vld [vmem:[#allocation2 + $0x8f] sm:$0xff]
      %v2954 = vld [vmem:[#allocation2 + $0x97] sm:$0xff]
      %v2955 = vld [vmem:[#allocation2 + $0x9f] sm:$0xff]
      %v2956 = vld [vmem:[#allocation2 + $0xa7] sm:$0xff]
      %v2957 = vld [vmem:[#allocation2 + $0xaf] sm:$0xff]
      %v2958 = vld [vmem:[#allocation2 + $0xb7] sm:$0xff]
      %v2959 = vld [vmem:[#allocation2 + $0xbf] sm:$0xff]
      %v2960 = vld [vmem:[#allocation2 + $0xc7] sm:$0xff]
      %v2961 = vld [vmem:[#allocation2 + $0xcf] sm:$0xff]
      %v2962 = vld [vmem:[#allocation2 + $0xd7] sm:$0xff]
      %v2963 = vld [vmem:[#allocation2 + $0xdf] sm:$0xff]
      %v2964 = vld [vmem:[#allocation2 + $0xe7] sm:$0xff]
      %v2965 = vld [vmem:[#allocation2 + $0xef] sm:$0xff]
      %v2966 = vld [vmem:[#allocation2 + $0xf7] sm:$0xff]
      %v2967 = vld [vmem:[#allocation2 + $0xff] sm:$0xff]
      %v2968 = vld [vmem:[#allocation2 + $0x107] sm:$0xff]
      %v2969 = vld [vmem:[#allocation2 + $0x10f] sm:$0xff]
      %2970 = vset.pattern.permute.xlu0 3
      %2971 = vperm.xlu0 %2970, %v257
      %v2972 = vpop.permute.xlu0 %2971
      %2974 = vset.pattern.permute.xlu0 3
      %2975 = vperm.xlu0 %2974, %v258
      %v2976 = vpop.permute.xlu0 %2975
      %2978 = vset.pattern.permute.xlu0 3
      %2979 = vperm.xlu0 %2978, %v259
      %v2980 = vpop.permute.xlu0 %2979
      %2982 = vset.pattern.permute.xlu0 3
      %2983 = vperm.xlu0 %2982, %v260
      %v2984 = vpop.permute.xlu0 %2983
      %2986 = vset.pattern.permute.xlu0 3
      %2987 = vperm.xlu0 %2986, %v261
      %v2988 = vpop.permute.xlu0 %2987
      %2990 = vset.pattern.permute.xlu0 3
      %2991 = vperm.xlu0 %2990, %v262
      %v2992 = vpop.permute.xlu0 %2991
      %2994 = vset.pattern.permute.xlu0 3
      %2995 = vperm.xlu0 %2994, %v263
      %v2996 = vpop.permute.xlu0 %2995
      %2998 = vset.pattern.permute.xlu0 3
      %2999 = vperm.xlu0 %2998, %v264
      %v3000 = vpop.permute.xlu0 %2999
      %3002 = vset.pattern.permute.xlu0 3
      %3003 = vperm.xlu0 %3002, %v265
      %v3004 = vpop.permute.xlu0 %3003
      %3006 = vset.pattern.permute.xlu0 3
      %3007 = vperm.xlu0 %3006, %v266
      %v3008 = vpop.permute.xlu0 %3007
      %3010 = vset.pattern.permute.xlu0 3
      %3011 = vperm.xlu0 %3010, %v267
      %v3012 = vpop.permute.xlu0 %3011
      %3014 = vset.pattern.permute.xlu0 3
      %3015 = vperm.xlu0 %3014, %v268
      %v3016 = vpop.permute.xlu0 %3015
      %3018 = vset.pattern.permute.xlu0 3
      %3019 = vperm.xlu0 %3018, %v269
      %v3020 = vpop.permute.xlu0 %3019
      %3022 = vset.pattern.permute.xlu0 3
      %3023 = vperm.xlu0 %3022, %v270
      %v3024 = vpop.permute.xlu0 %3023
      %3026 = vset.pattern.permute.xlu0 3
      %3027 = vperm.xlu0 %3026, %v271
      %v3028 = vpop.permute.xlu0 %3027
      %3030 = vset.pattern.permute.xlu0 3
      %3031 = vperm.xlu0 %3030, %v272
      %v3032 = vpop.permute.xlu0 %3031
      %3034 = vset.pattern.permute.xlu0 3
      %3035 = vperm.xlu0 %3034, %v273
      %v3036 = vpop.permute.xlu0 %3035
      %3038 = vset.pattern.permute.xlu0 3
      %3039 = vperm.xlu0 %3038, %v274
      %v3040 = vpop.permute.xlu0 %3039
      %3042 = vset.pattern.permute.xlu0 3
      %3043 = vperm.xlu0 %3042, %v275
      %v3044 = vpop.permute.xlu0 %3043
      %3046 = vset.pattern.permute.xlu0 3
      %3047 = vperm.xlu0 %3046, %v276
      %v3048 = vpop.permute.xlu0 %3047
      %3050 = vset.pattern.permute.xlu0 3
      %3051 = vperm.xlu0 %3050, %v277
      %v3052 = vpop.permute.xlu0 %3051
      %3054 = vset.pattern.permute.xlu0 3
      %3055 = vperm.xlu0 %3054, %v278
      %v3056 = vpop.permute.xlu0 %3055
      %3058 = vset.pattern.permute.xlu0 3
      %3059 = vperm.xlu0 %3058, %v279
      %v3060 = vpop.permute.xlu0 %3059
      %3062 = vset.pattern.permute.xlu0 3
      %3063 = vperm.xlu0 %3062, %v280
      %v3064 = vpop.permute.xlu0 %3063
      %3066 = vset.pattern.permute.xlu0 3
      %3067 = vperm.xlu0 %3066, %v281
      %v3068 = vpop.permute.xlu0 %3067
      %3070 = vset.pattern.permute.xlu0 3
      %3071 = vperm.xlu0 %3070, %v282
      %v3072 = vpop.permute.xlu0 %3071
      %3074 = vset.pattern.permute.xlu0 3
      %3075 = vperm.xlu0 %3074, %v283
      %v3076 = vpop.permute.xlu0 %3075
      %3078 = vset.pattern.permute.xlu0 3
      %3079 = vperm.xlu0 %3078, %v284
      %v3080 = vpop.permute.xlu0 %3079
      %3082 = vset.pattern.permute.xlu0 3
      %3083 = vperm.xlu0 %3082, %v285
      %v3084 = vpop.permute.xlu0 %3083
      %3086 = vset.pattern.permute.xlu0 3
      %3087 = vperm.xlu0 %3086, %v286
      %v3088 = vpop.permute.xlu0 %3087
      %3090 = vset.pattern.permute.xlu0 3
      %3091 = vperm.xlu0 %3090, %v287
      %v3092 = vpop.permute.xlu0 %3091
      %3094 = vset.pattern.permute.xlu0 3
      %3095 = vperm.xlu0 %3094, %v288
      %v3096 = vpop.permute.xlu0 %3095
      %v3098 = vmul.f32 %v2938, %v2972
      %v3099 = vmul.f32 %v2939, %v2976
      %v3100 = vmul.f32 %v2940, %v2980
      %v3101 = vmul.f32 %v2941, %v2984
      %v3102 = vmul.f32 %v2942, %v2988
      %v3103 = vmul.f32 %v2943, %v2992
      %v3104 = vmul.f32 %v2944, %v2996
      %v3105 = vmul.f32 %v2945, %v3000
      %v3106 = vmul.f32 %v2946, %v3004
      %v3107 = vmul.f32 %v2947, %v3008
      %v3108 = vmul.f32 %v2948, %v3012
      %v3109 = vmul.f32 %v2949, %v3016
      %v3110 = vmul.f32 %v2950, %v3020
      %v3111 = vmul.f32 %v2951, %v3024
      %v3112 = vmul.f32 %v2952, %v3028
      %v3113 = vmul.f32 %v2953, %v3032
      %v3114 = vmul.f32 %v2954, %v3036
      %v3115 = vmul.f32 %v2955, %v3040
      %v3116 = vmul.f32 %v2956, %v3044
      %v3117 = vmul.f32 %v2957, %v3048
      %v3118 = vmul.f32 %v2958, %v3052
      %v3119 = vmul.f32 %v2959, %v3056
      %v3120 = vmul.f32 %v2960, %v3060
      %v3121 = vmul.f32 %v2961, %v3064
      %v3122 = vmul.f32 %v2962, %v3068
      %v3123 = vmul.f32 %v2963, %v3072
      %v3124 = vmul.f32 %v2964, %v3076
      %v3125 = vmul.f32 %v2965, %v3080
      %v3126 = vmul.f32 %v2966, %v3084
      %v3127 = vmul.f32 %v2967, %v3088
      %v3128 = vmul.f32 %v2968, %v3092
      %v3129 = vmul.f32 %v2969, %v3096
      %3162 = vrot.lane.b32.xlu0 %v3098, 64
      %v3163 = vpop.permute.xlu0 %3162
      %3164 = vrot.lane.b32.xlu0 %v3099, 64
      %v3165 = vpop.permute.xlu0 %3164
      %3166 = vrot.lane.b32.xlu0 %v3100, 64
      %v3167 = vpop.permute.xlu0 %3166
      %3168 = vrot.lane.b32.xlu0 %v3101, 64
      %v3169 = vpop.permute.xlu0 %3168
      %3170 = vrot.lane.b32.xlu0 %v3102, 64
      %v3171 = vpop.permute.xlu0 %3170
      %3172 = vrot.lane.b32.xlu0 %v3103, 64
      %v3173 = vpop.permute.xlu0 %3172
      %3174 = vrot.lane.b32.xlu0 %v3104, 64
      %v3175 = vpop.permute.xlu0 %3174
      %3176 = vrot.lane.b32.xlu0 %v3105, 64
      %v3177 = vpop.permute.xlu0 %3176
      %3178 = vrot.lane.b32.xlu0 %v3106, 64
      %v3179 = vpop.permute.xlu0 %3178
      %3180 = vrot.lane.b32.xlu0 %v3107, 64
      %v3181 = vpop.permute.xlu0 %3180
      %3182 = vrot.lane.b32.xlu0 %v3108, 64
      %v3183 = vpop.permute.xlu0 %3182
      %3184 = vrot.lane.b32.xlu0 %v3109, 64
      %v3185 = vpop.permute.xlu0 %3184
      %3186 = vrot.lane.b32.xlu0 %v3110, 64
      %v3187 = vpop.permute.xlu0 %3186
      %3188 = vrot.lane.b32.xlu0 %v3111, 64
      %v3189 = vpop.permute.xlu0 %3188
      %3190 = vrot.lane.b32.xlu0 %v3112, 64
      %v3191 = vpop.permute.xlu0 %3190
      %3192 = vrot.lane.b32.xlu0 %v3113, 64
      %v3193 = vpop.permute.xlu0 %3192
      %3194 = vrot.lane.b32.xlu0 %v3114, 64
      %v3195 = vpop.permute.xlu0 %3194
      %3196 = vrot.lane.b32.xlu0 %v3115, 64
      %v3197 = vpop.permute.xlu0 %3196
      %3198 = vrot.lane.b32.xlu0 %v3116, 64
      %v3199 = vpop.permute.xlu0 %3198
      %3200 = vrot.lane.b32.xlu0 %v3117, 64
      %v3201 = vpop.permute.xlu0 %3200
      %3202 = vrot.lane.b32.xlu0 %v3118, 64
      %v3203 = vpop.permute.xlu0 %3202
      %3204 = vrot.lane.b32.xlu0 %v3119, 64
      %v3205 = vpop.permute.xlu0 %3204
      %3206 = vrot.lane.b32.xlu0 %v3120, 64
      %v3207 = vpop.permute.xlu0 %3206
      %3208 = vrot.lane.b32.xlu0 %v3121, 64
      %v3209 = vpop.permute.xlu0 %3208
      %3210 = vrot.lane.b32.xlu0 %v3122, 64
      %v3211 = vpop.permute.xlu0 %3210
      %3212 = vrot.lane.b32.xlu0 %v3123, 64
      %v3213 = vpop.permute.xlu0 %3212
      %3214 = vrot.lane.b32.xlu0 %v3124, 64
      %v3215 = vpop.permute.xlu0 %3214
      %3216 = vrot.lane.b32.xlu0 %v3125, 64
      %v3217 = vpop.permute.xlu0 %3216
      %3218 = vrot.lane.b32.xlu0 %v3126, 64
      %v3219 = vpop.permute.xlu0 %3218
      %3220 = vrot.lane.b32.xlu0 %v3127, 64
      %v3221 = vpop.permute.xlu0 %3220
      %3222 = vrot.lane.b32.xlu0 %v3128, 64
      %v3223 = vpop.permute.xlu0 %3222
      %3224 = vrot.lane.b32.xlu0 %v3129, 64
      %v3225 = vpop.permute.xlu0 %3224
      %3258 = vst.msk [vmem:[#allocation3 + $0x8] sm:$0xff] %vm2681, %v3163
      %3259 = vst.msk [vmem:[#allocation3 + $0x30] sm:$0xff] %vm2681, %v3165
      %3260 = vst.msk [vmem:[#allocation3 + $0x58] sm:$0xff] %vm2681, %v3167
      %3261 = vst.msk [vmem:[#allocation3 + $0x80] sm:$0xff] %vm2681, %v3169
      %3262 = vst.msk [vmem:[#allocation3 + $0xa8] sm:$0xff] %vm2681, %v3171
      %3263 = vst.msk [vmem:[#allocation3 + $0xd0] sm:$0xff] %vm2681, %v3173
      %3264 = vst.msk [vmem:[#allocation3 + $0xf8] sm:$0xff] %vm2681, %v3175
      %3265 = vst.msk [vmem:[#allocation3 + $0x120] sm:$0xff] %vm2681, %v3177
      %3266 = vst.msk [vmem:[#allocation3 + $0x148] sm:$0xff] %vm2681, %v3179
      %3267 = vst.msk [vmem:[#allocation3 + $0x170] sm:$0xff] %vm2681, %v3181
      %3268 = vst.msk [vmem:[#allocation3 + $0x198] sm:$0xff] %vm2681, %v3183
      %3269 = vst.msk [vmem:[#allocation3 + $0x1c0] sm:$0xff] %vm2681, %v3185
      %3270 = vst.msk [vmem:[#allocation3 + $0x1e8] sm:$0xff] %vm2681, %v3187
      %3271 = vst.msk [vmem:[#allocation3 + $0x210] sm:$0xff] %vm2681, %v3189
      %3272 = vst.msk [vmem:[#allocation3 + $0x238] sm:$0xff] %vm2681, %v3191
      %3273 = vst.msk [vmem:[#allocation3 + $0x260] sm:$0xff] %vm2681, %v3193
      %3274 = vst.msk [vmem:[#allocation3 + $0x288] sm:$0xff] %vm2681, %v3195
      %3275 = vst.msk [vmem:[#allocation3 + $0x2b0] sm:$0xff] %vm2681, %v3197
      %3276 = vst.msk [vmem:[#allocation3 + $0x2d8] sm:$0xff] %vm2681, %v3199
      %3277 = vst.msk [vmem:[#allocation3 + $0x300] sm:$0xff] %vm2681, %v3201
      %3278 = vst.msk [vmem:[#allocation3 + $0x328] sm:$0xff] %vm2681, %v3203
      %3279 = vst.msk [vmem:[#allocation3 + $0x350] sm:$0xff] %vm2681, %v3205
      %3280 = vst.msk [vmem:[#allocation3 + $0x378] sm:$0xff] %vm2681, %v3207
      %3281 = vst.msk [vmem:[#allocation3 + $0x3a0] sm:$0xff] %vm2681, %v3209
      %3282 = vst.msk [vmem:[#allocation3 + $0x3c8] sm:$0xff] %vm2681, %v3211
      %3283 = vst.msk [vmem:[#allocation3 + $0x3f0] sm:$0xff] %vm2681, %v3213
      %3284 = vst.msk [vmem:[#allocation3 + $0x418] sm:$0xff] %vm2681, %v3215
      %3285 = vst.msk [vmem:[#allocation3 + $0x440] sm:$0xff] %vm2681, %v3217
      %3286 = vst.msk [vmem:[#allocation3 + $0x468] sm:$0xff] %vm2681, %v3219
      %3287 = vst.msk [vmem:[#allocation3 + $0x490] sm:$0xff] %vm2681, %v3221
      %3288 = vst.msk [vmem:[#allocation3 + $0x4b8] sm:$0xff] %vm2681, %v3223
      %3289 = vst.msk [vmem:[#allocation3 + $0x4e0] sm:$0xff] %vm2681, %v3225
      %3290 = vst.msk [vmem:[#allocation3 + $0x10] sm:$0xff] %vm250, %v2041
      %3291 = vst.msk [vmem:[#allocation3 + $0x38] sm:$0xff] %vm250, %v2042
      %3292 = vst.msk [vmem:[#allocation3 + $0x60] sm:$0xff] %vm250, %v2043
      %3293 = vst.msk [vmem:[#allocation3 + $0x88] sm:$0xff] %vm250, %v2044
      %3294 = vst.msk [vmem:[#allocation3 + $0xb0] sm:$0xff] %vm250, %v2045
      %3295 = vst.msk [vmem:[#allocation3 + $0xd8] sm:$0xff] %vm250, %v2046
      %3296 = vst.msk [vmem:[#allocation3 + $0x100] sm:$0xff] %vm250, %v2047
      %3297 = vst.msk [vmem:[#allocation3 + $0x128] sm:$0xff] %vm250, %v2048
      %3298 = vst.msk [vmem:[#allocation3 + $0x150] sm:$0xff] %vm250, %v2049
      %3299 = vst.msk [vmem:[#allocation3 + $0x178] sm:$0xff] %vm250, %v2050
      %3300 = vst.msk [vmem:[#allocation3 + $0x1a0] sm:$0xff] %vm250, %v2051
      %3301 = vst.msk [vmem:[#allocation3 + $0x1c8] sm:$0xff] %vm250, %v2052
      %3302 = vst.msk [vmem:[#allocation3 + $0x1f0] sm:$0xff] %vm250, %v2053
      %3303 = vst.msk [vmem:[#allocation3 + $0x218] sm:$0xff] %vm250, %v2054
      %3304 = vst.msk [vmem:[#allocation3 + $0x240] sm:$0xff] %vm250, %v2055
      %3305 = vst.msk [vmem:[#allocation3 + $0x268] sm:$0xff] %vm250, %v2056
      %3306 = vst.msk [vmem:[#allocation3 + $0x290] sm:$0xff] %vm250, %v2057
      %3307 = vst.msk [vmem:[#allocation3 + $0x2b8] sm:$0xff] %vm250, %v2058
      %3308 = vst.msk [vmem:[#allocation3 + $0x2e0] sm:$0xff] %vm250, %v2059
      %3309 = vst.msk [vmem:[#allocation3 + $0x308] sm:$0xff] %vm250, %v2060
      %3310 = vst.msk [vmem:[#allocation3 + $0x330] sm:$0xff] %vm250, %v2061
      %3311 = vst.msk [vmem:[#allocation3 + $0x358] sm:$0xff] %vm250, %v2062
      %3312 = vst.msk [vmem:[#allocation3 + $0x380] sm:$0xff] %vm250, %v2063
      %3313 = vst.msk [vmem:[#allocation3 + $0x3a8] sm:$0xff] %vm250, %v2064
      %3314 = vst.msk [vmem:[#allocation3 + $0x3d0] sm:$0xff] %vm250, %v2065
      %3315 = vst.msk [vmem:[#allocation3 + $0x3f8] sm:$0xff] %vm250, %v2066
      %3316 = vst.msk [vmem:[#allocation3 + $0x420] sm:$0xff] %vm250, %v2067
      %3317 = vst.msk [vmem:[#allocation3 + $0x448] sm:$0xff] %vm250, %v2068
      %3318 = vst.msk [vmem:[#allocation3 + $0x470] sm:$0xff] %vm250, %v2069
      %3319 = vst.msk [vmem:[#allocation3 + $0x498] sm:$0xff] %vm250, %v2070
      %3320 = vst.msk [vmem:[#allocation3 + $0x4c0] sm:$0xff] %vm250, %v2071
      %3321 = vst.msk [vmem:[#allocation3 + $0x4e8] sm:$0xff] %vm250, %v2072
      %v3322 = vld [vmem:[#allocation2 + $0x19] sm:$0xff]
      %v3323 = vld [vmem:[#allocation2 + $0x21] sm:$0xff]
      %v3324 = vld [vmem:[#allocation2 + $0x29] sm:$0xff]
      %v3325 = vld [vmem:[#allocation2 + $0x31] sm:$0xff]
      %v3326 = vld [vmem:[#allocation2 + $0x39] sm:$0xff]
      %v3327 = vld [vmem:[#allocation2 + $0x41] sm:$0xff]
      %v3328 = vld [vmem:[#allocation2 + $0x49] sm:$0xff]
      %v3329 = vld [vmem:[#allocation2 + $0x51] sm:$0xff]
      %v3330 = vld [vmem:[#allocation2 + $0x59] sm:$0xff]
      %v3331 = vld [vmem:[#allocation2 + $0x61] sm:$0xff]
      %v3332 = vld [vmem:[#allocation2 + $0x69] sm:$0xff]
      %v3333 = vld [vmem:[#allocation2 + $0x71] sm:$0xff]
      %v3334 = vld [vmem:[#allocation2 + $0x79] sm:$0xff]
      %v3335 = vld [vmem:[#allocation2 + $0x81] sm:$0xff]
      %v3336 = vld [vmem:[#allocation2 + $0x89] sm:$0xff]
      %v3337 = vld [vmem:[#allocation2 + $0x91] sm:$0xff]
      %v3338 = vld [vmem:[#allocation2 + $0x99] sm:$0xff]
      %v3339 = vld [vmem:[#allocation2 + $0xa1] sm:$0xff]
      %v3340 = vld [vmem:[#allocation2 + $0xa9] sm:$0xff]
      %v3341 = vld [vmem:[#allocation2 + $0xb1] sm:$0xff]
      %v3342 = vld [vmem:[#allocation2 + $0xb9] sm:$0xff]
      %v3343 = vld [vmem:[#allocation2 + $0xc1] sm:$0xff]
      %v3344 = vld [vmem:[#allocation2 + $0xc9] sm:$0xff]
      %v3345 = vld [vmem:[#allocation2 + $0xd1] sm:$0xff]
      %v3346 = vld [vmem:[#allocation2 + $0xd9] sm:$0xff]
      %v3347 = vld [vmem:[#allocation2 + $0xe1] sm:$0xff]
      %v3348 = vld [vmem:[#allocation2 + $0xe9] sm:$0xff]
      %v3349 = vld [vmem:[#allocation2 + $0xf1] sm:$0xff]
      %v3350 = vld [vmem:[#allocation2 + $0xf9] sm:$0xff]
      %v3351 = vld [vmem:[#allocation2 + $0x101] sm:$0xff]
      %v3352 = vld [vmem:[#allocation2 + $0x109] sm:$0xff]
      %v3353 = vld [vmem:[#allocation2 + $0x111] sm:$0xff]
      %3354 = vset.pattern.permute.xlu0 4
      %3355 = vperm.xlu0 %3354, %v257
      %v3356 = vpop.permute.xlu0 %3355
      %3358 = vset.pattern.permute.xlu0 4
      %3359 = vperm.xlu0 %3358, %v258
      %v3360 = vpop.permute.xlu0 %3359
      %3362 = vset.pattern.permute.xlu0 4
      %3363 = vperm.xlu0 %3362, %v259
      %v3364 = vpop.permute.xlu0 %3363
      %3366 = vset.pattern.permute.xlu0 4
      %3367 = vperm.xlu0 %3366, %v260
      %v3368 = vpop.permute.xlu0 %3367
      %3370 = vset.pattern.permute.xlu0 4
      %3371 = vperm.xlu0 %3370, %v261
      %v3372 = vpop.permute.xlu0 %3371
      %3374 = vset.pattern.permute.xlu0 4
      %3375 = vperm.xlu0 %3374, %v262
      %v3376 = vpop.permute.xlu0 %3375
      %3378 = vset.pattern.permute.xlu0 4
      %3379 = vperm.xlu0 %3378, %v263
      %v3380 = vpop.permute.xlu0 %3379
      %3382 = vset.pattern.permute.xlu0 4
      %3383 = vperm.xlu0 %3382, %v264
      %v3384 = vpop.permute.xlu0 %3383
      %3386 = vset.pattern.permute.xlu0 4
      %3387 = vperm.xlu0 %3386, %v265
      %v3388 = vpop.permute.xlu0 %3387
      %3390 = vset.pattern.permute.xlu0 4
      %3391 = vperm.xlu0 %3390, %v266
      %v3392 = vpop.permute.xlu0 %3391
      %3394 = vset.pattern.permute.xlu0 4
      %3395 = vperm.xlu0 %3394, %v267
      %v3396 = vpop.permute.xlu0 %3395
      %3398 = vset.pattern.permute.xlu0 4
      %3399 = vperm.xlu0 %3398, %v268
      %v3400 = vpop.permute.xlu0 %3399
      %3402 = vset.pattern.permute.xlu0 4
      %3403 = vperm.xlu0 %3402, %v269
      %v3404 = vpop.permute.xlu0 %3403
      %3406 = vset.pattern.permute.xlu0 4
      %3407 = vperm.xlu0 %3406, %v270
      %v3408 = vpop.permute.xlu0 %3407
      %3410 = vset.pattern.permute.xlu0 4
      %3411 = vperm.xlu0 %3410, %v271
      %v3412 = vpop.permute.xlu0 %3411
      %3414 = vset.pattern.permute.xlu0 4
      %3415 = vperm.xlu0 %3414, %v272
      %v3416 = vpop.permute.xlu0 %3415
      %3418 = vset.pattern.permute.xlu0 4
      %3419 = vperm.xlu0 %3418, %v273
      %v3420 = vpop.permute.xlu0 %3419
      %3422 = vset.pattern.permute.xlu0 4
      %3423 = vperm.xlu0 %3422, %v274
      %v3424 = vpop.permute.xlu0 %3423
      %3426 = vset.pattern.permute.xlu0 4
      %3427 = vperm.xlu0 %3426, %v275
      %v3428 = vpop.permute.xlu0 %3427
      %3430 = vset.pattern.permute.xlu0 4
      %3431 = vperm.xlu0 %3430, %v276
      %v3432 = vpop.permute.xlu0 %3431
      %3434 = vset.pattern.permute.xlu0 4
      %3435 = vperm.xlu0 %3434, %v277
      %v3436 = vpop.permute.xlu0 %3435
      %3438 = vset.pattern.permute.xlu0 4
      %3439 = vperm.xlu0 %3438, %v278
      %v3440 = vpop.permute.xlu0 %3439
      %3442 = vset.pattern.permute.xlu0 4
      %3443 = vperm.xlu0 %3442, %v279
      %v3444 = vpop.permute.xlu0 %3443
      %3446 = vset.pattern.permute.xlu0 4
      %3447 = vperm.xlu0 %3446, %v280
      %v3448 = vpop.permute.xlu0 %3447
      %3450 = vset.pattern.permute.xlu0 4
      %3451 = vperm.xlu0 %3450, %v281
      %v3452 = vpop.permute.xlu0 %3451
      %3454 = vset.pattern.permute.xlu0 4
      %3455 = vperm.xlu0 %3454, %v282
      %v3456 = vpop.permute.xlu0 %3455
      %3458 = vset.pattern.permute.xlu0 4
      %3459 = vperm.xlu0 %3458, %v283
      %v3460 = vpop.permute.xlu0 %3459
      %3462 = vset.pattern.permute.xlu0 4
      %3463 = vperm.xlu0 %3462, %v284
      %v3464 = vpop.permute.xlu0 %3463
      %3466 = vset.pattern.permute.xlu0 4
      %3467 = vperm.xlu0 %3466, %v285
      %v3468 = vpop.permute.xlu0 %3467
      %3470 = vset.pattern.permute.xlu0 4
      %3471 = vperm.xlu0 %3470, %v286
      %v3472 = vpop.permute.xlu0 %3471
      %3474 = vset.pattern.permute.xlu0 4
      %3475 = vperm.xlu0 %3474, %v287
      %v3476 = vpop.permute.xlu0 %3475
      %3478 = vset.pattern.permute.xlu0 4
      %3479 = vperm.xlu0 %3478, %v288
      %v3480 = vpop.permute.xlu0 %3479
      %v3482 = vmul.f32 %v3322, %v3356
      %v3483 = vmul.f32 %v3323, %v3360
      %v3484 = vmul.f32 %v3324, %v3364
      %v3485 = vmul.f32 %v3325, %v3368
      %v3486 = vmul.f32 %v3326, %v3372
      %v3487 = vmul.f32 %v3327, %v3376
      %v3488 = vmul.f32 %v3328, %v3380
      %v3489 = vmul.f32 %v3329, %v3384
      %v3490 = vmul.f32 %v3330, %v3388
      %v3491 = vmul.f32 %v3331, %v3392
      %v3492 = vmul.f32 %v3332, %v3396
      %v3493 = vmul.f32 %v3333, %v3400
      %v3494 = vmul.f32 %v3334, %v3404
      %v3495 = vmul.f32 %v3335, %v3408
      %v3496 = vmul.f32 %v3336, %v3412
      %v3497 = vmul.f32 %v3337, %v3416
      %v3498 = vmul.f32 %v3338, %v3420
      %v3499 = vmul.f32 %v3339, %v3424
      %v3500 = vmul.f32 %v3340, %v3428
      %v3501 = vmul.f32 %v3341, %v3432
      %v3502 = vmul.f32 %v3342, %v3436
      %v3503 = vmul.f32 %v3343, %v3440
      %v3504 = vmul.f32 %v3344, %v3444
      %v3505 = vmul.f32 %v3345, %v3448
      %v3506 = vmul.f32 %v3346, %v3452
      %v3507 = vmul.f32 %v3347, %v3456
      %v3508 = vmul.f32 %v3348, %v3460
      %v3509 = vmul.f32 %v3349, %v3464
      %v3510 = vmul.f32 %v3350, %v3468
      %v3511 = vmul.f32 %v3351, %v3472
      %v3512 = vmul.f32 %v3352, %v3476
      %v3513 = vmul.f32 %v3353, %v3480
      %3546 = vrot.lane.b32.xlu0 %v3482, 64
      %v3547 = vpop.permute.xlu0 %3546
      %3548 = vrot.lane.b32.xlu0 %v3483, 64
      %v3549 = vpop.permute.xlu0 %3548
      %3550 = vrot.lane.b32.xlu0 %v3484, 64
      %v3551 = vpop.permute.xlu0 %3550
      %3552 = vrot.lane.b32.xlu0 %v3485, 64
      %v3553 = vpop.permute.xlu0 %3552
      %3554 = vrot.lane.b32.xlu0 %v3486, 64
      %v3555 = vpop.permute.xlu0 %3554
      %3556 = vrot.lane.b32.xlu0 %v3487, 64
      %v3557 = vpop.permute.xlu0 %3556
      %3558 = vrot.lane.b32.xlu0 %v3488, 64
      %v3559 = vpop.permute.xlu0 %3558
      %3560 = vrot.lane.b32.xlu0 %v3489, 64
      %v3561 = vpop.permute.xlu0 %3560
      %3562 = vrot.lane.b32.xlu0 %v3490, 64
      %v3563 = vpop.permute.xlu0 %3562
      %3564 = vrot.lane.b32.xlu0 %v3491, 64
      %v3565 = vpop.permute.xlu0 %3564
      %3566 = vrot.lane.b32.xlu0 %v3492, 64
      %v3567 = vpop.permute.xlu0 %3566
      %3568 = vrot.lane.b32.xlu0 %v3493, 64
      %v3569 = vpop.permute.xlu0 %3568
      %3570 = vrot.lane.b32.xlu0 %v3494, 64
      %v3571 = vpop.permute.xlu0 %3570
      %3572 = vrot.lane.b32.xlu0 %v3495, 64
      %v3573 = vpop.permute.xlu0 %3572
      %3574 = vrot.lane.b32.xlu0 %v3496, 64
      %v3575 = vpop.permute.xlu0 %3574
      %3576 = vrot.lane.b32.xlu0 %v3497, 64
      %v3577 = vpop.permute.xlu0 %3576
      %3578 = vrot.lane.b32.xlu0 %v3498, 64
      %v3579 = vpop.permute.xlu0 %3578
      %3580 = vrot.lane.b32.xlu0 %v3499, 64
      %v3581 = vpop.permute.xlu0 %3580
      %3582 = vrot.lane.b32.xlu0 %v3500, 64
      %v3583 = vpop.permute.xlu0 %3582
      %3584 = vrot.lane.b32.xlu0 %v3501, 64
      %v3585 = vpop.permute.xlu0 %3584
      %3586 = vrot.lane.b32.xlu0 %v3502, 64
      %v3587 = vpop.permute.xlu0 %3586
      %3588 = vrot.lane.b32.xlu0 %v3503, 64
      %v3589 = vpop.permute.xlu0 %3588
      %3590 = vrot.lane.b32.xlu0 %v3504, 64
      %v3591 = vpop.permute.xlu0 %3590
      %3592 = vrot.lane.b32.xlu0 %v3505, 64
      %v3593 = vpop.permute.xlu0 %3592
      %3594 = vrot.lane.b32.xlu0 %v3506, 64
      %v3595 = vpop.permute.xlu0 %3594
      %3596 = vrot.lane.b32.xlu0 %v3507, 64
      %v3597 = vpop.permute.xlu0 %3596
      %3598 = vrot.lane.b32.xlu0 %v3508, 64
      %v3599 = vpop.permute.xlu0 %3598
      %3600 = vrot.lane.b32.xlu0 %v3509, 64
      %v3601 = vpop.permute.xlu0 %3600
      %3602 = vrot.lane.b32.xlu0 %v3510, 64
      %v3603 = vpop.permute.xlu0 %3602
      %3604 = vrot.lane.b32.xlu0 %v3511, 64
      %v3605 = vpop.permute.xlu0 %3604
      %3606 = vrot.lane.b32.xlu0 %v3512, 64
      %v3607 = vpop.permute.xlu0 %3606
      %3608 = vrot.lane.b32.xlu0 %v3513, 64
      %v3609 = vpop.permute.xlu0 %3608
      %3642 = vst.msk [vmem:[#allocation3 + $0x10] sm:$0xff] %vm2681, %v3547
      %3643 = vst.msk [vmem:[#allocation3 + $0x38] sm:$0xff] %vm2681, %v3549
      %3644 = vst.msk [vmem:[#allocation3 + $0x60] sm:$0xff] %vm2681, %v3551
      %3645 = vst.msk [vmem:[#allocation3 + $0x88] sm:$0xff] %vm2681, %v3553
      %3646 = vst.msk [vmem:[#allocation3 + $0xb0] sm:$0xff] %vm2681, %v3555
      %3647 = vst.msk [vmem:[#allocation3 + $0xd8] sm:$0xff] %vm2681, %v3557
      %3648 = vst.msk [vmem:[#allocation3 + $0x100] sm:$0xff] %vm2681, %v3559
      %3649 = vst.msk [vmem:[#allocation3 + $0x128] sm:$0xff] %vm2681, %v3561
      %3650 = vst.msk [vmem:[#allocation3 + $0x150] sm:$0xff] %vm2681, %v3563
      %3651 = vst.msk [vmem:[#allocation3 + $0x178] sm:$0xff] %vm2681, %v3565
      %3652 = vst.msk [vmem:[#allocation3 + $0x1a0] sm:$0xff] %vm2681, %v3567
      %3653 = vst.msk [vmem:[#allocation3 + $0x1c8] sm:$0xff] %vm2681, %v3569
      %3654 = vst.msk [vmem:[#allocation3 + $0x1f0] sm:$0xff] %vm2681, %v3571
      %3655 = vst.msk [vmem:[#allocation3 + $0x218] sm:$0xff] %vm2681, %v3573
      %3656 = vst.msk [vmem:[#allocation3 + $0x240] sm:$0xff] %vm2681, %v3575
      %3657 = vst.msk [vmem:[#allocation3 + $0x268] sm:$0xff] %vm2681, %v3577
      %3658 = vst.msk [vmem:[#allocation3 + $0x290] sm:$0xff] %vm2681, %v3579
      %3659 = vst.msk [vmem:[#allocation3 + $0x2b8] sm:$0xff] %vm2681, %v3581
      %3660 = vst.msk [vmem:[#allocation3 + $0x2e0] sm:$0xff] %vm2681, %v3583
      %3661 = vst.msk [vmem:[#allocation3 + $0x308] sm:$0xff] %vm2681, %v3585
      %3662 = vst.msk [vmem:[#allocation3 + $0x330] sm:$0xff] %vm2681, %v3587
      %3663 = vst.msk [vmem:[#allocation3 + $0x358] sm:$0xff] %vm2681, %v3589
      %3664 = vst.msk [vmem:[#allocation3 + $0x380] sm:$0xff] %vm2681, %v3591
      %3665 = vst.msk [vmem:[#allocation3 + $0x3a8] sm:$0xff] %vm2681, %v3593
      %3666 = vst.msk [vmem:[#allocation3 + $0x3d0] sm:$0xff] %vm2681, %v3595
      %3667 = vst.msk [vmem:[#allocation3 + $0x3f8] sm:$0xff] %vm2681, %v3597
      %3668 = vst.msk [vmem:[#allocation3 + $0x420] sm:$0xff] %vm2681, %v3599
      %3669 = vst.msk [vmem:[#allocation3 + $0x448] sm:$0xff] %vm2681, %v3601
      %3670 = vst.msk [vmem:[#allocation3 + $0x470] sm:$0xff] %vm2681, %v3603
      %3671 = vst.msk [vmem:[#allocation3 + $0x498] sm:$0xff] %vm2681, %v3605
      %3672 = vst.msk [vmem:[#allocation3 + $0x4c0] sm:$0xff] %vm2681, %v3607
      %3673 = vst.msk [vmem:[#allocation3 + $0x4e8] sm:$0xff] %vm2681, %v3609
      %v3674 = vld [vmem:[#allocation2 + $0x27] sm:$0xff]
      %v3675 = vld [vmem:[#allocation2 + $0x2f] sm:$0xff]
      %v3676 = vld [vmem:[#allocation2 + $0x37] sm:$0xff]
      %v3677 = vld [vmem:[#allocation2 + $0x3f] sm:$0xff]
      %v3678 = vld [vmem:[#allocation2 + $0x47] sm:$0xff]
      %v3679 = vld [vmem:[#allocation2 + $0x4f] sm:$0xff]
      %v3680 = vld [vmem:[#allocation2 + $0x57] sm:$0xff]
      %v3681 = vld [vmem:[#allocation2 + $0x5f] sm:$0xff]
      %v3682 = vld [vmem:[#allocation2 + $0x67] sm:$0xff]
      %v3683 = vld [vmem:[#allocation2 + $0x6f] sm:$0xff]
      %v3684 = vld [vmem:[#allocation2 + $0x77] sm:$0xff]
      %v3685 = vld [vmem:[#allocation2 + $0x7f] sm:$0xff]
      %v3686 = vld [vmem:[#allocation2 + $0x87] sm:$0xff]
      %v3687 = vld [vmem:[#allocation2 + $0x8f] sm:$0xff]
      %v3688 = vld [vmem:[#allocation2 + $0x97] sm:$0xff]
      %v3689 = vld [vmem:[#allocation2 + $0x9f] sm:$0xff]
      %v3690 = vld [vmem:[#allocation2 + $0xa7] sm:$0xff]
      %v3691 = vld [vmem:[#allocation2 + $0xaf] sm:$0xff]
      %v3692 = vld [vmem:[#allocation2 + $0xb7] sm:$0xff]
      %v3693 = vld [vmem:[#allocation2 + $0xbf] sm:$0xff]
      %v3694 = vld [vmem:[#allocation2 + $0xc7] sm:$0xff]
      %v3695 = vld [vmem:[#allocation2 + $0xcf] sm:$0xff]
      %v3696 = vld [vmem:[#allocation2 + $0xd7] sm:$0xff]
      %v3697 = vld [vmem:[#allocation2 + $0xdf] sm:$0xff]
      %v3698 = vld [vmem:[#allocation2 + $0xe7] sm:$0xff]
      %v3699 = vld [vmem:[#allocation2 + $0xef] sm:$0xff]
      %v3700 = vld [vmem:[#allocation2 + $0xf7] sm:$0xff]
      %v3701 = vld [vmem:[#allocation2 + $0xff] sm:$0xff]
      %v3702 = vld [vmem:[#allocation2 + $0x107] sm:$0xff]
      %v3703 = vld [vmem:[#allocation2 + $0x10f] sm:$0xff]
      %v3704 = vld [vmem:[#allocation2 + $0x117] sm:$0xff]
      %v3705 = vld [vmem:[#allocation2 + $0x11f] sm:$0xff]
      %3706 = vset.pattern.permute.xlu0 5
      %3707 = vperm.xlu0 %3706, %v257
      %v3708 = vpop.permute.xlu0 %3707
      %3710 = vset.pattern.permute.xlu0 5
      %3711 = vperm.xlu0 %3710, %v258
      %v3712 = vpop.permute.xlu0 %3711
      %3714 = vset.pattern.permute.xlu0 5
      %3715 = vperm.xlu0 %3714, %v259
      %v3716 = vpop.permute.xlu0 %3715
      %3718 = vset.pattern.permute.xlu0 5
      %3719 = vperm.xlu0 %3718, %v260
      %v3720 = vpop.permute.xlu0 %3719
      %3722 = vset.pattern.permute.xlu0 5
      %3723 = vperm.xlu0 %3722, %v261
      %v3724 = vpop.permute.xlu0 %3723
      %3726 = vset.pattern.permute.xlu0 5
      %3727 = vperm.xlu0 %3726, %v262
      %v3728 = vpop.permute.xlu0 %3727
      %3730 = vset.pattern.permute.xlu0 5
      %3731 = vperm.xlu0 %3730, %v263
      %v3732 = vpop.permute.xlu0 %3731
      %3734 = vset.pattern.permute.xlu0 5
      %3735 = vperm.xlu0 %3734, %v264
      %v3736 = vpop.permute.xlu0 %3735
      %3738 = vset.pattern.permute.xlu0 5
      %3739 = vperm.xlu0 %3738, %v265
      %v3740 = vpop.permute.xlu0 %3739
      %3742 = vset.pattern.permute.xlu0 5
      %3743 = vperm.xlu0 %3742, %v266
      %v3744 = vpop.permute.xlu0 %3743
      %3746 = vset.pattern.permute.xlu0 5
      %3747 = vperm.xlu0 %3746, %v267
      %v3748 = vpop.permute.xlu0 %3747
      %3750 = vset.pattern.permute.xlu0 5
      %3751 = vperm.xlu0 %3750, %v268
      %v3752 = vpop.permute.xlu0 %3751
      %3754 = vset.pattern.permute.xlu0 5
      %3755 = vperm.xlu0 %3754, %v269
      %v3756 = vpop.permute.xlu0 %3755
      %3758 = vset.pattern.permute.xlu0 5
      %3759 = vperm.xlu0 %3758, %v270
      %v3760 = vpop.permute.xlu0 %3759
      %3762 = vset.pattern.permute.xlu0 5
      %3763 = vperm.xlu0 %3762, %v271
      %v3764 = vpop.permute.xlu0 %3763
      %3766 = vset.pattern.permute.xlu0 5
      %3767 = vperm.xlu0 %3766, %v272
      %v3768 = vpop.permute.xlu0 %3767
      %3770 = vset.pattern.permute.xlu0 5
      %3771 = vperm.xlu0 %3770, %v273
      %v3772 = vpop.permute.xlu0 %3771
      %3774 = vset.pattern.permute.xlu0 5
      %3775 = vperm.xlu0 %3774, %v274
      %v3776 = vpop.permute.xlu0 %3775
      %3778 = vset.pattern.permute.xlu0 5
      %3779 = vperm.xlu0 %3778, %v275
      %v3780 = vpop.permute.xlu0 %3779
      %3782 = vset.pattern.permute.xlu0 5
      %3783 = vperm.xlu0 %3782, %v276
      %v3784 = vpop.permute.xlu0 %3783
      %3786 = vset.pattern.permute.xlu0 5
      %3787 = vperm.xlu0 %3786, %v277
      %v3788 = vpop.permute.xlu0 %3787
      %3790 = vset.pattern.permute.xlu0 5
      %3791 = vperm.xlu0 %3790, %v278
      %v3792 = vpop.permute.xlu0 %3791
      %3794 = vset.pattern.permute.xlu0 5
      %3795 = vperm.xlu0 %3794, %v279
      %v3796 = vpop.permute.xlu0 %3795
      %3798 = vset.pattern.permute.xlu0 5
      %3799 = vperm.xlu0 %3798, %v280
      %v3800 = vpop.permute.xlu0 %3799
      %3802 = vset.pattern.permute.xlu0 5
      %3803 = vperm.xlu0 %3802, %v281
      %v3804 = vpop.permute.xlu0 %3803
      %3806 = vset.pattern.permute.xlu0 5
      %3807 = vperm.xlu0 %3806, %v282
      %v3808 = vpop.permute.xlu0 %3807
      %3810 = vset.pattern.permute.xlu0 5
      %3811 = vperm.xlu0 %3810, %v283
      %v3812 = vpop.permute.xlu0 %3811
      %3814 = vset.pattern.permute.xlu0 5
      %3815 = vperm.xlu0 %3814, %v284
      %v3816 = vpop.permute.xlu0 %3815
      %3818 = vset.pattern.permute.xlu0 5
      %3819 = vperm.xlu0 %3818, %v285
      %v3820 = vpop.permute.xlu0 %3819
      %3822 = vset.pattern.permute.xlu0 5
      %3823 = vperm.xlu0 %3822, %v286
      %v3824 = vpop.permute.xlu0 %3823
      %3826 = vset.pattern.permute.xlu0 5
      %3827 = vperm.xlu0 %3826, %v287
      %v3828 = vpop.permute.xlu0 %3827
      %3830 = vset.pattern.permute.xlu0 5
      %3831 = vperm.xlu0 %3830, %v288
      %v3832 = vpop.permute.xlu0 %3831
      %v3834 = vmul.f32 %v3674, %v3708
      %v3835 = vmul.f32 %v3675, %v3712
      %v3836 = vmul.f32 %v3676, %v3716
      %v3837 = vmul.f32 %v3677, %v3720
      %v3838 = vmul.f32 %v3678, %v3724
      %v3839 = vmul.f32 %v3679, %v3728
      %v3840 = vmul.f32 %v3680, %v3732
      %v3841 = vmul.f32 %v3681, %v3736
      %v3842 = vmul.f32 %v3682, %v3740
      %v3843 = vmul.f32 %v3683, %v3744
      %v3844 = vmul.f32 %v3684, %v3748
      %v3845 = vmul.f32 %v3685, %v3752
      %v3846 = vmul.f32 %v3686, %v3756
      %v3847 = vmul.f32 %v3687, %v3760
      %v3848 = vmul.f32 %v3688, %v3764
      %v3849 = vmul.f32 %v3689, %v3768
      %v3850 = vmul.f32 %v3690, %v3772
      %v3851 = vmul.f32 %v3691, %v3776
      %v3852 = vmul.f32 %v3692, %v3780
      %v3853 = vmul.f32 %v3693, %v3784
      %v3854 = vmul.f32 %v3694, %v3788
      %v3855 = vmul.f32 %v3695, %v3792
      %v3856 = vmul.f32 %v3696, %v3796
      %v3857 = vmul.f32 %v3697, %v3800
      %v3858 = vmul.f32 %v3698, %v3804
      %v3859 = vmul.f32 %v3699, %v3808
      %v3860 = vmul.f32 %v3700, %v3812
      %v3861 = vmul.f32 %v3701, %v3816
      %v3862 = vmul.f32 %v3702, %v3820
      %v3863 = vmul.f32 %v3703, %v3824
      %v3864 = vmul.f32 %v3704, %v3828
      %v3865 = vmul.f32 %v3705, %v3832
      %3866 = vst.msk [vmem:[#allocation3 + $0x18] sm:$0xff] %vm250, %v3834
      %3867 = vst.msk [vmem:[#allocation3 + $0x40] sm:$0xff] %vm250, %v3835
      %3868 = vst.msk [vmem:[#allocation3 + $0x68] sm:$0xff] %vm250, %v3836
      %3869 = vst.msk [vmem:[#allocation3 + $0x90] sm:$0xff] %vm250, %v3837
      %3870 = vst.msk [vmem:[#allocation3 + $0xb8] sm:$0xff] %vm250, %v3838
      %3871 = vst.msk [vmem:[#allocation3 + $0xe0] sm:$0xff] %vm250, %v3839
      %3872 = vst.msk [vmem:[#allocation3 + $0x108] sm:$0xff] %vm250, %v3840
      %3873 = vst.msk [vmem:[#allocation3 + $0x130] sm:$0xff] %vm250, %v3841
      %3874 = vst.msk [vmem:[#allocation3 + $0x158] sm:$0xff] %vm250, %v3842
      %3875 = vst.msk [vmem:[#allocation3 + $0x180] sm:$0xff] %vm250, %v3843
      %3876 = vst.msk [vmem:[#allocation3 + $0x1a8] sm:$0xff] %vm250, %v3844
      %3877 = vst.msk [vmem:[#allocation3 + $0x1d0] sm:$0xff] %vm250, %v3845
      %3878 = vst.msk [vmem:[#allocation3 + $0x1f8] sm:$0xff] %vm250, %v3846
      %3879 = vst.msk [vmem:[#allocation3 + $0x220] sm:$0xff] %vm250, %v3847
      %3880 = vst.msk [vmem:[#allocation3 + $0x248] sm:$0xff] %vm250, %v3848
      %3881 = vst.msk [vmem:[#allocation3 + $0x270] sm:$0xff] %vm250, %v3849
      %3882 = vst.msk [vmem:[#allocation3 + $0x298] sm:$0xff] %vm250, %v3850
      %3883 = vst.msk [vmem:[#allocation3 + $0x2c0] sm:$0xff] %vm250, %v3851
      %3884 = vst.msk [vmem:[#allocation3 + $0x2e8] sm:$0xff] %vm250, %v3852
      %3885 = vst.msk [vmem:[#allocation3 + $0x310] sm:$0xff] %vm250, %v3853
      %3886 = vst.msk [vmem:[#allocation3 + $0x338] sm:$0xff] %vm250, %v3854
      %3887 = vst.msk [vmem:[#allocation3 + $0x360] sm:$0xff] %vm250, %v3855
      %3888 = vst.msk [vmem:[#allocation3 + $0x388] sm:$0xff] %vm250, %v3856
      %3889 = vst.msk [vmem:[#allocation3 + $0x3b0] sm:$0xff] %vm250, %v3857
      %3890 = vst.msk [vmem:[#allocation3 + $0x3d8] sm:$0xff] %vm250, %v3858
      %3891 = vst.msk [vmem:[#allocation3 + $0x400] sm:$0xff] %vm250, %v3859
      %3892 = vst.msk [vmem:[#allocation3 + $0x428] sm:$0xff] %vm250, %v3860
      %3893 = vst.msk [vmem:[#allocation3 + $0x450] sm:$0xff] %vm250, %v3861
      %3894 = vst.msk [vmem:[#allocation3 + $0x478] sm:$0xff] %vm250, %v3862
      %3895 = vst.msk [vmem:[#allocation3 + $0x4a0] sm:$0xff] %vm250, %v3863
      %3896 = vst.msk [vmem:[#allocation3 + $0x4c8] sm:$0xff] %vm250, %v3864
      %3897 = vst.msk [vmem:[#allocation3 + $0x4f0] sm:$0xff] %vm250, %v3865
      %v3898 = vld [vmem:[#allocation2 + $0x28] sm:$0xff]
      %v3899 = vld [vmem:[#allocation2 + $0x30] sm:$0xff]
      %v3900 = vld [vmem:[#allocation2 + $0x38] sm:$0xff]
      %v3901 = vld [vmem:[#allocation2 + $0x40] sm:$0xff]
      %v3902 = vld [vmem:[#allocation2 + $0x48] sm:$0xff]
      %v3903 = vld [vmem:[#allocation2 + $0x50] sm:$0xff]
      %v3904 = vld [vmem:[#allocation2 + $0x58] sm:$0xff]
      %v3905 = vld [vmem:[#allocation2 + $0x60] sm:$0xff]
      %v3906 = vld [vmem:[#allocation2 + $0x68] sm:$0xff]
      %v3907 = vld [vmem:[#allocation2 + $0x70] sm:$0xff]
      %v3908 = vld [vmem:[#allocation2 + $0x78] sm:$0xff]
      %v3909 = vld [vmem:[#allocation2 + $0x80] sm:$0xff]
      %v3910 = vld [vmem:[#allocation2 + $0x88] sm:$0xff]
      %v3911 = vld [vmem:[#allocation2 + $0x90] sm:$0xff]
      %v3912 = vld [vmem:[#allocation2 + $0x98] sm:$0xff]
      %v3913 = vld [vmem:[#allocation2 + $0xa0] sm:$0xff]
      %v3914 = vld [vmem:[#allocation2 + $0xa8] sm:$0xff]
      %v3915 = vld [vmem:[#allocation2 + $0xb0] sm:$0xff]
      %v3916 = vld [vmem:[#allocation2 + $0xb8] sm:$0xff]
      %v3917 = vld [vmem:[#allocation2 + $0xc0] sm:$0xff]
      %v3918 = vld [vmem:[#allocation2 + $0xc8] sm:$0xff]
      %v3919 = vld [vmem:[#allocation2 + $0xd0] sm:$0xff]
      %v3920 = vld [vmem:[#allocation2 + $0xd8] sm:$0xff]
      %v3921 = vld [vmem:[#allocation2 + $0xe0] sm:$0xff]
      %v3922 = vld [vmem:[#allocation2 + $0xe8] sm:$0xff]
      %v3923 = vld [vmem:[#allocation2 + $0xf0] sm:$0xff]
      %v3924 = vld [vmem:[#allocation2 + $0xf8] sm:$0xff]
      %v3925 = vld [vmem:[#allocation2 + $0x100] sm:$0xff]
      %v3926 = vld [vmem:[#allocation2 + $0x108] sm:$0xff]
      %v3927 = vld [vmem:[#allocation2 + $0x110] sm:$0xff]
      %v3928 = vld [vmem:[#allocation2 + $0x118] sm:$0xff]
      %v3929 = vld [vmem:[#allocation2 + $0x120] sm:$0xff]
      %3930 = vset.pattern.permute.xlu0 6
      %3931 = vperm.xlu0 %3930, %v257
      %v3932 = vpop.permute.xlu0 %3931
      %3934 = vset.pattern.permute.xlu0 6
      %3935 = vperm.xlu0 %3934, %v258
      %v3936 = vpop.permute.xlu0 %3935
      %3938 = vset.pattern.permute.xlu0 6
      %3939 = vperm.xlu0 %3938, %v259
      %v3940 = vpop.permute.xlu0 %3939
      %3942 = vset.pattern.permute.xlu0 6
      %3943 = vperm.xlu0 %3942, %v260
      %v3944 = vpop.permute.xlu0 %3943
      %3946 = vset.pattern.permute.xlu0 6
      %3947 = vperm.xlu0 %3946, %v261
      %v3948 = vpop.permute.xlu0 %3947
      %3950 = vset.pattern.permute.xlu0 6
      %3951 = vperm.xlu0 %3950, %v262
      %v3952 = vpop.permute.xlu0 %3951
      %3954 = vset.pattern.permute.xlu0 6
      %3955 = vperm.xlu0 %3954, %v263
      %v3956 = vpop.permute.xlu0 %3955
      %3958 = vset.pattern.permute.xlu0 6
      %3959 = vperm.xlu0 %3958, %v264
      %v3960 = vpop.permute.xlu0 %3959
      %3962 = vset.pattern.permute.xlu0 6
      %3963 = vperm.xlu0 %3962, %v265
      %v3964 = vpop.permute.xlu0 %3963
      %3966 = vset.pattern.permute.xlu0 6
      %3967 = vperm.xlu0 %3966, %v266
      %v3968 = vpop.permute.xlu0 %3967
      %3970 = vset.pattern.permute.xlu0 6
      %3971 = vperm.xlu0 %3970, %v267
      %v3972 = vpop.permute.xlu0 %3971
      %3974 = vset.pattern.permute.xlu0 6
      %3975 = vperm.xlu0 %3974, %v268
      %v3976 = vpop.permute.xlu0 %3975
      %3978 = vset.pattern.permute.xlu0 6
      %3979 = vperm.xlu0 %3978, %v269
      %v3980 = vpop.permute.xlu0 %3979
      %3982 = vset.pattern.permute.xlu0 6
      %3983 = vperm.xlu0 %3982, %v270
      %v3984 = vpop.permute.xlu0 %3983
      %3986 = vset.pattern.permute.xlu0 6
      %3987 = vperm.xlu0 %3986, %v271
      %v3988 = vpop.permute.xlu0 %3987
      %3990 = vset.pattern.permute.xlu0 6
      %3991 = vperm.xlu0 %3990, %v272
      %v3992 = vpop.permute.xlu0 %3991
      %3994 = vset.pattern.permute.xlu0 6
      %3995 = vperm.xlu0 %3994, %v273
      %v3996 = vpop.permute.xlu0 %3995
      %3998 = vset.pattern.permute.xlu0 6
      %3999 = vperm.xlu0 %3998, %v274
      %v4000 = vpop.permute.xlu0 %3999
      %4002 = vset.pattern.permute.xlu0 6
      %4003 = vperm.xlu0 %4002, %v275
      %v4004 = vpop.permute.xlu0 %4003
      %4006 = vset.pattern.permute.xlu0 6
      %4007 = vperm.xlu0 %4006, %v276
      %v4008 = vpop.permute.xlu0 %4007
      %4010 = vset.pattern.permute.xlu0 6
      %4011 = vperm.xlu0 %4010, %v277
      %v4012 = vpop.permute.xlu0 %4011
      %4014 = vset.pattern.permute.xlu0 6
      %4015 = vperm.xlu0 %4014, %v278
      %v4016 = vpop.permute.xlu0 %4015
      %4018 = vset.pattern.permute.xlu0 6
      %4019 = vperm.xlu0 %4018, %v279
      %v4020 = vpop.permute.xlu0 %4019
      %4022 = vset.pattern.permute.xlu0 6
      %4023 = vperm.xlu0 %4022, %v280
      %v4024 = vpop.permute.xlu0 %4023
      %4026 = vset.pattern.permute.xlu0 6
      %4027 = vperm.xlu0 %4026, %v281
      %v4028 = vpop.permute.xlu0 %4027
      %4030 = vset.pattern.permute.xlu0 6
      %4031 = vperm.xlu0 %4030, %v282
      %v4032 = vpop.permute.xlu0 %4031
      %4034 = vset.pattern.permute.xlu0 6
      %4035 = vperm.xlu0 %4034, %v283
      %v4036 = vpop.permute.xlu0 %4035
      %4038 = vset.pattern.permute.xlu0 6
      %4039 = vperm.xlu0 %4038, %v284
      %v4040 = vpop.permute.xlu0 %4039
      %4042 = vset.pattern.permute.xlu0 6
      %4043 = vperm.xlu0 %4042, %v285
      %v4044 = vpop.permute.xlu0 %4043
      %4046 = vset.pattern.permute.xlu0 6
      %4047 = vperm.xlu0 %4046, %v286
      %v4048 = vpop.permute.xlu0 %4047
      %4050 = vset.pattern.permute.xlu0 6
      %4051 = vperm.xlu0 %4050, %v287
      %v4052 = vpop.permute.xlu0 %4051
      %4054 = vset.pattern.permute.xlu0 6
      %4055 = vperm.xlu0 %4054, %v288
      %v4056 = vpop.permute.xlu0 %4055
      %v4058 = vmul.f32 %v3898, %v3932
      %v4059 = vmul.f32 %v3899, %v3936
      %v4060 = vmul.f32 %v3900, %v3940
      %v4061 = vmul.f32 %v3901, %v3944
      %v4062 = vmul.f32 %v3902, %v3948
      %v4063 = vmul.f32 %v3903, %v3952
      %v4064 = vmul.f32 %v3904, %v3956
      %v4065 = vmul.f32 %v3905, %v3960
      %v4066 = vmul.f32 %v3906, %v3964
      %v4067 = vmul.f32 %v3907, %v3968
      %v4068 = vmul.f32 %v3908, %v3972
      %v4069 = vmul.f32 %v3909, %v3976
      %v4070 = vmul.f32 %v3910, %v3980
      %v4071 = vmul.f32 %v3911, %v3984
      %v4072 = vmul.f32 %v3912, %v3988
      %v4073 = vmul.f32 %v3913, %v3992
      %v4074 = vmul.f32 %v3914, %v3996
      %v4075 = vmul.f32 %v3915, %v4000
      %v4076 = vmul.f32 %v3916, %v4004
      %v4077 = vmul.f32 %v3917, %v4008
      %v4078 = vmul.f32 %v3918, %v4012
      %v4079 = vmul.f32 %v3919, %v4016
      %v4080 = vmul.f32 %v3920, %v4020
      %v4081 = vmul.f32 %v3921, %v4024
      %v4082 = vmul.f32 %v3922, %v4028
      %v4083 = vmul.f32 %v3923, %v4032
      %v4084 = vmul.f32 %v3924, %v4036
      %v4085 = vmul.f32 %v3925, %v4040
      %v4086 = vmul.f32 %v3926, %v4044
      %v4087 = vmul.f32 %v3927, %v4048
      %v4088 = vmul.f32 %v3928, %v4052
      %v4089 = vmul.f32 %v3929, %v4056
      %4122 = vrot.lane.b32.xlu0 %v4058, 64
      %v4123 = vpop.permute.xlu0 %4122
      %4124 = vrot.lane.b32.xlu0 %v4059, 64
      %v4125 = vpop.permute.xlu0 %4124
      %4126 = vrot.lane.b32.xlu0 %v4060, 64
      %v4127 = vpop.permute.xlu0 %4126
      %4128 = vrot.lane.b32.xlu0 %v4061, 64
      %v4129 = vpop.permute.xlu0 %4128
      %4130 = vrot.lane.b32.xlu0 %v4062, 64
      %v4131 = vpop.permute.xlu0 %4130
      %4132 = vrot.lane.b32.xlu0 %v4063, 64
      %v4133 = vpop.permute.xlu0 %4132
      %4134 = vrot.lane.b32.xlu0 %v4064, 64
      %v4135 = vpop.permute.xlu0 %4134
      %4136 = vrot.lane.b32.xlu0 %v4065, 64
      %v4137 = vpop.permute.xlu0 %4136
      %4138 = vrot.lane.b32.xlu0 %v4066, 64
      %v4139 = vpop.permute.xlu0 %4138
      %4140 = vrot.lane.b32.xlu0 %v4067, 64
      %v4141 = vpop.permute.xlu0 %4140
      %4142 = vrot.lane.b32.xlu0 %v4068, 64
      %v4143 = vpop.permute.xlu0 %4142
      %4144 = vrot.lane.b32.xlu0 %v4069, 64
      %v4145 = vpop.permute.xlu0 %4144
      %4146 = vrot.lane.b32.xlu0 %v4070, 64
      %v4147 = vpop.permute.xlu0 %4146
      %4148 = vrot.lane.b32.xlu0 %v4071, 64
      %v4149 = vpop.permute.xlu0 %4148
      %4150 = vrot.lane.b32.xlu0 %v4072, 64
      %v4151 = vpop.permute.xlu0 %4150
      %4152 = vrot.lane.b32.xlu0 %v4073, 64
      %v4153 = vpop.permute.xlu0 %4152
      %4154 = vrot.lane.b32.xlu0 %v4074, 64
      %v4155 = vpop.permute.xlu0 %4154
      %4156 = vrot.lane.b32.xlu0 %v4075, 64
      %v4157 = vpop.permute.xlu0 %4156
      %4158 = vrot.lane.b32.xlu0 %v4076, 64
      %v4159 = vpop.permute.xlu0 %4158
      %4160 = vrot.lane.b32.xlu0 %v4077, 64
      %v4161 = vpop.permute.xlu0 %4160
      %4162 = vrot.lane.b32.xlu0 %v4078, 64
      %v4163 = vpop.permute.xlu0 %4162
      %4164 = vrot.lane.b32.xlu0 %v4079, 64
      %v4165 = vpop.permute.xlu0 %4164
      %4166 = vrot.lane.b32.xlu0 %v4080, 64
      %v4167 = vpop.permute.xlu0 %4166
      %4168 = vrot.lane.b32.xlu0 %v4081, 64
      %v4169 = vpop.permute.xlu0 %4168
      %4170 = vrot.lane.b32.xlu0 %v4082, 64
      %v4171 = vpop.permute.xlu0 %4170
      %4172 = vrot.lane.b32.xlu0 %v4083, 64
      %v4173 = vpop.permute.xlu0 %4172
      %4174 = vrot.lane.b32.xlu0 %v4084, 64
      %v4175 = vpop.permute.xlu0 %4174
      %4176 = vrot.lane.b32.xlu0 %v4085, 64
      %v4177 = vpop.permute.xlu0 %4176
      %4178 = vrot.lane.b32.xlu0 %v4086, 64
      %v4179 = vpop.permute.xlu0 %4178
      %4180 = vrot.lane.b32.xlu0 %v4087, 64
      %v4181 = vpop.permute.xlu0 %4180
      %4182 = vrot.lane.b32.xlu0 %v4088, 64
      %v4183 = vpop.permute.xlu0 %4182
      %4184 = vrot.lane.b32.xlu0 %v4089, 64
      %v4185 = vpop.permute.xlu0 %4184
      %4218 = vst.msk [vmem:[#allocation3 + $0x18] sm:$0xff] %vm2681, %v4123
      %4219 = vst.msk [vmem:[#allocation3 + $0x40] sm:$0xff] %vm2681, %v4125
      %4220 = vst.msk [vmem:[#allocation3 + $0x68] sm:$0xff] %vm2681, %v4127
      %4221 = vst.msk [vmem:[#allocation3 + $0x90] sm:$0xff] %vm2681, %v4129
      %4222 = vst.msk [vmem:[#allocation3 + $0xb8] sm:$0xff] %vm2681, %v4131
      %4223 = vst.msk [vmem:[#allocation3 + $0xe0] sm:$0xff] %vm2681, %v4133
      %4224 = vst.msk [vmem:[#allocation3 + $0x108] sm:$0xff] %vm2681, %v4135
      %4225 = vst.msk [vmem:[#allocation3 + $0x130] sm:$0xff] %vm2681, %v4137
      %4226 = vst.msk [vmem:[#allocation3 + $0x158] sm:$0xff] %vm2681, %v4139
      %4227 = vst.msk [vmem:[#allocation3 + $0x180] sm:$0xff] %vm2681, %v4141
      %4228 = vst.msk [vmem:[#allocation3 + $0x1a8] sm:$0xff] %vm2681, %v4143
      %4229 = vst.msk [vmem:[#allocation3 + $0x1d0] sm:$0xff] %vm2681, %v4145
      %4230 = vst.msk [vmem:[#allocation3 + $0x1f8] sm:$0xff] %vm2681, %v4147
      %4231 = vst.msk [vmem:[#allocation3 + $0x220] sm:$0xff] %vm2681, %v4149
      %4232 = vst.msk [vmem:[#allocation3 + $0x248] sm:$0xff] %vm2681, %v4151
      %4233 = vst.msk [vmem:[#allocation3 + $0x270] sm:$0xff] %vm2681, %v4153
      %4234 = vst.msk [vmem:[#allocation3 + $0x298] sm:$0xff] %vm2681, %v4155
      %4235 = vst.msk [vmem:[#allocation3 + $0x2c0] sm:$0xff] %vm2681, %v4157
      %4236 = vst.msk [vmem:[#allocation3 + $0x2e8] sm:$0xff] %vm2681, %v4159
      %4237 = vst.msk [vmem:[#allocation3 + $0x310] sm:$0xff] %vm2681, %v4161
      %4238 = vst.msk [vmem:[#allocation3 + $0x338] sm:$0xff] %vm2681, %v4163
      %4239 = vst.msk [vmem:[#allocation3 + $0x360] sm:$0xff] %vm2681, %v4165
      %4240 = vst.msk [vmem:[#allocation3 + $0x388] sm:$0xff] %vm2681, %v4167
      %4241 = vst.msk [vmem:[#allocation3 + $0x3b0] sm:$0xff] %vm2681, %v4169
      %4242 = vst.msk [vmem:[#allocation3 + $0x3d8] sm:$0xff] %vm2681, %v4171
      %4243 = vst.msk [vmem:[#allocation3 + $0x400] sm:$0xff] %vm2681, %v4173
      %4244 = vst.msk [vmem:[#allocation3 + $0x428] sm:$0xff] %vm2681, %v4175
      %4245 = vst.msk [vmem:[#allocation3 + $0x450] sm:$0xff] %vm2681, %v4177
      %4246 = vst.msk [vmem:[#allocation3 + $0x478] sm:$0xff] %vm2681, %v4179
      %4247 = vst.msk [vmem:[#allocation3 + $0x4a0] sm:$0xff] %vm2681, %v4181
      %4248 = vst.msk [vmem:[#allocation3 + $0x4c8] sm:$0xff] %vm2681, %v4183
      %4249 = vst.msk [vmem:[#allocation3 + $0x4f0] sm:$0xff] %vm2681, %v4185
      %v4250 = vld [vmem:[#allocation2 + $0x29] sm:$0xff]
      %v4251 = vld [vmem:[#allocation2 + $0x31] sm:$0xff]
      %v4252 = vld [vmem:[#allocation2 + $0x39] sm:$0xff]
      %v4253 = vld [vmem:[#allocation2 + $0x41] sm:$0xff]
      %v4254 = vld [vmem:[#allocation2 + $0x49] sm:$0xff]
      %v4255 = vld [vmem:[#allocation2 + $0x51] sm:$0xff]
      %v4256 = vld [vmem:[#allocation2 + $0x59] sm:$0xff]
      %v4257 = vld [vmem:[#allocation2 + $0x61] sm:$0xff]
      %v4258 = vld [vmem:[#allocation2 + $0x69] sm:$0xff]
      %v4259 = vld [vmem:[#allocation2 + $0x71] sm:$0xff]
      %v4260 = vld [vmem:[#allocation2 + $0x79] sm:$0xff]
      %v4261 = vld [vmem:[#allocation2 + $0x81] sm:$0xff]
      %v4262 = vld [vmem:[#allocation2 + $0x89] sm:$0xff]
      %v4263 = vld [vmem:[#allocation2 + $0x91] sm:$0xff]
      %v4264 = vld [vmem:[#allocation2 + $0x99] sm:$0xff]
      %v4265 = vld [vmem:[#allocation2 + $0xa1] sm:$0xff]
      %v4266 = vld [vmem:[#allocation2 + $0xa9] sm:$0xff]
      %v4267 = vld [vmem:[#allocation2 + $0xb1] sm:$0xff]
      %v4268 = vld [vmem:[#allocation2 + $0xb9] sm:$0xff]
      %v4269 = vld [vmem:[#allocation2 + $0xc1] sm:$0xff]
      %v4270 = vld [vmem:[#allocation2 + $0xc9] sm:$0xff]
      %v4271 = vld [vmem:[#allocation2 + $0xd1] sm:$0xff]
      %v4272 = vld [vmem:[#allocation2 + $0xd9] sm:$0xff]
      %v4273 = vld [vmem:[#allocation2 + $0xe1] sm:$0xff]
      %v4274 = vld [vmem:[#allocation2 + $0xe9] sm:$0xff]
      %v4275 = vld [vmem:[#allocation2 + $0xf1] sm:$0xff]
      %v4276 = vld [vmem:[#allocation2 + $0xf9] sm:$0xff]
      %v4277 = vld [vmem:[#allocation2 + $0x101] sm:$0xff]
      %v4278 = vld [vmem:[#allocation2 + $0x109] sm:$0xff]
      %v4279 = vld [vmem:[#allocation2 + $0x111] sm:$0xff]
      %v4280 = vld [vmem:[#allocation2 + $0x119] sm:$0xff]
      %v4281 = vld [vmem:[#allocation2 + $0x121] sm:$0xff]
      %4282 = vset.pattern.permute.xlu0 7
      %4283 = vperm.xlu0 %4282, %v257
      %v4284 = vpop.permute.xlu0 %4283
      %4286 = vset.pattern.permute.xlu0 7
      %4287 = vperm.xlu0 %4286, %v258
      %v4288 = vpop.permute.xlu0 %4287
      %4290 = vset.pattern.permute.xlu0 7
      %4291 = vperm.xlu0 %4290, %v259
      %v4292 = vpop.permute.xlu0 %4291
      %4294 = vset.pattern.permute.xlu0 7
      %4295 = vperm.xlu0 %4294, %v260
      %v4296 = vpop.permute.xlu0 %4295
      %4298 = vset.pattern.permute.xlu0 7
      %4299 = vperm.xlu0 %4298, %v261
      %v4300 = vpop.permute.xlu0 %4299
      %4302 = vset.pattern.permute.xlu0 7
      %4303 = vperm.xlu0 %4302, %v262
      %v4304 = vpop.permute.xlu0 %4303
      %4306 = vset.pattern.permute.xlu0 7
      %4307 = vperm.xlu0 %4306, %v263
      %v4308 = vpop.permute.xlu0 %4307
      %4310 = vset.pattern.permute.xlu0 7
      %4311 = vperm.xlu0 %4310, %v264
      %v4312 = vpop.permute.xlu0 %4311
      %4314 = vset.pattern.permute.xlu0 7
      %4315 = vperm.xlu0 %4314, %v265
      %v4316 = vpop.permute.xlu0 %4315
      %4318 = vset.pattern.permute.xlu0 7
      %4319 = vperm.xlu0 %4318, %v266
      %v4320 = vpop.permute.xlu0 %4319
      %4322 = vset.pattern.permute.xlu0 7
      %4323 = vperm.xlu0 %4322, %v267
      %v4324 = vpop.permute.xlu0 %4323
      %4326 = vset.pattern.permute.xlu0 7
      %4327 = vperm.xlu0 %4326, %v268
      %v4328 = vpop.permute.xlu0 %4327
      %4330 = vset.pattern.permute.xlu0 7
      %4331 = vperm.xlu0 %4330, %v269
      %v4332 = vpop.permute.xlu0 %4331
      %4334 = vset.pattern.permute.xlu0 7
      %4335 = vperm.xlu0 %4334, %v270
      %v4336 = vpop.permute.xlu0 %4335
      %4338 = vset.pattern.permute.xlu0 7
      %4339 = vperm.xlu0 %4338, %v271
      %v4340 = vpop.permute.xlu0 %4339
      %4342 = vset.pattern.permute.xlu0 7
      %4343 = vperm.xlu0 %4342, %v272
      %v4344 = vpop.permute.xlu0 %4343
      %4346 = vset.pattern.permute.xlu0 7
      %4347 = vperm.xlu0 %4346, %v273
      %v4348 = vpop.permute.xlu0 %4347
      %4350 = vset.pattern.permute.xlu0 7
      %4351 = vperm.xlu0 %4350, %v274
      %v4352 = vpop.permute.xlu0 %4351
      %4354 = vset.pattern.permute.xlu0 7
      %4355 = vperm.xlu0 %4354, %v275
      %v4356 = vpop.permute.xlu0 %4355
      %4358 = vset.pattern.permute.xlu0 7
      %4359 = vperm.xlu0 %4358, %v276
      %v4360 = vpop.permute.xlu0 %4359
      %4362 = vset.pattern.permute.xlu0 7
      %4363 = vperm.xlu0 %4362, %v277
      %v4364 = vpop.permute.xlu0 %4363
      %4366 = vset.pattern.permute.xlu0 7
      %4367 = vperm.xlu0 %4366, %v278
      %v4368 = vpop.permute.xlu0 %4367
      %4370 = vset.pattern.permute.xlu0 7
      %4371 = vperm.xlu0 %4370, %v279
      %v4372 = vpop.permute.xlu0 %4371
      %4374 = vset.pattern.permute.xlu0 7
      %4375 = vperm.xlu0 %4374, %v280
      %v4376 = vpop.permute.xlu0 %4375
      %4378 = vset.pattern.permute.xlu0 7
      %4379 = vperm.xlu0 %4378, %v281
      %v4380 = vpop.permute.xlu0 %4379
      %4382 = vset.pattern.permute.xlu0 7
      %4383 = vperm.xlu0 %4382, %v282
      %v4384 = vpop.permute.xlu0 %4383
      %4386 = vset.pattern.permute.xlu0 7
      %4387 = vperm.xlu0 %4386, %v283
      %v4388 = vpop.permute.xlu0 %4387
      %4390 = vset.pattern.permute.xlu0 7
      %4391 = vperm.xlu0 %4390, %v284
      %v4392 = vpop.permute.xlu0 %4391
      %4394 = vset.pattern.permute.xlu0 7
      %4395 = vperm.xlu0 %4394, %v285
      %v4396 = vpop.permute.xlu0 %4395
      %4398 = vset.pattern.permute.xlu0 7
      %4399 = vperm.xlu0 %4398, %v286
      %v4400 = vpop.permute.xlu0 %4399
      %4402 = vset.pattern.permute.xlu0 7
      %4403 = vperm.xlu0 %4402, %v287
      %v4404 = vpop.permute.xlu0 %4403
      %4406 = vset.pattern.permute.xlu0 7
      %4407 = vperm.xlu0 %4406, %v288
      %v4408 = vpop.permute.xlu0 %4407
      %v4410 = vmul.f32 %v4250, %v4284
      %v4411 = vmul.f32 %v4251, %v4288
      %v4412 = vmul.f32 %v4252, %v4292
      %v4413 = vmul.f32 %v4253, %v4296
      %v4414 = vmul.f32 %v4254, %v4300
      %v4415 = vmul.f32 %v4255, %v4304
      %v4416 = vmul.f32 %v4256, %v4308
      %v4417 = vmul.f32 %v4257, %v4312
      %v4418 = vmul.f32 %v4258, %v4316
      %v4419 = vmul.f32 %v4259, %v4320
      %v4420 = vmul.f32 %v4260, %v4324
      %v4421 = vmul.f32 %v4261, %v4328
      %v4422 = vmul.f32 %v4262, %v4332
      %v4423 = vmul.f32 %v4263, %v4336
      %v4424 = vmul.f32 %v4264, %v4340
      %v4425 = vmul.f32 %v4265, %v4344
      %v4426 = vmul.f32 %v4266, %v4348
      %v4427 = vmul.f32 %v4267, %v4352
      %v4428 = vmul.f32 %v4268, %v4356
      %v4429 = vmul.f32 %v4269, %v4360
      %v4430 = vmul.f32 %v4270, %v4364
      %v4431 = vmul.f32 %v4271, %v4368
      %v4432 = vmul.f32 %v4272, %v4372
      %v4433 = vmul.f32 %v4273, %v4376
      %v4434 = vmul.f32 %v4274, %v4380
      %v4435 = vmul.f32 %v4275, %v4384
      %v4436 = vmul.f32 %v4276, %v4388
      %v4437 = vmul.f32 %v4277, %v4392
      %v4438 = vmul.f32 %v4278, %v4396
      %v4439 = vmul.f32 %v4279, %v4400
      %v4440 = vmul.f32 %v4280, %v4404
      %v4441 = vmul.f32 %v4281, %v4408
      %4442 = vst.msk [vmem:[#allocation3 + $0x20] sm:$0xff] %vm250, %v4410
      %4443 = vst.msk [vmem:[#allocation3 + $0x48] sm:$0xff] %vm250, %v4411
      %4444 = vst.msk [vmem:[#allocation3 + $0x70] sm:$0xff] %vm250, %v4412
      %4445 = vst.msk [vmem:[#allocation3 + $0x98] sm:$0xff] %vm250, %v4413
      %4446 = vst.msk [vmem:[#allocation3 + $0xc0] sm:$0xff] %vm250, %v4414
      %4447 = vst.msk [vmem:[#allocation3 + $0xe8] sm:$0xff] %vm250, %v4415
      %4448 = vst.msk [vmem:[#allocation3 + $0x110] sm:$0xff] %vm250, %v4416
      %4449 = vst.msk [vmem:[#allocation3 + $0x138] sm:$0xff] %vm250, %v4417
      %4450 = vst.msk [vmem:[#allocation3 + $0x160] sm:$0xff] %vm250, %v4418
      %4451 = vst.msk [vmem:[#allocation3 + $0x188] sm:$0xff] %vm250, %v4419
      %4452 = vst.msk [vmem:[#allocation3 + $0x1b0] sm:$0xff] %vm250, %v4420
      %4453 = vst.msk [vmem:[#allocation3 + $0x1d8] sm:$0xff] %vm250, %v4421
      %4454 = vst.msk [vmem:[#allocation3 + $0x200] sm:$0xff] %vm250, %v4422
      %4455 = vst.msk [vmem:[#allocation3 + $0x228] sm:$0xff] %vm250, %v4423
      %4456 = vst.msk [vmem:[#allocation3 + $0x250] sm:$0xff] %vm250, %v4424
      %4457 = vst.msk [vmem:[#allocation3 + $0x278] sm:$0xff] %vm250, %v4425
      %4458 = vst.msk [vmem:[#allocation3 + $0x2a0] sm:$0xff] %vm250, %v4426
      %4459 = vst.msk [vmem:[#allocation3 + $0x2c8] sm:$0xff] %vm250, %v4427
      %4460 = vst.msk [vmem:[#allocation3 + $0x2f0] sm:$0xff] %vm250, %v4428
      %4461 = vst.msk [vmem:[#allocation3 + $0x318] sm:$0xff] %vm250, %v4429
      %4462 = vst.msk [vmem:[#allocation3 + $0x340] sm:$0xff] %vm250, %v4430
      %4463 = vst.msk [vmem:[#allocation3 + $0x368] sm:$0xff] %vm250, %v4431
      %4464 = vst.msk [vmem:[#allocation3 + $0x390] sm:$0xff] %vm250, %v4432
      %4465 = vst.msk [vmem:[#allocation3 + $0x3b8] sm:$0xff] %vm250, %v4433
      %4466 = vst.msk [vmem:[#allocation3 + $0x3e0] sm:$0xff] %vm250, %v4434
      %4467 = vst.msk [vmem:[#allocation3 + $0x408] sm:$0xff] %vm250, %v4435
      %4468 = vst.msk [vmem:[#allocation3 + $0x430] sm:$0xff] %vm250, %v4436
      %4469 = vst.msk [vmem:[#allocation3 + $0x458] sm:$0xff] %vm250, %v4437
      %4470 = vst.msk [vmem:[#allocation3 + $0x480] sm:$0xff] %vm250, %v4438
      %4471 = vst.msk [vmem:[#allocation3 + $0x4a8] sm:$0xff] %vm250, %v4439
      %4472 = vst.msk [vmem:[#allocation3 + $0x4d0] sm:$0xff] %vm250, %v4440
      %4473 = vst.msk [vmem:[#allocation3 + $0x4f8] sm:$0xff] %vm250, %v4441
      %v4474 = vld [vmem:[#allocation3] sm:$0xff]
      %v4475 = vld [vmem:[#allocation3 + $0x8] sm:$0xff]
      %v4476 = vld [vmem:[#allocation3 + $0x10] sm:$0xff]
      %v4477 = vld [vmem:[#allocation3 + $0x18] sm:$0xff]
      %v4478 = vld [vmem:[#allocation3 + $0x20] sm:$0xff]
      %v4479 = vld [vmem:[#allocation3 + $0x28] sm:$0xff]
      %v4480 = vld [vmem:[#allocation3 + $0x30] sm:$0xff]
      %v4481 = vld [vmem:[#allocation3 + $0x38] sm:$0xff]
      %v4482 = vld [vmem:[#allocation3 + $0x40] sm:$0xff]
      %v4483 = vld [vmem:[#allocation3 + $0x48] sm:$0xff]
      %v4484 = vld [vmem:[#allocation3 + $0x50] sm:$0xff]
      %v4485 = vld [vmem:[#allocation3 + $0x58] sm:$0xff]
      %v4486 = vld [vmem:[#allocation3 + $0x60] sm:$0xff]
      %v4487 = vld [vmem:[#allocation3 + $0x68] sm:$0xff]
      %v4488 = vld [vmem:[#allocation3 + $0x70] sm:$0xff]
      %v4489 = vld [vmem:[#allocation3 + $0x78] sm:$0xff]
      %v4490 = vld [vmem:[#allocation3 + $0x80] sm:$0xff]
      %v4491 = vld [vmem:[#allocation3 + $0x88] sm:$0xff]
      %v4492 = vld [vmem:[#allocation3 + $0x90] sm:$0xff]
      %v4493 = vld [vmem:[#allocation3 + $0x98] sm:$0xff]
      %v4494 = vld [vmem:[#allocation3 + $0xa0] sm:$0xff]
      %v4495 = vld [vmem:[#allocation3 + $0xa8] sm:$0xff]
      %v4496 = vld [vmem:[#allocation3 + $0xb0] sm:$0xff]
      %v4497 = vld [vmem:[#allocation3 + $0xb8] sm:$0xff]
      %v4498 = vld [vmem:[#allocation3 + $0xc0] sm:$0xff]
      %v4499 = vld [vmem:[#allocation3 + $0xc8] sm:$0xff]
      %v4500 = vld [vmem:[#allocation3 + $0xd0] sm:$0xff]
      %v4501 = vld [vmem:[#allocation3 + $0xd8] sm:$0xff]
      %v4502 = vld [vmem:[#allocation3 + $0xe0] sm:$0xff]
      %v4503 = vld [vmem:[#allocation3 + $0xe8] sm:$0xff]
      %v4504 = vld [vmem:[#allocation3 + $0xf0] sm:$0xff]
      %v4505 = vld [vmem:[#allocation3 + $0xf8] sm:$0xff]
      %v4506 = vld [vmem:[#allocation3 + $0x100] sm:$0xff]
      %v4507 = vld [vmem:[#allocation3 + $0x108] sm:$0xff]
      %v4508 = vld [vmem:[#allocation3 + $0x110] sm:$0xff]
      %v4509 = vld [vmem:[#allocation3 + $0x118] sm:$0xff]
      %v4510 = vld [vmem:[#allocation3 + $0x120] sm:$0xff]
      %v4511 = vld [vmem:[#allocation3 + $0x128] sm:$0xff]
      %v4512 = vld [vmem:[#allocation3 + $0x130] sm:$0xff]
      %v4513 = vld [vmem:[#allocation3 + $0x138] sm:$0xff]
      %v4514 = vld [vmem:[#allocation3 + $0x140] sm:$0xff]
      %v4515 = vld [vmem:[#allocation3 + $0x148] sm:$0xff]
      %v4516 = vld [vmem:[#allocation3 + $0x150] sm:$0xff]
      %v4517 = vld [vmem:[#allocation3 + $0x158] sm:$0xff]
      %v4518 = vld [vmem:[#allocation3 + $0x160] sm:$0xff]
      %v4519 = vld [vmem:[#allocation3 + $0x168] sm:$0xff]
      %v4520 = vld [vmem:[#allocation3 + $0x170] sm:$0xff]
      %v4521 = vld [vmem:[#allocation3 + $0x178] sm:$0xff]
      %v4522 = vld [vmem:[#allocation3 + $0x180] sm:$0xff]
      %v4523 = vld [vmem:[#allocation3 + $0x188] sm:$0xff]
      %v4524 = vld [vmem:[#allocation3 + $0x190] sm:$0xff]
      %v4525 = vld [vmem:[#allocation3 + $0x198] sm:$0xff]
      %v4526 = vld [vmem:[#allocation3 + $0x1a0] sm:$0xff]
      %v4527 = vld [vmem:[#allocation3 + $0x1a8] sm:$0xff]
      %v4528 = vld [vmem:[#allocation3 + $0x1b0] sm:$0xff]
      %v4529 = vld [vmem:[#allocation3 + $0x1b8] sm:$0xff]
      %v4530 = vld [vmem:[#allocation3 + $0x1c0] sm:$0xff]
      %v4531 = vld [vmem:[#allocation3 + $0x1c8] sm:$0xff]
      %v4532 = vld [vmem:[#allocation3 + $0x1d0] sm:$0xff]
      %v4533 = vld [vmem:[#allocation3 + $0x1d8] sm:$0xff]
      %v4534 = vld [vmem:[#allocation3 + $0x1e0] sm:$0xff]
      %v4535 = vld [vmem:[#allocation3 + $0x1e8] sm:$0xff]
      %v4536 = vld [vmem:[#allocation3 + $0x1f0] sm:$0xff]
      %v4537 = vld [vmem:[#allocation3 + $0x1f8] sm:$0xff]
      %v4538 = vld [vmem:[#allocation3 + $0x200] sm:$0xff]
      %v4539 = vld [vmem:[#allocation3 + $0x208] sm:$0xff]
      %v4540 = vld [vmem:[#allocation3 + $0x210] sm:$0xff]
      %v4541 = vld [vmem:[#allocation3 + $0x218] sm:$0xff]
      %v4542 = vld [vmem:[#allocation3 + $0x220] sm:$0xff]
      %v4543 = vld [vmem:[#allocation3 + $0x228] sm:$0xff]
      %v4544 = vld [vmem:[#allocation3 + $0x230] sm:$0xff]
      %v4545 = vld [vmem:[#allocation3 + $0x238] sm:$0xff]
      %v4546 = vld [vmem:[#allocation3 + $0x240] sm:$0xff]
      %v4547 = vld [vmem:[#allocation3 + $0x248] sm:$0xff]
      %v4548 = vld [vmem:[#allocation3 + $0x250] sm:$0xff]
      %v4549 = vld [vmem:[#allocation3 + $0x258] sm:$0xff]
      %v4550 = vld [vmem:[#allocation3 + $0x260] sm:$0xff]
      %v4551 = vld [vmem:[#allocation3 + $0x268] sm:$0xff]
      %v4552 = vld [vmem:[#allocation3 + $0x270] sm:$0xff]
      %v4553 = vld [vmem:[#allocation3 + $0x278] sm:$0xff]
      %v4554 = vld [vmem:[#allocation3 + $0x280] sm:$0xff]
      %v4555 = vld [vmem:[#allocation3 + $0x288] sm:$0xff]
      %v4556 = vld [vmem:[#allocation3 + $0x290] sm:$0xff]
      %v4557 = vld [vmem:[#allocation3 + $0x298] sm:$0xff]
      %v4558 = vld [vmem:[#allocation3 + $0x2a0] sm:$0xff]
      %v4559 = vld [vmem:[#allocation3 + $0x2a8] sm:$0xff]
      %v4560 = vld [vmem:[#allocation3 + $0x2b0] sm:$0xff]
      %v4561 = vld [vmem:[#allocation3 + $0x2b8] sm:$0xff]
      %v4562 = vld [vmem:[#allocation3 + $0x2c0] sm:$0xff]
      %v4563 = vld [vmem:[#allocation3 + $0x2c8] sm:$0xff]
      %v4564 = vld [vmem:[#allocation3 + $0x2d0] sm:$0xff]
      %v4565 = vld [vmem:[#allocation3 + $0x2d8] sm:$0xff]
      %v4566 = vld [vmem:[#allocation3 + $0x2e0] sm:$0xff]
      %v4567 = vld [vmem:[#allocation3 + $0x2e8] sm:$0xff]
      %v4568 = vld [vmem:[#allocation3 + $0x2f0] sm:$0xff]
      %v4569 = vld [vmem:[#allocation3 + $0x2f8] sm:$0xff]
      %v4570 = vld [vmem:[#allocation3 + $0x300] sm:$0xff]
      %v4571 = vld [vmem:[#allocation3 + $0x308] sm:$0xff]
      %v4572 = vld [vmem:[#allocation3 + $0x310] sm:$0xff]
      %v4573 = vld [vmem:[#allocation3 + $0x318] sm:$0xff]
      %v4574 = vld [vmem:[#allocation3 + $0x320] sm:$0xff]
      %v4575 = vld [vmem:[#allocation3 + $0x328] sm:$0xff]
      %v4576 = vld [vmem:[#allocation3 + $0x330] sm:$0xff]
      %v4577 = vld [vmem:[#allocation3 + $0x338] sm:$0xff]
      %v4578 = vld [vmem:[#allocation3 + $0x340] sm:$0xff]
      %v4579 = vld [vmem:[#allocation3 + $0x348] sm:$0xff]
      %v4580 = vld [vmem:[#allocation3 + $0x350] sm:$0xff]
      %v4581 = vld [vmem:[#allocation3 + $0x358] sm:$0xff]
      %v4582 = vld [vmem:[#allocation3 + $0x360] sm:$0xff]
      %v4583 = vld [vmem:[#allocation3 + $0x368] sm:$0xff]
      %v4584 = vld [vmem:[#allocation3 + $0x370] sm:$0xff]
      %v4585 = vld [vmem:[#allocation3 + $0x378] sm:$0xff]
      %v4586 = vld [vmem:[#allocation3 + $0x380] sm:$0xff]
      %v4587 = vld [vmem:[#allocation3 + $0x388] sm:$0xff]
      %v4588 = vld [vmem:[#allocation3 + $0x390] sm:$0xff]
      %v4589 = vld [vmem:[#allocation3 + $0x398] sm:$0xff]
      %v4590 = vld [vmem:[#allocation3 + $0x3a0] sm:$0xff]
      %v4591 = vld [vmem:[#allocation3 + $0x3a8] sm:$0xff]
      %v4592 = vld [vmem:[#allocation3 + $0x3b0] sm:$0xff]
      %v4593 = vld [vmem:[#allocation3 + $0x3b8] sm:$0xff]
      %v4594 = vld [vmem:[#allocation3 + $0x3c0] sm:$0xff]
      %v4595 = vld [vmem:[#allocation3 + $0x3c8] sm:$0xff]
      %v4596 = vld [vmem:[#allocation3 + $0x3d0] sm:$0xff]
      %v4597 = vld [vmem:[#allocation3 + $0x3d8] sm:$0xff]
      %v4598 = vld [vmem:[#allocation3 + $0x3e0] sm:$0xff]
      %v4599 = vld [vmem:[#allocation3 + $0x3e8] sm:$0xff]
      %v4600 = vld [vmem:[#allocation3 + $0x3f0] sm:$0xff]
      %v4601 = vld [vmem:[#allocation3 + $0x3f8] sm:$0xff]
      %v4602 = vld [vmem:[#allocation3 + $0x400] sm:$0xff]
      %v4603 = vld [vmem:[#allocation3 + $0x408] sm:$0xff]
      %v4604 = vld [vmem:[#allocation3 + $0x410] sm:$0xff]
      %v4605 = vld [vmem:[#allocation3 + $0x418] sm:$0xff]
      %v4606 = vld [vmem:[#allocation3 + $0x420] sm:$0xff]
      %v4607 = vld [vmem:[#allocation3 + $0x428] sm:$0xff]
      %v4608 = vld [vmem:[#allocation3 + $0x430] sm:$0xff]
      %v4609 = vld [vmem:[#allocation3 + $0x438] sm:$0xff]
      %v4610 = vld [vmem:[#allocation3 + $0x440] sm:$0xff]
      %v4611 = vld [vmem:[#allocation3 + $0x448] sm:$0xff]
      %v4612 = vld [vmem:[#allocation3 + $0x450] sm:$0xff]
      %v4613 = vld [vmem:[#allocation3 + $0x458] sm:$0xff]
      %v4614 = vld [vmem:[#allocation3 + $0x460] sm:$0xff]
      %v4615 = vld [vmem:[#allocation3 + $0x468] sm:$0xff]
      %v4616 = vld [vmem:[#allocation3 + $0x470] sm:$0xff]
      %v4617 = vld [vmem:[#allocation3 + $0x478] sm:$0xff]
      %v4618 = vld [vmem:[#allocation3 + $0x480] sm:$0xff]
      %v4619 = vld [vmem:[#allocation3 + $0x488] sm:$0xff]
      %v4620 = vld [vmem:[#allocation3 + $0x490] sm:$0xff]
      %v4621 = vld [vmem:[#allocation3 + $0x498] sm:$0xff]
      %v4622 = vld [vmem:[#allocation3 + $0x4a0] sm:$0xff]
      %v4623 = vld [vmem:[#allocation3 + $0x4a8] sm:$0xff]
      %v4624 = vld [vmem:[#allocation3 + $0x4b0] sm:$0xff]
      %v4625 = vld [vmem:[#allocation3 + $0x4b8] sm:$0xff]
      %v4626 = vld [vmem:[#allocation3 + $0x4c0] sm:$0xff]
      %v4627 = vld [vmem:[#allocation3 + $0x4c8] sm:$0xff]
      %v4628 = vld [vmem:[#allocation3 + $0x4d0] sm:$0xff]
      %v4629 = vld [vmem:[#allocation3 + $0x4d8] sm:$0xff]
      %v4630 = vld [vmem:[#allocation3 + $0x4e0] sm:$0xff]
      %v4631 = vld [vmem:[#allocation3 + $0x4e8] sm:$0xff]
      %v4632 = vld [vmem:[#allocation3 + $0x4f0] sm:$0xff]
      %v4633 = vld [vmem:[#allocation3 + $0x4f8] sm:$0xff]
      %v4634 = vld [vmem:[%s5] sm:$0xff]
      %v4635 = vld [vmem:[%s5 + $0x8] sm:$0xff]
      %v4636 = vld [vmem:[%s5 + $0x10] sm:$0xff]
      %v4637 = vld [vmem:[%s5 + $0x18] sm:$0xff]
      %v4638 = vld [vmem:[%s5 + $0x20] sm:$0xff]
      %v4639 = vld [vmem:[%s5 + $0x28] sm:$0xff]
      %v4640 = vld [vmem:[%s5 + $0x30] sm:$0xff]
      %v4641 = vld [vmem:[%s5 + $0x38] sm:$0xff]
      %v4642 = vld [vmem:[%s5 + $0x40] sm:$0xff]
      %v4643 = vld [vmem:[%s5 + $0x48] sm:$0xff]
      %v4644 = vld [vmem:[%s5 + $0x50] sm:$0xff]
      %v4645 = vld [vmem:[%s5 + $0x58] sm:$0xff]
      %v4646 = vld [vmem:[%s5 + $0x60] sm:$0xff]
      %v4647 = vld [vmem:[%s5 + $0x68] sm:$0xff]
      %v4648 = vld [vmem:[%s5 + $0x70] sm:$0xff]
      %v4649 = vld [vmem:[%s5 + $0x78] sm:$0xff]
      %v4650 = vld [vmem:[%s5 + $0x80] sm:$0xff]
      %v4651 = vld [vmem:[%s5 + $0x88] sm:$0xff]
      %v4652 = vld [vmem:[%s5 + $0x90] sm:$0xff]
      %v4653 = vld [vmem:[%s5 + $0x98] sm:$0xff]
      %v4654 = vld [vmem:[%s5 + $0xa0] sm:$0xff]
      %v4655 = vld [vmem:[%s5 + $0xa8] sm:$0xff]
      %v4656 = vld [vmem:[%s5 + $0xb0] sm:$0xff]
      %v4657 = vld [vmem:[%s5 + $0xb8] sm:$0xff]
      %v4658 = vld [vmem:[%s5 + $0xc0] sm:$0xff]
      %v4659 = vld [vmem:[%s5 + $0xc8] sm:$0xff]
      %v4660 = vld [vmem:[%s5 + $0xd0] sm:$0xff]
      %v4661 = vld [vmem:[%s5 + $0xd8] sm:$0xff]
      %v4662 = vld [vmem:[%s5 + $0xe0] sm:$0xff]
      %v4663 = vld [vmem:[%s5 + $0xe8] sm:$0xff]
      %v4664 = vld [vmem:[%s5 + $0xf0] sm:$0xff]
      %v4665 = vld [vmem:[%s5 + $0xf8] sm:$0xff]
      %v4666 = vld [vmem:[%s5 + $0x100] sm:$0xff]
      %v4667 = vld [vmem:[%s5 + $0x108] sm:$0xff]
      %v4668 = vld [vmem:[%s5 + $0x110] sm:$0xff]
      %v4669 = vld [vmem:[%s5 + $0x118] sm:$0xff]
      %v4670 = vld [vmem:[%s5 + $0x120] sm:$0xff]
      %v4671 = vld [vmem:[%s5 + $0x128] sm:$0xff]
      %v4672 = vld [vmem:[%s5 + $0x130] sm:$0xff]
      %v4673 = vld [vmem:[%s5 + $0x138] sm:$0xff]
      %v4674 = vld [vmem:[%s5 + $0x140] sm:$0xff]
      %v4675 = vld [vmem:[%s5 + $0x148] sm:$0xff]
      %v4676 = vld [vmem:[%s5 + $0x150] sm:$0xff]
      %v4677 = vld [vmem:[%s5 + $0x158] sm:$0xff]
      %v4678 = vld [vmem:[%s5 + $0x160] sm:$0xff]
      %v4679 = vld [vmem:[%s5 + $0x168] sm:$0xff]
      %v4680 = vld [vmem:[%s5 + $0x170] sm:$0xff]
      %v4681 = vld [vmem:[%s5 + $0x178] sm:$0xff]
      %v4682 = vld [vmem:[%s5 + $0x180] sm:$0xff]
      %v4683 = vld [vmem:[%s5 + $0x188] sm:$0xff]
      %v4684 = vld [vmem:[%s5 + $0x190] sm:$0xff]
      %v4685 = vld [vmem:[%s5 + $0x198] sm:$0xff]
      %v4686 = vld [vmem:[%s5 + $0x1a0] sm:$0xff]
      %v4687 = vld [vmem:[%s5 + $0x1a8] sm:$0xff]
      %v4688 = vld [vmem:[%s5 + $0x1b0] sm:$0xff]
      %v4689 = vld [vmem:[%s5 + $0x1b8] sm:$0xff]
      %v4690 = vld [vmem:[%s5 + $0x1c0] sm:$0xff]
      %v4691 = vld [vmem:[%s5 + $0x1c8] sm:$0xff]
      %v4692 = vld [vmem:[%s5 + $0x1d0] sm:$0xff]
      %v4693 = vld [vmem:[%s5 + $0x1d8] sm:$0xff]
      %v4694 = vld [vmem:[%s5 + $0x1e0] sm:$0xff]
      %v4695 = vld [vmem:[%s5 + $0x1e8] sm:$0xff]
      %v4696 = vld [vmem:[%s5 + $0x1f0] sm:$0xff]
      %v4697 = vld [vmem:[%s5 + $0x1f8] sm:$0xff]
      %v4698 = vld [vmem:[%s5 + $0x200] sm:$0xff]
      %v4699 = vld [vmem:[%s5 + $0x208] sm:$0xff]
      %v4700 = vld [vmem:[%s5 + $0x210] sm:$0xff]
      %v4701 = vld [vmem:[%s5 + $0x218] sm:$0xff]
      %v4702 = vld [vmem:[%s5 + $0x220] sm:$0xff]
      %v4703 = vld [vmem:[%s5 + $0x228] sm:$0xff]
      %v4704 = vld [vmem:[%s5 + $0x230] sm:$0xff]
      %v4705 = vld [vmem:[%s5 + $0x238] sm:$0xff]
      %v4707 = vsel %vm250, %v4478, 0
      %v4710 = vsel %vm250, %v4483, 0
      %v4713 = vsel %vm250, %v4488, 0
      %v4716 = vsel %vm250, %v4493, 0
      %v4719 = vsel %vm250, %v4498, 0
      %v4722 = vsel %vm250, %v4503, 0
      %v4725 = vsel %vm250, %v4508, 0
      %v4728 = vsel %vm250, %v4513, 0
      %v4731 = vsel %vm250, %v4518, 0
      %v4734 = vsel %vm250, %v4523, 0
      %v4737 = vsel %vm250, %v4528, 0
      %v4740 = vsel %vm250, %v4533, 0
      %v4743 = vsel %vm250, %v4538, 0
      %v4746 = vsel %vm250, %v4543, 0
      %v4749 = vsel %vm250, %v4548, 0
      %v4752 = vsel %vm250, %v4553, 0
      %v4755 = vsel %vm250, %v4558, 0
      %v4758 = vsel %vm250, %v4563, 0
      %v4761 = vsel %vm250, %v4568, 0
      %v4764 = vsel %vm250, %v4573, 0
      %v4767 = vsel %vm250, %v4578, 0
      %v4770 = vsel %vm250, %v4583, 0
      %v4773 = vsel %vm250, %v4588, 0
      %v4776 = vsel %vm250, %v4593, 0
      %v4779 = vsel %vm250, %v4598, 0
      %v4782 = vsel %vm250, %v4603, 0
      %v4785 = vsel %vm250, %v4608, 0
      %v4788 = vsel %vm250, %v4613, 0
      %v4791 = vsel %vm250, %v4618, 0
      %v4794 = vsel %vm250, %v4623, 0
      %v4797 = vsel %vm250, %v4628, 0
      %v4800 = vsel %vm250, %v4633, 0
      %4802 = vmatprep.subr.mxu0 0.0
      %4803 = vmatpush1.msra.mxu0 %v4634
      %4804 = vmatprep.subr.mxu0 0.0
      %4805 = vmatpush1.msra.mxu0 %v4635
      %4806 = vmatprep.subr.mxu0 0.0
      %4807 = vmatpush1.msra.mxu0 %v4636
      %4808 = vmatprep.subr.mxu0 0.0
      %4809 = vmatpush1.msra.mxu0 %v4637
      %4810 = vmatprep.subr.mxu0 0.0
      %4811 = vmatpush1.msra.mxu0 %v4638
      %4812 = vmatprep.subr.mxu0 0.0
      %4813 = vmatpush1.msra.mxu0 %v4639
      %4814 = vmatprep.subr.mxu0 0.0
      %4815 = vmatpush1.msra.mxu0 %v4640
      %4816 = vmatprep.subr.mxu0 0.0
      %4817 = vmatpush1.msra.mxu0 %v4641
      %4818 = vmatprep.subr.mxu0 0.0
      %4819 = vmatpush1.msra.mxu0 %v4642
      %4820 = vmatprep.subr.mxu0 0.0
      %4821 = vmatpush1.msra.mxu0 %v4643
      %4822 = vmatprep.subr.mxu0 0.0
      %4823 = vmatpush1.msra.mxu0 %v4644
      %4824 = vmatprep.subr.mxu0 0.0
      %4825 = vmatpush1.msra.mxu0 %v4645
      %4826 = vmatprep.subr.mxu0 0.0
      %4827 = vmatpush1.msra.mxu0 %v4646
      %4828 = vmatprep.subr.mxu0 0.0
      %4829 = vmatpush1.msra.mxu0 %v4647
      %4830 = vmatprep.subr.mxu0 0.0
      %4831 = vmatpush1.msra.mxu0 %v4648
      %4832 = vmatprep.subr.mxu0 0.0
      %4833 = vmatpush1.msra.mxu0 %v4649
      %4834 = vmatprep.subr.mxu0 0.0
      %4835 = vmatpush1.msra.mxu0 %v4650
      %4836 = vmatprep.subr.mxu0 0.0
      %4837 = vmatpush1.msra.mxu0 %v4651
      %4838 = vmatprep.subr.mxu0 0.0
      %4839 = vmatpush1.msra.mxu0 %v4652
      %4840 = vmatprep.subr.mxu0 0.0
      %4841 = vmatpush1.msra.mxu0 %v4653
      %4842 = vmatprep.subr.mxu0 0.0
      %4843 = vmatpush1.msra.mxu0 %v4654
      %4844 = vmatprep.subr.mxu0 0.0
      %4845 = vmatpush1.msra.mxu0 %v4655
      %4846 = vmatprep.subr.mxu0 0.0
      %4847 = vmatpush1.msra.mxu0 %v4656
      %4848 = vmatprep.subr.mxu0 0.0
      %4849 = vmatpush1.msra.mxu0 %v4657
      %4850 = vmatprep.subr.mxu0 0.0
      %4851 = vmatpush1.msra.mxu0 %v4658
      %4852 = vmatprep.subr.mxu0 0.0
      %4853 = vmatpush1.msra.mxu0 %v4659
      %4854 = vmatprep.subr.mxu0 0.0
      %4855 = vmatpush1.msra.mxu0 %v4660
      %4856 = vmatprep.subr.mxu0 0.0
      %4857 = vmatpush1.msra.mxu0 %v4661
      %4858 = vmatprep.subr.mxu0 0.0
      %4859 = vmatpush1.msra.mxu0 %v4662
      %4860 = vmatprep.subr.mxu0 0.0
      %4861 = vmatpush1.msra.mxu0 %v4663
      %4862 = vmatprep.subr.mxu0 0.0
      %4863 = vmatpush1.msra.mxu0 %v4664
      %4864 = vmatprep.subr.mxu0 0.0
      %4865 = vmatpush1.msra.mxu0 %v4665
      %4866 = vmatprep.mubr.f32.mxu0 %v4475
      %4867 = vmatmul.mubr.f32.gmra.mrb[0].mxu0 %v4474
      %v4868 = vpop.f32.mrb[0].mxu0
      %v4869 = vadd.f32 0.0, %v4868
      %v4870 = vpop.f32.mrb[0].mxu0
      %4871 = vmatprep.mubr.f32.mxu0 %v4480
      %4872 = vmatmul.mubr.f32.gmra.mrb[0].mxu0 %v4479
      %v4873 = vpop.f32.mrb[0].mxu0
      %v4874 = vadd.f32 0.0, %v4873
      %v4875 = vpop.f32.mrb[0].mxu0
      %4876 = vmatprep.mubr.f32.mxu0 %v4485
      %4877 = vmatmul.mubr.f32.gmra.mrb[0].mxu0 %v4484
      %v4878 = vpop.f32.mrb[0].mxu0
      %v4879 = vadd.f32 0.0, %v4878
      %v4880 = vpop.f32.mrb[0].mxu0
      %4881 = vmatprep.mubr.f32.mxu0 %v4490
      %4882 = vmatmul.mubr.f32.gmra.mrb[0].mxu0 %v4489
      %v4883 = vpop.f32.mrb[0].mxu0
      %v4884 = vadd.f32 0.0, %v4883
      %v4885 = vpop.f32.mrb[0].mxu0
      %4886 = vmatprep.mubr.f32.mxu0 %v4495
      %4887 = vmatmul.mubr.f32.gmra.mrb[0].mxu0 %v4494
      %v4888 = vpop.f32.mrb[0].mxu0
      %v4889 = vadd.f32 0.0, %v4888
      %v4890 = vpop.f32.mrb[0].mxu0
      %4891 = vmatprep.mubr.f32.mxu0 %v4500
      %4892 = vmatmul.mubr.f32.gmra.mrb[0].mxu0 %v4499
      %v4893 = vpop.f32.mrb[0].mxu0
      %v4894 = vadd.f32 0.0, %v4893
      %v4895 = vpop.f32.mrb[0].mxu0
      %4896 = vmatprep.mubr.f32.mxu0 %v4505
      %4897 = vmatmul.mubr.f32.gmra.mrb[0].mxu0 %v4504
      %v4898 = vpop.f32.mrb[0].mxu0
      %v4899 = vadd.f32 0.0, %v4898
      %v4900 = vpop.f32.mrb[0].mxu0
      %4901 = vmatprep.mubr.f32.mxu0 %v4510
      %4902 = vmatmul.mubr.f32.gmra.mrb[0].mxu0 %v4509
      %v4903 = vpop.f32.mrb[0].mxu0
      %v4904 = vadd.f32 0.0, %v4903
      %v4905 = vpop.f32.mrb[0].mxu0
      %4906 = vmatprep.mubr.f32.mxu0 %v4515
      %4907 = vmatmul.mubr.f32.gmra.mrb[0].mxu0 %v4514
      %v4908 = vpop.f32.mrb[0].mxu0
      %v4909 = vadd.f32 0.0, %v4908
      %v4910 = vpop.f32.mrb[0].mxu0
      %4911 = vmatprep.mubr.f32.mxu0 %v4520
      %4912 = vmatmul.mubr.f32.gmra.mrb[0].mxu0 %v4519
      %v4913 = vpop.f32.mrb[0].mxu0
      %v4914 = vadd.f32 0.0, %v4913
      %v4915 = vpop.f32.mrb[0].mxu0
      %4916 = vmatprep.mubr.f32.mxu0 %v4525
      %4917 = vmatmul.mubr.f32.gmra.mrb[0].mxu0 %v4524
      %v4918 = vpop.f32.mrb[0].mxu0
      %v4919 = vadd.f32 0.0, %v4918
      %v4920 = vpop.f32.mrb[0].mxu0
      %4921 = vmatprep.mubr.f32.mxu0 %v4530
      %4922 = vmatmul.mubr.f32.gmra.mrb[0].mxu0 %v4529
      %v4923 = vpop.f32.mrb[0].mxu0
      %v4924 = vadd.f32 0.0, %v4923
      %v4925 = vpop.f32.mrb[0].mxu0
      %4926 = vmatprep.mubr.f32.mxu0 %v4535
      %4927 = vmatmul.mubr.f32.gmra.mrb[0].mxu0 %v4534
      %v4928 = vpop.f32.mrb[0].mxu0
      %v4929 = vadd.f32 0.0, %v4928
      %v4930 = vpop.f32.mrb[0].mxu0
      %4931 = vmatprep.mubr.f32.mxu0 %v4540
      %4932 = vmatmul.mubr.f32.gmra.mrb[0].mxu0 %v4539
      %v4933 = vpop.f32.mrb[0].mxu0
      %v4934 = vadd.f32 0.0, %v4933
      %v4935 = vpop.f32.mrb[0].mxu0
      %4936 = vmatprep.mubr.f32.mxu0 %v4545
      %4937 = vmatmul.mubr.f32.gmra.mrb[0].mxu0 %v4544
      %v4938 = vpop.f32.mrb[0].mxu0
      %v4939 = vadd.f32 0.0, %v4938
      %v4940 = vpop.f32.mrb[0].mxu0
      %4941 = vmatprep.mubr.f32.mxu0 %v4550
      %4942 = vmatmul.mubr.f32.gmra.mrb[0].mxu0 %v4549
      %v4943 = vpop.f32.mrb[0].mxu0
      %v4944 = vadd.f32 0.0, %v4943
      %v4945 = vpop.f32.mrb[0].mxu0
      %4946 = vmatprep.mubr.f32.mxu0 %v4555
      %4947 = vmatmul.mubr.f32.gmra.mrb[0].mxu0 %v4554
      %v4948 = vpop.f32.mrb[0].mxu0
      %v4949 = vadd.f32 0.0, %v4948
      %v4950 = vpop.f32.mrb[0].mxu0
      %4951 = vmatprep.mubr.f32.mxu0 %v4560
      %4952 = vmatmul.mubr.f32.gmra.mrb[0].mxu0 %v4559
      %v4953 = vpop.f32.mrb[0].mxu0
      %v4954 = vadd.f32 0.0, %v4953
      %v4955 = vpop.f32.mrb[0].mxu0
      %4956 = vmatprep.mubr.f32.mxu0 %v4565
      %4957 = vmatmul.mubr.f32.gmra.mrb[0].mxu0 %v4564
      %v4958 = vpop.f32.mrb[0].mxu0
      %v4959 = vadd.f32 0.0, %v4958
      %v4960 = vpop.f32.mrb[0].mxu0
      %4961 = vmatprep.mubr.f32.mxu0 %v4570
      %4962 = vmatmul.mubr.f32.gmra.mrb[0].mxu0 %v4569
      %v4963 = vpop.f32.mrb[0].mxu0
      %v4964 = vadd.f32 0.0, %v4963
      %v4965 = vpop.f32.mrb[0].mxu0
      %4966 = vmatprep.mubr.f32.mxu0 %v4575
      %4967 = vmatmul.mubr.f32.gmra.mrb[0].mxu0 %v4574
      %v4968 = vpop.f32.mrb[0].mxu0
      %v4969 = vadd.f32 0.0, %v4968
      %v4970 = vpop.f32.mrb[0].mxu0
      %4971 = vmatprep.mubr.f32.mxu0 %v4580
      %4972 = vmatmul.mubr.f32.gmra.mrb[0].mxu0 %v4579
      %v4973 = vpop.f32.mrb[0].mxu0
      %v4974 = vadd.f32 0.0, %v4973
      %v4975 = vpop.f32.mrb[0].mxu0
      %4976 = vmatprep.mubr.f32.mxu0 %v4585
      %4977 = vmatmul.mubr.f32.gmra.mrb[0].mxu0 %v4584
      %v4978 = vpop.f32.mrb[0].mxu0
      %v4979 = vadd.f32 0.0, %v4978
      %v4980 = vpop.f32.mrb[0].mxu0
      %4981 = vmatprep.mubr.f32.mxu0 %v4590
      %4982 = vmatmul.mubr.f32.gmra.mrb[0].mxu0 %v4589
      %v4983 = vpop.f32.mrb[0].mxu0
      %v4984 = vadd.f32 0.0, %v4983
      %v4985 = vpop.f32.mrb[0].mxu0
      %4986 = vmatprep.mubr.f32.mxu0 %v4595
      %4987 = vmatmul.mubr.f32.gmra.mrb[0].mxu0 %v4594
      %v4988 = vpop.f32.mrb[0].mxu0
      %v4989 = vadd.f32 0.0, %v4988
      %v4990 = vpop.f32.mrb[0].mxu0
      %4991 = vmatprep.mubr.f32.mxu0 %v4600
      %4992 = vmatmul.mubr.f32.gmra.mrb[0].mxu0 %v4599
      %v4993 = vpop.f32.mrb[0].mxu0
      %v4994 = vadd.f32 0.0, %v4993
      %v4995 = vpop.f32.mrb[0].mxu0
      %4996 = vmatprep.mubr.f32.mxu0 %v4605
      %4997 = vmatmul.mubr.f32.gmra.mrb[0].mxu0 %v4604
      %v4998 = vpop.f32.mrb[0].mxu0
      %v4999 = vadd.f32 0.0, %v4998
      %v5000 = vpop.f32.mrb[0].mxu0
      %5001 = vmatprep.mubr.f32.mxu0 %v4610
      %5002 = vmatmul.mubr.f32.gmra.mrb[0].mxu0 %v4609
      %v5003 = vpop.f32.mrb[0].mxu0
      %v5004 = vadd.f32 0.0, %v5003
      %v5005 = vpop.f32.mrb[0].mxu0
      %5006 = vmatprep.mubr.f32.mxu0 %v4615
      %5007 = vmatmul.mubr.f32.gmra.mrb[0].mxu0 %v4614
      %v5008 = vpop.f32.mrb[0].mxu0
      %v5009 = vadd.f32 0.0, %v5008
      %v5010 = vpop.f32.mrb[0].mxu0
      %5011 = vmatprep.mubr.f32.mxu0 %v4620
      %5012 = vmatmul.mubr.f32.gmra.mrb[0].mxu0 %v4619
      %v5013 = vpop.f32.mrb[0].mxu0
      %v5014 = vadd.f32 0.0, %v5013
      %v5015 = vpop.f32.mrb[0].mxu0
      %5016 = vmatprep.mubr.f32.mxu0 %v4625
      %5017 = vmatmul.mubr.f32.gmra.mrb[0].mxu0 %v4624
      %v5018 = vpop.f32.mrb[0].mxu0
      %v5019 = vadd.f32 0.0, %v5018
      %v5020 = vpop.f32.mrb[0].mxu0
      %5021 = vmatprep.mubr.f32.mxu0 %v4630
      %5022 = vmatmul.mubr.f32.gmra.mrb[0].mxu0 %v4629
      %v5023 = vpop.f32.mrb[0].mxu0
      %v5024 = vadd.f32 0.0, %v5023
      %v5025 = vpop.f32.mrb[0].mxu0
      %5026 = vdwg.mxu0
      %5027 = vmatprep.subr.mxu0 0.0
      %5028 = vmatpush1.msra.mxu0 %v4666
      %5029 = vmatprep.subr.mxu0 0.0
      %5030 = vmatpush1.msra.mxu0 %v4667
      %5031 = vmatprep.subr.mxu0 0.0
      %5032 = vmatpush1.msra.mxu0 %v4668
      %5033 = vmatprep.subr.mxu0 0.0
      %5034 = vmatpush1.msra.mxu0 %v4669
      %5035 = vmatprep.subr.mxu0 0.0
      %5036 = vmatpush1.msra.mxu0 %v4670
      %5037 = vmatprep.subr.mxu0 0.0
      %5038 = vmatpush1.msra.mxu0 %v4671
      %5039 = vmatprep.subr.mxu0 0.0
      %5040 = vmatpush1.msra.mxu0 %v4672
      %5041 = vmatprep.subr.mxu0 0.0
      %5042 = vmatpush1.msra.mxu0 %v4673
      %5043 = vmatprep.subr.mxu0 0.0
      %5044 = vmatpush1.msra.mxu0 %v4674
      %5045 = vmatprep.subr.mxu0 0.0
      %5046 = vmatpush1.msra.mxu0 %v4675
      %5047 = vmatprep.subr.mxu0 0.0
      %5048 = vmatpush1.msra.mxu0 %v4676
      %5049 = vmatprep.subr.mxu0 0.0
      %5050 = vmatpush1.msra.mxu0 %v4677
      %5051 = vmatprep.subr.mxu0 0.0
      %5052 = vmatpush1.msra.mxu0 %v4678
      %5053 = vmatprep.subr.mxu0 0.0
      %5054 = vmatpush1.msra.mxu0 %v4679
      %5055 = vmatprep.subr.mxu0 0.0
      %5056 = vmatpush1.msra.mxu0 %v4680
      %5057 = vmatprep.subr.mxu0 0.0
      %5058 = vmatpush1.msra.mxu0 %v4681
      %5059 = vmatprep.subr.mxu0 0.0
      %5060 = vmatpush1.msra.mxu0 %v4682
      %5061 = vmatprep.subr.mxu0 0.0
      %5062 = vmatpush1.msra.mxu0 %v4683
      %5063 = vmatprep.subr.mxu0 0.0
      %5064 = vmatpush1.msra.mxu0 %v4684
      %5065 = vmatprep.subr.mxu0 0.0
      %5066 = vmatpush1.msra.mxu0 %v4685
      %5067 = vmatprep.subr.mxu0 0.0
      %5068 = vmatpush1.msra.mxu0 %v4686
      %5069 = vmatprep.subr.mxu0 0.0
      %5070 = vmatpush1.msra.mxu0 %v4687
      %5071 = vmatprep.subr.mxu0 0.0
      %5072 = vmatpush1.msra.mxu0 %v4688
      %5073 = vmatprep.subr.mxu0 0.0
      %5074 = vmatpush1.msra.mxu0 %v4689
      %5075 = vmatprep.subr.mxu0 0.0
      %5076 = vmatpush1.msra.mxu0 %v4690
      %5077 = vmatprep.subr.mxu0 0.0
      %5078 = vmatpush1.msra.mxu0 %v4691
      %5079 = vmatprep.subr.mxu0 0.0
      %5080 = vmatpush1.msra.mxu0 %v4692
      %5081 = vmatprep.subr.mxu0 0.0
      %5082 = vmatpush1.msra.mxu0 %v4693
      %5083 = vmatprep.subr.mxu0 0.0
      %5084 = vmatpush1.msra.mxu0 %v4694
      %5085 = vmatprep.subr.mxu0 0.0
      %5086 = vmatpush1.msra.mxu0 %v4695
      %5087 = vmatprep.subr.mxu0 0.0
      %5088 = vmatpush1.msra.mxu0 %v4696
      %5089 = vmatprep.subr.mxu0 0.0
      %5090 = vmatpush1.msra.mxu0 %v4697
      %5091 = vmatprep.mubr.f32.mxu0 %v4477
      %5092 = vmatmul.mubr.f32.gmra.mrb[0].mxu0 %v4476
      %v5093 = vpop.f32.mrb[0].mxu0
      %v5094 = vadd.f32 %v4869, %v5093
      %v5095 = vpop.f32.mrb[0].mxu0
      %5096 = vmatprep.mubr.f32.mxu0 %v4482
      %5097 = vmatmul.mubr.f32.gmra.mrb[0].mxu0 %v4481
      %v5098 = vpop.f32.mrb[0].mxu0
      %v5099 = vadd.f32 %v4874, %v5098
      %v5100 = vpop.f32.mrb[0].mxu0
      %5101 = vmatprep.mubr.f32.mxu0 %v4487
      %5102 = vmatmul.mubr.f32.gmra.mrb[0].mxu0 %v4486
      %v5103 = vpop.f32.mrb[0].mxu0
      %v5104 = vadd.f32 %v4879, %v5103
      %v5105 = vpop.f32.mrb[0].mxu0
      %5106 = vmatprep.mubr.f32.mxu0 %v4492
      %5107 = vmatmul.mubr.f32.gmra.mrb[0].mxu0 %v4491
      %v5108 = vpop.f32.mrb[0].mxu0
      %v5109 = vadd.f32 %v4884, %v5108
      %v5110 = vpop.f32.mrb[0].mxu0
      %5111 = vmatprep.mubr.f32.mxu0 %v4497
      %5112 = vmatmul.mubr.f32.gmra.mrb[0].mxu0 %v4496
      %v5113 = vpop.f32.mrb[0].mxu0
      %v5114 = vadd.f32 %v4889, %v5113
      %v5115 = vpop.f32.mrb[0].mxu0
      %5116 = vmatprep.mubr.f32.mxu0 %v4502
      %5117 = vmatmul.mubr.f32.gmra.mrb[0].mxu0 %v4501
      %v5118 = vpop.f32.mrb[0].mxu0
      %v5119 = vadd.f32 %v4894, %v5118
      %v5120 = vpop.f32.mrb[0].mxu0
      %5121 = vmatprep.mubr.f32.mxu0 %v4507
      %5122 = vmatmul.mubr.f32.gmra.mrb[0].mxu0 %v4506
      %v5123 = vpop.f32.mrb[0].mxu0
      %v5124 = vadd.f32 %v4899, %v5123
      %v5125 = vpop.f32.mrb[0].mxu0
      %5126 = vmatprep.mubr.f32.mxu0 %v4512
      %5127 = vmatmul.mubr.f32.gmra.mrb[0].mxu0 %v4511
      %v5128 = vpop.f32.mrb[0].mxu0
      %v5129 = vadd.f32 %v4904, %v5128
      %v5130 = vpop.f32.mrb[0].mxu0
      %5131 = vmatprep.mubr.f32.mxu0 %v4517
      %5132 = vmatmul.mubr.f32.gmra.mrb[0].mxu0 %v4516
      %v5133 = vpop.f32.mrb[0].mxu0
      %v5134 = vadd.f32 %v4909, %v5133
      %v5135 = vpop.f32.mrb[0].mxu0
      %5136 = vmatprep.mubr.f32.mxu0 %v4522
      %5137 = vmatmul.mubr.f32.gmra.mrb[0].mxu0 %v4521
      %v5138 = vpop.f32.mrb[0].mxu0
      %v5139 = vadd.f32 %v4914, %v5138
      %v5140 = vpop.f32.mrb[0].mxu0
      %5141 = vmatprep.mubr.f32.mxu0 %v4527
      %5142 = vmatmul.mubr.f32.gmra.mrb[0].mxu0 %v4526
      %v5143 = vpop.f32.mrb[0].mxu0
      %v5144 = vadd.f32 %v4919, %v5143
      %v5145 = vpop.f32.mrb[0].mxu0
      %5146 = vmatprep.mubr.f32.mxu0 %v4532
      %5147 = vmatmul.mubr.f32.gmra.mrb[0].mxu0 %v4531
      %v5148 = vpop.f32.mrb[0].mxu0
      %v5149 = vadd.f32 %v4924, %v5148
      %v5150 = vpop.f32.mrb[0].mxu0
      %5151 = vmatprep.mubr.f32.mxu0 %v4537
      %5152 = vmatmul.mubr.f32.gmra.mrb[0].mxu0 %v4536
      %v5153 = vpop.f32.mrb[0].mxu0
      %v5154 = vadd.f32 %v4929, %v5153
      %v5155 = vpop.f32.mrb[0].mxu0
      %5156 = vmatprep.mubr.f32.mxu0 %v4542
      %5157 = vmatmul.mubr.f32.gmra.mrb[0].mxu0 %v4541
      %v5158 = vpop.f32.mrb[0].mxu0
      %v5159 = vadd.f32 %v4934, %v5158
      %v5160 = vpop.f32.mrb[0].mxu0
      %5161 = vmatprep.mubr.f32.mxu0 %v4547
      %5162 = vmatmul.mubr.f32.gmra.mrb[0].mxu0 %v4546
      %v5163 = vpop.f32.mrb[0].mxu0
      %v5164 = vadd.f32 %v4939, %v5163
      %v5165 = vpop.f32.mrb[0].mxu0
      %5166 = vmatprep.mubr.f32.mxu0 %v4552
      %5167 = vmatmul.mubr.f32.gmra.mrb[0].mxu0 %v4551
      %v5168 = vpop.f32.mrb[0].mxu0
      %v5169 = vadd.f32 %v4944, %v5168
      %v5170 = vpop.f32.mrb[0].mxu0
      %5171 = vmatprep.mubr.f32.mxu0 %v4557
      %5172 = vmatmul.mubr.f32.gmra.mrb[0].mxu0 %v4556
      %v5173 = vpop.f32.mrb[0].mxu0
      %v5174 = vadd.f32 %v4949, %v5173
      %v5175 = vpop.f32.mrb[0].mxu0
      %5176 = vmatprep.mubr.f32.mxu0 %v4562
      %5177 = vmatmul.mubr.f32.gmra.mrb[0].mxu0 %v4561
      %v5178 = vpop.f32.mrb[0].mxu0
      %v5179 = vadd.f32 %v4954, %v5178
      %v5180 = vpop.f32.mrb[0].mxu0
      %5181 = vmatprep.mubr.f32.mxu0 %v4567
      %5182 = vmatmul.mubr.f32.gmra.mrb[0].mxu0 %v4566
      %v5183 = vpop.f32.mrb[0].mxu0
      %v5184 = vadd.f32 %v4959, %v5183
      %v5185 = vpop.f32.mrb[0].mxu0
      %5186 = vmatprep.mubr.f32.mxu0 %v4572
      %5187 = vmatmul.mubr.f32.gmra.mrb[0].mxu0 %v4571
      %v5188 = vpop.f32.mrb[0].mxu0
      %v5189 = vadd.f32 %v4964, %v5188
      %v5190 = vpop.f32.mrb[0].mxu0
      %5191 = vmatprep.mubr.f32.mxu0 %v4577
      %5192 = vmatmul.mubr.f32.gmra.mrb[0].mxu0 %v4576
      %v5193 = vpop.f32.mrb[0].mxu0
      %v5194 = vadd.f32 %v4969, %v5193
      %v5195 = vpop.f32.mrb[0].mxu0
      %5196 = vmatprep.mubr.f32.mxu0 %v4582
      %5197 = vmatmul.mubr.f32.gmra.mrb[0].mxu0 %v4581
      %v5198 = vpop.f32.mrb[0].mxu0
      %v5199 = vadd.f32 %v4974, %v5198
      %v5200 = vpop.f32.mrb[0].mxu0
      %5201 = vmatprep.mubr.f32.mxu0 %v4587
      %5202 = vmatmul.mubr.f32.gmra.mrb[0].mxu0 %v4586
      %v5203 = vpop.f32.mrb[0].mxu0
      %v5204 = vadd.f32 %v4979, %v5203
      %v5205 = vpop.f32.mrb[0].mxu0
      %5206 = vmatprep.mubr.f32.mxu0 %v4592
      %5207 = vmatmul.mubr.f32.gmra.mrb[0].mxu0 %v4591
      %v5208 = vpop.f32.mrb[0].mxu0
      %v5209 = vadd.f32 %v4984, %v5208
      %v5210 = vpop.f32.mrb[0].mxu0
      %5211 = vmatprep.mubr.f32.mxu0 %v4597
      %5212 = vmatmul.mubr.f32.gmra.mrb[0].mxu0 %v4596
      %v5213 = vpop.f32.mrb[0].mxu0
      %v5214 = vadd.f32 %v4989, %v5213
      %v5215 = vpop.f32.mrb[0].mxu0
      %5216 = vmatprep.mubr.f32.mxu0 %v4602
      %5217 = vmatmul.mubr.f32.gmra.mrb[0].mxu0 %v4601
      %v5218 = vpop.f32.mrb[0].mxu0
      %v5219 = vadd.f32 %v4994, %v5218
      %v5220 = vpop.f32.mrb[0].mxu0
      %5221 = vmatprep.mubr.f32.mxu0 %v4607
      %5222 = vmatmul.mubr.f32.gmra.mrb[0].mxu0 %v4606
      %v5223 = vpop.f32.mrb[0].mxu0
      %v5224 = vadd.f32 %v4999, %v5223
      %v5225 = vpop.f32.mrb[0].mxu0
      %5226 = vmatprep.mubr.f32.mxu0 %v4612
      %5227 = vmatmul.mubr.f32.gmra.mrb[0].mxu0 %v4611
      %v5228 = vpop.f32.mrb[0].mxu0
      %v5229 = vadd.f32 %v5004, %v5228
      %v5230 = vpop.f32.mrb[0].mxu0
      %5231 = vmatprep.mubr.f32.mxu0 %v4617
      %5232 = vmatmul.mubr.f32.gmra.mrb[0].mxu0 %v4616
      %v5233 = vpop.f32.mrb[0].mxu0
      %v5234 = vadd.f32 %v5009, %v5233
      %v5235 = vpop.f32.mrb[0].mxu0
      %5236 = vmatprep.mubr.f32.mxu0 %v4622
      %5237 = vmatmul.mubr.f32.gmra.mrb[0].mxu0 %v4621
      %v5238 = vpop.f32.mrb[0].mxu0
      %v5239 = vadd.f32 %v5014, %v5238
      %v5240 = vpop.f32.mrb[0].mxu0
      %5241 = vmatprep.mubr.f32.mxu0 %v4627
      %5242 = vmatmul.mubr.f32.gmra.mrb[0].mxu0 %v4626
      %v5243 = vpop.f32.mrb[0].mxu0
      %v5244 = vadd.f32 %v5019, %v5243
      %v5245 = vpop.f32.mrb[0].mxu0
      %5246 = vmatprep.mubr.f32.mxu0 %v4632
      %5247 = vmatmul.mubr.f32.gmra.mrb[0].mxu0 %v4631
      %v5248 = vpop.f32.mrb[0].mxu0
      %v5249 = vadd.f32 %v5024, %v5248
      %v5250 = vpop.f32.mrb[0].mxu0
      %5251 = vdwg.mxu0
      %5252 = vmatprep.subr.mxu0 0.0
      %5253 = vmatpush1.msra.mxu0 %v4698
      %5254 = vmatprep.subr.mxu0 0.0
      %5255 = vmatpush1.msra.mxu0 %v4699
      %5256 = vmatprep.subr.mxu0 0.0
      %5257 = vmatpush1.msra.mxu0 %v4700
      %5258 = vmatprep.subr.mxu0 0.0
      %5259 = vmatpush1.msra.mxu0 %v4701
      %5260 = vmatprep.subr.mxu0 0.0
      %5261 = vmatpush1.msra.mxu0 %v4702
      %5262 = vmatprep.subr.mxu0 0.0
      %5263 = vmatpush1.msra.mxu0 %v4703
      %5264 = vmatprep.subr.mxu0 0.0
      %5265 = vmatpush1.msra.mxu0 %v4704
      %5266 = vmatprep.subr.mxu0 0.0
      %5267 = vmatpush1.msra.mxu0 %v4705
      %5268 = vmatprep.subr.mxu0 0.0
      %5269 = vmatpush1.msra.mxu0 0.0
      %5270 = vmatprep.subr.mxu0 0.0
      %5271 = vmatpush1.msra.mxu0 0.0
      %5272 = vmatprep.subr.mxu0 0.0
      %5273 = vmatpush1.msra.mxu0 0.0
      %5274 = vmatprep.subr.mxu0 0.0
      %5275 = vmatpush1.msra.mxu0 0.0
      %5276 = vmatprep.subr.mxu0 0.0
      %5277 = vmatpush1.msra.mxu0 0.0
      %5278 = vmatprep.subr.mxu0 0.0
      %5279 = vmatpush1.msra.mxu0 0.0
      %5280 = vmatprep.subr.mxu0 0.0
      %5281 = vmatpush1.msra.mxu0 0.0
      %5282 = vmatprep.subr.mxu0 0.0
      %5283 = vmatpush1.msra.mxu0 0.0
      %5284 = vmatprep.subr.mxu0 0.0
      %5285 = vmatpush1.msra.mxu0 0.0
      %5286 = vmatprep.subr.mxu0 0.0
      %5287 = vmatpush1.msra.mxu0 0.0
      %5288 = vmatprep.subr.mxu0 0.0
      %5289 = vmatpush1.msra.mxu0 0.0
      %5290 = vmatprep.subr.mxu0 0.0
      %5291 = vmatpush1.msra.mxu0 0.0
      %5292 = vmatprep.subr.mxu0 0.0
      %5293 = vmatpush1.msra.mxu0 0.0
      %5294 = vmatprep.subr.mxu0 0.0
      %5295 = vmatpush1.msra.mxu0 0.0
      %5296 = vmatprep.subr.mxu0 0.0
      %5297 = vmatpush1.msra.mxu0 0.0
      %5298 = vmatprep.subr.mxu0 0.0
      %5299 = vmatpush1.msra.mxu0 0.0
      %5300 = vmatprep.subr.mxu0 0.0
      %5301 = vmatpush1.msra.mxu0 0.0
      %5302 = vmatprep.subr.mxu0 0.0
      %5303 = vmatpush1.msra.mxu0 0.0
      %5304 = vmatprep.subr.mxu0 0.0
      %5305 = vmatpush1.msra.mxu0 0.0
      %5306 = vmatprep.subr.mxu0 0.0
      %5307 = vmatpush1.msra.mxu0 0.0
      %5308 = vmatprep.subr.mxu0 0.0
      %5309 = vmatpush1.msra.mxu0 0.0
      %5310 = vmatprep.subr.mxu0 0.0
      %5311 = vmatpush1.msra.mxu0 0.0
      %5312 = vmatprep.subr.mxu0 0.0
      %5313 = vmatpush1.msra.mxu0 0.0
      %5314 = vmatprep.subr.mxu0 0.0
      %5315 = vmatpush1.msra.mxu0 0.0
      %5316 = vmatprep.mubr.f32.mxu0 0.0
      %5317 = vmatmul.mubr.f32.gmra.mrb[0].mxu0 %v4707
      %v5318 = vpop.f32.mrb[0].mxu0
      %v5319 = vadd.f32 %v5094, %v5318
      %v5320 = vpop.f32.mrb[0].mxu0
      %5321 = vmatprep.mubr.f32.mxu0 0.0
      %5322 = vmatmul.mubr.f32.gmra.mrb[0].mxu0 %v4710
      %v5323 = vpop.f32.mrb[0].mxu0
      %v5324 = vadd.f32 %v5099, %v5323
      %v5325 = vpop.f32.mrb[0].mxu0
      %5326 = vmatprep.mubr.f32.mxu0 0.0
      %5327 = vmatmul.mubr.f32.gmra.mrb[0].mxu0 %v4713
      %v5328 = vpop.f32.mrb[0].mxu0
      %v5329 = vadd.f32 %v5104, %v5328
      %v5330 = vpop.f32.mrb[0].mxu0
      %5331 = vmatprep.mubr.f32.mxu0 0.0
      %5332 = vmatmul.mubr.f32.gmra.mrb[0].mxu0 %v4716
      %v5333 = vpop.f32.mrb[0].mxu0
      %v5334 = vadd.f32 %v5109, %v5333
      %v5335 = vpop.f32.mrb[0].mxu0
      %5336 = vmatprep.mubr.f32.mxu0 0.0
      %5337 = vmatmul.mubr.f32.gmra.mrb[0].mxu0 %v4719
      %v5338 = vpop.f32.mrb[0].mxu0
      %v5339 = vadd.f32 %v5114, %v5338
      %v5340 = vpop.f32.mrb[0].mxu0
      %5341 = vmatprep.mubr.f32.mxu0 0.0
      %5342 = vmatmul.mubr.f32.gmra.mrb[0].mxu0 %v4722
      %v5343 = vpop.f32.mrb[0].mxu0
      %v5344 = vadd.f32 %v5119, %v5343
      %v5345 = vpop.f32.mrb[0].mxu0
      %5346 = vmatprep.mubr.f32.mxu0 0.0
      %5347 = vmatmul.mubr.f32.gmra.mrb[0].mxu0 %v4725
      %v5348 = vpop.f32.mrb[0].mxu0
      %v5349 = vadd.f32 %v5124, %v5348
      %v5350 = vpop.f32.mrb[0].mxu0
      %5351 = vmatprep.mubr.f32.mxu0 0.0
      %5352 = vmatmul.mubr.f32.gmra.mrb[0].mxu0 %v4728
      %v5353 = vpop.f32.mrb[0].mxu0
      %v5354 = vadd.f32 %v5129, %v5353
      %v5355 = vpop.f32.mrb[0].mxu0
      %5356 = vmatprep.mubr.f32.mxu0 0.0
      %5357 = vmatmul.mubr.f32.gmra.mrb[0].mxu0 %v4731
      %v5358 = vpop.f32.mrb[0].mxu0
      %v5359 = vadd.f32 %v5134, %v5358
      %v5360 = vpop.f32.mrb[0].mxu0
      %5361 = vmatprep.mubr.f32.mxu0 0.0
      %5362 = vmatmul.mubr.f32.gmra.mrb[0].mxu0 %v4734
      %v5363 = vpop.f32.mrb[0].mxu0
      %v5364 = vadd.f32 %v5139, %v5363
      %v5365 = vpop.f32.mrb[0].mxu0
      %5366 = vmatprep.mubr.f32.mxu0 0.0
      %5367 = vmatmul.mubr.f32.gmra.mrb[0].mxu0 %v4737
      %v5368 = vpop.f32.mrb[0].mxu0
      %v5369 = vadd.f32 %v5144, %v5368
      %v5370 = vpop.f32.mrb[0].mxu0
      %5371 = vmatprep.mubr.f32.mxu0 0.0
      %5372 = vmatmul.mubr.f32.gmra.mrb[0].mxu0 %v4740
      %v5373 = vpop.f32.mrb[0].mxu0
      %v5374 = vadd.f32 %v5149, %v5373
      %v5375 = vpop.f32.mrb[0].mxu0
      %5376 = vmatprep.mubr.f32.mxu0 0.0
      %5377 = vmatmul.mubr.f32.gmra.mrb[0].mxu0 %v4743
      %v5378 = vpop.f32.mrb[0].mxu0
      %v5379 = vadd.f32 %v5154, %v5378
      %v5380 = vpop.f32.mrb[0].mxu0
      %5381 = vmatprep.mubr.f32.mxu0 0.0
      %5382 = vmatmul.mubr.f32.gmra.mrb[0].mxu0 %v4746
      %v5383 = vpop.f32.mrb[0].mxu0
      %v5384 = vadd.f32 %v5159, %v5383
      %v5385 = vpop.f32.mrb[0].mxu0
      %5386 = vmatprep.mubr.f32.mxu0 0.0
      %5387 = vmatmul.mubr.f32.gmra.mrb[0].mxu0 %v4749
      %v5388 = vpop.f32.mrb[0].mxu0
      %v5389 = vadd.f32 %v5164, %v5388
      %v5390 = vpop.f32.mrb[0].mxu0
      %5391 = vmatprep.mubr.f32.mxu0 0.0
      %5392 = vmatmul.mubr.f32.gmra.mrb[0].mxu0 %v4752
      %v5393 = vpop.f32.mrb[0].mxu0
      %v5394 = vadd.f32 %v5169, %v5393
      %v5395 = vpop.f32.mrb[0].mxu0
      %5396 = vmatprep.mubr.f32.mxu0 0.0
      %5397 = vmatmul.mubr.f32.gmra.mrb[0].mxu0 %v4755
      %v5398 = vpop.f32.mrb[0].mxu0
      %v5399 = vadd.f32 %v5174, %v5398
      %v5400 = vpop.f32.mrb[0].mxu0
      %5401 = vmatprep.mubr.f32.mxu0 0.0
      %5402 = vmatmul.mubr.f32.gmra.mrb[0].mxu0 %v4758
      %v5403 = vpop.f32.mrb[0].mxu0
      %v5404 = vadd.f32 %v5179, %v5403
      %v5405 = vpop.f32.mrb[0].mxu0
      %5406 = vmatprep.mubr.f32.mxu0 0.0
      %5407 = vmatmul.mubr.f32.gmra.mrb[0].mxu0 %v4761
      %v5408 = vpop.f32.mrb[0].mxu0
      %v5409 = vadd.f32 %v5184, %v5408
      %v5410 = vpop.f32.mrb[0].mxu0
      %5411 = vmatprep.mubr.f32.mxu0 0.0
      %5412 = vmatmul.mubr.f32.gmra.mrb[0].mxu0 %v4764
      %v5413 = vpop.f32.mrb[0].mxu0
      %v5414 = vadd.f32 %v5189, %v5413
      %v5415 = vpop.f32.mrb[0].mxu0
      %5416 = vmatprep.mubr.f32.mxu0 0.0
      %5417 = vmatmul.mubr.f32.gmra.mrb[0].mxu0 %v4767
      %v5418 = vpop.f32.mrb[0].mxu0
      %v5419 = vadd.f32 %v5194, %v5418
      %v5420 = vpop.f32.mrb[0].mxu0
      %5421 = vmatprep.mubr.f32.mxu0 0.0
      %5422 = vmatmul.mubr.f32.gmra.mrb[0].mxu0 %v4770
      %v5423 = vpop.f32.mrb[0].mxu0
      %v5424 = vadd.f32 %v5199, %v5423
      %v5425 = vpop.f32.mrb[0].mxu0
      %5426 = vmatprep.mubr.f32.mxu0 0.0
      %5427 = vmatmul.mubr.f32.gmra.mrb[0].mxu0 %v4773
      %v5428 = vpop.f32.mrb[0].mxu0
      %v5429 = vadd.f32 %v5204, %v5428
      %v5430 = vpop.f32.mrb[0].mxu0
      %5431 = vmatprep.mubr.f32.mxu0 0.0
      %5432 = vmatmul.mubr.f32.gmra.mrb[0].mxu0 %v4776
      %v5433 = vpop.f32.mrb[0].mxu0
      %v5434 = vadd.f32 %v5209, %v5433
      %v5435 = vpop.f32.mrb[0].mxu0
      %5436 = vmatprep.mubr.f32.mxu0 0.0
      %5437 = vmatmul.mubr.f32.gmra.mrb[0].mxu0 %v4779
      %v5438 = vpop.f32.mrb[0].mxu0
      %v5439 = vadd.f32 %v5214, %v5438
      %v5440 = vpop.f32.mrb[0].mxu0
      %5441 = vmatprep.mubr.f32.mxu0 0.0
      %5442 = vmatmul.mubr.f32.gmra.mrb[0].mxu0 %v4782
      %v5443 = vpop.f32.mrb[0].mxu0
      %v5444 = vadd.f32 %v5219, %v5443
      %v5445 = vpop.f32.mrb[0].mxu0
      %5446 = vmatprep.mubr.f32.mxu0 0.0
      %5447 = vmatmul.mubr.f32.gmra.mrb[0].mxu0 %v4785
      %v5448 = vpop.f32.mrb[0].mxu0
      %v5449 = vadd.f32 %v5224, %v5448
      %v5450 = vpop.f32.mrb[0].mxu0
      %5451 = vmatprep.mubr.f32.mxu0 0.0
      %5452 = vmatmul.mubr.f32.gmra.mrb[0].mxu0 %v4788
      %v5453 = vpop.f32.mrb[0].mxu0
      %v5454 = vadd.f32 %v5229, %v5453
      %v5455 = vpop.f32.mrb[0].mxu0
      %5456 = vmatprep.mubr.f32.mxu0 0.0
      %5457 = vmatmul.mubr.f32.gmra.mrb[0].mxu0 %v4791
      %v5458 = vpop.f32.mrb[0].mxu0
      %v5459 = vadd.f32 %v5234, %v5458
      %v5460 = vpop.f32.mrb[0].mxu0
      %5461 = vmatprep.mubr.f32.mxu0 0.0
      %5462 = vmatmul.mubr.f32.gmra.mrb[0].mxu0 %v4794
      %v5463 = vpop.f32.mrb[0].mxu0
      %v5464 = vadd.f32 %v5239, %v5463
      %v5465 = vpop.f32.mrb[0].mxu0
      %5466 = vmatprep.mubr.f32.mxu0 0.0
      %5467 = vmatmul.mubr.f32.gmra.mrb[0].mxu0 %v4797
      %v5468 = vpop.f32.mrb[0].mxu0
      %v5469 = vadd.f32 %v5244, %v5468
      %v5470 = vpop.f32.mrb[0].mxu0
      %5471 = vmatprep.mubr.f32.mxu0 0.0
      %5472 = vmatmul.mubr.f32.gmra.mrb[0].mxu0 %v4800
      %v5473 = vpop.f32.mrb[0].mxu0
      %v5474 = vadd.f32 %v5249, %v5473
      %v5475 = vpop.f32.mrb[0].mxu0
      %5476 = vdwg.mxu0
      %v5477 = vadd.f32 %v1076, %v5319
      %v5478 = vadd.f32 %v1077, %v5324
      %v5479 = vadd.f32 %v1078, %v5329
      %v5480 = vadd.f32 %v1079, %v5334
      %v5481 = vadd.f32 %v1080, %v5339
      %v5482 = vadd.f32 %v1081, %v5344
      %v5483 = vadd.f32 %v1082, %v5349
      %v5484 = vadd.f32 %v1083, %v5354
      %v5485 = vadd.f32 %v1084, %v5359
      %v5486 = vadd.f32 %v1085, %v5364
      %v5487 = vadd.f32 %v1086, %v5369
      %v5488 = vadd.f32 %v1087, %v5374
      %v5489 = vadd.f32 %v1088, %v5379
      %v5490 = vadd.f32 %v1089, %v5384
      %v5491 = vadd.f32 %v1090, %v5389
      %v5492 = vadd.f32 %v1091, %v5394
      %v5493 = vadd.f32 %v1092, %v5399
      %v5494 = vadd.f32 %v1093, %v5404
      %v5495 = vadd.f32 %v1094, %v5409
      %v5496 = vadd.f32 %v1095, %v5414
      %v5497 = vadd.f32 %v1096, %v5419
      %v5498 = vadd.f32 %v1097, %v5424
      %v5499 = vadd.f32 %v1098, %v5429
      %v5500 = vadd.f32 %v1099, %v5434
      %v5501 = vadd.f32 %v1100, %v5439
      %v5502 = vadd.f32 %v1101, %v5444
      %v5503 = vadd.f32 %v1102, %v5449
      %v5504 = vadd.f32 %v1103, %v5454
      %v5505 = vadd.f32 %v1104, %v5459
      %v5506 = vadd.f32 %v1105, %v5464
      %v5507 = vadd.f32 %v1106, %v5469
      %v5508 = vadd.f32 %v1107, %v5474
      %v5509 = vld [vmem:[%s3 + $0xb] sm:$0x1]
      %v5510 = vlaneseq
      %v5511 = vshrl.u32 %v5510, 7
      %v5512 = vsub.s32 0, %v5511
      %v5513 = vrot.slane %v5509, %v5512
      %v5514 = vmul.f32 %v5477, %v5513
      %v5515 = vmul.f32 %v5478, %v5513
      %v5516 = vmul.f32 %v5479, %v5513
      %v5517 = vmul.f32 %v5480, %v5513
      %v5518 = vmul.f32 %v5481, %v5513
      %v5519 = vmul.f32 %v5482, %v5513
      %v5520 = vmul.f32 %v5483, %v5513
      %v5521 = vmul.f32 %v5484, %v5513
      %v5522 = vmul.f32 %v5485, %v5513
      %v5523 = vmul.f32 %v5486, %v5513
      %v5524 = vmul.f32 %v5487, %v5513
      %v5525 = vmul.f32 %v5488, %v5513
      %v5526 = vmul.f32 %v5489, %v5513
      %v5527 = vmul.f32 %v5490, %v5513
      %v5528 = vmul.f32 %v5491, %v5513
      %v5529 = vmul.f32 %v5492, %v5513
      %v5530 = vmul.f32 %v5493, %v5513
      %v5531 = vmul.f32 %v5494, %v5513
      %v5532 = vmul.f32 %v5495, %v5513
      %v5533 = vmul.f32 %v5496, %v5513
      %v5534 = vmul.f32 %v5497, %v5513
      %v5535 = vmul.f32 %v5498, %v5513
      %v5536 = vmul.f32 %v5499, %v5513
      %v5537 = vmul.f32 %v5500, %v5513
      %v5538 = vmul.f32 %v5501, %v5513
      %v5539 = vmul.f32 %v5502, %v5513
      %v5540 = vmul.f32 %v5503, %v5513
      %v5541 = vmul.f32 %v5504, %v5513
      %v5542 = vmul.f32 %v5505, %v5513
      %v5543 = vmul.f32 %v5506, %v5513
      %v5544 = vmul.f32 %v5507, %v5513
      %v5545 = vmul.f32 %v5508, %v5513
      %v5546 = vld [vmem:[%s3 + $0xc] sm:$0x1]
      %v5547 = vlaneseq
      %v5548 = vshrl.u32 %v5547, 7
      %v5549 = vsub.s32 0, %v5548
      %v5550 = vrot.slane %v5546, %v5549
      %v5551 = vadd.f32 %v5514, %v5550
      %v5552 = vadd.f32 %v5515, %v5550
      %v5553 = vadd.f32 %v5516, %v5550
      %v5554 = vadd.f32 %v5517, %v5550
      %v5555 = vadd.f32 %v5518, %v5550
      %v5556 = vadd.f32 %v5519, %v5550
      %v5557 = vadd.f32 %v5520, %v5550
      %v5558 = vadd.f32 %v5521, %v5550
      %v5559 = vadd.f32 %v5522, %v5550
      %v5560 = vadd.f32 %v5523, %v5550
      %v5561 = vadd.f32 %v5524, %v5550
      %v5562 = vadd.f32 %v5525, %v5550
      %v5563 = vadd.f32 %v5526, %v5550
      %v5564 = vadd.f32 %v5527, %v5550
      %v5565 = vadd.f32 %v5528, %v5550
      %v5566 = vadd.f32 %v5529, %v5550
      %v5567 = vadd.f32 %v5530, %v5550
      %v5568 = vadd.f32 %v5531, %v5550
      %v5569 = vadd.f32 %v5532, %v5550
      %v5570 = vadd.f32 %v5533, %v5550
      %v5571 = vadd.f32 %v5534, %v5550
      %v5572 = vadd.f32 %v5535, %v5550
      %v5573 = vadd.f32 %v5536, %v5550
      %v5574 = vadd.f32 %v5537, %v5550
      %v5575 = vadd.f32 %v5538, %v5550
      %v5576 = vadd.f32 %v5539, %v5550
      %v5577 = vadd.f32 %v5540, %v5550
      %v5578 = vadd.f32 %v5541, %v5550
      %v5579 = vadd.f32 %v5542, %v5550
      %v5580 = vadd.f32 %v5543, %v5550
      %v5581 = vadd.f32 %v5544, %v5550
      %v5582 = vadd.f32 %v5545, %v5550
      %v5583 = vmax.f32 %v5551, 0.0
      %v5584 = vmax.f32 %v5552, 0.0
      %v5585 = vmax.f32 %v5553, 0.0
      %v5586 = vmax.f32 %v5554, 0.0
      %v5587 = vmax.f32 %v5555, 0.0
      %v5588 = vmax.f32 %v5556, 0.0
      %v5589 = vmax.f32 %v5557, 0.0
      %v5590 = vmax.f32 %v5558, 0.0
      %v5591 = vmax.f32 %v5559, 0.0
      %v5592 = vmax.f32 %v5560, 0.0
      %v5593 = vmax.f32 %v5561, 0.0
      %v5594 = vmax.f32 %v5562, 0.0
      %v5595 = vmax.f32 %v5563, 0.0
      %v5596 = vmax.f32 %v5564, 0.0
      %v5597 = vmax.f32 %v5565, 0.0
      %v5598 = vmax.f32 %v5566, 0.0
      %v5599 = vmax.f32 %v5567, 0.0
      %v5600 = vmax.f32 %v5568, 0.0
      %v5601 = vmax.f32 %v5569, 0.0
      %v5602 = vmax.f32 %v5570, 0.0
      %v5603 = vmax.f32 %v5571, 0.0
      %v5604 = vmax.f32 %v5572, 0.0
      %v5605 = vmax.f32 %v5573, 0.0
      %v5606 = vmax.f32 %v5574, 0.0
      %v5607 = vmax.f32 %v5575, 0.0
      %v5608 = vmax.f32 %v5576, 0.0
      %v5609 = vmax.f32 %v5577, 0.0
      %v5610 = vmax.f32 %v5578, 0.0
      %v5611 = vmax.f32 %v5579, 0.0
      %v5612 = vmax.f32 %v5580, 0.0
      %v5613 = vmax.f32 %v5581, 0.0
      %v5614 = vmax.f32 %v5582, 0.0
      %v5615 = vand.u32 2147483647, %v5551
      %v5616 = vand.u32 2147483647, %v5552
      %v5617 = vand.u32 2147483647, %v5553
      %v5618 = vand.u32 2147483647, %v5554
      %v5619 = vand.u32 2147483647, %v5555
      %v5620 = vand.u32 2147483647, %v5556
      %v5621 = vand.u32 2147483647, %v5557
      %v5622 = vand.u32 2147483647, %v5558
      %v5623 = vand.u32 2147483647, %v5559
      %v5624 = vand.u32 2147483647, %v5560
      %v5625 = vand.u32 2147483647, %v5561
      %v5626 = vand.u32 2147483647, %v5562
      %v5627 = vand.u32 2147483647, %v5563
      %v5628 = vand.u32 2147483647, %v5564
      %v5629 = vand.u32 2147483647, %v5565
      %v5630 = vand.u32 2147483647, %v5566
      %v5631 = vand.u32 2147483647, %v5567
      %v5632 = vand.u32 2147483647, %v5568
      %v5633 = vand.u32 2147483647, %v5569
      %v5634 = vand.u32 2147483647, %v5570
      %v5635 = vand.u32 2147483647, %v5571
      %v5636 = vand.u32 2147483647, %v5572
      %v5637 = vand.u32 2147483647, %v5573
      %v5638 = vand.u32 2147483647, %v5574
      %v5639 = vand.u32 2147483647, %v5575
      %v5640 = vand.u32 2147483647, %v5576
      %v5641 = vand.u32 2147483647, %v5577
      %v5642 = vand.u32 2147483647, %v5578
      %v5643 = vand.u32 2147483647, %v5579
      %v5644 = vand.u32 2147483647, %v5580
      %v5645 = vand.u32 2147483647, %v5581
      %v5646 = vand.u32 2147483647, %v5582
      %v5647 = vsub.f32 0.0, %v5615
      %v5648 = vsub.f32 0.0, %v5616
      %v5649 = vsub.f32 0.0, %v5617
      %v5650 = vsub.f32 0.0, %v5618
      %v5651 = vsub.f32 0.0, %v5619
      %v5652 = vsub.f32 0.0, %v5620
      %v5653 = vsub.f32 0.0, %v5621
      %v5654 = vsub.f32 0.0, %v5622
      %v5655 = vsub.f32 0.0, %v5623
      %v5656 = vsub.f32 0.0, %v5624
      %v5657 = vsub.f32 0.0, %v5625
      %v5658 = vsub.f32 0.0, %v5626
      %v5659 = vsub.f32 0.0, %v5627
      %v5660 = vsub.f32 0.0, %v5628
      %v5661 = vsub.f32 0.0, %v5629
      %v5662 = vsub.f32 0.0, %v5630
      %v5663 = vsub.f32 0.0, %v5631
      %v5664 = vsub.f32 0.0, %v5632
      %v5665 = vsub.f32 0.0, %v5633
      %v5666 = vsub.f32 0.0, %v5634
      %v5667 = vsub.f32 0.0, %v5635
      %v5668 = vsub.f32 0.0, %v5636
      %v5669 = vsub.f32 0.0, %v5637
      %v5670 = vsub.f32 0.0, %v5638
      %v5671 = vsub.f32 0.0, %v5639
      %v5672 = vsub.f32 0.0, %v5640
      %v5673 = vsub.f32 0.0, %v5641
      %v5674 = vsub.f32 0.0, %v5642
      %v5675 = vsub.f32 0.0, %v5643
      %v5676 = vsub.f32 0.0, %v5644
      %v5677 = vsub.f32 0.0, %v5645
      %v5678 = vsub.f32 0.0, %v5646
      %v5679 = vmul.f32 %v5647, 1.442695
      %v5680 = vpow.pop %v5679
      %v5681 = vmul.f32 %v5648, 1.442695
      %v5682 = vpow.pop %v5681
      %v5683 = vmul.f32 %v5649, 1.442695
      %v5684 = vpow.pop %v5683
      %v5685 = vmul.f32 %v5650, 1.442695
      %v5686 = vpow.pop %v5685
      %v5687 = vmul.f32 %v5651, 1.442695
      %v5688 = vpow.pop %v5687
      %v5689 = vmul.f32 %v5652, 1.442695
      %v5690 = vpow.pop %v5689
      %v5691 = vmul.f32 %v5653, 1.442695
      %v5692 = vpow.pop %v5691
      %v5693 = vmul.f32 %v5654, 1.442695
      %v5694 = vpow.pop %v5693
      %v5695 = vmul.f32 %v5655, 1.442695
      %v5696 = vpow.pop %v5695
      %v5697 = vmul.f32 %v5656, 1.442695
      %v5698 = vpow.pop %v5697
      %v5699 = vmul.f32 %v5657, 1.442695
      %v5700 = vpow.pop %v5699
      %v5701 = vmul.f32 %v5658, 1.442695
      %v5702 = vpow.pop %v5701
      %v5703 = vmul.f32 %v5659, 1.442695
      %v5704 = vpow.pop %v5703
      %v5705 = vmul.f32 %v5660, 1.442695
      %v5706 = vpow.pop %v5705
      %v5707 = vmul.f32 %v5661, 1.442695
      %v5708 = vpow.pop %v5707
      %v5709 = vmul.f32 %v5662, 1.442695
      %v5710 = vpow.pop %v5709
      %v5711 = vmul.f32 %v5663, 1.442695
      %v5712 = vpow.pop %v5711
      %v5713 = vmul.f32 %v5664, 1.442695
      %v5714 = vpow.pop %v5713
      %v5715 = vmul.f32 %v5665, 1.442695
      %v5716 = vpow.pop %v5715
      %v5717 = vmul.f32 %v5666, 1.442695
      %v5718 = vpow.pop %v5717
      %v5719 = vmul.f32 %v5667, 1.442695
      %v5720 = vpow.pop %v5719
      %v5721 = vmul.f32 %v5668, 1.442695
      %v5722 = vpow.pop %v5721
      %v5723 = vmul.f32 %v5669, 1.442695
      %v5724 = vpow.pop %v5723
      %v5725 = vmul.f32 %v5670, 1.442695
      %v5726 = vpow.pop %v5725
      %v5727 = vmul.f32 %v5671, 1.442695
      %v5728 = vpow.pop %v5727
      %v5729 = vmul.f32 %v5672, 1.442695
      %v5730 = vpow.pop %v5729
      %v5731 = vmul.f32 %v5673, 1.442695
      %v5732 = vpow.pop %v5731
      %v5733 = vmul.f32 %v5674, 1.442695
      %v5734 = vpow.pop %v5733
      %v5735 = vmul.f32 %v5675, 1.442695
      %v5736 = vpow.pop %v5735
      %v5737 = vmul.f32 %v5676, 1.442695
      %v5738 = vpow.pop %v5737
      %v5739 = vmul.f32 %v5677, 1.442695
      %v5740 = vpow.pop %v5739
      %v5741 = vmul.f32 %v5678, 1.442695
      %v5742 = vpow.pop %v5741
      %v5743 = vadd.f32 %v5680, 1.0
      %v5744 = vadd.f32 %v5682, 1.0
      %v5745 = vadd.f32 %v5684, 1.0
      %v5746 = vadd.f32 %v5686, 1.0
      %v5747 = vadd.f32 %v5688, 1.0
      %v5748 = vadd.f32 %v5690, 1.0
      %v5749 = vadd.f32 %v5692, 1.0
      %v5750 = vadd.f32 %v5694, 1.0
      %v5751 = vadd.f32 %v5696, 1.0
      %v5752 = vadd.f32 %v5698, 1.0
      %v5753 = vadd.f32 %v5700, 1.0
      %v5754 = vadd.f32 %v5702, 1.0
      %v5755 = vadd.f32 %v5704, 1.0
      %v5756 = vadd.f32 %v5706, 1.0
      %v5757 = vadd.f32 %v5708, 1.0
      %v5758 = vadd.f32 %v5710, 1.0
      %v5759 = vadd.f32 %v5712, 1.0
      %v5760 = vadd.f32 %v5714, 1.0
      %v5761 = vadd.f32 %v5716, 1.0
      %v5762 = vadd.f32 %v5718, 1.0
      %v5763 = vadd.f32 %v5720, 1.0
      %v5764 = vadd.f32 %v5722, 1.0
      %v5765 = vadd.f32 %v5724, 1.0
      %v5766 = vadd.f32 %v5726, 1.0
      %v5767 = vadd.f32 %v5728, 1.0
      %v5768 = vadd.f32 %v5730, 1.0
      %v5769 = vadd.f32 %v5732, 1.0
      %v5770 = vadd.f32 %v5734, 1.0
      %v5771 = vadd.f32 %v5736, 1.0
      %v5772 = vadd.f32 %v5738, 1.0
      %v5773 = vadd.f32 %v5740, 1.0
      %v5774 = vadd.f32 %v5742, 1.0
      %v5775 = vlog2.pop %v5743
      %v5776 = vmul.f32 %v5775, 0.6931472
      %v5777 = vlog2.pop %v5744
      %v5778 = vmul.f32 %v5777, 0.6931472
      %v5779 = vlog2.pop %v5745
      %v5780 = vmul.f32 %v5779, 0.6931472
      %v5781 = vlog2.pop %v5746
      %v5782 = vmul.f32 %v5781, 0.6931472
      %v5783 = vlog2.pop %v5747
      %v5784 = vmul.f32 %v5783, 0.6931472
      %v5785 = vlog2.pop %v5748
      %v5786 = vmul.f32 %v5785, 0.6931472
      %v5787 = vlog2.pop %v5749
      %v5788 = vmul.f32 %v5787, 0.6931472
      %v5789 = vlog2.pop %v5750
      %v5790 = vmul.f32 %v5789, 0.6931472
      %v5791 = vlog2.pop %v5751
      %v5792 = vmul.f32 %v5791, 0.6931472
      %v5793 = vlog2.pop %v5752
      %v5794 = vmul.f32 %v5793, 0.6931472
      %v5795 = vlog2.pop %v5753
      %v5796 = vmul.f32 %v5795, 0.6931472
      %v5797 = vlog2.pop %v5754
      %v5798 = vmul.f32 %v5797, 0.6931472
      %v5799 = vlog2.pop %v5755
      %v5800 = vmul.f32 %v5799, 0.6931472
      %v5801 = vlog2.pop %v5756
      %v5802 = vmul.f32 %v5801, 0.6931472
      %v5803 = vlog2.pop %v5757
      %v5804 = vmul.f32 %v5803, 0.6931472
      %v5805 = vlog2.pop %v5758
      %v5806 = vmul.f32 %v5805, 0.6931472
      %v5807 = vlog2.pop %v5759
      %v5808 = vmul.f32 %v5807, 0.6931472
      %v5809 = vlog2.pop %v5760
      %v5810 = vmul.f32 %v5809, 0.6931472
      %v5811 = vlog2.pop %v5761
      %v5812 = vmul.f32 %v5811, 0.6931472
      %v5813 = vlog2.pop %v5762
      %v5814 = vmul.f32 %v5813, 0.6931472
      %v5815 = vlog2.pop %v5763
      %v5816 = vmul.f32 %v5815, 0.6931472
      %v5817 = vlog2.pop %v5764
      %v5818 = vmul.f32 %v5817, 0.6931472
      %v5819 = vlog2.pop %v5765
      %v5820 = vmul.f32 %v5819, 0.6931472
      %v5821 = vlog2.pop %v5766
      %v5822 = vmul.f32 %v5821, 0.6931472
      %v5823 = vlog2.pop %v5767
      %v5824 = vmul.f32 %v5823, 0.6931472
      %v5825 = vlog2.pop %v5768
      %v5826 = vmul.f32 %v5825, 0.6931472
      %v5827 = vlog2.pop %v5769
      %v5828 = vmul.f32 %v5827, 0.6931472
      %v5829 = vlog2.pop %v5770
      %v5830 = vmul.f32 %v5829, 0.6931472
      %v5831 = vlog2.pop %v5771
      %v5832 = vmul.f32 %v5831, 0.6931472
      %v5833 = vlog2.pop %v5772
      %v5834 = vmul.f32 %v5833, 0.6931472
      %v5835 = vlog2.pop %v5773
      %v5836 = vmul.f32 %v5835, 0.6931472
      %v5837 = vlog2.pop %v5774
      %v5838 = vmul.f32 %v5837, 0.6931472
      %v5839 = vadd.f32 %v5583, %v5776
      %v5840 = vadd.f32 %v5584, %v5778
      %v5841 = vadd.f32 %v5585, %v5780
      %v5842 = vadd.f32 %v5586, %v5782
      %v5843 = vadd.f32 %v5587, %v5784
      %v5844 = vadd.f32 %v5588, %v5786
      %v5845 = vadd.f32 %v5589, %v5788
      %v5846 = vadd.f32 %v5590, %v5790
      %v5847 = vadd.f32 %v5591, %v5792
      %v5848 = vadd.f32 %v5592, %v5794
      %v5849 = vadd.f32 %v5593, %v5796
      %v5850 = vadd.f32 %v5594, %v5798
      %v5851 = vadd.f32 %v5595, %v5800
      %v5852 = vadd.f32 %v5596, %v5802
      %v5853 = vadd.f32 %v5597, %v5804
      %v5854 = vadd.f32 %v5598, %v5806
      %v5855 = vadd.f32 %v5599, %v5808
      %v5856 = vadd.f32 %v5600, %v5810
      %v5857 = vadd.f32 %v5601, %v5812
      %v5858 = vadd.f32 %v5602, %v5814
      %v5859 = vadd.f32 %v5603, %v5816
      %v5860 = vadd.f32 %v5604, %v5818
      %v5861 = vadd.f32 %v5605, %v5820
      %v5862 = vadd.f32 %v5606, %v5822
      %v5863 = vadd.f32 %v5607, %v5824
      %v5864 = vadd.f32 %v5608, %v5826
      %v5865 = vadd.f32 %v5609, %v5828
      %v5866 = vadd.f32 %v5610, %v5830
      %v5867 = vadd.f32 %v5611, %v5832
      %v5868 = vadd.f32 %v5612, %v5834
      %v5869 = vadd.f32 %v5613, %v5836
      %v5870 = vadd.f32 %v5614, %v5838
      %s5871 = scalar_lea.vmem %s4, 128
      %v5872 = vld [vmem:[%s5871] sm:$0xff]
      %v5873 = vld [vmem:[%s5871 + $0x8] sm:$0xff]
      %v5874 = vld [vmem:[%s5871 + $0x10] sm:$0xff]
      %v5875 = vld [vmem:[%s5871 + $0x18] sm:$0xff]
      %v5876 = vld [vmem:[%s5871 + $0x20] sm:$0xff]
      %v5877 = vld [vmem:[%s5871 + $0x28] sm:$0xff]
      %v5878 = vld [vmem:[%s5871 + $0x30] sm:$0xff]
      %v5879 = vld [vmem:[%s5871 + $0x38] sm:$0xff]
      %v5880 = vld [vmem:[%s5871 + $0x40] sm:$0xff]
      %v5881 = vld [vmem:[%s5871 + $0x48] sm:$0xff]
      %v5882 = vld [vmem:[%s5871 + $0x50] sm:$0xff]
      %v5883 = vld [vmem:[%s5871 + $0x58] sm:$0xff]
      %v5884 = vld [vmem:[%s5871 + $0x60] sm:$0xff]
      %v5885 = vld [vmem:[%s5871 + $0x68] sm:$0xff]
      %v5886 = vld [vmem:[%s5871 + $0x70] sm:$0xff]
      %v5887 = vld [vmem:[%s5871 + $0x78] sm:$0xff]
      %5888 = vmatprep.subr.mxu0 0.0
      %5889 = vmatpush1.msra.mxu0 %v5872
      %5890 = vmatprep.subr.mxu0 0.0
      %5891 = vmatpush1.msra.mxu0 %v5873
      %5892 = vmatprep.subr.mxu0 0.0
      %5893 = vmatpush1.msra.mxu0 %v5874
      %5894 = vmatprep.subr.mxu0 0.0
      %5895 = vmatpush1.msra.mxu0 %v5875
      %5896 = vmatprep.subr.mxu0 0.0
      %5897 = vmatpush1.msra.mxu0 %v5876
      %5898 = vmatprep.subr.mxu0 0.0
      %5899 = vmatpush1.msra.mxu0 %v5877
      %5900 = vmatprep.subr.mxu0 0.0
      %5901 = vmatpush1.msra.mxu0 %v5878
      %5902 = vmatprep.subr.mxu0 0.0
      %5903 = vmatpush1.msra.mxu0 %v5879
      %5904 = vmatprep.subr.mxu0 0.0
      %5905 = vmatpush1.msra.mxu0 %v5880
      %5906 = vmatprep.subr.mxu0 0.0
      %5907 = vmatpush1.msra.mxu0 %v5881
      %5908 = vmatprep.subr.mxu0 0.0
      %5909 = vmatpush1.msra.mxu0 %v5882
      %5910 = vmatprep.subr.mxu0 0.0
      %5911 = vmatpush1.msra.mxu0 %v5883
      %5912 = vmatprep.subr.mxu0 0.0
      %5913 = vmatpush1.msra.mxu0 %v5884
      %5914 = vmatprep.subr.mxu0 0.0
      %5915 = vmatpush1.msra.mxu0 %v5885
      %5916 = vmatprep.subr.mxu0 0.0
      %5917 = vmatpush1.msra.mxu0 %v5886
      %5918 = vmatprep.subr.mxu0 0.0
      %5919 = vmatpush1.msra.mxu0 %v5887
      %5920 = vmatprep.subr.mxu0 0.0
      %5921 = vmatpush1.msra.mxu0 0.0
      %5922 = vmatprep.subr.mxu0 0.0
      %5923 = vmatpush1.msra.mxu0 0.0
      %5924 = vmatprep.subr.mxu0 0.0
      %5925 = vmatpush1.msra.mxu0 0.0
      %5926 = vmatprep.subr.mxu0 0.0
      %5927 = vmatpush1.msra.mxu0 0.0
      %5928 = vmatprep.subr.mxu0 0.0
      %5929 = vmatpush1.msra.mxu0 0.0
      %5930 = vmatprep.subr.mxu0 0.0
      %5931 = vmatpush1.msra.mxu0 0.0
      %5932 = vmatprep.subr.mxu0 0.0
      %5933 = vmatpush1.msra.mxu0 0.0
      %5934 = vmatprep.subr.mxu0 0.0
      %5935 = vmatpush1.msra.mxu0 0.0
      %5936 = vmatprep.subr.mxu0 0.0
      %5937 = vmatpush1.msra.mxu0 0.0
      %5938 = vmatprep.subr.mxu0 0.0
      %5939 = vmatpush1.msra.mxu0 0.0
      %5940 = vmatprep.subr.mxu0 0.0
      %5941 = vmatpush1.msra.mxu0 0.0
      %5942 = vmatprep.subr.mxu0 0.0
      %5943 = vmatpush1.msra.mxu0 0.0
      %5944 = vmatprep.subr.mxu0 0.0
      %5945 = vmatpush1.msra.mxu0 0.0
      %5946 = vmatprep.subr.mxu0 0.0
      %5947 = vmatpush1.msra.mxu0 0.0
      %5948 = vmatprep.subr.mxu0 0.0
      %5949 = vmatpush1.msra.mxu0 0.0
      %5950 = vmatprep.subr.mxu0 0.0
      %5951 = vmatpush1.msra.mxu0 0.0
      %5952 = vmatprep.mubr.f32.mxu0 0.0
      %5953 = vmatmul.mubr.f32.gmra.mrb[0].mxu0 %v5839
      %v5954 = vpop.f32.mrb[0].mxu0
      %v5955 = vadd.f32 0.0, %v5954
      %v5956 = vpop.f32.mrb[0].mxu0
      %5957 = vmatprep.mubr.f32.mxu0 0.0
      %5958 = vmatmul.mubr.f32.gmra.mrb[0].mxu0 %v5840
      %v5959 = vpop.f32.mrb[0].mxu0
      %v5960 = vadd.f32 0.0, %v5959
      %v5961 = vpop.f32.mrb[0].mxu0
      %5962 = vmatprep.mubr.f32.mxu0 0.0
      %5963 = vmatmul.mubr.f32.gmra.mrb[0].mxu0 %v5841
      %v5964 = vpop.f32.mrb[0].mxu0
      %v5965 = vadd.f32 0.0, %v5964
      %v5966 = vpop.f32.mrb[0].mxu0
      %5967 = vmatprep.mubr.f32.mxu0 0.0
      %5968 = vmatmul.mubr.f32.gmra.mrb[0].mxu0 %v5842
      %v5969 = vpop.f32.mrb[0].mxu0
      %v5970 = vadd.f32 0.0, %v5969
      %v5971 = vpop.f32.mrb[0].mxu0
      %5972 = vmatprep.mubr.f32.mxu0 0.0
      %5973 = vmatmul.mubr.f32.gmra.mrb[0].mxu0 %v5843
      %v5974 = vpop.f32.mrb[0].mxu0
      %v5975 = vadd.f32 0.0, %v5974
      %v5976 = vpop.f32.mrb[0].mxu0
      %5977 = vmatprep.mubr.f32.mxu0 0.0
      %5978 = vmatmul.mubr.f32.gmra.mrb[0].mxu0 %v5844
      %v5979 = vpop.f32.mrb[0].mxu0
      %v5980 = vadd.f32 0.0, %v5979
      %v5981 = vpop.f32.mrb[0].mxu0
      %5982 = vmatprep.mubr.f32.mxu0 0.0
      %5983 = vmatmul.mubr.f32.gmra.mrb[0].mxu0 %v5845
      %v5984 = vpop.f32.mrb[0].mxu0
      %v5985 = vadd.f32 0.0, %v5984
      %v5986 = vpop.f32.mrb[0].mxu0
      %5987 = vmatprep.mubr.f32.mxu0 0.0
      %5988 = vmatmul.mubr.f32.gmra.mrb[0].mxu0 %v5846
      %v5989 = vpop.f32.mrb[0].mxu0
      %v5990 = vadd.f32 0.0, %v5989
      %v5991 = vpop.f32.mrb[0].mxu0
      %5992 = vmatprep.mubr.f32.mxu0 0.0
      %5993 = vmatmul.mubr.f32.gmra.mrb[0].mxu0 %v5847
      %v5994 = vpop.f32.mrb[0].mxu0
      %v5995 = vadd.f32 0.0, %v5994
      %v5996 = vpop.f32.mrb[0].mxu0
      %5997 = vmatprep.mubr.f32.mxu0 0.0
      %5998 = vmatmul.mubr.f32.gmra.mrb[0].mxu0 %v5848
      %v5999 = vpop.f32.mrb[0].mxu0
      %v6000 = vadd.f32 0.0, %v5999
      %v6001 = vpop.f32.mrb[0].mxu0
      %6002 = vmatprep.mubr.f32.mxu0 0.0
      %6003 = vmatmul.mubr.f32.gmra.mrb[0].mxu0 %v5849
      %v6004 = vpop.f32.mrb[0].mxu0
      %v6005 = vadd.f32 0.0, %v6004
      %v6006 = vpop.f32.mrb[0].mxu0
      %6007 = vmatprep.mubr.f32.mxu0 0.0
      %6008 = vmatmul.mubr.f32.gmra.mrb[0].mxu0 %v5850
      %v6009 = vpop.f32.mrb[0].mxu0
      %v6010 = vadd.f32 0.0, %v6009
      %v6011 = vpop.f32.mrb[0].mxu0
      %6012 = vmatprep.mubr.f32.mxu0 0.0
      %6013 = vmatmul.mubr.f32.gmra.mrb[0].mxu0 %v5851
      %v6014 = vpop.f32.mrb[0].mxu0
      %v6015 = vadd.f32 0.0, %v6014
      %v6016 = vpop.f32.mrb[0].mxu0
      %6017 = vmatprep.mubr.f32.mxu0 0.0
      %6018 = vmatmul.mubr.f32.gmra.mrb[0].mxu0 %v5852
      %v6019 = vpop.f32.mrb[0].mxu0
      %v6020 = vadd.f32 0.0, %v6019
      %v6021 = vpop.f32.mrb[0].mxu0
      %6022 = vmatprep.mubr.f32.mxu0 0.0
      %6023 = vmatmul.mubr.f32.gmra.mrb[0].mxu0 %v5853
      %v6024 = vpop.f32.mrb[0].mxu0
      %v6025 = vadd.f32 0.0, %v6024
      %v6026 = vpop.f32.mrb[0].mxu0
      %6027 = vmatprep.mubr.f32.mxu0 0.0
      %6028 = vmatmul.mubr.f32.gmra.mrb[0].mxu0 %v5854
      %v6029 = vpop.f32.mrb[0].mxu0
      %v6030 = vadd.f32 0.0, %v6029
      %v6031 = vpop.f32.mrb[0].mxu0
      %6032 = vmatprep.mubr.f32.mxu0 0.0
      %6033 = vmatmul.mubr.f32.gmra.mrb[0].mxu0 %v5855
      %v6034 = vpop.f32.mrb[0].mxu0
      %v6035 = vadd.f32 0.0, %v6034
      %v6036 = vpop.f32.mrb[0].mxu0
      %6037 = vmatprep.mubr.f32.mxu0 0.0
      %6038 = vmatmul.mubr.f32.gmra.mrb[0].mxu0 %v5856
      %v6039 = vpop.f32.mrb[0].mxu0
      %v6040 = vadd.f32 0.0, %v6039
      %v6041 = vpop.f32.mrb[0].mxu0
      %6042 = vmatprep.mubr.f32.mxu0 0.0
      %6043 = vmatmul.mubr.f32.gmra.mrb[0].mxu0 %v5857
      %v6044 = vpop.f32.mrb[0].mxu0
      %v6045 = vadd.f32 0.0, %v6044
      %v6046 = vpop.f32.mrb[0].mxu0
      %6047 = vmatprep.mubr.f32.mxu0 0.0
      %6048 = vmatmul.mubr.f32.gmra.mrb[0].mxu0 %v5858
      %v6049 = vpop.f32.mrb[0].mxu0
      %v6050 = vadd.f32 0.0, %v6049
      %v6051 = vpop.f32.mrb[0].mxu0
      %6052 = vmatprep.mubr.f32.mxu0 0.0
      %6053 = vmatmul.mubr.f32.gmra.mrb[0].mxu0 %v5859
      %v6054 = vpop.f32.mrb[0].mxu0
      %v6055 = vadd.f32 0.0, %v6054
      %v6056 = vpop.f32.mrb[0].mxu0
      %6057 = vmatprep.mubr.f32.mxu0 0.0
      %6058 = vmatmul.mubr.f32.gmra.mrb[0].mxu0 %v5860
      %v6059 = vpop.f32.mrb[0].mxu0
      %v6060 = vadd.f32 0.0, %v6059
      %v6061 = vpop.f32.mrb[0].mxu0
      %6062 = vmatprep.mubr.f32.mxu0 0.0
      %6063 = vmatmul.mubr.f32.gmra.mrb[0].mxu0 %v5861
      %v6064 = vpop.f32.mrb[0].mxu0
      %v6065 = vadd.f32 0.0, %v6064
      %v6066 = vpop.f32.mrb[0].mxu0
      %6067 = vmatprep.mubr.f32.mxu0 0.0
      %6068 = vmatmul.mubr.f32.gmra.mrb[0].mxu0 %v5862
      %v6069 = vpop.f32.mrb[0].mxu0
      %v6070 = vadd.f32 0.0, %v6069
      %v6071 = vpop.f32.mrb[0].mxu0
      %6072 = vmatprep.mubr.f32.mxu0 0.0
      %6073 = vmatmul.mubr.f32.gmra.mrb[0].mxu0 %v5863
      %v6074 = vpop.f32.mrb[0].mxu0
      %v6075 = vadd.f32 0.0, %v6074
      %v6076 = vpop.f32.mrb[0].mxu0
      %6077 = vmatprep.mubr.f32.mxu0 0.0
      %6078 = vmatmul.mubr.f32.gmra.mrb[0].mxu0 %v5864
      %v6079 = vpop.f32.mrb[0].mxu0
      %v6080 = vadd.f32 0.0, %v6079
      %v6081 = vpop.f32.mrb[0].mxu0
      %6082 = vmatprep.mubr.f32.mxu0 0.0
      %6083 = vmatmul.mubr.f32.gmra.mrb[0].mxu0 %v5865
      %v6084 = vpop.f32.mrb[0].mxu0
      %v6085 = vadd.f32 0.0, %v6084
      %v6086 = vpop.f32.mrb[0].mxu0
      %6087 = vmatprep.mubr.f32.mxu0 0.0
      %6088 = vmatmul.mubr.f32.gmra.mrb[0].mxu0 %v5866
      %v6089 = vpop.f32.mrb[0].mxu0
      %v6090 = vadd.f32 0.0, %v6089
      %v6091 = vpop.f32.mrb[0].mxu0
      %6092 = vmatprep.mubr.f32.mxu0 0.0
      %6093 = vmatmul.mubr.f32.gmra.mrb[0].mxu0 %v5867
      %v6094 = vpop.f32.mrb[0].mxu0
      %v6095 = vadd.f32 0.0, %v6094
      %v6096 = vpop.f32.mrb[0].mxu0
      %6097 = vmatprep.mubr.f32.mxu0 0.0
      %6098 = vmatmul.mubr.f32.gmra.mrb[0].mxu0 %v5868
      %v6099 = vpop.f32.mrb[0].mxu0
      %v6100 = vadd.f32 0.0, %v6099
      %v6101 = vpop.f32.mrb[0].mxu0
      %6102 = vmatprep.mubr.f32.mxu0 0.0
      %6103 = vmatmul.mubr.f32.gmra.mrb[0].mxu0 %v5869
      %v6104 = vpop.f32.mrb[0].mxu0
      %v6105 = vadd.f32 0.0, %v6104
      %v6106 = vpop.f32.mrb[0].mxu0
      %6107 = vmatprep.mubr.f32.mxu0 0.0
      %6108 = vmatmul.mubr.f32.gmra.mrb[0].mxu0 %v5870
      %v6109 = vpop.f32.mrb[0].mxu0
      %v6110 = vadd.f32 0.0, %v6109
      %v6111 = vpop.f32.mrb[0].mxu0
      %6112 = vdwg.mxu0
      %v6113 = vld [vmem:[%s3 + $0xd] sm:$0x1]
      %v6114 = vlaneseq
      %v6115 = vshrl.u32 %v6114, 7
      %v6116 = vsub.s32 0, %v6115
      %v6117 = vrot.slane %v6113, %v6116
      %v6118 = vmul.f32 %v5955, %v6117
      %v6119 = vmul.f32 %v5960, %v6117
      %v6120 = vmul.f32 %v5965, %v6117
      %v6121 = vmul.f32 %v5970, %v6117
      %v6122 = vmul.f32 %v5975, %v6117
      %v6123 = vmul.f32 %v5980, %v6117
      %v6124 = vmul.f32 %v5985, %v6117
      %v6125 = vmul.f32 %v5990, %v6117
      %v6126 = vmul.f32 %v5995, %v6117
      %v6127 = vmul.f32 %v6000, %v6117
      %v6128 = vmul.f32 %v6005, %v6117
      %v6129 = vmul.f32 %v6010, %v6117
      %v6130 = vmul.f32 %v6015, %v6117
      %v6131 = vmul.f32 %v6020, %v6117
      %v6132 = vmul.f32 %v6025, %v6117
      %v6133 = vmul.f32 %v6030, %v6117
      %v6134 = vmul.f32 %v6035, %v6117
      %v6135 = vmul.f32 %v6040, %v6117
      %v6136 = vmul.f32 %v6045, %v6117
      %v6137 = vmul.f32 %v6050, %v6117
      %v6138 = vmul.f32 %v6055, %v6117
      %v6139 = vmul.f32 %v6060, %v6117
      %v6140 = vmul.f32 %v6065, %v6117
      %v6141 = vmul.f32 %v6070, %v6117
      %v6142 = vmul.f32 %v6075, %v6117
      %v6143 = vmul.f32 %v6080, %v6117
      %v6144 = vmul.f32 %v6085, %v6117
      %v6145 = vmul.f32 %v6090, %v6117
      %v6146 = vmul.f32 %v6095, %v6117
      %v6147 = vmul.f32 %v6100, %v6117
      %v6148 = vmul.f32 %v6105, %v6117
      %v6149 = vmul.f32 %v6110, %v6117
      %v6150 = vld [vmem:[%s3 + $0xe] sm:$0x1]
      %v6151 = vlaneseq
      %v6152 = vshrl.u32 %v6151, 7
      %v6153 = vsub.s32 0, %v6152
      %v6154 = vrot.slane %v6150, %v6153
      %v6155 = vadd.f32 %v6118, %v6154
      %v6156 = vadd.f32 %v6119, %v6154
      %v6157 = vadd.f32 %v6120, %v6154
      %v6158 = vadd.f32 %v6121, %v6154
      %v6159 = vadd.f32 %v6122, %v6154
      %v6160 = vadd.f32 %v6123, %v6154
      %v6161 = vadd.f32 %v6124, %v6154
      %v6162 = vadd.f32 %v6125, %v6154
      %v6163 = vadd.f32 %v6126, %v6154
      %v6164 = vadd.f32 %v6127, %v6154
      %v6165 = vadd.f32 %v6128, %v6154
      %v6166 = vadd.f32 %v6129, %v6154
      %v6167 = vadd.f32 %v6130, %v6154
      %v6168 = vadd.f32 %v6131, %v6154
      %v6169 = vadd.f32 %v6132, %v6154
      %v6170 = vadd.f32 %v6133, %v6154
      %v6171 = vadd.f32 %v6134, %v6154
      %v6172 = vadd.f32 %v6135, %v6154
      %v6173 = vadd.f32 %v6136, %v6154
      %v6174 = vadd.f32 %v6137, %v6154
      %v6175 = vadd.f32 %v6138, %v6154
      %v6176 = vadd.f32 %v6139, %v6154
      %v6177 = vadd.f32 %v6140, %v6154
      %v6178 = vadd.f32 %v6141, %v6154
      %v6179 = vadd.f32 %v6142, %v6154
      %v6180 = vadd.f32 %v6143, %v6154
      %v6181 = vadd.f32 %v6144, %v6154
      %v6182 = vadd.f32 %v6145, %v6154
      %v6183 = vadd.f32 %v6146, %v6154
      %v6184 = vadd.f32 %v6147, %v6154
      %v6185 = vadd.f32 %v6148, %v6154
      %v6186 = vadd.f32 %v6149, %v6154
      %v6187 = vmax.f32 %v6155, 0.0
      %v6188 = vmax.f32 %v6156, 0.0
      %v6189 = vmax.f32 %v6157, 0.0
      %v6190 = vmax.f32 %v6158, 0.0
      %v6191 = vmax.f32 %v6159, 0.0
      %v6192 = vmax.f32 %v6160, 0.0
      %v6193 = vmax.f32 %v6161, 0.0
      %v6194 = vmax.f32 %v6162, 0.0
      %v6195 = vmax.f32 %v6163, 0.0
      %v6196 = vmax.f32 %v6164, 0.0
      %v6197 = vmax.f32 %v6165, 0.0
      %v6198 = vmax.f32 %v6166, 0.0
      %v6199 = vmax.f32 %v6167, 0.0
      %v6200 = vmax.f32 %v6168, 0.0
      %v6201 = vmax.f32 %v6169, 0.0
      %v6202 = vmax.f32 %v6170, 0.0
      %v6203 = vmax.f32 %v6171, 0.0
      %v6204 = vmax.f32 %v6172, 0.0
      %v6205 = vmax.f32 %v6173, 0.0
      %v6206 = vmax.f32 %v6174, 0.0
      %v6207 = vmax.f32 %v6175, 0.0
      %v6208 = vmax.f32 %v6176, 0.0
      %v6209 = vmax.f32 %v6177, 0.0
      %v6210 = vmax.f32 %v6178, 0.0
      %v6211 = vmax.f32 %v6179, 0.0
      %v6212 = vmax.f32 %v6180, 0.0
      %v6213 = vmax.f32 %v6181, 0.0
      %v6214 = vmax.f32 %v6182, 0.0
      %v6215 = vmax.f32 %v6183, 0.0
      %v6216 = vmax.f32 %v6184, 0.0
      %v6217 = vmax.f32 %v6185, 0.0
      %v6218 = vmax.f32 %v6186, 0.0
      %v6219 = vand.u32 2147483647, %v6155
      %v6220 = vand.u32 2147483647, %v6156
      %v6221 = vand.u32 2147483647, %v6157
      %v6222 = vand.u32 2147483647, %v6158
      %v6223 = vand.u32 2147483647, %v6159
      %v6224 = vand.u32 2147483647, %v6160
      %v6225 = vand.u32 2147483647, %v6161
      %v6226 = vand.u32 2147483647, %v6162
      %v6227 = vand.u32 2147483647, %v6163
      %v6228 = vand.u32 2147483647, %v6164
      %v6229 = vand.u32 2147483647, %v6165
      %v6230 = vand.u32 2147483647, %v6166
      %v6231 = vand.u32 2147483647, %v6167
      %v6232 = vand.u32 2147483647, %v6168
      %v6233 = vand.u32 2147483647, %v6169
      %v6234 = vand.u32 2147483647, %v6170
      %v6235 = vand.u32 2147483647, %v6171
      %v6236 = vand.u32 2147483647, %v6172
      %v6237 = vand.u32 2147483647, %v6173
      %v6238 = vand.u32 2147483647, %v6174
      %v6239 = vand.u32 2147483647, %v6175
      %v6240 = vand.u32 2147483647, %v6176
      %v6241 = vand.u32 2147483647, %v6177
      %v6242 = vand.u32 2147483647, %v6178
      %v6243 = vand.u32 2147483647, %v6179
      %v6244 = vand.u32 2147483647, %v6180
      %v6245 = vand.u32 2147483647, %v6181
      %v6246 = vand.u32 2147483647, %v6182
      %v6247 = vand.u32 2147483647, %v6183
      %v6248 = vand.u32 2147483647, %v6184
      %v6249 = vand.u32 2147483647, %v6185
      %v6250 = vand.u32 2147483647, %v6186
      %v6251 = vsub.f32 0.0, %v6219
      %v6252 = vsub.f32 0.0, %v6220
      %v6253 = vsub.f32 0.0, %v6221
      %v6254 = vsub.f32 0.0, %v6222
      %v6255 = vsub.f32 0.0, %v6223
      %v6256 = vsub.f32 0.0, %v6224
      %v6257 = vsub.f32 0.0, %v6225
      %v6258 = vsub.f32 0.0, %v6226
      %v6259 = vsub.f32 0.0, %v6227
      %v6260 = vsub.f32 0.0, %v6228
      %v6261 = vsub.f32 0.0, %v6229
      %v6262 = vsub.f32 0.0, %v6230
      %v6263 = vsub.f32 0.0, %v6231
      %v6264 = vsub.f32 0.0, %v6232
      %v6265 = vsub.f32 0.0, %v6233
      %v6266 = vsub.f32 0.0, %v6234
      %v6267 = vsub.f32 0.0, %v6235
      %v6268 = vsub.f32 0.0, %v6236
      %v6269 = vsub.f32 0.0, %v6237
      %v6270 = vsub.f32 0.0, %v6238
      %v6271 = vsub.f32 0.0, %v6239
      %v6272 = vsub.f32 0.0, %v6240
      %v6273 = vsub.f32 0.0, %v6241
      %v6274 = vsub.f32 0.0, %v6242
      %v6275 = vsub.f32 0.0, %v6243
      %v6276 = vsub.f32 0.0, %v6244
      %v6277 = vsub.f32 0.0, %v6245
      %v6278 = vsub.f32 0.0, %v6246
      %v6279 = vsub.f32 0.0, %v6247
      %v6280 = vsub.f32 0.0, %v6248
      %v6281 = vsub.f32 0.0, %v6249
      %v6282 = vsub.f32 0.0, %v6250
      %v6283 = vmul.f32 %v6251, 1.442695
      %v6284 = vpow.pop %v6283
      %v6285 = vmul.f32 %v6252, 1.442695
      %v6286 = vpow.pop %v6285
      %v6287 = vmul.f32 %v6253, 1.442695
      %v6288 = vpow.pop %v6287
      %v6289 = vmul.f32 %v6254, 1.442695
      %v6290 = vpow.pop %v6289
      %v6291 = vmul.f32 %v6255, 1.442695
      %v6292 = vpow.pop %v6291
      %v6293 = vmul.f32 %v6256, 1.442695
      %v6294 = vpow.pop %v6293
      %v6295 = vmul.f32 %v6257, 1.442695
      %v6296 = vpow.pop %v6295
      %v6297 = vmul.f32 %v6258, 1.442695
      %v6298 = vpow.pop %v6297
      %v6299 = vmul.f32 %v6259, 1.442695
      %v6300 = vpow.pop %v6299
      %v6301 = vmul.f32 %v6260, 1.442695
      %v6302 = vpow.pop %v6301
      %v6303 = vmul.f32 %v6261, 1.442695
      %v6304 = vpow.pop %v6303
      %v6305 = vmul.f32 %v6262, 1.442695
      %v6306 = vpow.pop %v6305
      %v6307 = vmul.f32 %v6263, 1.442695
      %v6308 = vpow.pop %v6307
      %v6309 = vmul.f32 %v6264, 1.442695
      %v6310 = vpow.pop %v6309
      %v6311 = vmul.f32 %v6265, 1.442695
      %v6312 = vpow.pop %v6311
      %v6313 = vmul.f32 %v6266, 1.442695
      %v6314 = vpow.pop %v6313
      %v6315 = vmul.f32 %v6267, 1.442695
      %v6316 = vpow.pop %v6315
      %v6317 = vmul.f32 %v6268, 1.442695
      %v6318 = vpow.pop %v6317
      %v6319 = vmul.f32 %v6269, 1.442695
      %v6320 = vpow.pop %v6319
      %v6321 = vmul.f32 %v6270, 1.442695
      %v6322 = vpow.pop %v6321
      %v6323 = vmul.f32 %v6271, 1.442695
      %v6324 = vpow.pop %v6323
      %v6325 = vmul.f32 %v6272, 1.442695
      %v6326 = vpow.pop %v6325
      %v6327 = vmul.f32 %v6273, 1.442695
      %v6328 = vpow.pop %v6327
      %v6329 = vmul.f32 %v6274, 1.442695
      %v6330 = vpow.pop %v6329
      %v6331 = vmul.f32 %v6275, 1.442695
      %v6332 = vpow.pop %v6331
      %v6333 = vmul.f32 %v6276, 1.442695
      %v6334 = vpow.pop %v6333
      %v6335 = vmul.f32 %v6277, 1.442695
      %v6336 = vpow.pop %v6335
      %v6337 = vmul.f32 %v6278, 1.442695
      %v6338 = vpow.pop %v6337
      %v6339 = vmul.f32 %v6279, 1.442695
      %v6340 = vpow.pop %v6339
      %v6341 = vmul.f32 %v6280, 1.442695
      %v6342 = vpow.pop %v6341
      %v6343 = vmul.f32 %v6281, 1.442695
      %v6344 = vpow.pop %v6343
      %v6345 = vmul.f32 %v6282, 1.442695
      %v6346 = vpow.pop %v6345
      %v6347 = vadd.f32 %v6284, 1.0
      %v6348 = vadd.f32 %v6286, 1.0
      %v6349 = vadd.f32 %v6288, 1.0
      %v6350 = vadd.f32 %v6290, 1.0
      %v6351 = vadd.f32 %v6292, 1.0
      %v6352 = vadd.f32 %v6294, 1.0
      %v6353 = vadd.f32 %v6296, 1.0
      %v6354 = vadd.f32 %v6298, 1.0
      %v6355 = vadd.f32 %v6300, 1.0
      %v6356 = vadd.f32 %v6302, 1.0
      %v6357 = vadd.f32 %v6304, 1.0
      %v6358 = vadd.f32 %v6306, 1.0
      %v6359 = vadd.f32 %v6308, 1.0
      %v6360 = vadd.f32 %v6310, 1.0
      %v6361 = vadd.f32 %v6312, 1.0
      %v6362 = vadd.f32 %v6314, 1.0
      %v6363 = vadd.f32 %v6316, 1.0
      %v6364 = vadd.f32 %v6318, 1.0
      %v6365 = vadd.f32 %v6320, 1.0
      %v6366 = vadd.f32 %v6322, 1.0
      %v6367 = vadd.f32 %v6324, 1.0
      %v6368 = vadd.f32 %v6326, 1.0
      %v6369 = vadd.f32 %v6328, 1.0
      %v6370 = vadd.f32 %v6330, 1.0
      %v6371 = vadd.f32 %v6332, 1.0
      %v6372 = vadd.f32 %v6334, 1.0
      %v6373 = vadd.f32 %v6336, 1.0
      %v6374 = vadd.f32 %v6338, 1.0
      %v6375 = vadd.f32 %v6340, 1.0
      %v6376 = vadd.f32 %v6342, 1.0
      %v6377 = vadd.f32 %v6344, 1.0
      %v6378 = vadd.f32 %v6346, 1.0
      %v6379 = vlog2.pop %v6347
      %v6380 = vmul.f32 %v6379, 0.6931472
      %v6381 = vlog2.pop %v6348
      %v6382 = vmul.f32 %v6381, 0.6931472
      %v6383 = vlog2.pop %v6349
      %v6384 = vmul.f32 %v6383, 0.6931472
      %v6385 = vlog2.pop %v6350
      %v6386 = vmul.f32 %v6385, 0.6931472
      %v6387 = vlog2.pop %v6351
      %v6388 = vmul.f32 %v6387, 0.6931472
      %v6389 = vlog2.pop %v6352
      %v6390 = vmul.f32 %v6389, 0.6931472
      %v6391 = vlog2.pop %v6353
      %v6392 = vmul.f32 %v6391, 0.6931472
      %v6393 = vlog2.pop %v6354
      %v6394 = vmul.f32 %v6393, 0.6931472
      %v6395 = vlog2.pop %v6355
      %v6396 = vmul.f32 %v6395, 0.6931472
      %v6397 = vlog2.pop %v6356
      %v6398 = vmul.f32 %v6397, 0.6931472
      %v6399 = vlog2.pop %v6357
      %v6400 = vmul.f32 %v6399, 0.6931472
      %v6401 = vlog2.pop %v6358
      %v6402 = vmul.f32 %v6401, 0.6931472
      %v6403 = vlog2.pop %v6359
      %v6404 = vmul.f32 %v6403, 0.6931472
      %v6405 = vlog2.pop %v6360
      %v6406 = vmul.f32 %v6405, 0.6931472
      %v6407 = vlog2.pop %v6361
      %v6408 = vmul.f32 %v6407, 0.6931472
      %v6409 = vlog2.pop %v6362
      %v6410 = vmul.f32 %v6409, 0.6931472
      %v6411 = vlog2.pop %v6363
      %v6412 = vmul.f32 %v6411, 0.6931472
      %v6413 = vlog2.pop %v6364
      %v6414 = vmul.f32 %v6413, 0.6931472
      %v6415 = vlog2.pop %v6365
      %v6416 = vmul.f32 %v6415, 0.6931472
      %v6417 = vlog2.pop %v6366
      %v6418 = vmul.f32 %v6417, 0.6931472
      %v6419 = vlog2.pop %v6367
      %v6420 = vmul.f32 %v6419, 0.6931472
      %v6421 = vlog2.pop %v6368
      %v6422 = vmul.f32 %v6421, 0.6931472
      %v6423 = vlog2.pop %v6369
      %v6424 = vmul.f32 %v6423, 0.6931472
      %v6425 = vlog2.pop %v6370
      %v6426 = vmul.f32 %v6425, 0.6931472
      %v6427 = vlog2.pop %v6371
      %v6428 = vmul.f32 %v6427, 0.6931472
      %v6429 = vlog2.pop %v6372
      %v6430 = vmul.f32 %v6429, 0.6931472
      %v6431 = vlog2.pop %v6373
      %v6432 = vmul.f32 %v6431, 0.6931472
      %v6433 = vlog2.pop %v6374
      %v6434 = vmul.f32 %v6433, 0.6931472
      %v6435 = vlog2.pop %v6375
      %v6436 = vmul.f32 %v6435, 0.6931472
      %v6437 = vlog2.pop %v6376
      %v6438 = vmul.f32 %v6437, 0.6931472
      %v6439 = vlog2.pop %v6377
      %v6440 = vmul.f32 %v6439, 0.6931472
      %v6441 = vlog2.pop %v6378
      %v6442 = vmul.f32 %v6441, 0.6931472
      %v6443 = vadd.f32 %v6187, %v6380
      %v6444 = vadd.f32 %v6188, %v6382
      %v6445 = vadd.f32 %v6189, %v6384
      %v6446 = vadd.f32 %v6190, %v6386
      %v6447 = vadd.f32 %v6191, %v6388
      %v6448 = vadd.f32 %v6192, %v6390
      %v6449 = vadd.f32 %v6193, %v6392
      %v6450 = vadd.f32 %v6194, %v6394
      %v6451 = vadd.f32 %v6195, %v6396
      %v6452 = vadd.f32 %v6196, %v6398
      %v6453 = vadd.f32 %v6197, %v6400
      %v6454 = vadd.f32 %v6198, %v6402
      %v6455 = vadd.f32 %v6199, %v6404
      %v6456 = vadd.f32 %v6200, %v6406
      %v6457 = vadd.f32 %v6201, %v6408
      %v6458 = vadd.f32 %v6202, %v6410
      %v6459 = vadd.f32 %v6203, %v6412
      %v6460 = vadd.f32 %v6204, %v6414
      %v6461 = vadd.f32 %v6205, %v6416
      %v6462 = vadd.f32 %v6206, %v6418
      %v6463 = vadd.f32 %v6207, %v6420
      %v6464 = vadd.f32 %v6208, %v6422
      %v6465 = vadd.f32 %v6209, %v6424
      %v6466 = vadd.f32 %v6210, %v6426
      %v6467 = vadd.f32 %v6211, %v6428
      %v6468 = vadd.f32 %v6212, %v6430
      %v6469 = vadd.f32 %v6213, %v6432
      %v6470 = vadd.f32 %v6214, %v6434
      %v6471 = vadd.f32 %v6215, %v6436
      %v6472 = vadd.f32 %v6216, %v6438
      %v6473 = vadd.f32 %v6217, %v6440
      %v6474 = vadd.f32 %v6218, %v6442
      %6475 = vst.msk [vmem:[#allocation2 + $0x18] sm:$0xff] %vm250, %v6443
      %6476 = vst.msk [vmem:[#allocation2 + $0x20] sm:$0xff] %vm250, %v6444
      %6477 = vst.msk [vmem:[#allocation2 + $0x28] sm:$0xff] %vm250, %v6445
      %6478 = vst.msk [vmem:[#allocation2 + $0x30] sm:$0xff] %vm250, %v6446
      %6479 = vst.msk [vmem:[#allocation2 + $0x38] sm:$0xff] %vm250, %v6447
      %6480 = vst.msk [vmem:[#allocation2 + $0x40] sm:$0xff] %vm250, %v6448
      %6481 = vst.msk [vmem:[#allocation2 + $0x48] sm:$0xff] %vm250, %v6449
      %6482 = vst.msk [vmem:[#allocation2 + $0x50] sm:$0xff] %vm250, %v6450
      %6483 = vst.msk [vmem:[#allocation2 + $0x58] sm:$0xff] %vm250, %v6451
      %6484 = vst.msk [vmem:[#allocation2 + $0x60] sm:$0xff] %vm250, %v6452
      %6485 = vst.msk [vmem:[#allocation2 + $0x68] sm:$0xff] %vm250, %v6453
      %6486 = vst.msk [vmem:[#allocation2 + $0x70] sm:$0xff] %vm250, %v6454
      %6487 = vst.msk [vmem:[#allocation2 + $0x78] sm:$0xff] %vm250, %v6455
      %6488 = vst.msk [vmem:[#allocation2 + $0x80] sm:$0xff] %vm250, %v6456
      %6489 = vst.msk [vmem:[#allocation2 + $0x88] sm:$0xff] %vm250, %v6457
      %6490 = vst.msk [vmem:[#allocation2 + $0x90] sm:$0xff] %vm250, %v6458
      %6491 = vst.msk [vmem:[#allocation2 + $0x98] sm:$0xff] %vm250, %v6459
      %6492 = vst.msk [vmem:[#allocation2 + $0xa0] sm:$0xff] %vm250, %v6460
      %6493 = vst.msk [vmem:[#allocation2 + $0xa8] sm:$0xff] %vm250, %v6461
      %6494 = vst.msk [vmem:[#allocation2 + $0xb0] sm:$0xff] %vm250, %v6462
      %6495 = vst.msk [vmem:[#allocation2 + $0xb8] sm:$0xff] %vm250, %v6463
      %6496 = vst.msk [vmem:[#allocation2 + $0xc0] sm:$0xff] %vm250, %v6464
      %6497 = vst.msk [vmem:[#allocation2 + $0xc8] sm:$0xff] %vm250, %v6465
      %6498 = vst.msk [vmem:[#allocation2 + $0xd0] sm:$0xff] %vm250, %v6466
      %6499 = vst.msk [vmem:[#allocation2 + $0xd8] sm:$0xff] %vm250, %v6467
      %6500 = vst.msk [vmem:[#allocation2 + $0xe0] sm:$0xff] %vm250, %v6468
      %6501 = vst.msk [vmem:[#allocation2 + $0xe8] sm:$0xff] %vm250, %v6469
      %6502 = vst.msk [vmem:[#allocation2 + $0xf0] sm:$0xff] %vm250, %v6470
      %6503 = vst.msk [vmem:[#allocation2 + $0xf8] sm:$0xff] %vm250, %v6471
      %6504 = vst.msk [vmem:[#allocation2 + $0x100] sm:$0xff] %vm250, %v6472
      %6505 = vst.msk [vmem:[#allocation2 + $0x108] sm:$0xff] %vm250, %v6473
      %6506 = vst.msk [vmem:[#allocation2 + $0x110] sm:$0xff] %vm250, %v6474
      %v6507 = vld [vmem:[#allocation2 + $0x7] sm:$0xff]
      %v6508 = vld [vmem:[#allocation2 + $0xf] sm:$0xff]
      %v6509 = vld [vmem:[#allocation2 + $0x17] sm:$0xff]
      %v6510 = vld [vmem:[#allocation2 + $0x1f] sm:$0xff]
      %v6511 = vld [vmem:[#allocation2 + $0x27] sm:$0xff]
      %v6512 = vld [vmem:[#allocation2 + $0x2f] sm:$0xff]
      %v6513 = vld [vmem:[#allocation2 + $0x37] sm:$0xff]
      %v6514 = vld [vmem:[#allocation2 + $0x3f] sm:$0xff]
      %v6515 = vld [vmem:[#allocation2 + $0x47] sm:$0xff]
      %v6516 = vld [vmem:[#allocation2 + $0x4f] sm:$0xff]
      %v6517 = vld [vmem:[#allocation2 + $0x57] sm:$0xff]
      %v6518 = vld [vmem:[#allocation2 + $0x5f] sm:$0xff]
      %v6519 = vld [vmem:[#allocation2 + $0x67] sm:$0xff]
      %v6520 = vld [vmem:[#allocation2 + $0x6f] sm:$0xff]
      %v6521 = vld [vmem:[#allocation2 + $0x77] sm:$0xff]
      %v6522 = vld [vmem:[#allocation2 + $0x7f] sm:$0xff]
      %v6523 = vld [vmem:[#allocation2 + $0x87] sm:$0xff]
      %v6524 = vld [vmem:[#allocation2 + $0x8f] sm:$0xff]
      %v6525 = vld [vmem:[#allocation2 + $0x97] sm:$0xff]
      %v6526 = vld [vmem:[#allocation2 + $0x9f] sm:$0xff]
      %v6527 = vld [vmem:[#allocation2 + $0xa7] sm:$0xff]
      %v6528 = vld [vmem:[#allocation2 + $0xaf] sm:$0xff]
      %v6529 = vld [vmem:[#allocation2 + $0xb7] sm:$0xff]
      %v6530 = vld [vmem:[#allocation2 + $0xbf] sm:$0xff]
      %v6531 = vld [vmem:[#allocation2 + $0xc7] sm:$0xff]
      %v6532 = vld [vmem:[#allocation2 + $0xcf] sm:$0xff]
      %v6533 = vld [vmem:[#allocation2 + $0xd7] sm:$0xff]
      %v6534 = vld [vmem:[#allocation2 + $0xdf] sm:$0xff]
      %v6535 = vld [vmem:[#allocation2 + $0xe7] sm:$0xff]
      %v6536 = vld [vmem:[#allocation2 + $0xef] sm:$0xff]
      %v6537 = vld [vmem:[#allocation2 + $0xf7] sm:$0xff]
      %v6538 = vld [vmem:[#allocation2 + $0xff] sm:$0xff]
      %v6539 = vmul.f32 %v6507, %v2140
      %v6540 = vmul.f32 %v6508, %v2145
      %v6541 = vmul.f32 %v6509, %v2150
      %v6542 = vmul.f32 %v6510, %v2155
      %v6543 = vmul.f32 %v6511, %v2160
      %v6544 = vmul.f32 %v6512, %v2165
      %v6545 = vmul.f32 %v6513, %v2170
      %v6546 = vmul.f32 %v6514, %v2175
      %v6547 = vmul.f32 %v6515, %v2180
      %v6548 = vmul.f32 %v6516, %v2185
      %v6549 = vmul.f32 %v6517, %v2190
      %v6550 = vmul.f32 %v6518, %v2195
      %v6551 = vmul.f32 %v6519, %v2200
      %v6552 = vmul.f32 %v6520, %v2205
      %v6553 = vmul.f32 %v6521, %v2210
      %v6554 = vmul.f32 %v6522, %v2215
      %v6555 = vmul.f32 %v6523, %v2220
      %v6556 = vmul.f32 %v6524, %v2225
      %v6557 = vmul.f32 %v6525, %v2230
      %v6558 = vmul.f32 %v6526, %v2235
      %v6559 = vmul.f32 %v6527, %v2240
      %v6560 = vmul.f32 %v6528, %v2245
      %v6561 = vmul.f32 %v6529, %v2250
      %v6562 = vmul.f32 %v6530, %v2255
      %v6563 = vmul.f32 %v6531, %v2260
      %v6564 = vmul.f32 %v6532, %v2265
      %v6565 = vmul.f32 %v6533, %v2270
      %v6566 = vmul.f32 %v6534, %v2275
      %v6567 = vmul.f32 %v6535, %v2280
      %v6568 = vmul.f32 %v6536, %v2285
      %v6569 = vmul.f32 %v6537, %v2290
      %v6570 = vmul.f32 %v6538, %v2295
      %6571 = vst.msk [vmem:[#allocation3] sm:$0xff] %vm250, %v6539
      %6572 = vst.msk [vmem:[#allocation3 + $0x28] sm:$0xff] %vm250, %v6540
      %6573 = vst.msk [vmem:[#allocation3 + $0x50] sm:$0xff] %vm250, %v6541
      %6574 = vst.msk [vmem:[#allocation3 + $0x78] sm:$0xff] %vm250, %v6542
      %6575 = vst.msk [vmem:[#allocation3 + $0xa0] sm:$0xff] %vm250, %v6543
      %6576 = vst.msk [vmem:[#allocation3 + $0xc8] sm:$0xff] %vm250, %v6544
      %6577 = vst.msk [vmem:[#allocation3 + $0xf0] sm:$0xff] %vm250, %v6545
      %6578 = vst.msk [vmem:[#allocation3 + $0x118] sm:$0xff] %vm250, %v6546
      %6579 = vst.msk [vmem:[#allocation3 + $0x140] sm:$0xff] %vm250, %v6547
      %6580 = vst.msk [vmem:[#allocation3 + $0x168] sm:$0xff] %vm250, %v6548
      %6581 = vst.msk [vmem:[#allocation3 + $0x190] sm:$0xff] %vm250, %v6549
      %6582 = vst.msk [vmem:[#allocation3 + $0x1b8] sm:$0xff] %vm250, %v6550
      %6583 = vst.msk [vmem:[#allocation3 + $0x1e0] sm:$0xff] %vm250, %v6551
      %6584 = vst.msk [vmem:[#allocation3 + $0x208] sm:$0xff] %vm250, %v6552
      %6585 = vst.msk [vmem:[#allocation3 + $0x230] sm:$0xff] %vm250, %v6553
      %6586 = vst.msk [vmem:[#allocation3 + $0x258] sm:$0xff] %vm250, %v6554
      %6587 = vst.msk [vmem:[#allocation3 + $0x280] sm:$0xff] %vm250, %v6555
      %6588 = vst.msk [vmem:[#allocation3 + $0x2a8] sm:$0xff] %vm250, %v6556
      %6589 = vst.msk [vmem:[#allocation3 + $0x2d0] sm:$0xff] %vm250, %v6557
      %6590 = vst.msk [vmem:[#allocation3 + $0x2f8] sm:$0xff] %vm250, %v6558
      %6591 = vst.msk [vmem:[#allocation3 + $0x320] sm:$0xff] %vm250, %v6559
      %6592 = vst.msk [vmem:[#allocation3 + $0x348] sm:$0xff] %vm250, %v6560
      %6593 = vst.msk [vmem:[#allocation3 + $0x370] sm:$0xff] %vm250, %v6561
      %6594 = vst.msk [vmem:[#allocation3 + $0x398] sm:$0xff] %vm250, %v6562
      %6595 = vst.msk [vmem:[#allocation3 + $0x3c0] sm:$0xff] %vm250, %v6563
      %6596 = vst.msk [vmem:[#allocation3 + $0x3e8] sm:$0xff] %vm250, %v6564
      %6597 = vst.msk [vmem:[#allocation3 + $0x410] sm:$0xff] %vm250, %v6565
      %6598 = vst.msk [vmem:[#allocation3 + $0x438] sm:$0xff] %vm250, %v6566
      %6599 = vst.msk [vmem:[#allocation3 + $0x460] sm:$0xff] %vm250, %v6567
      %6600 = vst.msk [vmem:[#allocation3 + $0x488] sm:$0xff] %vm250, %v6568
      %6601 = vst.msk [vmem:[#allocation3 + $0x4b0] sm:$0xff] %vm250, %v6569
      %6602 = vst.msk [vmem:[#allocation3 + $0x4d8] sm:$0xff] %vm250, %v6570
      %v6603 = vld [vmem:[#allocation2 + $0x8] sm:$0xff]
      %v6604 = vld [vmem:[#allocation2 + $0x10] sm:$0xff]
      %v6605 = vld [vmem:[#allocation2 + $0x18] sm:$0xff]
      %v6606 = vld [vmem:[#allocation2 + $0x20] sm:$0xff]
      %v6607 = vld [vmem:[#allocation2 + $0x28] sm:$0xff]
      %v6608 = vld [vmem:[#allocation2 + $0x30] sm:$0xff]
      %v6609 = vld [vmem:[#allocation2 + $0x38] sm:$0xff]
      %v6610 = vld [vmem:[#allocation2 + $0x40] sm:$0xff]
      %v6611 = vld [vmem:[#allocation2 + $0x48] sm:$0xff]
      %v6612 = vld [vmem:[#allocation2 + $0x50] sm:$0xff]
      %v6613 = vld [vmem:[#allocation2 + $0x58] sm:$0xff]
      %v6614 = vld [vmem:[#allocation2 + $0x60] sm:$0xff]
      %v6615 = vld [vmem:[#allocation2 + $0x68] sm:$0xff]
      %v6616 = vld [vmem:[#allocation2 + $0x70] sm:$0xff]
      %v6617 = vld [vmem:[#allocation2 + $0x78] sm:$0xff]
      %v6618 = vld [vmem:[#allocation2 + $0x80] sm:$0xff]
      %v6619 = vld [vmem:[#allocation2 + $0x88] sm:$0xff]
      %v6620 = vld [vmem:[#allocation2 + $0x90] sm:$0xff]
      %v6621 = vld [vmem:[#allocation2 + $0x98] sm:$0xff]
      %v6622 = vld [vmem:[#allocation2 + $0xa0] sm:$0xff]
      %v6623 = vld [vmem:[#allocation2 + $0xa8] sm:$0xff]
      %v6624 = vld [vmem:[#allocation2 + $0xb0] sm:$0xff]
      %v6625 = vld [vmem:[#allocation2 + $0xb8] sm:$0xff]
      %v6626 = vld [vmem:[#allocation2 + $0xc0] sm:$0xff]
      %v6627 = vld [vmem:[#allocation2 + $0xc8] sm:$0xff]
      %v6628 = vld [vmem:[#allocation2 + $0xd0] sm:$0xff]
      %v6629 = vld [vmem:[#allocation2 + $0xd8] sm:$0xff]
      %v6630 = vld [vmem:[#allocation2 + $0xe0] sm:$0xff]
      %v6631 = vld [vmem:[#allocation2 + $0xe8] sm:$0xff]
      %v6632 = vld [vmem:[#allocation2 + $0xf0] sm:$0xff]
      %v6633 = vld [vmem:[#allocation2 + $0xf8] sm:$0xff]
      %v6634 = vld [vmem:[#allocation2 + $0x100] sm:$0xff]
      %v6635 = vmul.f32 %v6603, %v2395
      %v6636 = vmul.f32 %v6604, %v2399
      %v6637 = vmul.f32 %v6605, %v2403
      %v6638 = vmul.f32 %v6606, %v2407
      %v6639 = vmul.f32 %v6607, %v2411
      %v6640 = vmul.f32 %v6608, %v2415
      %v6641 = vmul.f32 %v6609, %v2419
      %v6642 = vmul.f32 %v6610, %v2423
      %v6643 = vmul.f32 %v6611, %v2427
      %v6644 = vmul.f32 %v6612, %v2431
      %v6645 = vmul.f32 %v6613, %v2435
      %v6646 = vmul.f32 %v6614, %v2439
      %v6647 = vmul.f32 %v6615, %v2443
      %v6648 = vmul.f32 %v6616, %v2447
      %v6649 = vmul.f32 %v6617, %v2451
      %v6650 = vmul.f32 %v6618, %v2455
      %v6651 = vmul.f32 %v6619, %v2459
      %v6652 = vmul.f32 %v6620, %v2463
      %v6653 = vmul.f32 %v6621, %v2467
      %v6654 = vmul.f32 %v6622, %v2471
      %v6655 = vmul.f32 %v6623, %v2475
      %v6656 = vmul.f32 %v6624, %v2479
      %v6657 = vmul.f32 %v6625, %v2483
      %v6658 = vmul.f32 %v6626, %v2487
      %v6659 = vmul.f32 %v6627, %v2491
      %v6660 = vmul.f32 %v6628, %v2495
      %v6661 = vmul.f32 %v6629, %v2499
      %v6662 = vmul.f32 %v6630, %v2503
      %v6663 = vmul.f32 %v6631, %v2507
      %v6664 = vmul.f32 %v6632, %v2511
      %v6665 = vmul.f32 %v6633, %v2515
      %v6666 = vmul.f32 %v6634, %v2519
      %6699 = vrot.lane.b32.xlu0 %v6635, 64
      %v6700 = vpop.permute.xlu0 %6699
      %6701 = vrot.lane.b32.xlu0 %v6636, 64
      %v6702 = vpop.permute.xlu0 %6701
      %6703 = vrot.lane.b32.xlu0 %v6637, 64
      %v6704 = vpop.permute.xlu0 %6703
      %6705 = vrot.lane.b32.xlu0 %v6638, 64
      %v6706 = vpop.permute.xlu0 %6705
      %6707 = vrot.lane.b32.xlu0 %v6639, 64
      %v6708 = vpop.permute.xlu0 %6707
      %6709 = vrot.lane.b32.xlu0 %v6640, 64
      %v6710 = vpop.permute.xlu0 %6709
      %6711 = vrot.lane.b32.xlu0 %v6641, 64
      %v6712 = vpop.permute.xlu0 %6711
      %6713 = vrot.lane.b32.xlu0 %v6642, 64
      %v6714 = vpop.permute.xlu0 %6713
      %6715 = vrot.lane.b32.xlu0 %v6643, 64
      %v6716 = vpop.permute.xlu0 %6715
      %6717 = vrot.lane.b32.xlu0 %v6644, 64
      %v6718 = vpop.permute.xlu0 %6717
      %6719 = vrot.lane.b32.xlu0 %v6645, 64
      %v6720 = vpop.permute.xlu0 %6719
      %6721 = vrot.lane.b32.xlu0 %v6646, 64
      %v6722 = vpop.permute.xlu0 %6721
      %6723 = vrot.lane.b32.xlu0 %v6647, 64
      %v6724 = vpop.permute.xlu0 %6723
      %6725 = vrot.lane.b32.xlu0 %v6648, 64
      %v6726 = vpop.permute.xlu0 %6725
      %6727 = vrot.lane.b32.xlu0 %v6649, 64
      %v6728 = vpop.permute.xlu0 %6727
      %6729 = vrot.lane.b32.xlu0 %v6650, 64
      %v6730 = vpop.permute.xlu0 %6729
      %6731 = vrot.lane.b32.xlu0 %v6651, 64
      %v6732 = vpop.permute.xlu0 %6731
      %6733 = vrot.lane.b32.xlu0 %v6652, 64
      %v6734 = vpop.permute.xlu0 %6733
      %6735 = vrot.lane.b32.xlu0 %v6653, 64
      %v6736 = vpop.permute.xlu0 %6735
      %6737 = vrot.lane.b32.xlu0 %v6654, 64
      %v6738 = vpop.permute.xlu0 %6737
      %6739 = vrot.lane.b32.xlu0 %v6655, 64
      %v6740 = vpop.permute.xlu0 %6739
      %6741 = vrot.lane.b32.xlu0 %v6656, 64
      %v6742 = vpop.permute.xlu0 %6741
      %6743 = vrot.lane.b32.xlu0 %v6657, 64
      %v6744 = vpop.permute.xlu0 %6743
      %6745 = vrot.lane.b32.xlu0 %v6658, 64
      %v6746 = vpop.permute.xlu0 %6745
      %6747 = vrot.lane.b32.xlu0 %v6659, 64
      %v6748 = vpop.permute.xlu0 %6747
      %6749 = vrot.lane.b32.xlu0 %v6660, 64
      %v6750 = vpop.permute.xlu0 %6749
      %6751 = vrot.lane.b32.xlu0 %v6661, 64
      %v6752 = vpop.permute.xlu0 %6751
      %6753 = vrot.lane.b32.xlu0 %v6662, 64
      %v6754 = vpop.permute.xlu0 %6753
      %6755 = vrot.lane.b32.xlu0 %v6663, 64
      %v6756 = vpop.permute.xlu0 %6755
      %6757 = vrot.lane.b32.xlu0 %v6664, 64
      %v6758 = vpop.permute.xlu0 %6757
      %6759 = vrot.lane.b32.xlu0 %v6665, 64
      %v6760 = vpop.permute.xlu0 %6759
      %6761 = vrot.lane.b32.xlu0 %v6666, 64
      %v6762 = vpop.permute.xlu0 %6761
      %6795 = vst.msk [vmem:[#allocation3] sm:$0xff] %vm2681, %v6700
      %6796 = vst.msk [vmem:[#allocation3 + $0x28] sm:$0xff] %vm2681, %v6702
      %6797 = vst.msk [vmem:[#allocation3 + $0x50] sm:$0xff] %vm2681, %v6704
      %6798 = vst.msk [vmem:[#allocation3 + $0x78] sm:$0xff] %vm2681, %v6706
      %6799 = vst.msk [vmem:[#allocation3 + $0xa0] sm:$0xff] %vm2681, %v6708
      %6800 = vst.msk [vmem:[#allocation3 + $0xc8] sm:$0xff] %vm2681, %v6710
      %6801 = vst.msk [vmem:[#allocation3 + $0xf0] sm:$0xff] %vm2681, %v6712
      %6802 = vst.msk [vmem:[#allocation3 + $0x118] sm:$0xff] %vm2681, %v6714
      %6803 = vst.msk [vmem:[#allocation3 + $0x140] sm:$0xff] %vm2681, %v6716
      %6804 = vst.msk [vmem:[#allocation3 + $0x168] sm:$0xff] %vm2681, %v6718
      %6805 = vst.msk [vmem:[#allocation3 + $0x190] sm:$0xff] %vm2681, %v6720
      %6806 = vst.msk [vmem:[#allocation3 + $0x1b8] sm:$0xff] %vm2681, %v6722
      %6807 = vst.msk [vmem:[#allocation3 + $0x1e0] sm:$0xff] %vm2681, %v6724
      %6808 = vst.msk [vmem:[#allocation3 + $0x208] sm:$0xff] %vm2681, %v6726
      %6809 = vst.msk [vmem:[#allocation3 + $0x230] sm:$0xff] %vm2681, %v6728
      %6810 = vst.msk [vmem:[#allocation3 + $0x258] sm:$0xff] %vm2681, %v6730
      %6811 = vst.msk [vmem:[#allocation3 + $0x280] sm:$0xff] %vm2681, %v6732
      %6812 = vst.msk [vmem:[#allocation3 + $0x2a8] sm:$0xff] %vm2681, %v6734
      %6813 = vst.msk [vmem:[#allocation3 + $0x2d0] sm:$0xff] %vm2681, %v6736
      %6814 = vst.msk [vmem:[#allocation3 + $0x2f8] sm:$0xff] %vm2681, %v6738
      %6815 = vst.msk [vmem:[#allocation3 + $0x320] sm:$0xff] %vm2681, %v6740
      %6816 = vst.msk [vmem:[#allocation3 + $0x348] sm:$0xff] %vm2681, %v6742
      %6817 = vst.msk [vmem:[#allocation3 + $0x370] sm:$0xff] %vm2681, %v6744
      %6818 = vst.msk [vmem:[#allocation3 + $0x398] sm:$0xff] %vm2681, %v6746
      %6819 = vst.msk [vmem:[#allocation3 + $0x3c0] sm:$0xff] %vm2681, %v6748
      %6820 = vst.msk [vmem:[#allocation3 + $0x3e8] sm:$0xff] %vm2681, %v6750
      %6821 = vst.msk [vmem:[#allocation3 + $0x410] sm:$0xff] %vm2681, %v6752
      %6822 = vst.msk [vmem:[#allocation3 + $0x438] sm:$0xff] %vm2681, %v6754
      %6823 = vst.msk [vmem:[#allocation3 + $0x460] sm:$0xff] %vm2681, %v6756
      %6824 = vst.msk [vmem:[#allocation3 + $0x488] sm:$0xff] %vm2681, %v6758
      %6825 = vst.msk [vmem:[#allocation3 + $0x4b0] sm:$0xff] %vm2681, %v6760
      %6826 = vst.msk [vmem:[#allocation3 + $0x4d8] sm:$0xff] %vm2681, %v6762
      %v6827 = vld [vmem:[#allocation2 + $0x9] sm:$0xff]
      %v6828 = vld [vmem:[#allocation2 + $0x11] sm:$0xff]
      %v6829 = vld [vmem:[#allocation2 + $0x19] sm:$0xff]
      %v6830 = vld [vmem:[#allocation2 + $0x21] sm:$0xff]
      %v6831 = vld [vmem:[#allocation2 + $0x29] sm:$0xff]
      %v6832 = vld [vmem:[#allocation2 + $0x31] sm:$0xff]
      %v6833 = vld [vmem:[#allocation2 + $0x39] sm:$0xff]
      %v6834 = vld [vmem:[#allocation2 + $0x41] sm:$0xff]
      %v6835 = vld [vmem:[#allocation2 + $0x49] sm:$0xff]
      %v6836 = vld [vmem:[#allocation2 + $0x51] sm:$0xff]
      %v6837 = vld [vmem:[#allocation2 + $0x59] sm:$0xff]
      %v6838 = vld [vmem:[#allocation2 + $0x61] sm:$0xff]
      %v6839 = vld [vmem:[#allocation2 + $0x69] sm:$0xff]
      %v6840 = vld [vmem:[#allocation2 + $0x71] sm:$0xff]
      %v6841 = vld [vmem:[#allocation2 + $0x79] sm:$0xff]
      %v6842 = vld [vmem:[#allocation2 + $0x81] sm:$0xff]
      %v6843 = vld [vmem:[#allocation2 + $0x89] sm:$0xff]
      %v6844 = vld [vmem:[#allocation2 + $0x91] sm:$0xff]
      %v6845 = vld [vmem:[#allocation2 + $0x99] sm:$0xff]
      %v6846 = vld [vmem:[#allocation2 + $0xa1] sm:$0xff]
      %v6847 = vld [vmem:[#allocation2 + $0xa9] sm:$0xff]
      %v6848 = vld [vmem:[#allocation2 + $0xb1] sm:$0xff]
      %v6849 = vld [vmem:[#allocation2 + $0xb9] sm:$0xff]
      %v6850 = vld [vmem:[#allocation2 + $0xc1] sm:$0xff]
      %v6851 = vld [vmem:[#allocation2 + $0xc9] sm:$0xff]
      %v6852 = vld [vmem:[#allocation2 + $0xd1] sm:$0xff]
      %v6853 = vld [vmem:[#allocation2 + $0xd9] sm:$0xff]
      %v6854 = vld [vmem:[#allocation2 + $0xe1] sm:$0xff]
      %v6855 = vld [vmem:[#allocation2 + $0xe9] sm:$0xff]
      %v6856 = vld [vmem:[#allocation2 + $0xf1] sm:$0xff]
      %v6857 = vld [vmem:[#allocation2 + $0xf9] sm:$0xff]
      %v6858 = vld [vmem:[#allocation2 + $0x101] sm:$0xff]
      %v6859 = vmul.f32 %v6827, %v2748
      %v6860 = vmul.f32 %v6828, %v2752
      %v6861 = vmul.f32 %v6829, %v2756
      %v6862 = vmul.f32 %v6830, %v2760
      %v6863 = vmul.f32 %v6831, %v2764
      %v6864 = vmul.f32 %v6832, %v2768
      %v6865 = vmul.f32 %v6833, %v2772
      %v6866 = vmul.f32 %v6834, %v2776
      %v6867 = vmul.f32 %v6835, %v2780
      %v6868 = vmul.f32 %v6836, %v2784
      %v6869 = vmul.f32 %v6837, %v2788
      %v6870 = vmul.f32 %v6838, %v2792
      %v6871 = vmul.f32 %v6839, %v2796
      %v6872 = vmul.f32 %v6840, %v2800
      %v6873 = vmul.f32 %v6841, %v2804
      %v6874 = vmul.f32 %v6842, %v2808
      %v6875 = vmul.f32 %v6843, %v2812
      %v6876 = vmul.f32 %v6844, %v2816
      %v6877 = vmul.f32 %v6845, %v2820
      %v6878 = vmul.f32 %v6846, %v2824
      %v6879 = vmul.f32 %v6847, %v2828
      %v6880 = vmul.f32 %v6848, %v2832
      %v6881 = vmul.f32 %v6849, %v2836
      %v6882 = vmul.f32 %v6850, %v2840
      %v6883 = vmul.f32 %v6851, %v2844
      %v6884 = vmul.f32 %v6852, %v2848
      %v6885 = vmul.f32 %v6853, %v2852
      %v6886 = vmul.f32 %v6854, %v2856
      %v6887 = vmul.f32 %v6855, %v2860
      %v6888 = vmul.f32 %v6856, %v2864
      %v6889 = vmul.f32 %v6857, %v2868
      %v6890 = vmul.f32 %v6858, %v2872
      %6891 = vst.msk [vmem:[#allocation3 + $0x8] sm:$0xff] %vm250, %v6859
      %6892 = vst.msk [vmem:[#allocation3 + $0x30] sm:$0xff] %vm250, %v6860
      %6893 = vst.msk [vmem:[#allocation3 + $0x58] sm:$0xff] %vm250, %v6861
      %6894 = vst.msk [vmem:[#allocation3 + $0x80] sm:$0xff] %vm250, %v6862
      %6895 = vst.msk [vmem:[#allocation3 + $0xa8] sm:$0xff] %vm250, %v6863
      %6896 = vst.msk [vmem:[#allocation3 + $0xd0] sm:$0xff] %vm250, %v6864
      %6897 = vst.msk [vmem:[#allocation3 + $0xf8] sm:$0xff] %vm250, %v6865
      %6898 = vst.msk [vmem:[#allocation3 + $0x120] sm:$0xff] %vm250, %v6866
      %6899 = vst.msk [vmem:[#allocation3 + $0x148] sm:$0xff] %vm250, %v6867
      %6900 = vst.msk [vmem:[#allocation3 + $0x170] sm:$0xff] %vm250, %v6868
      %6901 = vst.msk [vmem:[#allocation3 + $0x198] sm:$0xff] %vm250, %v6869
      %6902 = vst.msk [vmem:[#allocation3 + $0x1c0] sm:$0xff] %vm250, %v6870
      %6903 = vst.msk [vmem:[#allocation3 + $0x1e8] sm:$0xff] %vm250, %v6871
      %6904 = vst.msk [vmem:[#allocation3 + $0x210] sm:$0xff] %vm250, %v6872
      %6905 = vst.msk [vmem:[#allocation3 + $0x238] sm:$0xff] %vm250, %v6873
      %6906 = vst.msk [vmem:[#allocation3 + $0x260] sm:$0xff] %vm250, %v6874
      %6907 = vst.msk [vmem:[#allocation3 + $0x288] sm:$0xff] %vm250, %v6875
      %6908 = vst.msk [vmem:[#allocation3 + $0x2b0] sm:$0xff] %vm250, %v6876
      %6909 = vst.msk [vmem:[#allocation3 + $0x2d8] sm:$0xff] %vm250, %v6877
      %6910 = vst.msk [vmem:[#allocation3 + $0x300] sm:$0xff] %vm250, %v6878
      %6911 = vst.msk [vmem:[#allocation3 + $0x328] sm:$0xff] %vm250, %v6879
      %6912 = vst.msk [vmem:[#allocation3 + $0x350] sm:$0xff] %vm250, %v6880
      %6913 = vst.msk [vmem:[#allocation3 + $0x378] sm:$0xff] %vm250, %v6881
      %6914 = vst.msk [vmem:[#allocation3 + $0x3a0] sm:$0xff] %vm250, %v6882
      %6915 = vst.msk [vmem:[#allocation3 + $0x3c8] sm:$0xff] %vm250, %v6883
      %6916 = vst.msk [vmem:[#allocation3 + $0x3f0] sm:$0xff] %vm250, %v6884
      %6917 = vst.msk [vmem:[#allocation3 + $0x418] sm:$0xff] %vm250, %v6885
      %6918 = vst.msk [vmem:[#allocation3 + $0x440] sm:$0xff] %vm250, %v6886
      %6919 = vst.msk [vmem:[#allocation3 + $0x468] sm:$0xff] %vm250, %v6887
      %6920 = vst.msk [vmem:[#allocation3 + $0x490] sm:$0xff] %vm250, %v6888
      %6921 = vst.msk [vmem:[#allocation3 + $0x4b8] sm:$0xff] %vm250, %v6889
      %6922 = vst.msk [vmem:[#allocation3 + $0x4e0] sm:$0xff] %vm250, %v6890
      %v6923 = vld [vmem:[#allocation2 + $0x17] sm:$0xff]
      %v6924 = vld [vmem:[#allocation2 + $0x1f] sm:$0xff]
      %v6925 = vld [vmem:[#allocation2 + $0x27] sm:$0xff]
      %v6926 = vld [vmem:[#allocation2 + $0x2f] sm:$0xff]
      %v6927 = vld [vmem:[#allocation2 + $0x37] sm:$0xff]
      %v6928 = vld [vmem:[#allocation2 + $0x3f] sm:$0xff]
      %v6929 = vld [vmem:[#allocation2 + $0x47] sm:$0xff]
      %v6930 = vld [vmem:[#allocation2 + $0x4f] sm:$0xff]
      %v6931 = vld [vmem:[#allocation2 + $0x57] sm:$0xff]
      %v6932 = vld [vmem:[#allocation2 + $0x5f] sm:$0xff]
      %v6933 = vld [vmem:[#allocation2 + $0x67] sm:$0xff]
      %v6934 = vld [vmem:[#allocation2 + $0x6f] sm:$0xff]
      %v6935 = vld [vmem:[#allocation2 + $0x77] sm:$0xff]
      %v6936 = vld [vmem:[#allocation2 + $0x7f] sm:$0xff]
      %v6937 = vld [vmem:[#allocation2 + $0x87] sm:$0xff]
      %v6938 = vld [vmem:[#allocation2 + $0x8f] sm:$0xff]
      %v6939 = vld [vmem:[#allocation2 + $0x97] sm:$0xff]
      %v6940 = vld [vmem:[#allocation2 + $0x9f] sm:$0xff]
      %v6941 = vld [vmem:[#allocation2 + $0xa7] sm:$0xff]
      %v6942 = vld [vmem:[#allocation2 + $0xaf] sm:$0xff]
      %v6943 = vld [vmem:[#allocation2 + $0xb7] sm:$0xff]
      %v6944 = vld [vmem:[#allocation2 + $0xbf] sm:$0xff]
      %v6945 = vld [vmem:[#allocation2 + $0xc7] sm:$0xff]
      %v6946 = vld [vmem:[#allocation2 + $0xcf] sm:$0xff]
      %v6947 = vld [vmem:[#allocation2 + $0xd7] sm:$0xff]
      %v6948 = vld [vmem:[#allocation2 + $0xdf] sm:$0xff]
      %v6949 = vld [vmem:[#allocation2 + $0xe7] sm:$0xff]
      %v6950 = vld [vmem:[#allocation2 + $0xef] sm:$0xff]
      %v6951 = vld [vmem:[#allocation2 + $0xf7] sm:$0xff]
      %v6952 = vld [vmem:[#allocation2 + $0xff] sm:$0xff]
      %v6953 = vld [vmem:[#allocation2 + $0x107] sm:$0xff]
      %v6954 = vld [vmem:[#allocation2 + $0x10f] sm:$0xff]
      %v6955 = vmul.f32 %v6923, %v2972
      %v6956 = vmul.f32 %v6924, %v2976
      %v6957 = vmul.f32 %v6925, %v2980
      %v6958 = vmul.f32 %v6926, %v2984
      %v6959 = vmul.f32 %v6927, %v2988
      %v6960 = vmul.f32 %v6928, %v2992
      %v6961 = vmul.f32 %v6929, %v2996
      %v6962 = vmul.f32 %v6930, %v3000
      %v6963 = vmul.f32 %v6931, %v3004
      %v6964 = vmul.f32 %v6932, %v3008
      %v6965 = vmul.f32 %v6933, %v3012
      %v6966 = vmul.f32 %v6934, %v3016
      %v6967 = vmul.f32 %v6935, %v3020
      %v6968 = vmul.f32 %v6936, %v3024
      %v6969 = vmul.f32 %v6937, %v3028
      %v6970 = vmul.f32 %v6938, %v3032
      %v6971 = vmul.f32 %v6939, %v3036
      %v6972 = vmul.f32 %v6940, %v3040
      %v6973 = vmul.f32 %v6941, %v3044
      %v6974 = vmul.f32 %v6942, %v3048
      %v6975 = vmul.f32 %v6943, %v3052
      %v6976 = vmul.f32 %v6944, %v3056
      %v6977 = vmul.f32 %v6945, %v3060
      %v6978 = vmul.f32 %v6946, %v3064
      %v6979 = vmul.f32 %v6947, %v3068
      %v6980 = vmul.f32 %v6948, %v3072
      %v6981 = vmul.f32 %v6949, %v3076
      %v6982 = vmul.f32 %v6950, %v3080
      %v6983 = vmul.f32 %v6951, %v3084
      %v6984 = vmul.f32 %v6952, %v3088
      %v6985 = vmul.f32 %v6953, %v3092
      %v6986 = vmul.f32 %v6954, %v3096
      %7019 = vrot.lane.b32.xlu0 %v6955, 64
      %v7020 = vpop.permute.xlu0 %7019
      %7021 = vrot.lane.b32.xlu0 %v6956, 64
      %v7022 = vpop.permute.xlu0 %7021
      %7023 = vrot.lane.b32.xlu0 %v6957, 64
      %v7024 = vpop.permute.xlu0 %7023
      %7025 = vrot.lane.b32.xlu0 %v6958, 64
      %v7026 = vpop.permute.xlu0 %7025
      %7027 = vrot.lane.b32.xlu0 %v6959, 64
      %v7028 = vpop.permute.xlu0 %7027
      %7029 = vrot.lane.b32.xlu0 %v6960, 64
      %v7030 = vpop.permute.xlu0 %7029
      %7031 = vrot.lane.b32.xlu0 %v6961, 64
      %v7032 = vpop.permute.xlu0 %7031
      %7033 = vrot.lane.b32.xlu0 %v6962, 64
      %v7034 = vpop.permute.xlu0 %7033
      %7035 = vrot.lane.b32.xlu0 %v6963, 64
      %v7036 = vpop.permute.xlu0 %7035
      %7037 = vrot.lane.b32.xlu0 %v6964, 64
      %v7038 = vpop.permute.xlu0 %7037
      %7039 = vrot.lane.b32.xlu0 %v6965, 64
      %v7040 = vpop.permute.xlu0 %7039
      %7041 = vrot.lane.b32.xlu0 %v6966, 64
      %v7042 = vpop.permute.xlu0 %7041
      %7043 = vrot.lane.b32.xlu0 %v6967, 64
      %v7044 = vpop.permute.xlu0 %7043
      %7045 = vrot.lane.b32.xlu0 %v6968, 64
      %v7046 = vpop.permute.xlu0 %7045
      %7047 = vrot.lane.b32.xlu0 %v6969, 64
      %v7048 = vpop.permute.xlu0 %7047
      %7049 = vrot.lane.b32.xlu0 %v6970, 64
      %v7050 = vpop.permute.xlu0 %7049
      %7051 = vrot.lane.b32.xlu0 %v6971, 64
      %v7052 = vpop.permute.xlu0 %7051
      %7053 = vrot.lane.b32.xlu0 %v6972, 64
      %v7054 = vpop.permute.xlu0 %7053
      %7055 = vrot.lane.b32.xlu0 %v6973, 64
      %v7056 = vpop.permute.xlu0 %7055
      %7057 = vrot.lane.b32.xlu0 %v6974, 64
      %v7058 = vpop.permute.xlu0 %7057
      %7059 = vrot.lane.b32.xlu0 %v6975, 64
      %v7060 = vpop.permute.xlu0 %7059
      %7061 = vrot.lane.b32.xlu0 %v6976, 64
      %v7062 = vpop.permute.xlu0 %7061
      %7063 = vrot.lane.b32.xlu0 %v6977, 64
      %v7064 = vpop.permute.xlu0 %7063
      %7065 = vrot.lane.b32.xlu0 %v6978, 64
      %v7066 = vpop.permute.xlu0 %7065
      %7067 = vrot.lane.b32.xlu0 %v6979, 64
      %v7068 = vpop.permute.xlu0 %7067
      %7069 = vrot.lane.b32.xlu0 %v6980, 64
      %v7070 = vpop.permute.xlu0 %7069
      %7071 = vrot.lane.b32.xlu0 %v6981, 64
      %v7072 = vpop.permute.xlu0 %7071
      %7073 = vrot.lane.b32.xlu0 %v6982, 64
      %v7074 = vpop.permute.xlu0 %7073
      %7075 = vrot.lane.b32.xlu0 %v6983, 64
      %v7076 = vpop.permute.xlu0 %7075
      %7077 = vrot.lane.b32.xlu0 %v6984, 64
      %v7078 = vpop.permute.xlu0 %7077
      %7079 = vrot.lane.b32.xlu0 %v6985, 64
      %v7080 = vpop.permute.xlu0 %7079
      %7081 = vrot.lane.b32.xlu0 %v6986, 64
      %v7082 = vpop.permute.xlu0 %7081
      %7115 = vst.msk [vmem:[#allocation3 + $0x8] sm:$0xff] %vm2681, %v7020
      %7116 = vst.msk [vmem:[#allocation3 + $0x30] sm:$0xff] %vm2681, %v7022
      %7117 = vst.msk [vmem:[#allocation3 + $0x58] sm:$0xff] %vm2681, %v7024
      %7118 = vst.msk [vmem:[#allocation3 + $0x80] sm:$0xff] %vm2681, %v7026
      %7119 = vst.msk [vmem:[#allocation3 + $0xa8] sm:$0xff] %vm2681, %v7028
      %7120 = vst.msk [vmem:[#allocation3 + $0xd0] sm:$0xff] %vm2681, %v7030
      %7121 = vst.msk [vmem:[#allocation3 + $0xf8] sm:$0xff] %vm2681, %v7032
      %7122 = vst.msk [vmem:[#allocation3 + $0x120] sm:$0xff] %vm2681, %v7034
      %7123 = vst.msk [vmem:[#allocation3 + $0x148] sm:$0xff] %vm2681, %v7036
      %7124 = vst.msk [vmem:[#allocation3 + $0x170] sm:$0xff] %vm2681, %v7038
      %7125 = vst.msk [vmem:[#allocation3 + $0x198] sm:$0xff] %vm2681, %v7040
      %7126 = vst.msk [vmem:[#allocation3 + $0x1c0] sm:$0xff] %vm2681, %v7042
      %7127 = vst.msk [vmem:[#allocation3 + $0x1e8] sm:$0xff] %vm2681, %v7044
      %7128 = vst.msk [vmem:[#allocation3 + $0x210] sm:$0xff] %vm2681, %v7046
      %7129 = vst.msk [vmem:[#allocation3 + $0x238] sm:$0xff] %vm2681, %v7048
      %7130 = vst.msk [vmem:[#allocation3 + $0x260] sm:$0xff] %vm2681, %v7050
      %7131 = vst.msk [vmem:[#allocation3 + $0x288] sm:$0xff] %vm2681, %v7052
      %7132 = vst.msk [vmem:[#allocation3 + $0x2b0] sm:$0xff] %vm2681, %v7054
      %7133 = vst.msk [vmem:[#allocation3 + $0x2d8] sm:$0xff] %vm2681, %v7056
      %7134 = vst.msk [vmem:[#allocation3 + $0x300] sm:$0xff] %vm2681, %v7058
      %7135 = vst.msk [vmem:[#allocation3 + $0x328] sm:$0xff] %vm2681, %v7060
      %7136 = vst.msk [vmem:[#allocation3 + $0x350] sm:$0xff] %vm2681, %v7062
      %7137 = vst.msk [vmem:[#allocation3 + $0x378] sm:$0xff] %vm2681, %v7064
      %7138 = vst.msk [vmem:[#allocation3 + $0x3a0] sm:$0xff] %vm2681, %v7066
      %7139 = vst.msk [vmem:[#allocation3 + $0x3c8] sm:$0xff] %vm2681, %v7068
      %7140 = vst.msk [vmem:[#allocation3 + $0x3f0] sm:$0xff] %vm2681, %v7070
      %7141 = vst.msk [vmem:[#allocation3 + $0x418] sm:$0xff] %vm2681, %v7072
      %7142 = vst.msk [vmem:[#allocation3 + $0x440] sm:$0xff] %vm2681, %v7074
      %7143 = vst.msk [vmem:[#allocation3 + $0x468] sm:$0xff] %vm2681, %v7076
      %7144 = vst.msk [vmem:[#allocation3 + $0x490] sm:$0xff] %vm2681, %v7078
      %7145 = vst.msk [vmem:[#allocation3 + $0x4b8] sm:$0xff] %vm2681, %v7080
      %7146 = vst.msk [vmem:[#allocation3 + $0x4e0] sm:$0xff] %vm2681, %v7082
      %7147 = vst.msk [vmem:[#allocation3 + $0x10] sm:$0xff] %vm250, %v6443
      %7148 = vst.msk [vmem:[#allocation3 + $0x38] sm:$0xff] %vm250, %v6444
      %7149 = vst.msk [vmem:[#allocation3 + $0x60] sm:$0xff] %vm250, %v6445
      %7150 = vst.msk [vmem:[#allocation3 + $0x88] sm:$0xff] %vm250, %v6446
      %7151 = vst.msk [vmem:[#allocation3 + $0xb0] sm:$0xff] %vm250, %v6447
      %7152 = vst.msk [vmem:[#allocation3 + $0xd8] sm:$0xff] %vm250, %v6448
      %7153 = vst.msk [vmem:[#allocation3 + $0x100] sm:$0xff] %vm250, %v6449
      %7154 = vst.msk [vmem:[#allocation3 + $0x128] sm:$0xff] %vm250, %v6450
      %7155 = vst.msk [vmem:[#allocation3 + $0x150] sm:$0xff] %vm250, %v6451
      %7156 = vst.msk [vmem:[#allocation3 + $0x178] sm:$0xff] %vm250, %v6452
      %7157 = vst.msk [vmem:[#allocation3 + $0x1a0] sm:$0xff] %vm250, %v6453
      %7158 = vst.msk [vmem:[#allocation3 + $0x1c8] sm:$0xff] %vm250, %v6454
      %7159 = vst.msk [vmem:[#allocation3 + $0x1f0] sm:$0xff] %vm250, %v6455
      %7160 = vst.msk [vmem:[#allocation3 + $0x218] sm:$0xff] %vm250, %v6456
      %7161 = vst.msk [vmem:[#allocation3 + $0x240] sm:$0xff] %vm250, %v6457
      %7162 = vst.msk [vmem:[#allocation3 + $0x268] sm:$0xff] %vm250, %v6458
      %7163 = vst.msk [vmem:[#allocation3 + $0x290] sm:$0xff] %vm250, %v6459
      %7164 = vst.msk [vmem:[#allocation3 + $0x2b8] sm:$0xff] %vm250, %v6460
      %7165 = vst.msk [vmem:[#allocation3 + $0x2e0] sm:$0xff] %vm250, %v6461
      %7166 = vst.msk [vmem:[#allocation3 + $0x308] sm:$0xff] %vm250, %v6462
      %7167 = vst.msk [vmem:[#allocation3 + $0x330] sm:$0xff] %vm250, %v6463
      %7168 = vst.msk [vmem:[#allocation3 + $0x358] sm:$0xff] %vm250, %v6464
      %7169 = vst.msk [vmem:[#allocation3 + $0x380] sm:$0xff] %vm250, %v6465
      %7170 = vst.msk [vmem:[#allocation3 + $0x3a8] sm:$0xff] %vm250, %v6466
      %7171 = vst.msk [vmem:[#allocation3 + $0x3d0] sm:$0xff] %vm250, %v6467
      %7172 = vst.msk [vmem:[#allocation3 + $0x3f8] sm:$0xff] %vm250, %v6468
      %7173 = vst.msk [vmem:[#allocation3 + $0x420] sm:$0xff] %vm250, %v6469
      %7174 = vst.msk [vmem:[#allocation3 + $0x448] sm:$0xff] %vm250, %v6470
      %7175 = vst.msk [vmem:[#allocation3 + $0x470] sm:$0xff] %vm250, %v6471
      %7176 = vst.msk [vmem:[#allocation3 + $0x498] sm:$0xff] %vm250, %v6472
      %7177 = vst.msk [vmem:[#allocation3 + $0x4c0] sm:$0xff] %vm250, %v6473
      %7178 = vst.msk [vmem:[#allocation3 + $0x4e8] sm:$0xff] %vm250, %v6474
      %v7179 = vld [vmem:[#allocation2 + $0x19] sm:$0xff]
      %v7180 = vld [vmem:[#allocation2 + $0x21] sm:$0xff]
      %v7181 = vld [vmem:[#allocation2 + $0x29] sm:$0xff]
      %v7182 = vld [vmem:[#allocation2 + $0x31] sm:$0xff]
      %v7183 = vld [vmem:[#allocation2 + $0x39] sm:$0xff]
      %v7184 = vld [vmem:[#allocation2 + $0x41] sm:$0xff]
      %v7185 = vld [vmem:[#allocation2 + $0x49] sm:$0xff]
      %v7186 = vld [vmem:[#allocation2 + $0x51] sm:$0xff]
      %v7187 = vld [vmem:[#allocation2 + $0x59] sm:$0xff]
      %v7188 = vld [vmem:[#allocation2 + $0x61] sm:$0xff]
      %v7189 = vld [vmem:[#allocation2 + $0x69] sm:$0xff]
      %v7190 = vld [vmem:[#allocation2 + $0x71] sm:$0xff]
      %v7191 = vld [vmem:[#allocation2 + $0x79] sm:$0xff]
      %v7192 = vld [vmem:[#allocation2 + $0x81] sm:$0xff]
      %v7193 = vld [vmem:[#allocation2 + $0x89] sm:$0xff]
      %v7194 = vld [vmem:[#allocation2 + $0x91] sm:$0xff]
      %v7195 = vld [vmem:[#allocation2 + $0x99] sm:$0xff]
      %v7196 = vld [vmem:[#allocation2 + $0xa1] sm:$0xff]
      %v7197 = vld [vmem:[#allocation2 + $0xa9] sm:$0xff]
      %v7198 = vld [vmem:[#allocation2 + $0xb1] sm:$0xff]
      %v7199 = vld [vmem:[#allocation2 + $0xb9] sm:$0xff]
      %v7200 = vld [vmem:[#allocation2 + $0xc1] sm:$0xff]
      %v7201 = vld [vmem:[#allocation2 + $0xc9] sm:$0xff]
      %v7202 = vld [vmem:[#allocation2 + $0xd1] sm:$0xff]
      %v7203 = vld [vmem:[#allocation2 + $0xd9] sm:$0xff]
      %v7204 = vld [vmem:[#allocation2 + $0xe1] sm:$0xff]
      %v7205 = vld [vmem:[#allocation2 + $0xe9] sm:$0xff]
      %v7206 = vld [vmem:[#allocation2 + $0xf1] sm:$0xff]
      %v7207 = vld [vmem:[#allocation2 + $0xf9] sm:$0xff]
      %v7208 = vld [vmem:[#allocation2 + $0x101] sm:$0xff]
      %v7209 = vld [vmem:[#allocation2 + $0x109] sm:$0xff]
      %v7210 = vld [vmem:[#allocation2 + $0x111] sm:$0xff]
      %v7211 = vmul.f32 %v7179, %v3356
      %v7212 = vmul.f32 %v7180, %v3360
      %v7213 = vmul.f32 %v7181, %v3364
      %v7214 = vmul.f32 %v7182, %v3368
      %v7215 = vmul.f32 %v7183, %v3372
      %v7216 = vmul.f32 %v7184, %v3376
      %v7217 = vmul.f32 %v7185, %v3380
      %v7218 = vmul.f32 %v7186, %v3384
      %v7219 = vmul.f32 %v7187, %v3388
      %v7220 = vmul.f32 %v7188, %v3392
      %v7221 = vmul.f32 %v7189, %v3396
      %v7222 = vmul.f32 %v7190, %v3400
      %v7223 = vmul.f32 %v7191, %v3404
      %v7224 = vmul.f32 %v7192, %v3408
      %v7225 = vmul.f32 %v7193, %v3412
      %v7226 = vmul.f32 %v7194, %v3416
      %v7227 = vmul.f32 %v7195, %v3420
      %v7228 = vmul.f32 %v7196, %v3424
      %v7229 = vmul.f32 %v7197, %v3428
      %v7230 = vmul.f32 %v7198, %v3432
      %v7231 = vmul.f32 %v7199, %v3436
      %v7232 = vmul.f32 %v7200, %v3440
      %v7233 = vmul.f32 %v7201, %v3444
      %v7234 = vmul.f32 %v7202, %v3448
      %v7235 = vmul.f32 %v7203, %v3452
      %v7236 = vmul.f32 %v7204, %v3456
      %v7237 = vmul.f32 %v7205, %v3460
      %v7238 = vmul.f32 %v7206, %v3464
      %v7239 = vmul.f32 %v7207, %v3468
      %v7240 = vmul.f32 %v7208, %v3472
      %v7241 = vmul.f32 %v7209, %v3476
      %v7242 = vmul.f32 %v7210, %v3480
      %7275 = vrot.lane.b32.xlu0 %v7211, 64
      %v7276 = vpop.permute.xlu0 %7275
      %7277 = vrot.lane.b32.xlu0 %v7212, 64
      %v7278 = vpop.permute.xlu0 %7277
      %7279 = vrot.lane.b32.xlu0 %v7213, 64
      %v7280 = vpop.permute.xlu0 %7279
      %7281 = vrot.lane.b32.xlu0 %v7214, 64
      %v7282 = vpop.permute.xlu0 %7281
      %7283 = vrot.lane.b32.xlu0 %v7215, 64
      %v7284 = vpop.permute.xlu0 %7283
      %7285 = vrot.lane.b32.xlu0 %v7216, 64
      %v7286 = vpop.permute.xlu0 %7285
      %7287 = vrot.lane.b32.xlu0 %v7217, 64
      %v7288 = vpop.permute.xlu0 %7287
      %7289 = vrot.lane.b32.xlu0 %v7218, 64
      %v7290 = vpop.permute.xlu0 %7289
      %7291 = vrot.lane.b32.xlu0 %v7219, 64
      %v7292 = vpop.permute.xlu0 %7291
      %7293 = vrot.lane.b32.xlu0 %v7220, 64
      %v7294 = vpop.permute.xlu0 %7293
      %7295 = vrot.lane.b32.xlu0 %v7221, 64
      %v7296 = vpop.permute.xlu0 %7295
      %7297 = vrot.lane.b32.xlu0 %v7222, 64
      %v7298 = vpop.permute.xlu0 %7297
      %7299 = vrot.lane.b32.xlu0 %v7223, 64
      %v7300 = vpop.permute.xlu0 %7299
      %7301 = vrot.lane.b32.xlu0 %v7224, 64
      %v7302 = vpop.permute.xlu0 %7301
      %7303 = vrot.lane.b32.xlu0 %v7225, 64
      %v7304 = vpop.permute.xlu0 %7303
      %7305 = vrot.lane.b32.xlu0 %v7226, 64
      %v7306 = vpop.permute.xlu0 %7305
      %7307 = vrot.lane.b32.xlu0 %v7227, 64
      %v7308 = vpop.permute.xlu0 %7307
      %7309 = vrot.lane.b32.xlu0 %v7228, 64
      %v7310 = vpop.permute.xlu0 %7309
      %7311 = vrot.lane.b32.xlu0 %v7229, 64
      %v7312 = vpop.permute.xlu0 %7311
      %7313 = vrot.lane.b32.xlu0 %v7230, 64
      %v7314 = vpop.permute.xlu0 %7313
      %7315 = vrot.lane.b32.xlu0 %v7231, 64
      %v7316 = vpop.permute.xlu0 %7315
      %7317 = vrot.lane.b32.xlu0 %v7232, 64
      %v7318 = vpop.permute.xlu0 %7317
      %7319 = vrot.lane.b32.xlu0 %v7233, 64
      %v7320 = vpop.permute.xlu0 %7319
      %7321 = vrot.lane.b32.xlu0 %v7234, 64
      %v7322 = vpop.permute.xlu0 %7321
      %7323 = vrot.lane.b32.xlu0 %v7235, 64
      %v7324 = vpop.permute.xlu0 %7323
      %7325 = vrot.lane.b32.xlu0 %v7236, 64
      %v7326 = vpop.permute.xlu0 %7325
      %7327 = vrot.lane.b32.xlu0 %v7237, 64
      %v7328 = vpop.permute.xlu0 %7327
      %7329 = vrot.lane.b32.xlu0 %v7238, 64
      %v7330 = vpop.permute.xlu0 %7329
      %7331 = vrot.lane.b32.xlu0 %v7239, 64
      %v7332 = vpop.permute.xlu0 %7331
      %7333 = vrot.lane.b32.xlu0 %v7240, 64
      %v7334 = vpop.permute.xlu0 %7333
      %7335 = vrot.lane.b32.xlu0 %v7241, 64
      %v7336 = vpop.permute.xlu0 %7335
      %7337 = vrot.lane.b32.xlu0 %v7242, 64
      %v7338 = vpop.permute.xlu0 %7337
      %7371 = vst.msk [vmem:[#allocation3 + $0x10] sm:$0xff] %vm2681, %v7276
      %7372 = vst.msk [vmem:[#allocation3 + $0x38] sm:$0xff] %vm2681, %v7278
      %7373 = vst.msk [vmem:[#allocation3 + $0x60] sm:$0xff] %vm2681, %v7280
      %7374 = vst.msk [vmem:[#allocation3 + $0x88] sm:$0xff] %vm2681, %v7282
      %7375 = vst.msk [vmem:[#allocation3 + $0xb0] sm:$0xff] %vm2681, %v7284
      %7376 = vst.msk [vmem:[#allocation3 + $0xd8] sm:$0xff] %vm2681, %v7286
      %7377 = vst.msk [vmem:[#allocation3 + $0x100] sm:$0xff] %vm2681, %v7288
      %7378 = vst.msk [vmem:[#allocation3 + $0x128] sm:$0xff] %vm2681, %v7290
      %7379 = vst.msk [vmem:[#allocation3 + $0x150] sm:$0xff] %vm2681, %v7292
      %7380 = vst.msk [vmem:[#allocation3 + $0x178] sm:$0xff] %vm2681, %v7294
      %7381 = vst.msk [vmem:[#allocation3 + $0x1a0] sm:$0xff] %vm2681, %v7296
      %7382 = vst.msk [vmem:[#allocation3 + $0x1c8] sm:$0xff] %vm2681, %v7298
      %7383 = vst.msk [vmem:[#allocation3 + $0x1f0] sm:$0xff] %vm2681, %v7300
      %7384 = vst.msk [vmem:[#allocation3 + $0x218] sm:$0xff] %vm2681, %v7302
      %7385 = vst.msk [vmem:[#allocation3 + $0x240] sm:$0xff] %vm2681, %v7304
      %7386 = vst.msk [vmem:[#allocation3 + $0x268] sm:$0xff] %vm2681, %v7306
      %7387 = vst.msk [vmem:[#allocation3 + $0x290] sm:$0xff] %vm2681, %v7308
      %7388 = vst.msk [vmem:[#allocation3 + $0x2b8] sm:$0xff] %vm2681, %v7310
      %7389 = vst.msk [vmem:[#allocation3 + $0x2e0] sm:$0xff] %vm2681, %v7312
      %7390 = vst.msk [vmem:[#allocation3 + $0x308] sm:$0xff] %vm2681, %v7314
      %7391 = vst.msk [vmem:[#allocation3 + $0x330] sm:$0xff] %vm2681, %v7316
      %7392 = vst.msk [vmem:[#allocation3 + $0x358] sm:$0xff] %vm2681, %v7318
      %7393 = vst.msk [vmem:[#allocation3 + $0x380] sm:$0xff] %vm2681, %v7320
      %7394 = vst.msk [vmem:[#allocation3 + $0x3a8] sm:$0xff] %vm2681, %v7322
      %7395 = vst.msk [vmem:[#allocation3 + $0x3d0] sm:$0xff] %vm2681, %v7324
      %7396 = vst.msk [vmem:[#allocation3 + $0x3f8] sm:$0xff] %vm2681, %v7326
      %7397 = vst.msk [vmem:[#allocation3 + $0x420] sm:$0xff] %vm2681, %v7328
      %7398 = vst.msk [vmem:[#allocation3 + $0x448] sm:$0xff] %vm2681, %v7330
      %7399 = vst.msk [vmem:[#allocation3 + $0x470] sm:$0xff] %vm2681, %v7332
      %7400 = vst.msk [vmem:[#allocation3 + $0x498] sm:$0xff] %vm2681, %v7334
      %7401 = vst.msk [vmem:[#allocation3 + $0x4c0] sm:$0xff] %vm2681, %v7336
      %7402 = vst.msk [vmem:[#allocation3 + $0x4e8] sm:$0xff] %vm2681, %v7338
      %v7403 = vld [vmem:[#allocation2 + $0x27] sm:$0xff]
      %v7404 = vld [vmem:[#allocation2 + $0x2f] sm:$0xff]
      %v7405 = vld [vmem:[#allocation2 + $0x37] sm:$0xff]
      %v7406 = vld [vmem:[#allocation2 + $0x3f] sm:$0xff]
      %v7407 = vld [vmem:[#allocation2 + $0x47] sm:$0xff]
      %v7408 = vld [vmem:[#allocation2 + $0x4f] sm:$0xff]
      %v7409 = vld [vmem:[#allocation2 + $0x57] sm:$0xff]
      %v7410 = vld [vmem:[#allocation2 + $0x5f] sm:$0xff]
      %v7411 = vld [vmem:[#allocation2 + $0x67] sm:$0xff]
      %v7412 = vld [vmem:[#allocation2 + $0x6f] sm:$0xff]
      %v7413 = vld [vmem:[#allocation2 + $0x77] sm:$0xff]
      %v7414 = vld [vmem:[#allocation2 + $0x7f] sm:$0xff]
      %v7415 = vld [vmem:[#allocation2 + $0x87] sm:$0xff]
      %v7416 = vld [vmem:[#allocation2 + $0x8f] sm:$0xff]
      %v7417 = vld [vmem:[#allocation2 + $0x97] sm:$0xff]
      %v7418 = vld [vmem:[#allocation2 + $0x9f] sm:$0xff]
      %v7419 = vld [vmem:[#allocation2 + $0xa7] sm:$0xff]
      %v7420 = vld [vmem:[#allocation2 + $0xaf] sm:$0xff]
      %v7421 = vld [vmem:[#allocation2 + $0xb7] sm:$0xff]
      %v7422 = vld [vmem:[#allocation2 + $0xbf] sm:$0xff]
      %v7423 = vld [vmem:[#allocation2 + $0xc7] sm:$0xff]
      %v7424 = vld [vmem:[#allocation2 + $0xcf] sm:$0xff]
      %v7425 = vld [vmem:[#allocation2 + $0xd7] sm:$0xff]
      %v7426 = vld [vmem:[#allocation2 + $0xdf] sm:$0xff]
      %v7427 = vld [vmem:[#allocation2 + $0xe7] sm:$0xff]
      %v7428 = vld [vmem:[#allocation2 + $0xef] sm:$0xff]
      %v7429 = vld [vmem:[#allocation2 + $0xf7] sm:$0xff]
      %v7430 = vld [vmem:[#allocation2 + $0xff] sm:$0xff]
      %v7431 = vld [vmem:[#allocation2 + $0x107] sm:$0xff]
      %v7432 = vld [vmem:[#allocation2 + $0x10f] sm:$0xff]
      %v7433 = vld [vmem:[#allocation2 + $0x117] sm:$0xff]
      %v7434 = vld [vmem:[#allocation2 + $0x11f] sm:$0xff]
      %v7435 = vmul.f32 %v7403, %v3708
      %v7436 = vmul.f32 %v7404, %v3712
      %v7437 = vmul.f32 %v7405, %v3716
      %v7438 = vmul.f32 %v7406, %v3720
      %v7439 = vmul.f32 %v7407, %v3724
      %v7440 = vmul.f32 %v7408, %v3728
      %v7441 = vmul.f32 %v7409, %v3732
      %v7442 = vmul.f32 %v7410, %v3736
      %v7443 = vmul.f32 %v7411, %v3740
      %v7444 = vmul.f32 %v7412, %v3744
      %v7445 = vmul.f32 %v7413, %v3748
      %v7446 = vmul.f32 %v7414, %v3752
      %v7447 = vmul.f32 %v7415, %v3756
      %v7448 = vmul.f32 %v7416, %v3760
      %v7449 = vmul.f32 %v7417, %v3764
      %v7450 = vmul.f32 %v7418, %v3768
      %v7451 = vmul.f32 %v7419, %v3772
      %v7452 = vmul.f32 %v7420, %v3776
      %v7453 = vmul.f32 %v7421, %v3780
      %v7454 = vmul.f32 %v7422, %v3784
      %v7455 = vmul.f32 %v7423, %v3788
      %v7456 = vmul.f32 %v7424, %v3792
      %v7457 = vmul.f32 %v7425, %v3796
      %v7458 = vmul.f32 %v7426, %v3800
      %v7459 = vmul.f32 %v7427, %v3804
      %v7460 = vmul.f32 %v7428, %v3808
      %v7461 = vmul.f32 %v7429, %v3812
      %v7462 = vmul.f32 %v7430, %v3816
      %v7463 = vmul.f32 %v7431, %v3820
      %v7464 = vmul.f32 %v7432, %v3824
      %v7465 = vmul.f32 %v7433, %v3828
      %v7466 = vmul.f32 %v7434, %v3832
      %7467 = vst.msk [vmem:[#allocation3 + $0x18] sm:$0xff] %vm250, %v7435
      %7468 = vst.msk [vmem:[#allocation3 + $0x40] sm:$0xff] %vm250, %v7436
      %7469 = vst.msk [vmem:[#allocation3 + $0x68] sm:$0xff] %vm250, %v7437
      %7470 = vst.msk [vmem:[#allocation3 + $0x90] sm:$0xff] %vm250, %v7438
      %7471 = vst.msk [vmem:[#allocation3 + $0xb8] sm:$0xff] %vm250, %v7439
      %7472 = vst.msk [vmem:[#allocation3 + $0xe0] sm:$0xff] %vm250, %v7440
      %7473 = vst.msk [vmem:[#allocation3 + $0x108] sm:$0xff] %vm250, %v7441
      %7474 = vst.msk [vmem:[#allocation3 + $0x130] sm:$0xff] %vm250, %v7442
      %7475 = vst.msk [vmem:[#allocation3 + $0x158] sm:$0xff] %vm250, %v7443
      %7476 = vst.msk [vmem:[#allocation3 + $0x180] sm:$0xff] %vm250, %v7444
      %7477 = vst.msk [vmem:[#allocation3 + $0x1a8] sm:$0xff] %vm250, %v7445
      %7478 = vst.msk [vmem:[#allocation3 + $0x1d0] sm:$0xff] %vm250, %v7446
      %7479 = vst.msk [vmem:[#allocation3 + $0x1f8] sm:$0xff] %vm250, %v7447
      %7480 = vst.msk [vmem:[#allocation3 + $0x220] sm:$0xff] %vm250, %v7448
      %7481 = vst.msk [vmem:[#allocation3 + $0x248] sm:$0xff] %vm250, %v7449
      %7482 = vst.msk [vmem:[#allocation3 + $0x270] sm:$0xff] %vm250, %v7450
      %7483 = vst.msk [vmem:[#allocation3 + $0x298] sm:$0xff] %vm250, %v7451
      %7484 = vst.msk [vmem:[#allocation3 + $0x2c0] sm:$0xff] %vm250, %v7452
      %7485 = vst.msk [vmem:[#allocation3 + $0x2e8] sm:$0xff] %vm250, %v7453
      %7486 = vst.msk [vmem:[#allocation3 + $0x310] sm:$0xff] %vm250, %v7454
      %7487 = vst.msk [vmem:[#allocation3 + $0x338] sm:$0xff] %vm250, %v7455
      %7488 = vst.msk [vmem:[#allocation3 + $0x360] sm:$0xff] %vm250, %v7456
      %7489 = vst.msk [vmem:[#allocation3 + $0x388] sm:$0xff] %vm250, %v7457
      %7490 = vst.msk [vmem:[#allocation3 + $0x3b0] sm:$0xff] %vm250, %v7458
      %7491 = vst.msk [vmem:[#allocation3 + $0x3d8] sm:$0xff] %vm250, %v7459
      %7492 = vst.msk [vmem:[#allocation3 + $0x400] sm:$0xff] %vm250, %v7460
      %7493 = vst.msk [vmem:[#allocation3 + $0x428] sm:$0xff] %vm250, %v7461
      %7494 = vst.msk [vmem:[#allocation3 + $0x450] sm:$0xff] %vm250, %v7462
      %7495 = vst.msk [vmem:[#allocation3 + $0x478] sm:$0xff] %vm250, %v7463
      %7496 = vst.msk [vmem:[#allocation3 + $0x4a0] sm:$0xff] %vm250, %v7464
      %7497 = vst.msk [vmem:[#allocation3 + $0x4c8] sm:$0xff] %vm250, %v7465
      %7498 = vst.msk [vmem:[#allocation3 + $0x4f0] sm:$0xff] %vm250, %v7466
      %v7499 = vld [vmem:[#allocation2 + $0x28] sm:$0xff]
      %v7500 = vld [vmem:[#allocation2 + $0x30] sm:$0xff]
      %v7501 = vld [vmem:[#allocation2 + $0x38] sm:$0xff]
      %v7502 = vld [vmem:[#allocation2 + $0x40] sm:$0xff]
      %v7503 = vld [vmem:[#allocation2 + $0x48] sm:$0xff]
      %v7504 = vld [vmem:[#allocation2 + $0x50] sm:$0xff]
      %v7505 = vld [vmem:[#allocation2 + $0x58] sm:$0xff]
      %v7506 = vld [vmem:[#allocation2 + $0x60] sm:$0xff]
      %v7507 = vld [vmem:[#allocation2 + $0x68] sm:$0xff]
      %v7508 = vld [vmem:[#allocation2 + $0x70] sm:$0xff]
      %v7509 = vld [vmem:[#allocation2 + $0x78] sm:$0xff]
      %v7510 = vld [vmem:[#allocation2 + $0x80] sm:$0xff]
      %v7511 = vld [vmem:[#allocation2 + $0x88] sm:$0xff]
      %v7512 = vld [vmem:[#allocation2 + $0x90] sm:$0xff]
      %v7513 = vld [vmem:[#allocation2 + $0x98] sm:$0xff]
      %v7514 = vld [vmem:[#allocation2 + $0xa0] sm:$0xff]
      %v7515 = vld [vmem:[#allocation2 + $0xa8] sm:$0xff]
      %v7516 = vld [vmem:[#allocation2 + $0xb0] sm:$0xff]
      %v7517 = vld [vmem:[#allocation2 + $0xb8] sm:$0xff]
      %v7518 = vld [vmem:[#allocation2 + $0xc0] sm:$0xff]
      %v7519 = vld [vmem:[#allocation2 + $0xc8] sm:$0xff]
      %v7520 = vld [vmem:[#allocation2 + $0xd0] sm:$0xff]
      %v7521 = vld [vmem:[#allocation2 + $0xd8] sm:$0xff]
      %v7522 = vld [vmem:[#allocation2 + $0xe0] sm:$0xff]
      %v7523 = vld [vmem:[#allocation2 + $0xe8] sm:$0xff]
      %v7524 = vld [vmem:[#allocation2 + $0xf0] sm:$0xff]
      %v7525 = vld [vmem:[#allocation2 + $0xf8] sm:$0xff]
      %v7526 = vld [vmem:[#allocation2 + $0x100] sm:$0xff]
      %v7527 = vld [vmem:[#allocation2 + $0x108] sm:$0xff]
      %v7528 = vld [vmem:[#allocation2 + $0x110] sm:$0xff]
      %v7529 = vld [vmem:[#allocation2 + $0x118] sm:$0xff]
      %v7530 = vld [vmem:[#allocation2 + $0x120] sm:$0xff]
      %v7531 = vmul.f32 %v7499, %v3932
      %v7532 = vmul.f32 %v7500, %v3936
      %v7533 = vmul.f32 %v7501, %v3940
      %v7534 = vmul.f32 %v7502, %v3944
      %v7535 = vmul.f32 %v7503, %v3948
      %v7536 = vmul.f32 %v7504, %v3952
      %v7537 = vmul.f32 %v7505, %v3956
      %v7538 = vmul.f32 %v7506, %v3960
      %v7539 = vmul.f32 %v7507, %v3964
      %v7540 = vmul.f32 %v7508, %v3968
      %v7541 = vmul.f32 %v7509, %v3972
      %v7542 = vmul.f32 %v7510, %v3976
      %v7543 = vmul.f32 %v7511, %v3980
      %v7544 = vmul.f32 %v7512, %v3984
      %v7545 = vmul.f32 %v7513, %v3988
      %v7546 = vmul.f32 %v7514, %v3992
      %v7547 = vmul.f32 %v7515, %v3996
      %v7548 = vmul.f32 %v7516, %v4000
      %v7549 = vmul.f32 %v7517, %v4004
      %v7550 = vmul.f32 %v7518, %v4008
      %v7551 = vmul.f32 %v7519, %v4012
      %v7552 = vmul.f32 %v7520, %v4016
      %v7553 = vmul.f32 %v7521, %v4020
      %v7554 = vmul.f32 %v7522, %v4024
      %v7555 = vmul.f32 %v7523, %v4028
      %v7556 = vmul.f32 %v7524, %v4032
      %v7557 = vmul.f32 %v7525, %v4036
      %v7558 = vmul.f32 %v7526, %v4040
      %v7559 = vmul.f32 %v7527, %v4044
      %v7560 = vmul.f32 %v7528, %v4048
      %v7561 = vmul.f32 %v7529, %v4052
      %v7562 = vmul.f32 %v7530, %v4056
      %7595 = vrot.lane.b32.xlu0 %v7531, 64
      %v7596 = vpop.permute.xlu0 %7595
      %7597 = vrot.lane.b32.xlu0 %v7532, 64
      %v7598 = vpop.permute.xlu0 %7597
      %7599 = vrot.lane.b32.xlu0 %v7533, 64
      %v7600 = vpop.permute.xlu0 %7599
      %7601 = vrot.lane.b32.xlu0 %v7534, 64
      %v7602 = vpop.permute.xlu0 %7601
      %7603 = vrot.lane.b32.xlu0 %v7535, 64
      %v7604 = vpop.permute.xlu0 %7603
      %7605 = vrot.lane.b32.xlu0 %v7536, 64
      %v7606 = vpop.permute.xlu0 %7605
      %7607 = vrot.lane.b32.xlu0 %v7537, 64
      %v7608 = vpop.permute.xlu0 %7607
      %7609 = vrot.lane.b32.xlu0 %v7538, 64
      %v7610 = vpop.permute.xlu0 %7609
      %7611 = vrot.lane.b32.xlu0 %v7539, 64
      %v7612 = vpop.permute.xlu0 %7611
      %7613 = vrot.lane.b32.xlu0 %v7540, 64
      %v7614 = vpop.permute.xlu0 %7613
      %7615 = vrot.lane.b32.xlu0 %v7541, 64
      %v7616 = vpop.permute.xlu0 %7615
      %7617 = vrot.lane.b32.xlu0 %v7542, 64
      %v7618 = vpop.permute.xlu0 %7617
      %7619 = vrot.lane.b32.xlu0 %v7543, 64
      %v7620 = vpop.permute.xlu0 %7619
      %7621 = vrot.lane.b32.xlu0 %v7544, 64
      %v7622 = vpop.permute.xlu0 %7621
      %7623 = vrot.lane.b32.xlu0 %v7545, 64
      %v7624 = vpop.permute.xlu0 %7623
      %7625 = vrot.lane.b32.xlu0 %v7546, 64
      %v7626 = vpop.permute.xlu0 %7625
      %7627 = vrot.lane.b32.xlu0 %v7547, 64
      %v7628 = vpop.permute.xlu0 %7627
      %7629 = vrot.lane.b32.xlu0 %v7548, 64
      %v7630 = vpop.permute.xlu0 %7629
      %7631 = vrot.lane.b32.xlu0 %v7549, 64
      %v7632 = vpop.permute.xlu0 %7631
      %7633 = vrot.lane.b32.xlu0 %v7550, 64
      %v7634 = vpop.permute.xlu0 %7633
      %7635 = vrot.lane.b32.xlu0 %v7551, 64
      %v7636 = vpop.permute.xlu0 %7635
      %7637 = vrot.lane.b32.xlu0 %v7552, 64
      %v7638 = vpop.permute.xlu0 %7637
      %7639 = vrot.lane.b32.xlu0 %v7553, 64
      %v7640 = vpop.permute.xlu0 %7639
      %7641 = vrot.lane.b32.xlu0 %v7554, 64
      %v7642 = vpop.permute.xlu0 %7641
      %7643 = vrot.lane.b32.xlu0 %v7555, 64
      %v7644 = vpop.permute.xlu0 %7643
      %7645 = vrot.lane.b32.xlu0 %v7556, 64
      %v7646 = vpop.permute.xlu0 %7645
      %7647 = vrot.lane.b32.xlu0 %v7557, 64
      %v7648 = vpop.permute.xlu0 %7647
      %7649 = vrot.lane.b32.xlu0 %v7558, 64
      %v7650 = vpop.permute.xlu0 %7649
      %7651 = vrot.lane.b32.xlu0 %v7559, 64
      %v7652 = vpop.permute.xlu0 %7651
      %7653 = vrot.lane.b32.xlu0 %v7560, 64
      %v7654 = vpop.permute.xlu0 %7653
      %7655 = vrot.lane.b32.xlu0 %v7561, 64
      %v7656 = vpop.permute.xlu0 %7655
      %7657 = vrot.lane.b32.xlu0 %v7562, 64
      %v7658 = vpop.permute.xlu0 %7657
      %7691 = vst.msk [vmem:[#allocation3 + $0x18] sm:$0xff] %vm2681, %v7596
      %7692 = vst.msk [vmem:[#allocation3 + $0x40] sm:$0xff] %vm2681, %v7598
      %7693 = vst.msk [vmem:[#allocation3 + $0x68] sm:$0xff] %vm2681, %v7600
      %7694 = vst.msk [vmem:[#allocation3 + $0x90] sm:$0xff] %vm2681, %v7602
      %7695 = vst.msk [vmem:[#allocation3 + $0xb8] sm:$0xff] %vm2681, %v7604
      %7696 = vst.msk [vmem:[#allocation3 + $0xe0] sm:$0xff] %vm2681, %v7606
      %7697 = vst.msk [vmem:[#allocation3 + $0x108] sm:$0xff] %vm2681, %v7608
      %7698 = vst.msk [vmem:[#allocation3 + $0x130] sm:$0xff] %vm2681, %v7610
      %7699 = vst.msk [vmem:[#allocation3 + $0x158] sm:$0xff] %vm2681, %v7612
      %7700 = vst.msk [vmem:[#allocation3 + $0x180] sm:$0xff] %vm2681, %v7614
      %7701 = vst.msk [vmem:[#allocation3 + $0x1a8] sm:$0xff] %vm2681, %v7616
      %7702 = vst.msk [vmem:[#allocation3 + $0x1d0] sm:$0xff] %vm2681, %v7618
      %7703 = vst.msk [vmem:[#allocation3 + $0x1f8] sm:$0xff] %vm2681, %v7620
      %7704 = vst.msk [vmem:[#allocation3 + $0x220] sm:$0xff] %vm2681, %v7622
      %7705 = vst.msk [vmem:[#allocation3 + $0x248] sm:$0xff] %vm2681, %v7624
      %7706 = vst.msk [vmem:[#allocation3 + $0x270] sm:$0xff] %vm2681, %v7626
      %7707 = vst.msk [vmem:[#allocation3 + $0x298] sm:$0xff] %vm2681, %v7628
      %7708 = vst.msk [vmem:[#allocation3 + $0x2c0] sm:$0xff] %vm2681, %v7630
      %7709 = vst.msk [vmem:[#allocation3 + $0x2e8] sm:$0xff] %vm2681, %v7632
      %7710 = vst.msk [vmem:[#allocation3 + $0x310] sm:$0xff] %vm2681, %v7634
      %7711 = vst.msk [vmem:[#allocation3 + $0x338] sm:$0xff] %vm2681, %v7636
      %7712 = vst.msk [vmem:[#allocation3 + $0x360] sm:$0xff] %vm2681, %v7638
      %7713 = vst.msk [vmem:[#allocation3 + $0x388] sm:$0xff] %vm2681, %v7640
      %7714 = vst.msk [vmem:[#allocation3 + $0x3b0] sm:$0xff] %vm2681, %v7642
      %7715 = vst.msk [vmem:[#allocation3 + $0x3d8] sm:$0xff] %vm2681, %v7644
      %7716 = vst.msk [vmem:[#allocation3 + $0x400] sm:$0xff] %vm2681, %v7646
      %7717 = vst.msk [vmem:[#allocation3 + $0x428] sm:$0xff] %vm2681, %v7648
      %7718 = vst.msk [vmem:[#allocation3 + $0x450] sm:$0xff] %vm2681, %v7650
      %7719 = vst.msk [vmem:[#allocation3 + $0x478] sm:$0xff] %vm2681, %v7652
      %7720 = vst.msk [vmem:[#allocation3 + $0x4a0] sm:$0xff] %vm2681, %v7654
      %7721 = vst.msk [vmem:[#allocation3 + $0x4c8] sm:$0xff] %vm2681, %v7656
      %7722 = vst.msk [vmem:[#allocation3 + $0x4f0] sm:$0xff] %vm2681, %v7658
      %v7723 = vld [vmem:[#allocation2 + $0x29] sm:$0xff]
      %v7724 = vld [vmem:[#allocation2 + $0x31] sm:$0xff]
      %v7725 = vld [vmem:[#allocation2 + $0x39] sm:$0xff]
      %v7726 = vld [vmem:[#allocation2 + $0x41] sm:$0xff]
      %v7727 = vld [vmem:[#allocation2 + $0x49] sm:$0xff]
      %v7728 = vld [vmem:[#allocation2 + $0x51] sm:$0xff]
      %v7729 = vld [vmem:[#allocation2 + $0x59] sm:$0xff]
      %v7730 = vld [vmem:[#allocation2 + $0x61] sm:$0xff]
      %v7731 = vld [vmem:[#allocation2 + $0x69] sm:$0xff]
      %v7732 = vld [vmem:[#allocation2 + $0x71] sm:$0xff]
      %v7733 = vld [vmem:[#allocation2 + $0x79] sm:$0xff]
      %v7734 = vld [vmem:[#allocation2 + $0x81] sm:$0xff]
      %v7735 = vld [vmem:[#allocation2 + $0x89] sm:$0xff]
      %v7736 = vld [vmem:[#allocation2 + $0x91] sm:$0xff]
      %v7737 = vld [vmem:[#allocation2 + $0x99] sm:$0xff]
      %v7738 = vld [vmem:[#allocation2 + $0xa1] sm:$0xff]
      %v7739 = vld [vmem:[#allocation2 + $0xa9] sm:$0xff]
      %v7740 = vld [vmem:[#allocation2 + $0xb1] sm:$0xff]
      %v7741 = vld [vmem:[#allocation2 + $0xb9] sm:$0xff]
      %v7742 = vld [vmem:[#allocation2 + $0xc1] sm:$0xff]
      %v7743 = vld [vmem:[#allocation2 + $0xc9] sm:$0xff]
      %v7744 = vld [vmem:[#allocation2 + $0xd1] sm:$0xff]
      %v7745 = vld [vmem:[#allocation2 + $0xd9] sm:$0xff]
      %v7746 = vld [vmem:[#allocation2 + $0xe1] sm:$0xff]
      %v7747 = vld [vmem:[#allocation2 + $0xe9] sm:$0xff]
      %v7748 = vld [vmem:[#allocation2 + $0xf1] sm:$0xff]
      %v7749 = vld [vmem:[#allocation2 + $0xf9] sm:$0xff]
      %v7750 = vld [vmem:[#allocation2 + $0x101] sm:$0xff]
      %v7751 = vld [vmem:[#allocation2 + $0x109] sm:$0xff]
      %v7752 = vld [vmem:[#allocation2 + $0x111] sm:$0xff]
      %v7753 = vld [vmem:[#allocation2 + $0x119] sm:$0xff]
      %v7754 = vld [vmem:[#allocation2 + $0x121] sm:$0xff]
      %v7755 = vmul.f32 %v7723, %v4284
      %v7756 = vmul.f32 %v7724, %v4288
      %v7757 = vmul.f32 %v7725, %v4292
      %v7758 = vmul.f32 %v7726, %v4296
      %v7759 = vmul.f32 %v7727, %v4300
      %v7760 = vmul.f32 %v7728, %v4304
      %v7761 = vmul.f32 %v7729, %v4308
      %v7762 = vmul.f32 %v7730, %v4312
      %v7763 = vmul.f32 %v7731, %v4316
      %v7764 = vmul.f32 %v7732, %v4320
      %v7765 = vmul.f32 %v7733, %v4324
      %v7766 = vmul.f32 %v7734, %v4328
      %v7767 = vmul.f32 %v7735, %v4332
      %v7768 = vmul.f32 %v7736, %v4336
      %v7769 = vmul.f32 %v7737, %v4340
      %v7770 = vmul.f32 %v7738, %v4344
      %v7771 = vmul.f32 %v7739, %v4348
      %v7772 = vmul.f32 %v7740, %v4352
      %v7773 = vmul.f32 %v7741, %v4356
      %v7774 = vmul.f32 %v7742, %v4360
      %v7775 = vmul.f32 %v7743, %v4364
      %v7776 = vmul.f32 %v7744, %v4368
      %v7777 = vmul.f32 %v7745, %v4372
      %v7778 = vmul.f32 %v7746, %v4376
      %v7779 = vmul.f32 %v7747, %v4380
      %v7780 = vmul.f32 %v7748, %v4384
      %v7781 = vmul.f32 %v7749, %v4388
      %v7782 = vmul.f32 %v7750, %v4392
      %v7783 = vmul.f32 %v7751, %v4396
      %v7784 = vmul.f32 %v7752, %v4400
      %v7785 = vmul.f32 %v7753, %v4404
      %v7786 = vmul.f32 %v7754, %v4408
      %7787 = vst.msk [vmem:[#allocation3 + $0x20] sm:$0xff] %vm250, %v7755
      %7788 = vst.msk [vmem:[#allocation3 + $0x48] sm:$0xff] %vm250, %v7756
      %7789 = vst.msk [vmem:[#allocation3 + $0x70] sm:$0xff] %vm250, %v7757
      %7790 = vst.msk [vmem:[#allocation3 + $0x98] sm:$0xff] %vm250, %v7758
      %7791 = vst.msk [vmem:[#allocation3 + $0xc0] sm:$0xff] %vm250, %v7759
      %7792 = vst.msk [vmem:[#allocation3 + $0xe8] sm:$0xff] %vm250, %v7760
      %7793 = vst.msk [vmem:[#allocation3 + $0x110] sm:$0xff] %vm250, %v7761
      %7794 = vst.msk [vmem:[#allocation3 + $0x138] sm:$0xff] %vm250, %v7762
      %7795 = vst.msk [vmem:[#allocation3 + $0x160] sm:$0xff] %vm250, %v7763
      %7796 = vst.msk [vmem:[#allocation3 + $0x188] sm:$0xff] %vm250, %v7764
      %7797 = vst.msk [vmem:[#allocation3 + $0x1b0] sm:$0xff] %vm250, %v7765
      %7798 = vst.msk [vmem:[#allocation3 + $0x1d8] sm:$0xff] %vm250, %v7766
      %7799 = vst.msk [vmem:[#allocation3 + $0x200] sm:$0xff] %vm250, %v7767
      %7800 = vst.msk [vmem:[#allocation3 + $0x228] sm:$0xff] %vm250, %v7768
      %7801 = vst.msk [vmem:[#allocation3 + $0x250] sm:$0xff] %vm250, %v7769
      %7802 = vst.msk [vmem:[#allocation3 + $0x278] sm:$0xff] %vm250, %v7770
      %7803 = vst.msk [vmem:[#allocation3 + $0x2a0] sm:$0xff] %vm250, %v7771
      %7804 = vst.msk [vmem:[#allocation3 + $0x2c8] sm:$0xff] %vm250, %v7772
      %7805 = vst.msk [vmem:[#allocation3 + $0x2f0] sm:$0xff] %vm250, %v7773
      %7806 = vst.msk [vmem:[#allocation3 + $0x318] sm:$0xff] %vm250, %v7774
      %7807 = vst.msk [vmem:[#allocation3 + $0x340] sm:$0xff] %vm250, %v7775
      %7808 = vst.msk [vmem:[#allocation3 + $0x368] sm:$0xff] %vm250, %v7776
      %7809 = vst.msk [vmem:[#allocation3 + $0x390] sm:$0xff] %vm250, %v7777
      %7810 = vst.msk [vmem:[#allocation3 + $0x3b8] sm:$0xff] %vm250, %v7778
      %7811 = vst.msk [vmem:[#allocation3 + $0x3e0] sm:$0xff] %vm250, %v7779
      %7812 = vst.msk [vmem:[#allocation3 + $0x408] sm:$0xff] %vm250, %v7780
      %7813 = vst.msk [vmem:[#allocation3 + $0x430] sm:$0xff] %vm250, %v7781
      %7814 = vst.msk [vmem:[#allocation3 + $0x458] sm:$0xff] %vm250, %v7782
      %7815 = vst.msk [vmem:[#allocation3 + $0x480] sm:$0xff] %vm250, %v7783
      %7816 = vst.msk [vmem:[#allocation3 + $0x4a8] sm:$0xff] %vm250, %v7784
      %7817 = vst.msk [vmem:[#allocation3 + $0x4d0] sm:$0xff] %vm250, %v7785
      %7818 = vst.msk [vmem:[#allocation3 + $0x4f8] sm:$0xff] %vm250, %v7786
      %v7819 = vld [vmem:[#allocation3] sm:$0xff]
      %v7820 = vld [vmem:[#allocation3 + $0x8] sm:$0xff]
      %v7821 = vld [vmem:[#allocation3 + $0x10] sm:$0xff]
      %v7822 = vld [vmem:[#allocation3 + $0x18] sm:$0xff]
      %v7823 = vld [vmem:[#allocation3 + $0x20] sm:$0xff]
      %v7824 = vld [vmem:[#allocation3 + $0x28] sm:$0xff]
      %v7825 = vld [vmem:[#allocation3 + $0x30] sm:$0xff]
      %v7826 = vld [vmem:[#allocation3 + $0x38] sm:$0xff]
      %v7827 = vld [vmem:[#allocation3 + $0x40] sm:$0xff]
      %v7828 = vld [vmem:[#allocation3 + $0x48] sm:$0xff]
      %v7829 = vld [vmem:[#allocation3 + $0x50] sm:$0xff]
      %v7830 = vld [vmem:[#allocation3 + $0x58] sm:$0xff]
      %v7831 = vld [vmem:[#allocation3 + $0x60] sm:$0xff]
      %v7832 = vld [vmem:[#allocation3 + $0x68] sm:$0xff]
      %v7833 = vld [vmem:[#allocation3 + $0x70] sm:$0xff]
      %v7834 = vld [vmem:[#allocation3 + $0x78] sm:$0xff]
      %v7835 = vld [vmem:[#allocation3 + $0x80] sm:$0xff]
      %v7836 = vld [vmem:[#allocation3 + $0x88] sm:$0xff]
      %v7837 = vld [vmem:[#allocation3 + $0x90] sm:$0xff]
      %v7838 = vld [vmem:[#allocation3 + $0x98] sm:$0xff]
      %v7839 = vld [vmem:[#allocation3 + $0xa0] sm:$0xff]
      %v7840 = vld [vmem:[#allocation3 + $0xa8] sm:$0xff]
      %v7841 = vld [vmem:[#allocation3 + $0xb0] sm:$0xff]
      %v7842 = vld [vmem:[#allocation3 + $0xb8] sm:$0xff]
      %v7843 = vld [vmem:[#allocation3 + $0xc0] sm:$0xff]
      %v7844 = vld [vmem:[#allocation3 + $0xc8] sm:$0xff]
      %v7845 = vld [vmem:[#allocation3 + $0xd0] sm:$0xff]
      %v7846 = vld [vmem:[#allocation3 + $0xd8] sm:$0xff]
      %v7847 = vld [vmem:[#allocation3 + $0xe0] sm:$0xff]
      %v7848 = vld [vmem:[#allocation3 + $0xe8] sm:$0xff]
      %v7849 = vld [vmem:[#allocation3 + $0xf0] sm:$0xff]
      %v7850 = vld [vmem:[#allocation3 + $0xf8] sm:$0xff]
      %v7851 = vld [vmem:[#allocation3 + $0x100] sm:$0xff]
      %v7852 = vld [vmem:[#allocation3 + $0x108] sm:$0xff]
      %v7853 = vld [vmem:[#allocation3 + $0x110] sm:$0xff]
      %v7854 = vld [vmem:[#allocation3 + $0x118] sm:$0xff]
      %v7855 = vld [vmem:[#allocation3 + $0x120] sm:$0xff]
      %v7856 = vld [vmem:[#allocation3 + $0x128] sm:$0xff]
      %v7857 = vld [vmem:[#allocation3 + $0x130] sm:$0xff]
      %v7858 = vld [vmem:[#allocation3 + $0x138] sm:$0xff]
      %v7859 = vld [vmem:[#allocation3 + $0x140] sm:$0xff]
      %v7860 = vld [vmem:[#allocation3 + $0x148] sm:$0xff]
      %v7861 = vld [vmem:[#allocation3 + $0x150] sm:$0xff]
      %v7862 = vld [vmem:[#allocation3 + $0x158] sm:$0xff]
      %v7863 = vld [vmem:[#allocation3 + $0x160] sm:$0xff]
      %v7864 = vld [vmem:[#allocation3 + $0x168] sm:$0xff]
      %v7865 = vld [vmem:[#allocation3 + $0x170] sm:$0xff]
      %v7866 = vld [vmem:[#allocation3 + $0x178] sm:$0xff]
      %v7867 = vld [vmem:[#allocation3 + $0x180] sm:$0xff]
      %v7868 = vld [vmem:[#allocation3 + $0x188] sm:$0xff]
      %v7869 = vld [vmem:[#allocation3 + $0x190] sm:$0xff]
      %v7870 = vld [vmem:[#allocation3 + $0x198] sm:$0xff]
      %v7871 = vld [vmem:[#allocation3 + $0x1a0] sm:$0xff]
      %v7872 = vld [vmem:[#allocation3 + $0x1a8] sm:$0xff]
      %v7873 = vld [vmem:[#allocation3 + $0x1b0] sm:$0xff]
      %v7874 = vld [vmem:[#allocation3 + $0x1b8] sm:$0xff]
      %v7875 = vld [vmem:[#allocation3 + $0x1c0] sm:$0xff]
      %v7876 = vld [vmem:[#allocation3 + $0x1c8] sm:$0xff]
      %v7877 = vld [vmem:[#allocation3 + $0x1d0] sm:$0xff]
      %v7878 = vld [vmem:[#allocation3 + $0x1d8] sm:$0xff]
      %v7879 = vld [vmem:[#allocation3 + $0x1e0] sm:$0xff]
      %v7880 = vld [vmem:[#allocation3 + $0x1e8] sm:$0xff]
      %v7881 = vld [vmem:[#allocation3 + $0x1f0] sm:$0xff]
      %v7882 = vld [vmem:[#allocation3 + $0x1f8] sm:$0xff]
      %v7883 = vld [vmem:[#allocation3 + $0x200] sm:$0xff]
      %v7884 = vld [vmem:[#allocation3 + $0x208] sm:$0xff]
      %v7885 = vld [vmem:[#allocation3 + $0x210] sm:$0xff]
      %v7886 = vld [vmem:[#allocation3 + $0x218] sm:$0xff]
      %v7887 = vld [vmem:[#allocation3 + $0x220] sm:$0xff]
      %v7888 = vld [vmem:[#allocation3 + $0x228] sm:$0xff]
      %v7889 = vld [vmem:[#allocation3 + $0x230] sm:$0xff]
      %v7890 = vld [vmem:[#allocation3 + $0x238] sm:$0xff]
      %v7891 = vld [vmem:[#allocation3 + $0x240] sm:$0xff]
      %v7892 = vld [vmem:[#allocation3 + $0x248] sm:$0xff]
      %v7893 = vld [vmem:[#allocation3 + $0x250] sm:$0xff]
      %v7894 = vld [vmem:[#allocation3 + $0x258] sm:$0xff]
      %v7895 = vld [vmem:[#allocation3 + $0x260] sm:$0xff]
      %v7896 = vld [vmem:[#allocation3 + $0x268] sm:$0xff]
      %v7897 = vld [vmem:[#allocation3 + $0x270] sm:$0xff]
      %v7898 = vld [vmem:[#allocation3 + $0x278] sm:$0xff]
      %v7899 = vld [vmem:[#allocation3 + $0x280] sm:$0xff]
      %v7900 = vld [vmem:[#allocation3 + $0x288] sm:$0xff]
      %v7901 = vld [vmem:[#allocation3 + $0x290] sm:$0xff]
      %v7902 = vld [vmem:[#allocation3 + $0x298] sm:$0xff]
      %v7903 = vld [vmem:[#allocation3 + $0x2a0] sm:$0xff]
      %v7904 = vld [vmem:[#allocation3 + $0x2a8] sm:$0xff]
      %v7905 = vld [vmem:[#allocation3 + $0x2b0] sm:$0xff]
      %v7906 = vld [vmem:[#allocation3 + $0x2b8] sm:$0xff]
      %v7907 = vld [vmem:[#allocation3 + $0x2c0] sm:$0xff]
      %v7908 = vld [vmem:[#allocation3 + $0x2c8] sm:$0xff]
      %v7909 = vld [vmem:[#allocation3 + $0x2d0] sm:$0xff]
      %v7910 = vld [vmem:[#allocation3 + $0x2d8] sm:$0xff]
      %v7911 = vld [vmem:[#allocation3 + $0x2e0] sm:$0xff]
      %v7912 = vld [vmem:[#allocation3 + $0x2e8] sm:$0xff]
      %v7913 = vld [vmem:[#allocation3 + $0x2f0] sm:$0xff]
      %v7914 = vld [vmem:[#allocation3 + $0x2f8] sm:$0xff]
      %v7915 = vld [vmem:[#allocation3 + $0x300] sm:$0xff]
      %v7916 = vld [vmem:[#allocation3 + $0x308] sm:$0xff]
      %v7917 = vld [vmem:[#allocation3 + $0x310] sm:$0xff]
      %v7918 = vld [vmem:[#allocation3 + $0x318] sm:$0xff]
      %v7919 = vld [vmem:[#allocation3 + $0x320] sm:$0xff]
      %v7920 = vld [vmem:[#allocation3 + $0x328] sm:$0xff]
      %v7921 = vld [vmem:[#allocation3 + $0x330] sm:$0xff]
      %v7922 = vld [vmem:[#allocation3 + $0x338] sm:$0xff]
      %v7923 = vld [vmem:[#allocation3 + $0x340] sm:$0xff]
      %v7924 = vld [vmem:[#allocation3 + $0x348] sm:$0xff]
      %v7925 = vld [vmem:[#allocation3 + $0x350] sm:$0xff]
      %v7926 = vld [vmem:[#allocation3 + $0x358] sm:$0xff]
      %v7927 = vld [vmem:[#allocation3 + $0x360] sm:$0xff]
      %v7928 = vld [vmem:[#allocation3 + $0x368] sm:$0xff]
      %v7929 = vld [vmem:[#allocation3 + $0x370] sm:$0xff]
      %v7930 = vld [vmem:[#allocation3 + $0x378] sm:$0xff]
      %v7931 = vld [vmem:[#allocation3 + $0x380] sm:$0xff]
      %v7932 = vld [vmem:[#allocation3 + $0x388] sm:$0xff]
      %v7933 = vld [vmem:[#allocation3 + $0x390] sm:$0xff]
      %v7934 = vld [vmem:[#allocation3 + $0x398] sm:$0xff]
      %v7935 = vld [vmem:[#allocation3 + $0x3a0] sm:$0xff]
      %v7936 = vld [vmem:[#allocation3 + $0x3a8] sm:$0xff]
      %v7937 = vld [vmem:[#allocation3 + $0x3b0] sm:$0xff]
      %v7938 = vld [vmem:[#allocation3 + $0x3b8] sm:$0xff]
      %v7939 = vld [vmem:[#allocation3 + $0x3c0] sm:$0xff]
      %v7940 = vld [vmem:[#allocation3 + $0x3c8] sm:$0xff]
      %v7941 = vld [vmem:[#allocation3 + $0x3d0] sm:$0xff]
      %v7942 = vld [vmem:[#allocation3 + $0x3d8] sm:$0xff]
      %v7943 = vld [vmem:[#allocation3 + $0x3e0] sm:$0xff]
      %v7944 = vld [vmem:[#allocation3 + $0x3e8] sm:$0xff]
      %v7945 = vld [vmem:[#allocation3 + $0x3f0] sm:$0xff]
      %v7946 = vld [vmem:[#allocation3 + $0x3f8] sm:$0xff]
      %v7947 = vld [vmem:[#allocation3 + $0x400] sm:$0xff]
      %v7948 = vld [vmem:[#allocation3 + $0x408] sm:$0xff]
      %v7949 = vld [vmem:[#allocation3 + $0x410] sm:$0xff]
      %v7950 = vld [vmem:[#allocation3 + $0x418] sm:$0xff]
      %v7951 = vld [vmem:[#allocation3 + $0x420] sm:$0xff]
      %v7952 = vld [vmem:[#allocation3 + $0x428] sm:$0xff]
      %v7953 = vld [vmem:[#allocation3 + $0x430] sm:$0xff]
      %v7954 = vld [vmem:[#allocation3 + $0x438] sm:$0xff]
      %v7955 = vld [vmem:[#allocation3 + $0x440] sm:$0xff]
      %v7956 = vld [vmem:[#allocation3 + $0x448] sm:$0xff]
      %v7957 = vld [vmem:[#allocation3 + $0x450] sm:$0xff]
      %v7958 = vld [vmem:[#allocation3 + $0x458] sm:$0xff]
      %v7959 = vld [vmem:[#allocation3 + $0x460] sm:$0xff]
      %v7960 = vld [vmem:[#allocation3 + $0x468] sm:$0xff]
      %v7961 = vld [vmem:[#allocation3 + $0x470] sm:$0xff]
      %v7962 = vld [vmem:[#allocation3 + $0x478] sm:$0xff]
      %v7963 = vld [vmem:[#allocation3 + $0x480] sm:$0xff]
      %v7964 = vld [vmem:[#allocation3 + $0x488] sm:$0xff]
      %v7965 = vld [vmem:[#allocation3 + $0x490] sm:$0xff]
      %v7966 = vld [vmem:[#allocation3 + $0x498] sm:$0xff]
      %v7967 = vld [vmem:[#allocation3 + $0x4a0] sm:$0xff]
      %v7968 = vld [vmem:[#allocation3 + $0x4a8] sm:$0xff]
      %v7969 = vld [vmem:[#allocation3 + $0x4b0] sm:$0xff]
      %v7970 = vld [vmem:[#allocation3 + $0x4b8] sm:$0xff]
      %v7971 = vld [vmem:[#allocation3 + $0x4c0] sm:$0xff]
      %v7972 = vld [vmem:[#allocation3 + $0x4c8] sm:$0xff]
      %v7973 = vld [vmem:[#allocation3 + $0x4d0] sm:$0xff]
      %v7974 = vld [vmem:[#allocation3 + $0x4d8] sm:$0xff]
      %v7975 = vld [vmem:[#allocation3 + $0x4e0] sm:$0xff]
      %v7976 = vld [vmem:[#allocation3 + $0x4e8] sm:$0xff]
      %v7977 = vld [vmem:[#allocation3 + $0x4f0] sm:$0xff]
      %v7978 = vld [vmem:[#allocation3 + $0x4f8] sm:$0xff]
      %s7979 = scalar_lea.vmem %s5, 576
      %v7980 = vld [vmem:[%s7979] sm:$0xff]
      %v7981 = vld [vmem:[%s7979 + $0x8] sm:$0xff]
      %v7982 = vld [vmem:[%s7979 + $0x10] sm:$0xff]
      %v7983 = vld [vmem:[%s7979 + $0x18] sm:$0xff]
      %v7984 = vld [vmem:[%s7979 + $0x20] sm:$0xff]
      %v7985 = vld [vmem:[%s7979 + $0x28] sm:$0xff]
      %v7986 = vld [vmem:[%s7979 + $0x30] sm:$0xff]
      %v7987 = vld [vmem:[%s7979 + $0x38] sm:$0xff]
      %v7988 = vld [vmem:[%s7979 + $0x40] sm:$0xff]
      %v7989 = vld [vmem:[%s7979 + $0x48] sm:$0xff]
      %v7990 = vld [vmem:[%s7979 + $0x50] sm:$0xff]
      %v7991 = vld [vmem:[%s7979 + $0x58] sm:$0xff]
      %v7992 = vld [vmem:[%s7979 + $0x60] sm:$0xff]
      %v7993 = vld [vmem:[%s7979 + $0x68] sm:$0xff]
      %v7994 = vld [vmem:[%s7979 + $0x70] sm:$0xff]
      %v7995 = vld [vmem:[%s7979 + $0x78] sm:$0xff]
      %v7996 = vld [vmem:[%s7979 + $0x80] sm:$0xff]
      %v7997 = vld [vmem:[%s7979 + $0x88] sm:$0xff]
      %v7998 = vld [vmem:[%s7979 + $0x90] sm:$0xff]
      %v7999 = vld [vmem:[%s7979 + $0x98] sm:$0xff]
      %v8000 = vld [vmem:[%s7979 + $0xa0] sm:$0xff]
      %v8001 = vld [vmem:[%s7979 + $0xa8] sm:$0xff]
      %v8002 = vld [vmem:[%s7979 + $0xb0] sm:$0xff]
      %v8003 = vld [vmem:[%s7979 + $0xb8] sm:$0xff]
      %v8004 = vld [vmem:[%s7979 + $0xc0] sm:$0xff]
      %v8005 = vld [vmem:[%s7979 + $0xc8] sm:$0xff]
      %v8006 = vld [vmem:[%s7979 + $0xd0] sm:$0xff]
      %v8007 = vld [vmem:[%s7979 + $0xd8] sm:$0xff]
      %v8008 = vld [vmem:[%s7979 + $0xe0] sm:$0xff]
      %v8009 = vld [vmem:[%s7979 + $0xe8] sm:$0xff]
      %v8010 = vld [vmem:[%s7979 + $0xf0] sm:$0xff]
      %v8011 = vld [vmem:[%s7979 + $0xf8] sm:$0xff]
      %v8012 = vld [vmem:[%s7979 + $0x100] sm:$0xff]
      %v8013 = vld [vmem:[%s7979 + $0x108] sm:$0xff]
      %v8014 = vld [vmem:[%s7979 + $0x110] sm:$0xff]
      %v8015 = vld [vmem:[%s7979 + $0x118] sm:$0xff]
      %v8016 = vld [vmem:[%s7979 + $0x120] sm:$0xff]
      %v8017 = vld [vmem:[%s7979 + $0x128] sm:$0xff]
      %v8018 = vld [vmem:[%s7979 + $0x130] sm:$0xff]
      %v8019 = vld [vmem:[%s7979 + $0x138] sm:$0xff]
      %v8020 = vld [vmem:[%s7979 + $0x140] sm:$0xff]
      %v8021 = vld [vmem:[%s7979 + $0x148] sm:$0xff]
      %v8022 = vld [vmem:[%s7979 + $0x150] sm:$0xff]
      %v8023 = vld [vmem:[%s7979 + $0x158] sm:$0xff]
      %v8024 = vld [vmem:[%s7979 + $0x160] sm:$0xff]
      %v8025 = vld [vmem:[%s7979 + $0x168] sm:$0xff]
      %v8026 = vld [vmem:[%s7979 + $0x170] sm:$0xff]
      %v8027 = vld [vmem:[%s7979 + $0x178] sm:$0xff]
      %v8028 = vld [vmem:[%s7979 + $0x180] sm:$0xff]
      %v8029 = vld [vmem:[%s7979 + $0x188] sm:$0xff]
      %v8030 = vld [vmem:[%s7979 + $0x190] sm:$0xff]
      %v8031 = vld [vmem:[%s7979 + $0x198] sm:$0xff]
      %v8032 = vld [vmem:[%s7979 + $0x1a0] sm:$0xff]
      %v8033 = vld [vmem:[%s7979 + $0x1a8] sm:$0xff]
      %v8034 = vld [vmem:[%s7979 + $0x1b0] sm:$0xff]
      %v8035 = vld [vmem:[%s7979 + $0x1b8] sm:$0xff]
      %v8036 = vld [vmem:[%s7979 + $0x1c0] sm:$0xff]
      %v8037 = vld [vmem:[%s7979 + $0x1c8] sm:$0xff]
      %v8038 = vld [vmem:[%s7979 + $0x1d0] sm:$0xff]
      %v8039 = vld [vmem:[%s7979 + $0x1d8] sm:$0xff]
      %v8040 = vld [vmem:[%s7979 + $0x1e0] sm:$0xff]
      %v8041 = vld [vmem:[%s7979 + $0x1e8] sm:$0xff]
      %v8042 = vld [vmem:[%s7979 + $0x1f0] sm:$0xff]
      %v8043 = vld [vmem:[%s7979 + $0x1f8] sm:$0xff]
      %v8044 = vld [vmem:[%s7979 + $0x200] sm:$0xff]
      %v8045 = vld [vmem:[%s7979 + $0x208] sm:$0xff]
      %v8046 = vld [vmem:[%s7979 + $0x210] sm:$0xff]
      %v8047 = vld [vmem:[%s7979 + $0x218] sm:$0xff]
      %v8048 = vld [vmem:[%s7979 + $0x220] sm:$0xff]
      %v8049 = vld [vmem:[%s7979 + $0x228] sm:$0xff]
      %v8050 = vld [vmem:[%s7979 + $0x230] sm:$0xff]
      %v8051 = vld [vmem:[%s7979 + $0x238] sm:$0xff]
      %v8053 = vsel %vm250, %v7823, 0
      %v8056 = vsel %vm250, %v7828, 0
      %v8059 = vsel %vm250, %v7833, 0
      %v8062 = vsel %vm250, %v7838, 0
      %v8065 = vsel %vm250, %v7843, 0
      %v8068 = vsel %vm250, %v7848, 0
      %v8071 = vsel %vm250, %v7853, 0
      %v8074 = vsel %vm250, %v7858, 0
      %v8077 = vsel %vm250, %v7863, 0
      %v8080 = vsel %vm250, %v7868, 0
      %v8083 = vsel %vm250, %v7873, 0
      %v8086 = vsel %vm250, %v7878, 0
      %v8089 = vsel %vm250, %v7883, 0
      %v8092 = vsel %vm250, %v7888, 0
      %v8095 = vsel %vm250, %v7893, 0
      %v8098 = vsel %vm250, %v7898, 0
      %v8101 = vsel %vm250, %v7903, 0
      %v8104 = vsel %vm250, %v7908, 0
      %v8107 = vsel %vm250, %v7913, 0
      %v8110 = vsel %vm250, %v7918, 0
      %v8113 = vsel %vm250, %v7923, 0
      %v8116 = vsel %vm250, %v7928, 0
      %v8119 = vsel %vm250, %v7933, 0
      %v8122 = vsel %vm250, %v7938, 0
      %v8125 = vsel %vm250, %v7943, 0
      %v8128 = vsel %vm250, %v7948, 0
      %v8131 = vsel %vm250, %v7953, 0
      %v8134 = vsel %vm250, %v7958, 0
      %v8137 = vsel %vm250, %v7963, 0
      %v8140 = vsel %vm250, %v7968, 0
      %v8143 = vsel %vm250, %v7973, 0
      %v8146 = vsel %vm250, %v7978, 0
      %8148 = vmatprep.subr.mxu0 0.0
      %8149 = vmatpush1.msra.mxu0 %v7980
      %8150 = vmatprep.subr.mxu0 0.0
      %8151 = vmatpush1.msra.mxu0 %v7981
      %8152 = vmatprep.subr.mxu0 0.0
      %8153 = vmatpush1.msra.mxu0 %v7982
      %8154 = vmatprep.subr.mxu0 0.0
      %8155 = vmatpush1.msra.mxu0 %v7983
      %8156 = vmatprep.subr.mxu0 0.0
      %8157 = vmatpush1.msra.mxu0 %v7984
      %8158 = vmatprep.subr.mxu0 0.0
      %8159 = vmatpush1.msra.mxu0 %v7985
      %8160 = vmatprep.subr.mxu0 0.0
      %8161 = vmatpush1.msra.mxu0 %v7986
      %8162 = vmatprep.subr.mxu0 0.0
      %8163 = vmatpush1.msra.mxu0 %v7987
      %8164 = vmatprep.subr.mxu0 0.0
      %8165 = vmatpush1.msra.mxu0 %v7988
      %8166 = vmatprep.subr.mxu0 0.0
      %8167 = vmatpush1.msra.mxu0 %v7989
      %8168 = vmatprep.subr.mxu0 0.0
      %8169 = vmatpush1.msra.mxu0 %v7990
      %8170 = vmatprep.subr.mxu0 0.0
      %8171 = vmatpush1.msra.mxu0 %v7991
      %8172 = vmatprep.subr.mxu0 0.0
      %8173 = vmatpush1.msra.mxu0 %v7992
      %8174 = vmatprep.subr.mxu0 0.0
      %8175 = vmatpush1.msra.mxu0 %v7993
      %8176 = vmatprep.subr.mxu0 0.0
      %8177 = vmatpush1.msra.mxu0 %v7994
      %8178 = vmatprep.subr.mxu0 0.0
      %8179 = vmatpush1.msra.mxu0 %v7995
      %8180 = vmatprep.subr.mxu0 0.0
      %8181 = vmatpush1.msra.mxu0 %v7996
      %8182 = vmatprep.subr.mxu0 0.0
      %8183 = vmatpush1.msra.mxu0 %v7997
      %8184 = vmatprep.subr.mxu0 0.0
      %8185 = vmatpush1.msra.mxu0 %v7998
      %8186 = vmatprep.subr.mxu0 0.0
      %8187 = vmatpush1.msra.mxu0 %v7999
      %8188 = vmatprep.subr.mxu0 0.0
      %8189 = vmatpush1.msra.mxu0 %v8000
      %8190 = vmatprep.subr.mxu0 0.0
      %8191 = vmatpush1.msra.mxu0 %v8001
      %8192 = vmatprep.subr.mxu0 0.0
      %8193 = vmatpush1.msra.mxu0 %v8002
      %8194 = vmatprep.subr.mxu0 0.0
      %8195 = vmatpush1.msra.mxu0 %v8003
      %8196 = vmatprep.subr.mxu0 0.0
      %8197 = vmatpush1.msra.mxu0 %v8004
      %8198 = vmatprep.subr.mxu0 0.0
      %8199 = vmatpush1.msra.mxu0 %v8005
      %8200 = vmatprep.subr.mxu0 0.0
      %8201 = vmatpush1.msra.mxu0 %v8006
      %8202 = vmatprep.subr.mxu0 0.0
      %8203 = vmatpush1.msra.mxu0 %v8007
      %8204 = vmatprep.subr.mxu0 0.0
      %8205 = vmatpush1.msra.mxu0 %v8008
      %8206 = vmatprep.subr.mxu0 0.0
      %8207 = vmatpush1.msra.mxu0 %v8009
      %8208 = vmatprep.subr.mxu0 0.0
      %8209 = vmatpush1.msra.mxu0 %v8010
      %8210 = vmatprep.subr.mxu0 0.0
      %8211 = vmatpush1.msra.mxu0 %v8011
      %8212 = vmatprep.mubr.f32.mxu0 %v7820
      %8213 = vmatmul.mubr.f32.gmra.mrb[0].mxu0 %v7819
      %v8214 = vpop.f32.mrb[0].mxu0
      %v8215 = vadd.f32 0.0, %v8214
      %v8216 = vpop.f32.mrb[0].mxu0
      %8217 = vmatprep.mubr.f32.mxu0 %v7825
      %8218 = vmatmul.mubr.f32.gmra.mrb[0].mxu0 %v7824
      %v8219 = vpop.f32.mrb[0].mxu0
      %v8220 = vadd.f32 0.0, %v8219
      %v8221 = vpop.f32.mrb[0].mxu0
      %8222 = vmatprep.mubr.f32.mxu0 %v7830
      %8223 = vmatmul.mubr.f32.gmra.mrb[0].mxu0 %v7829
      %v8224 = vpop.f32.mrb[0].mxu0
      %v8225 = vadd.f32 0.0, %v8224
      %v8226 = vpop.f32.mrb[0].mxu0
      %8227 = vmatprep.mubr.f32.mxu0 %v7835
      %8228 = vmatmul.mubr.f32.gmra.mrb[0].mxu0 %v7834
      %v8229 = vpop.f32.mrb[0].mxu0
      %v8230 = vadd.f32 0.0, %v8229
      %v8231 = vpop.f32.mrb[0].mxu0
      %8232 = vmatprep.mubr.f32.mxu0 %v7840
      %8233 = vmatmul.mubr.f32.gmra.mrb[0].mxu0 %v7839
      %v8234 = vpop.f32.mrb[0].mxu0
      %v8235 = vadd.f32 0.0, %v8234
      %v8236 = vpop.f32.mrb[0].mxu0
      %8237 = vmatprep.mubr.f32.mxu0 %v7845
      %8238 = vmatmul.mubr.f32.gmra.mrb[0].mxu0 %v7844
      %v8239 = vpop.f32.mrb[0].mxu0
      %v8240 = vadd.f32 0.0, %v8239
      %v8241 = vpop.f32.mrb[0].mxu0
      %8242 = vmatprep.mubr.f32.mxu0 %v7850
      %8243 = vmatmul.mubr.f32.gmra.mrb[0].mxu0 %v7849
      %v8244 = vpop.f32.mrb[0].mxu0
      %v8245 = vadd.f32 0.0, %v8244
      %v8246 = vpop.f32.mrb[0].mxu0
      %8247 = vmatprep.mubr.f32.mxu0 %v7855
      %8248 = vmatmul.mubr.f32.gmra.mrb[0].mxu0 %v7854
      %v8249 = vpop.f32.mrb[0].mxu0
      %v8250 = vadd.f32 0.0, %v8249
      %v8251 = vpop.f32.mrb[0].mxu0
      %8252 = vmatprep.mubr.f32.mxu0 %v7860
      %8253 = vmatmul.mubr.f32.gmra.mrb[0].mxu0 %v7859
      %v8254 = vpop.f32.mrb[0].mxu0
      %v8255 = vadd.f32 0.0, %v8254
      %v8256 = vpop.f32.mrb[0].mxu0
      %8257 = vmatprep.mubr.f32.mxu0 %v7865
      %8258 = vmatmul.mubr.f32.gmra.mrb[0].mxu0 %v7864
      %v8259 = vpop.f32.mrb[0].mxu0
      %v8260 = vadd.f32 0.0, %v8259
      %v8261 = vpop.f32.mrb[0].mxu0
      %8262 = vmatprep.mubr.f32.mxu0 %v7870
      %8263 = vmatmul.mubr.f32.gmra.mrb[0].mxu0 %v7869
      %v8264 = vpop.f32.mrb[0].mxu0
      %v8265 = vadd.f32 0.0, %v8264
      %v8266 = vpop.f32.mrb[0].mxu0
      %8267 = vmatprep.mubr.f32.mxu0 %v7875
      %8268 = vmatmul.mubr.f32.gmra.mrb[0].mxu0 %v7874
      %v8269 = vpop.f32.mrb[0].mxu0
      %v8270 = vadd.f32 0.0, %v8269
      %v8271 = vpop.f32.mrb[0].mxu0
      %8272 = vmatprep.mubr.f32.mxu0 %v7880
      %8273 = vmatmul.mubr.f32.gmra.mrb[0].mxu0 %v7879
      %v8274 = vpop.f32.mrb[0].mxu0
      %v8275 = vadd.f32 0.0, %v8274
      %v8276 = vpop.f32.mrb[0].mxu0
      %8277 = vmatprep.mubr.f32.mxu0 %v7885
      %8278 = vmatmul.mubr.f32.gmra.mrb[0].mxu0 %v7884
      %v8279 = vpop.f32.mrb[0].mxu0
      %v8280 = vadd.f32 0.0, %v8279
      %v8281 = vpop.f32.mrb[0].mxu0
      %8282 = vmatprep.mubr.f32.mxu0 %v7890
      %8283 = vmatmul.mubr.f32.gmra.mrb[0].mxu0 %v7889
      %v8284 = vpop.f32.mrb[0].mxu0
      %v8285 = vadd.f32 0.0, %v8284
      %v8286 = vpop.f32.mrb[0].mxu0
      %8287 = vmatprep.mubr.f32.mxu0 %v7895
      %8288 = vmatmul.mubr.f32.gmra.mrb[0].mxu0 %v7894
      %v8289 = vpop.f32.mrb[0].mxu0
      %v8290 = vadd.f32 0.0, %v8289
      %v8291 = vpop.f32.mrb[0].mxu0
      %8292 = vmatprep.mubr.f32.mxu0 %v7900
      %8293 = vmatmul.mubr.f32.gmra.mrb[0].mxu0 %v7899
      %v8294 = vpop.f32.mrb[0].mxu0
      %v8295 = vadd.f32 0.0, %v8294
      %v8296 = vpop.f32.mrb[0].mxu0
      %8297 = vmatprep.mubr.f32.mxu0 %v7905
      %8298 = vmatmul.mubr.f32.gmra.mrb[0].mxu0 %v7904
      %v8299 = vpop.f32.mrb[0].mxu0
      %v8300 = vadd.f32 0.0, %v8299
      %v8301 = vpop.f32.mrb[0].mxu0
      %8302 = vmatprep.mubr.f32.mxu0 %v7910
      %8303 = vmatmul.mubr.f32.gmra.mrb[0].mxu0 %v7909
      %v8304 = vpop.f32.mrb[0].mxu0
      %v8305 = vadd.f32 0.0, %v8304
      %v8306 = vpop.f32.mrb[0].mxu0
      %8307 = vmatprep.mubr.f32.mxu0 %v7915
      %8308 = vmatmul.mubr.f32.gmra.mrb[0].mxu0 %v7914
      %v8309 = vpop.f32.mrb[0].mxu0
      %v8310 = vadd.f32 0.0, %v8309
      %v8311 = vpop.f32.mrb[0].mxu0
      %8312 = vmatprep.mubr.f32.mxu0 %v7920
      %8313 = vmatmul.mubr.f32.gmra.mrb[0].mxu0 %v7919
      %v8314 = vpop.f32.mrb[0].mxu0
      %v8315 = vadd.f32 0.0, %v8314
      %v8316 = vpop.f32.mrb[0].mxu0
      %8317 = vmatprep.mubr.f32.mxu0 %v7925
      %8318 = vmatmul.mubr.f32.gmra.mrb[0].mxu0 %v7924
      %v8319 = vpop.f32.mrb[0].mxu0
      %v8320 = vadd.f32 0.0, %v8319
      %v8321 = vpop.f32.mrb[0].mxu0
      %8322 = vmatprep.mubr.f32.mxu0 %v7930
      %8323 = vmatmul.mubr.f32.gmra.mrb[0].mxu0 %v7929
      %v8324 = vpop.f32.mrb[0].mxu0
      %v8325 = vadd.f32 0.0, %v8324
      %v8326 = vpop.f32.mrb[0].mxu0
      %8327 = vmatprep.mubr.f32.mxu0 %v7935
      %8328 = vmatmul.mubr.f32.gmra.mrb[0].mxu0 %v7934
      %v8329 = vpop.f32.mrb[0].mxu0
      %v8330 = vadd.f32 0.0, %v8329
      %v8331 = vpop.f32.mrb[0].mxu0
      %8332 = vmatprep.mubr.f32.mxu0 %v7940
      %8333 = vmatmul.mubr.f32.gmra.mrb[0].mxu0 %v7939
      %v8334 = vpop.f32.mrb[0].mxu0
      %v8335 = vadd.f32 0.0, %v8334
      %v8336 = vpop.f32.mrb[0].mxu0
      %8337 = vmatprep.mubr.f32.mxu0 %v7945
      %8338 = vmatmul.mubr.f32.gmra.mrb[0].mxu0 %v7944
      %v8339 = vpop.f32.mrb[0].mxu0
      %v8340 = vadd.f32 0.0, %v8339
      %v8341 = vpop.f32.mrb[0].mxu0
      %8342 = vmatprep.mubr.f32.mxu0 %v7950
      %8343 = vmatmul.mubr.f32.gmra.mrb[0].mxu0 %v7949
      %v8344 = vpop.f32.mrb[0].mxu0
      %v8345 = vadd.f32 0.0, %v8344
      %v8346 = vpop.f32.mrb[0].mxu0
      %8347 = vmatprep.mubr.f32.mxu0 %v7955
      %8348 = vmatmul.mubr.f32.gmra.mrb[0].mxu0 %v7954
      %v8349 = vpop.f32.mrb[0].mxu0
      %v8350 = vadd.f32 0.0, %v8349
      %v8351 = vpop.f32.mrb[0].mxu0
      %8352 = vmatprep.mubr.f32.mxu0 %v7960
      %8353 = vmatmul.mubr.f32.gmra.mrb[0].mxu0 %v7959
      %v8354 = vpop.f32.mrb[0].mxu0
      %v8355 = vadd.f32 0.0, %v8354
      %v8356 = vpop.f32.mrb[0].mxu0
      %8357 = vmatprep.mubr.f32.mxu0 %v7965
      %8358 = vmatmul.mubr.f32.gmra.mrb[0].mxu0 %v7964
      %v8359 = vpop.f32.mrb[0].mxu0
      %v8360 = vadd.f32 0.0, %v8359
      %v8361 = vpop.f32.mrb[0].mxu0
      %8362 = vmatprep.mubr.f32.mxu0 %v7970
      %8363 = vmatmul.mubr.f32.gmra.mrb[0].mxu0 %v7969
      %v8364 = vpop.f32.mrb[0].mxu0
      %v8365 = vadd.f32 0.0, %v8364
      %v8366 = vpop.f32.mrb[0].mxu0
      %8367 = vmatprep.mubr.f32.mxu0 %v7975
      %8368 = vmatmul.mubr.f32.gmra.mrb[0].mxu0 %v7974
      %v8369 = vpop.f32.mrb[0].mxu0
      %v8370 = vadd.f32 0.0, %v8369
      %v8371 = vpop.f32.mrb[0].mxu0
      %8372 = vdwg.mxu0
      %8373 = vmatprep.subr.mxu0 0.0
      %8374 = vmatpush1.msra.mxu0 %v8012
      %8375 = vmatprep.subr.mxu0 0.0
      %8376 = vmatpush1.msra.mxu0 %v8013
      %8377 = vmatprep.subr.mxu0 0.0
      %8378 = vmatpush1.msra.mxu0 %v8014
      %8379 = vmatprep.subr.mxu0 0.0
      %8380 = vmatpush1.msra.mxu0 %v8015
      %8381 = vmatprep.subr.mxu0 0.0
      %8382 = vmatpush1.msra.mxu0 %v8016
      %8383 = vmatprep.subr.mxu0 0.0
      %8384 = vmatpush1.msra.mxu0 %v8017
      %8385 = vmatprep.subr.mxu0 0.0
      %8386 = vmatpush1.msra.mxu0 %v8018
      %8387 = vmatprep.subr.mxu0 0.0
      %8388 = vmatpush1.msra.mxu0 %v8019
      %8389 = vmatprep.subr.mxu0 0.0
      %8390 = vmatpush1.msra.mxu0 %v8020
      %8391 = vmatprep.subr.mxu0 0.0
      %8392 = vmatpush1.msra.mxu0 %v8021
      %8393 = vmatprep.subr.mxu0 0.0
      %8394 = vmatpush1.msra.mxu0 %v8022
      %8395 = vmatprep.subr.mxu0 0.0
      %8396 = vmatpush1.msra.mxu0 %v8023
      %8397 = vmatprep.subr.mxu0 0.0
      %8398 = vmatpush1.msra.mxu0 %v8024
      %8399 = vmatprep.subr.mxu0 0.0
      %8400 = vmatpush1.msra.mxu0 %v8025
      %8401 = vmatprep.subr.mxu0 0.0
      %8402 = vmatpush1.msra.mxu0 %v8026
      %8403 = vmatprep.subr.mxu0 0.0
      %8404 = vmatpush1.msra.mxu0 %v8027
      %8405 = vmatprep.subr.mxu0 0.0
      %8406 = vmatpush1.msra.mxu0 %v8028
      %8407 = vmatprep.subr.mxu0 0.0
      %8408 = vmatpush1.msra.mxu0 %v8029
      %8409 = vmatprep.subr.mxu0 0.0
      %8410 = vmatpush1.msra.mxu0 %v8030
      %8411 = vmatprep.subr.mxu0 0.0
      %8412 = vmatpush1.msra.mxu0 %v8031
      %8413 = vmatprep.subr.mxu0 0.0
      %8414 = vmatpush1.msra.mxu0 %v8032
      %8415 = vmatprep.subr.mxu0 0.0
      %8416 = vmatpush1.msra.mxu0 %v8033
      %8417 = vmatprep.subr.mxu0 0.0
      %8418 = vmatpush1.msra.mxu0 %v8034
      %8419 = vmatprep.subr.mxu0 0.0
      %8420 = vmatpush1.msra.mxu0 %v8035
      %8421 = vmatprep.subr.mxu0 0.0
      %8422 = vmatpush1.msra.mxu0 %v8036
      %8423 = vmatprep.subr.mxu0 0.0
      %8424 = vmatpush1.msra.mxu0 %v8037
      %8425 = vmatprep.subr.mxu0 0.0
      %8426 = vmatpush1.msra.mxu0 %v8038
      %8427 = vmatprep.subr.mxu0 0.0
      %8428 = vmatpush1.msra.mxu0 %v8039
      %8429 = vmatprep.subr.mxu0 0.0
      %8430 = vmatpush1.msra.mxu0 %v8040
      %8431 = vmatprep.subr.mxu0 0.0
      %8432 = vmatpush1.msra.mxu0 %v8041
      %8433 = vmatprep.subr.mxu0 0.0
      %8434 = vmatpush1.msra.mxu0 %v8042
      %8435 = vmatprep.subr.mxu0 0.0
      %8436 = vmatpush1.msra.mxu0 %v8043
      %8437 = vmatprep.mubr.f32.mxu0 %v7822
      %8438 = vmatmul.mubr.f32.gmra.mrb[0].mxu0 %v7821
      %v8439 = vpop.f32.mrb[0].mxu0
      %v8440 = vadd.f32 %v8215, %v8439
      %v8441 = vpop.f32.mrb[0].mxu0
      %8442 = vmatprep.mubr.f32.mxu0 %v7827
      %8443 = vmatmul.mubr.f32.gmra.mrb[0].mxu0 %v7826
      %v8444 = vpop.f32.mrb[0].mxu0
      %v8445 = vadd.f32 %v8220, %v8444
      %v8446 = vpop.f32.mrb[0].mxu0
      %8447 = vmatprep.mubr.f32.mxu0 %v7832
      %8448 = vmatmul.mubr.f32.gmra.mrb[0].mxu0 %v7831
      %v8449 = vpop.f32.mrb[0].mxu0
      %v8450 = vadd.f32 %v8225, %v8449
      %v8451 = vpop.f32.mrb[0].mxu0
      %8452 = vmatprep.mubr.f32.mxu0 %v7837
      %8453 = vmatmul.mubr.f32.gmra.mrb[0].mxu0 %v7836
      %v8454 = vpop.f32.mrb[0].mxu0
      %v8455 = vadd.f32 %v8230, %v8454
      %v8456 = vpop.f32.mrb[0].mxu0
      %8457 = vmatprep.mubr.f32.mxu0 %v7842
      %8458 = vmatmul.mubr.f32.gmra.mrb[0].mxu0 %v7841
      %v8459 = vpop.f32.mrb[0].mxu0
      %v8460 = vadd.f32 %v8235, %v8459
      %v8461 = vpop.f32.mrb[0].mxu0
      %8462 = vmatprep.mubr.f32.mxu0 %v7847
      %8463 = vmatmul.mubr.f32.gmra.mrb[0].mxu0 %v7846
      %v8464 = vpop.f32.mrb[0].mxu0
      %v8465 = vadd.f32 %v8240, %v8464
      %v8466 = vpop.f32.mrb[0].mxu0
      %8467 = vmatprep.mubr.f32.mxu0 %v7852
      %8468 = vmatmul.mubr.f32.gmra.mrb[0].mxu0 %v7851
      %v8469 = vpop.f32.mrb[0].mxu0
      %v8470 = vadd.f32 %v8245, %v8469
      %v8471 = vpop.f32.mrb[0].mxu0
      %8472 = vmatprep.mubr.f32.mxu0 %v7857
      %8473 = vmatmul.mubr.f32.gmra.mrb[0].mxu0 %v7856
      %v8474 = vpop.f32.mrb[0].mxu0
      %v8475 = vadd.f32 %v8250, %v8474
      %v8476 = vpop.f32.mrb[0].mxu0
      %8477 = vmatprep.mubr.f32.mxu0 %v7862
      %8478 = vmatmul.mubr.f32.gmra.mrb[0].mxu0 %v7861
      %v8479 = vpop.f32.mrb[0].mxu0
      %v8480 = vadd.f32 %v8255, %v8479
      %v8481 = vpop.f32.mrb[0].mxu0
      %8482 = vmatprep.mubr.f32.mxu0 %v7867
      %8483 = vmatmul.mubr.f32.gmra.mrb[0].mxu0 %v7866
      %v8484 = vpop.f32.mrb[0].mxu0
      %v8485 = vadd.f32 %v8260, %v8484
      %v8486 = vpop.f32.mrb[0].mxu0
      %8487 = vmatprep.mubr.f32.mxu0 %v7872
      %8488 = vmatmul.mubr.f32.gmra.mrb[0].mxu0 %v7871
      %v8489 = vpop.f32.mrb[0].mxu0
      %v8490 = vadd.f32 %v8265, %v8489
      %v8491 = vpop.f32.mrb[0].mxu0
      %8492 = vmatprep.mubr.f32.mxu0 %v7877
      %8493 = vmatmul.mubr.f32.gmra.mrb[0].mxu0 %v7876
      %v8494 = vpop.f32.mrb[0].mxu0
      %v8495 = vadd.f32 %v8270, %v8494
      %v8496 = vpop.f32.mrb[0].mxu0
      %8497 = vmatprep.mubr.f32.mxu0 %v7882
      %8498 = vmatmul.mubr.f32.gmra.mrb[0].mxu0 %v7881
      %v8499 = vpop.f32.mrb[0].mxu0
      %v8500 = vadd.f32 %v8275, %v8499
      %v8501 = vpop.f32.mrb[0].mxu0
      %8502 = vmatprep.mubr.f32.mxu0 %v7887
      %8503 = vmatmul.mubr.f32.gmra.mrb[0].mxu0 %v7886
      %v8504 = vpop.f32.mrb[0].mxu0
      %v8505 = vadd.f32 %v8280, %v8504
      %v8506 = vpop.f32.mrb[0].mxu0
      %8507 = vmatprep.mubr.f32.mxu0 %v7892
      %8508 = vmatmul.mubr.f32.gmra.mrb[0].mxu0 %v7891
      %v8509 = vpop.f32.mrb[0].mxu0
      %v8510 = vadd.f32 %v8285, %v8509
      %v8511 = vpop.f32.mrb[0].mxu0
      %8512 = vmatprep.mubr.f32.mxu0 %v7897
      %8513 = vmatmul.mubr.f32.gmra.mrb[0].mxu0 %v7896
      %v8514 = vpop.f32.mrb[0].mxu0
      %v8515 = vadd.f32 %v8290, %v8514
      %v8516 = vpop.f32.mrb[0].mxu0
      %8517 = vmatprep.mubr.f32.mxu0 %v7902
      %8518 = vmatmul.mubr.f32.gmra.mrb[0].mxu0 %v7901
      %v8519 = vpop.f32.mrb[0].mxu0
      %v8520 = vadd.f32 %v8295, %v8519
      %v8521 = vpop.f32.mrb[0].mxu0
      %8522 = vmatprep.mubr.f32.mxu0 %v7907
      %8523 = vmatmul.mubr.f32.gmra.mrb[0].mxu0 %v7906
      %v8524 = vpop.f32.mrb[0].mxu0
      %v8525 = vadd.f32 %v8300, %v8524
      %v8526 = vpop.f32.mrb[0].mxu0
      %8527 = vmatprep.mubr.f32.mxu0 %v7912
      %8528 = vmatmul.mubr.f32.gmra.mrb[0].mxu0 %v7911
      %v8529 = vpop.f32.mrb[0].mxu0
      %v8530 = vadd.f32 %v8305, %v8529
      %v8531 = vpop.f32.mrb[0].mxu0
      %8532 = vmatprep.mubr.f32.mxu0 %v7917
      %8533 = vmatmul.mubr.f32.gmra.mrb[0].mxu0 %v7916
      %v8534 = vpop.f32.mrb[0].mxu0
      %v8535 = vadd.f32 %v8310, %v8534
      %v8536 = vpop.f32.mrb[0].mxu0
      %8537 = vmatprep.mubr.f32.mxu0 %v7922
      %8538 = vmatmul.mubr.f32.gmra.mrb[0].mxu0 %v7921
      %v8539 = vpop.f32.mrb[0].mxu0
      %v8540 = vadd.f32 %v8315, %v8539
      %v8541 = vpop.f32.mrb[0].mxu0
      %8542 = vmatprep.mubr.f32.mxu0 %v7927
      %8543 = vmatmul.mubr.f32.gmra.mrb[0].mxu0 %v7926
      %v8544 = vpop.f32.mrb[0].mxu0
      %v8545 = vadd.f32 %v8320, %v8544
      %v8546 = vpop.f32.mrb[0].mxu0
      %8547 = vmatprep.mubr.f32.mxu0 %v7932
      %8548 = vmatmul.mubr.f32.gmra.mrb[0].mxu0 %v7931
      %v8549 = vpop.f32.mrb[0].mxu0
      %v8550 = vadd.f32 %v8325, %v8549
      %v8551 = vpop.f32.mrb[0].mxu0
      %8552 = vmatprep.mubr.f32.mxu0 %v7937
      %8553 = vmatmul.mubr.f32.gmra.mrb[0].mxu0 %v7936
      %v8554 = vpop.f32.mrb[0].mxu0
      %v8555 = vadd.f32 %v8330, %v8554
      %v8556 = vpop.f32.mrb[0].mxu0
      %8557 = vmatprep.mubr.f32.mxu0 %v7942
      %8558 = vmatmul.mubr.f32.gmra.mrb[0].mxu0 %v7941
      %v8559 = vpop.f32.mrb[0].mxu0
      %v8560 = vadd.f32 %v8335, %v8559
      %v8561 = vpop.f32.mrb[0].mxu0
      %8562 = vmatprep.mubr.f32.mxu0 %v7947
      %8563 = vmatmul.mubr.f32.gmra.mrb[0].mxu0 %v7946
      %v8564 = vpop.f32.mrb[0].mxu0
      %v8565 = vadd.f32 %v8340, %v8564
      %v8566 = vpop.f32.mrb[0].mxu0
      %8567 = vmatprep.mubr.f32.mxu0 %v7952
      %8568 = vmatmul.mubr.f32.gmra.mrb[0].mxu0 %v7951
      %v8569 = vpop.f32.mrb[0].mxu0
      %v8570 = vadd.f32 %v8345, %v8569
      %v8571 = vpop.f32.mrb[0].mxu0
      %8572 = vmatprep.mubr.f32.mxu0 %v7957
      %8573 = vmatmul.mubr.f32.gmra.mrb[0].mxu0 %v7956
      %v8574 = vpop.f32.mrb[0].mxu0
      %v8575 = vadd.f32 %v8350, %v8574
      %v8576 = vpop.f32.mrb[0].mxu0
      %8577 = vmatprep.mubr.f32.mxu0 %v7962
      %8578 = vmatmul.mubr.f32.gmra.mrb[0].mxu0 %v7961
      %v8579 = vpop.f32.mrb[0].mxu0
      %v8580 = vadd.f32 %v8355, %v8579
      %v8581 = vpop.f32.mrb[0].mxu0
      %8582 = vmatprep.mubr.f32.mxu0 %v7967
      %8583 = vmatmul.mubr.f32.gmra.mrb[0].mxu0 %v7966
      %v8584 = vpop.f32.mrb[0].mxu0
      %v8585 = vadd.f32 %v8360, %v8584
      %v8586 = vpop.f32.mrb[0].mxu0
      %8587 = vmatprep.mubr.f32.mxu0 %v7972
      %8588 = vmatmul.mubr.f32.gmra.mrb[0].mxu0 %v7971
      %v8589 = vpop.f32.mrb[0].mxu0
      %v8590 = vadd.f32 %v8365, %v8589
      %v8591 = vpop.f32.mrb[0].mxu0
      %8592 = vmatprep.mubr.f32.mxu0 %v7977
      %8593 = vmatmul.mubr.f32.gmra.mrb[0].mxu0 %v7976
      %v8594 = vpop.f32.mrb[0].mxu0
      %v8595 = vadd.f32 %v8370, %v8594
      %v8596 = vpop.f32.mrb[0].mxu0
      %8597 = vdwg.mxu0
      %8598 = vmatprep.subr.mxu0 0.0
      %8599 = vmatpush1.msra.mxu0 %v8044
      %8600 = vmatprep.subr.mxu0 0.0
      %8601 = vmatpush1.msra.mxu0 %v8045
      %8602 = vmatprep.subr.mxu0 0.0
      %8603 = vmatpush1.msra.mxu0 %v8046
      %8604 = vmatprep.subr.mxu0 0.0
      %8605 = vmatpush1.msra.mxu0 %v8047
      %8606 = vmatprep.subr.mxu0 0.0
      %8607 = vmatpush1.msra.mxu0 %v8048
      %8608 = vmatprep.subr.mxu0 0.0
      %8609 = vmatpush1.msra.mxu0 %v8049
      %8610 = vmatprep.subr.mxu0 0.0
      %8611 = vmatpush1.msra.mxu0 %v8050
      %8612 = vmatprep.subr.mxu0 0.0
      %8613 = vmatpush1.msra.mxu0 %v8051
      %8614 = vmatprep.subr.mxu0 0.0
      %8615 = vmatpush1.msra.mxu0 0.0
      %8616 = vmatprep.subr.mxu0 0.0
      %8617 = vmatpush1.msra.mxu0 0.0
      %8618 = vmatprep.subr.mxu0 0.0
      %8619 = vmatpush1.msra.mxu0 0.0
      %8620 = vmatprep.subr.mxu0 0.0
      %8621 = vmatpush1.msra.mxu0 0.0
      %8622 = vmatprep.subr.mxu0 0.0
      %8623 = vmatpush1.msra.mxu0 0.0
      %8624 = vmatprep.subr.mxu0 0.0
      %8625 = vmatpush1.msra.mxu0 0.0
      %8626 = vmatprep.subr.mxu0 0.0
      %8627 = vmatpush1.msra.mxu0 0.0
      %8628 = vmatprep.subr.mxu0 0.0
      %8629 = vmatpush1.msra.mxu0 0.0
      %8630 = vmatprep.subr.mxu0 0.0
      %8631 = vmatpush1.msra.mxu0 0.0
      %8632 = vmatprep.subr.mxu0 0.0
      %8633 = vmatpush1.msra.mxu0 0.0
      %8634 = vmatprep.subr.mxu0 0.0
      %8635 = vmatpush1.msra.mxu0 0.0
      %8636 = vmatprep.subr.mxu0 0.0
      %8637 = vmatpush1.msra.mxu0 0.0
      %8638 = vmatprep.subr.mxu0 0.0
      %8639 = vmatpush1.msra.mxu0 0.0
      %8640 = vmatprep.subr.mxu0 0.0
      %8641 = vmatpush1.msra.mxu0 0.0
      %8642 = vmatprep.subr.mxu0 0.0
      %8643 = vmatpush1.msra.mxu0 0.0
      %8644 = vmatprep.subr.mxu0 0.0
      %8645 = vmatpush1.msra.mxu0 0.0
      %8646 = vmatprep.subr.mxu0 0.0
      %8647 = vmatpush1.msra.mxu0 0.0
      %8648 = vmatprep.subr.mxu0 0.0
      %8649 = vmatpush1.msra.mxu0 0.0
      %8650 = vmatprep.subr.mxu0 0.0
      %8651 = vmatpush1.msra.mxu0 0.0
      %8652 = vmatprep.subr.mxu0 0.0
      %8653 = vmatpush1.msra.mxu0 0.0
      %8654 = vmatprep.subr.mxu0 0.0
      %8655 = vmatpush1.msra.mxu0 0.0
      %8656 = vmatprep.subr.mxu0 0.0
      %8657 = vmatpush1.msra.mxu0 0.0
      %8658 = vmatprep.subr.mxu0 0.0
      %8659 = vmatpush1.msra.mxu0 0.0
      %8660 = vmatprep.subr.mxu0 0.0
      %8661 = vmatpush1.msra.mxu0 0.0
      %8662 = vmatprep.mubr.f32.mxu0 0.0
      %8663 = vmatmul.mubr.f32.gmra.mrb[0].mxu0 %v8053
      %v8664 = vpop.f32.mrb[0].mxu0
      %v8665 = vadd.f32 %v8440, %v8664
      %v8666 = vpop.f32.mrb[0].mxu0
      %8667 = vmatprep.mubr.f32.mxu0 0.0
      %8668 = vmatmul.mubr.f32.gmra.mrb[0].mxu0 %v8056
      %v8669 = vpop.f32.mrb[0].mxu0
      %v8670 = vadd.f32 %v8445, %v8669
      %v8671 = vpop.f32.mrb[0].mxu0
      %8672 = vmatprep.mubr.f32.mxu0 0.0
      %8673 = vmatmul.mubr.f32.gmra.mrb[0].mxu0 %v8059
      %v8674 = vpop.f32.mrb[0].mxu0
      %v8675 = vadd.f32 %v8450, %v8674
      %v8676 = vpop.f32.mrb[0].mxu0
      %8677 = vmatprep.mubr.f32.mxu0 0.0
      %8678 = vmatmul.mubr.f32.gmra.mrb[0].mxu0 %v8062
      %v8679 = vpop.f32.mrb[0].mxu0
      %v8680 = vadd.f32 %v8455, %v8679
      %v8681 = vpop.f32.mrb[0].mxu0
      %8682 = vmatprep.mubr.f32.mxu0 0.0
      %8683 = vmatmul.mubr.f32.gmra.mrb[0].mxu0 %v8065
      %v8684 = vpop.f32.mrb[0].mxu0
      %v8685 = vadd.f32 %v8460, %v8684
      %v8686 = vpop.f32.mrb[0].mxu0
      %8687 = vmatprep.mubr.f32.mxu0 0.0
      %8688 = vmatmul.mubr.f32.gmra.mrb[0].mxu0 %v8068
      %v8689 = vpop.f32.mrb[0].mxu0
      %v8690 = vadd.f32 %v8465, %v8689
      %v8691 = vpop.f32.mrb[0].mxu0
      %8692 = vmatprep.mubr.f32.mxu0 0.0
      %8693 = vmatmul.mubr.f32.gmra.mrb[0].mxu0 %v8071
      %v8694 = vpop.f32.mrb[0].mxu0
      %v8695 = vadd.f32 %v8470, %v8694
      %v8696 = vpop.f32.mrb[0].mxu0
      %8697 = vmatprep.mubr.f32.mxu0 0.0
      %8698 = vmatmul.mubr.f32.gmra.mrb[0].mxu0 %v8074
      %v8699 = vpop.f32.mrb[0].mxu0
      %v8700 = vadd.f32 %v8475, %v8699
      %v8701 = vpop.f32.mrb[0].mxu0
      %8702 = vmatprep.mubr.f32.mxu0 0.0
      %8703 = vmatmul.mubr.f32.gmra.mrb[0].mxu0 %v8077
      %v8704 = vpop.f32.mrb[0].mxu0
      %v8705 = vadd.f32 %v8480, %v8704
      %v8706 = vpop.f32.mrb[0].mxu0
      %8707 = vmatprep.mubr.f32.mxu0 0.0
      %8708 = vmatmul.mubr.f32.gmra.mrb[0].mxu0 %v8080
      %v8709 = vpop.f32.mrb[0].mxu0
      %v8710 = vadd.f32 %v8485, %v8709
      %v8711 = vpop.f32.mrb[0].mxu0
      %8712 = vmatprep.mubr.f32.mxu0 0.0
      %8713 = vmatmul.mubr.f32.gmra.mrb[0].mxu0 %v8083
      %v8714 = vpop.f32.mrb[0].mxu0
      %v8715 = vadd.f32 %v8490, %v8714
      %v8716 = vpop.f32.mrb[0].mxu0
      %8717 = vmatprep.mubr.f32.mxu0 0.0
      %8718 = vmatmul.mubr.f32.gmra.mrb[0].mxu0 %v8086
      %v8719 = vpop.f32.mrb[0].mxu0
      %v8720 = vadd.f32 %v8495, %v8719
      %v8721 = vpop.f32.mrb[0].mxu0
      %8722 = vmatprep.mubr.f32.mxu0 0.0
      %8723 = vmatmul.mubr.f32.gmra.mrb[0].mxu0 %v8089
      %v8724 = vpop.f32.mrb[0].mxu0
      %v8725 = vadd.f32 %v8500, %v8724
      %v8726 = vpop.f32.mrb[0].mxu0
      %8727 = vmatprep.mubr.f32.mxu0 0.0
      %8728 = vmatmul.mubr.f32.gmra.mrb[0].mxu0 %v8092
      %v8729 = vpop.f32.mrb[0].mxu0
      %v8730 = vadd.f32 %v8505, %v8729
      %v8731 = vpop.f32.mrb[0].mxu0
      %8732 = vmatprep.mubr.f32.mxu0 0.0
      %8733 = vmatmul.mubr.f32.gmra.mrb[0].mxu0 %v8095
      %v8734 = vpop.f32.mrb[0].mxu0
      %v8735 = vadd.f32 %v8510, %v8734
      %v8736 = vpop.f32.mrb[0].mxu0
      %8737 = vmatprep.mubr.f32.mxu0 0.0
      %8738 = vmatmul.mubr.f32.gmra.mrb[0].mxu0 %v8098
      %v8739 = vpop.f32.mrb[0].mxu0
      %v8740 = vadd.f32 %v8515, %v8739
      %v8741 = vpop.f32.mrb[0].mxu0
      %8742 = vmatprep.mubr.f32.mxu0 0.0
      %8743 = vmatmul.mubr.f32.gmra.mrb[0].mxu0 %v8101
      %v8744 = vpop.f32.mrb[0].mxu0
      %v8745 = vadd.f32 %v8520, %v8744
      %v8746 = vpop.f32.mrb[0].mxu0
      %8747 = vmatprep.mubr.f32.mxu0 0.0
      %8748 = vmatmul.mubr.f32.gmra.mrb[0].mxu0 %v8104
      %v8749 = vpop.f32.mrb[0].mxu0
      %v8750 = vadd.f32 %v8525, %v8749
      %v8751 = vpop.f32.mrb[0].mxu0
      %8752 = vmatprep.mubr.f32.mxu0 0.0
      %8753 = vmatmul.mubr.f32.gmra.mrb[0].mxu0 %v8107
      %v8754 = vpop.f32.mrb[0].mxu0
      %v8755 = vadd.f32 %v8530, %v8754
      %v8756 = vpop.f32.mrb[0].mxu0
      %8757 = vmatprep.mubr.f32.mxu0 0.0
      %8758 = vmatmul.mubr.f32.gmra.mrb[0].mxu0 %v8110
      %v8759 = vpop.f32.mrb[0].mxu0
      %v8760 = vadd.f32 %v8535, %v8759
      %v8761 = vpop.f32.mrb[0].mxu0
      %8762 = vmatprep.mubr.f32.mxu0 0.0
      %8763 = vmatmul.mubr.f32.gmra.mrb[0].mxu0 %v8113
      %v8764 = vpop.f32.mrb[0].mxu0
      %v8765 = vadd.f32 %v8540, %v8764
      %v8766 = vpop.f32.mrb[0].mxu0
      %8767 = vmatprep.mubr.f32.mxu0 0.0
      %8768 = vmatmul.mubr.f32.gmra.mrb[0].mxu0 %v8116
      %v8769 = vpop.f32.mrb[0].mxu0
      %v8770 = vadd.f32 %v8545, %v8769
      %v8771 = vpop.f32.mrb[0].mxu0
      %8772 = vmatprep.mubr.f32.mxu0 0.0
      %8773 = vmatmul.mubr.f32.gmra.mrb[0].mxu0 %v8119
      %v8774 = vpop.f32.mrb[0].mxu0
      %v8775 = vadd.f32 %v8550, %v8774
      %v8776 = vpop.f32.mrb[0].mxu0
      %8777 = vmatprep.mubr.f32.mxu0 0.0
      %8778 = vmatmul.mubr.f32.gmra.mrb[0].mxu0 %v8122
      %v8779 = vpop.f32.mrb[0].mxu0
      %v8780 = vadd.f32 %v8555, %v8779
      %v8781 = vpop.f32.mrb[0].mxu0
      %8782 = vmatprep.mubr.f32.mxu0 0.0
      %8783 = vmatmul.mubr.f32.gmra.mrb[0].mxu0 %v8125
      %v8784 = vpop.f32.mrb[0].mxu0
      %v8785 = vadd.f32 %v8560, %v8784
      %v8786 = vpop.f32.mrb[0].mxu0
      %8787 = vmatprep.mubr.f32.mxu0 0.0
      %8788 = vmatmul.mubr.f32.gmra.mrb[0].mxu0 %v8128
      %v8789 = vpop.f32.mrb[0].mxu0
      %v8790 = vadd.f32 %v8565, %v8789
      %v8791 = vpop.f32.mrb[0].mxu0
      %8792 = vmatprep.mubr.f32.mxu0 0.0
      %8793 = vmatmul.mubr.f32.gmra.mrb[0].mxu0 %v8131
      %v8794 = vpop.f32.mrb[0].mxu0
      %v8795 = vadd.f32 %v8570, %v8794
      %v8796 = vpop.f32.mrb[0].mxu0
      %8797 = vmatprep.mubr.f32.mxu0 0.0
      %8798 = vmatmul.mubr.f32.gmra.mrb[0].mxu0 %v8134
      %v8799 = vpop.f32.mrb[0].mxu0
      %v8800 = vadd.f32 %v8575, %v8799
      %v8801 = vpop.f32.mrb[0].mxu0
      %8802 = vmatprep.mubr.f32.mxu0 0.0
      %8803 = vmatmul.mubr.f32.gmra.mrb[0].mxu0 %v8137
      %v8804 = vpop.f32.mrb[0].mxu0
      %v8805 = vadd.f32 %v8580, %v8804
      %v8806 = vpop.f32.mrb[0].mxu0
      %8807 = vmatprep.mubr.f32.mxu0 0.0
      %8808 = vmatmul.mubr.f32.gmra.mrb[0].mxu0 %v8140
      %v8809 = vpop.f32.mrb[0].mxu0
      %v8810 = vadd.f32 %v8585, %v8809
      %v8811 = vpop.f32.mrb[0].mxu0
      %8812 = vmatprep.mubr.f32.mxu0 0.0
      %8813 = vmatmul.mubr.f32.gmra.mrb[0].mxu0 %v8143
      %v8814 = vpop.f32.mrb[0].mxu0
      %v8815 = vadd.f32 %v8590, %v8814
      %v8816 = vpop.f32.mrb[0].mxu0
      %8817 = vmatprep.mubr.f32.mxu0 0.0
      %8818 = vmatmul.mubr.f32.gmra.mrb[0].mxu0 %v8146
      %v8819 = vpop.f32.mrb[0].mxu0
      %v8820 = vadd.f32 %v8595, %v8819
      %v8821 = vpop.f32.mrb[0].mxu0
      %8822 = vdwg.mxu0
      %v8823 = vadd.f32 %v5477, %v8665
      %v8824 = vadd.f32 %v5478, %v8670
      %v8825 = vadd.f32 %v5479, %v8675
      %v8826 = vadd.f32 %v5480, %v8680
      %v8827 = vadd.f32 %v5481, %v8685
      %v8828 = vadd.f32 %v5482, %v8690
      %v8829 = vadd.f32 %v5483, %v8695
      %v8830 = vadd.f32 %v5484, %v8700
      %v8831 = vadd.f32 %v5485, %v8705
      %v8832 = vadd.f32 %v5486, %v8710
      %v8833 = vadd.f32 %v5487, %v8715
      %v8834 = vadd.f32 %v5488, %v8720
      %v8835 = vadd.f32 %v5489, %v8725
      %v8836 = vadd.f32 %v5490, %v8730
      %v8837 = vadd.f32 %v5491, %v8735
      %v8838 = vadd.f32 %v5492, %v8740
      %v8839 = vadd.f32 %v5493, %v8745
      %v8840 = vadd.f32 %v5494, %v8750
      %v8841 = vadd.f32 %v5495, %v8755
      %v8842 = vadd.f32 %v5496, %v8760
      %v8843 = vadd.f32 %v5497, %v8765
      %v8844 = vadd.f32 %v5498, %v8770
      %v8845 = vadd.f32 %v5499, %v8775
      %v8846 = vadd.f32 %v5500, %v8780
      %v8847 = vadd.f32 %v5501, %v8785
      %v8848 = vadd.f32 %v5502, %v8790
      %v8849 = vadd.f32 %v5503, %v8795
      %v8850 = vadd.f32 %v5504, %v8800
      %v8851 = vadd.f32 %v5505, %v8805
      %v8852 = vadd.f32 %v5506, %v8810
      %v8853 = vadd.f32 %v5507, %v8815
      %v8854 = vadd.f32 %v5508, %v8820
      %v8855 = vld [vmem:[%s3 + $0x3] sm:$0x1]
      %v8856 = vlaneseq
      %v8857 = vshrl.u32 %v8856, 7
      %v8858 = vsub.s32 0, %v8857
      %v8859 = vrot.slane %v8855, %v8858
      %v8860 = vmul.f32 %v8823, %v8859
      %v8861 = vmul.f32 %v8824, %v8859
      %v8862 = vmul.f32 %v8825, %v8859
      %v8863 = vmul.f32 %v8826, %v8859
      %v8864 = vmul.f32 %v8827, %v8859
      %v8865 = vmul.f32 %v8828, %v8859
      %v8866 = vmul.f32 %v8829, %v8859
      %v8867 = vmul.f32 %v8830, %v8859
      %v8868 = vmul.f32 %v8831, %v8859
      %v8869 = vmul.f32 %v8832, %v8859
      %v8870 = vmul.f32 %v8833, %v8859
      %v8871 = vmul.f32 %v8834, %v8859
      %v8872 = vmul.f32 %v8835, %v8859
      %v8873 = vmul.f32 %v8836, %v8859
      %v8874 = vmul.f32 %v8837, %v8859
      %v8875 = vmul.f32 %v8838, %v8859
      %v8876 = vmul.f32 %v8839, %v8859
      %v8877 = vmul.f32 %v8840, %v8859
      %v8878 = vmul.f32 %v8841, %v8859
      %v8879 = vmul.f32 %v8842, %v8859
      %v8880 = vmul.f32 %v8843, %v8859
      %v8881 = vmul.f32 %v8844, %v8859
      %v8882 = vmul.f32 %v8845, %v8859
      %v8883 = vmul.f32 %v8846, %v8859
      %v8884 = vmul.f32 %v8847, %v8859
      %v8885 = vmul.f32 %v8848, %v8859
      %v8886 = vmul.f32 %v8849, %v8859
      %v8887 = vmul.f32 %v8850, %v8859
      %v8888 = vmul.f32 %v8851, %v8859
      %v8889 = vmul.f32 %v8852, %v8859
      %v8890 = vmul.f32 %v8853, %v8859
      %v8891 = vmul.f32 %v8854, %v8859
      %v8892 = vld [vmem:[%s3 + $0x4] sm:$0x1]
      %v8893 = vlaneseq
      %v8894 = vshrl.u32 %v8893, 7
      %v8895 = vsub.s32 0, %v8894
      %v8896 = vrot.slane %v8892, %v8895
      %v8897 = vadd.f32 %v8860, %v8896
      %v8898 = vadd.f32 %v8861, %v8896
      %v8899 = vadd.f32 %v8862, %v8896
      %v8900 = vadd.f32 %v8863, %v8896
      %v8901 = vadd.f32 %v8864, %v8896
      %v8902 = vadd.f32 %v8865, %v8896
      %v8903 = vadd.f32 %v8866, %v8896
      %v8904 = vadd.f32 %v8867, %v8896
      %v8905 = vadd.f32 %v8868, %v8896
      %v8906 = vadd.f32 %v8869, %v8896
      %v8907 = vadd.f32 %v8870, %v8896
      %v8908 = vadd.f32 %v8871, %v8896
      %v8909 = vadd.f32 %v8872, %v8896
      %v8910 = vadd.f32 %v8873, %v8896
      %v8911 = vadd.f32 %v8874, %v8896
      %v8912 = vadd.f32 %v8875, %v8896
      %v8913 = vadd.f32 %v8876, %v8896
      %v8914 = vadd.f32 %v8877, %v8896
      %v8915 = vadd.f32 %v8878, %v8896
      %v8916 = vadd.f32 %v8879, %v8896
      %v8917 = vadd.f32 %v8880, %v8896
      %v8918 = vadd.f32 %v8881, %v8896
      %v8919 = vadd.f32 %v8882, %v8896
      %v8920 = vadd.f32 %v8883, %v8896
      %v8921 = vadd.f32 %v8884, %v8896
      %v8922 = vadd.f32 %v8885, %v8896
      %v8923 = vadd.f32 %v8886, %v8896
      %v8924 = vadd.f32 %v8887, %v8896
      %v8925 = vadd.f32 %v8888, %v8896
      %v8926 = vadd.f32 %v8889, %v8896
      %v8927 = vadd.f32 %v8890, %v8896
      %v8928 = vadd.f32 %v8891, %v8896
      %v8929 = vmax.f32 %v8897, 0.0
      %v8930 = vmax.f32 %v8898, 0.0
      %v8931 = vmax.f32 %v8899, 0.0
      %v8932 = vmax.f32 %v8900, 0.0
      %v8933 = vmax.f32 %v8901, 0.0
      %v8934 = vmax.f32 %v8902, 0.0
      %v8935 = vmax.f32 %v8903, 0.0
      %v8936 = vmax.f32 %v8904, 0.0
      %v8937 = vmax.f32 %v8905, 0.0
      %v8938 = vmax.f32 %v8906, 0.0
      %v8939 = vmax.f32 %v8907, 0.0
      %v8940 = vmax.f32 %v8908, 0.0
      %v8941 = vmax.f32 %v8909, 0.0
      %v8942 = vmax.f32 %v8910, 0.0
      %v8943 = vmax.f32 %v8911, 0.0
      %v8944 = vmax.f32 %v8912, 0.0
      %v8945 = vmax.f32 %v8913, 0.0
      %v8946 = vmax.f32 %v8914, 0.0
      %v8947 = vmax.f32 %v8915, 0.0
      %v8948 = vmax.f32 %v8916, 0.0
      %v8949 = vmax.f32 %v8917, 0.0
      %v8950 = vmax.f32 %v8918, 0.0
      %v8951 = vmax.f32 %v8919, 0.0
      %v8952 = vmax.f32 %v8920, 0.0
      %v8953 = vmax.f32 %v8921, 0.0
      %v8954 = vmax.f32 %v8922, 0.0
      %v8955 = vmax.f32 %v8923, 0.0
      %v8956 = vmax.f32 %v8924, 0.0
      %v8957 = vmax.f32 %v8925, 0.0
      %v8958 = vmax.f32 %v8926, 0.0
      %v8959 = vmax.f32 %v8927, 0.0
      %v8960 = vmax.f32 %v8928, 0.0
      %v8961 = vld [vmem:[%s3 + $0x5] sm:$0x1]
      %v8962 = vld [vmem:[%s3 + $0x6] sm:$0x1]
      %v8963 = vadd.f32 %v8929, %v8930
      %v8964 = vadd.f32 %v8963, %v8931
      %v8965 = vadd.f32 %v8964, %v8932
      %v8966 = vadd.f32 %v8965, %v8933
      %v8967 = vadd.f32 %v8966, %v8934
      %v8968 = vadd.f32 %v8967, %v8935
      %v8969 = vadd.f32 %v8968, %v8936
      %v8970 = vadd.f32 %v8969, %v8937
      %v8971 = vadd.f32 %v8970, %v8938
      %v8972 = vadd.f32 %v8971, %v8939
      %v8973 = vadd.f32 %v8972, %v8940
      %v8974 = vadd.f32 %v8973, %v8941
      %v8975 = vadd.f32 %v8974, %v8942
      %v8976 = vadd.f32 %v8975, %v8943
      %v8977 = vadd.f32 %v8976, %v8944
      %v8978 = vadd.f32 %v8977, %v8945
      %v8979 = vadd.f32 %v8978, %v8946
      %v8980 = vadd.f32 %v8979, %v8947
      %v8981 = vadd.f32 %v8980, %v8948
      %v8982 = vadd.f32 %v8981, %v8949
      %v8983 = vadd.f32 %v8982, %v8950
      %v8984 = vadd.f32 %v8983, %v8951
      %v8985 = vadd.f32 %v8984, %v8952
      %v8986 = vadd.f32 %v8985, %v8953
      %v8987 = vadd.f32 %v8986, %v8954
      %v8988 = vadd.f32 %v8987, %v8955
      %v8989 = vadd.f32 %v8988, %v8956
      %v8990 = vadd.f32 %v8989, %v8957
      %v8991 = vadd.f32 %v8990, %v8958
      %v8992 = vadd.f32 %v8991, %v8959
      %v8993 = vadd.f32 %v8992, %v8960
      %v8994 = vrot.slane %v8993, 4
      %v8995 = vadd.f32 %v8993, %v8994
      %v8996 = vrot.slane %v8995, 2
      %v8997 = vadd.f32 %v8995, %v8996
      %v8998 = vrot.slane %v8997, 1
      %v8999 = vadd.f32 %v8997, %v8998
      %v9000 = vmul.f32 %v8999, 0.00390625
      %v9001 = vmul.f32 %v9000, %v8961
      %v9002 = vadd.f32 %v9001, %v8962
      %vm9003 = vcmask 1040384
      %v9004 = vsel %vm9003, %v9002, 0.0
      %9005 = vadd.xlane.f32.xlu0 %v9004
      %v9006 = vpop.xlane.xlu0 %9005
      %vm9007 = vcmask 0
      %9008 = vst.msk [vmem:[%s249] sm:$0x1] %vm9007, %v9006
      %p9009 = scmp.lt.s32.totalorder %s17, 1
      %s9010 = scalar_select %p9009, %s17, 1
      %s9011 = scalar_lea.vmem %s6, %s9010
      // Predicated region
      $region45: #{densenet_icnn_forward.1} parent=43 // pred_check
        %p9012 = pneg %p166
      $region46: #{densenet_icnn_forward.1} parent=43 // pred_check_branch
        %9014 = sbr.rel (%p9012) target = $region48
      $region47: #{densenet_icnn_forward.1} parent=43 // pred_region
        _
      $region48: #{densenet_icnn_forward.1} parent=43 // pred_fallthru
        _
    $region44: #{densenet_icnn_forward.1} parent=5 // pred_fallthru
      _
    %p9015 = scmp.le.s32.totalorder 2, %s12
    // Predicated region
    $region49: #{densenet_icnn_forward.1} parent=5 // pred_check
      %p9016 = pneg %p9015
    $region50: #{densenet_icnn_forward.1} parent=5 // pred_check_branch
      %9018 = sbr.rel (%p9016) target = $region52
    $region51: #{densenet_icnn_forward.1} parent=5 // pred_region
      %s9019 = ssub.s32 %s12, 2
      // Predicated region
      $region53: #{densenet_icnn_forward.1} parent=51 // pred_check
        %p9020 = pneg %p172
      $region54: #{densenet_icnn_forward.1} parent=51 // pred_check_branch
        %9022 = sbr.rel (%p9020) target = $region56
      $region55: #{densenet_icnn_forward.1} parent=51 // pred_region
        %p9023 = scmp.lt.s32.totalorder %s18, 1
        %s9024 = scalar_select %p9023, %s18, 1
        %s9025 = scalar_lea.vmem %s6, %s9024
      $region56: #{densenet_icnn_forward.1} parent=51 // pred_fallthru
        _
    $region52: #{densenet_icnn_forward.1} parent=5 // pred_fallthru
      _
  $region6: #{densenet_icnn_forward.1} parent=0 // loop_footer
    %s16 = sadd.s32 1, %s12
  $region7: #{densenet_icnn_forward.1} parent=0 // loop_footer_branch
    %11 = sbr.rel target = $region3
  $region8: #{densenet_icnn_forward.1} parent=0 // loop_exit
    _

</llo_original>
